<compile_context>
chip_gen: v5e
topology: v5e:2x2
jax: 0.10.0
libtpu: 0.0.40
codegen_flags: <defaults>
</compile_context>

<pallas_src>
import numpy as np
import jax
import jax.numpy as jnp
from jax.experimental import pallas as pl
from jax.experimental.pallas import tpu as pltpu

# ---------------- configuration (scaled-down, consistent with the module) -----
BATCH = 2
IMG = 32            # power of two, multiple of PATCH
PATCH = 16
IN_CH = 3
CNN_MID = 32        # Conv2d(3, 32) -> Conv2d(32, 3)
EMBED_DIM = 64      # vit_small uses 384; scaled down
NUM_HEADS = 4       # vit_small uses 6
HEAD_DIM = EMBED_DIM // NUM_HEADS
DEPTH = 2           # vit_small uses 12
MLP_HIDDEN = 4 * EMBED_DIM
NUM_CLASSES = 2
NUM_PATCHES_SIDE = IMG // PATCH              # 2
NUM_PATCHES = NUM_PATCHES_SIDE ** 2          # 4
NUM_TOKENS = NUM_PATCHES + 1                 # 5
T_PAD = 8                                    # tokens padded to sublane multiple
BN_EPS = 1e-5
LN_EPS = 1e-6
PATCH_FEAT = PATCH * PATCH * IN_CH           # 768
ROW_FEAT = IMG * IN_CH                       # 96  (cols of the (N*H, W*C) layout)
NH_ROWS = BATCH * IMG                        # 64
N_PIX = BATCH * IMG * IMG                    # 2048

assert IMG & (IMG - 1) == 0 and IMG % PATCH == 0

VMEM_SPEC = pl.BlockSpec(memory_space=pltpu.MemorySpace.VMEM)
VMEM_LIMIT = 32 * 1024 * 1024


# ---------------- single fused kernel -------------------------------------------
def _fused_kernel(x_ref,
                  cw1_ref, g1_ref, bb1_ref,
                  cw2_ref, g2_ref, bb2_ref, sel2_ref, selT2_ref,
                  pe_w_ref, pe_b_ref, cls_ref, pos_ref,
                  ln1_g_ref, ln1_b_ref, qkv_w_ref, qkv_b_ref,
                  proj_w_ref, proj_b_ref, ln2_g_ref, ln2_b_ref,
                  fc1_w_ref, fc1_b_ref, fc2_w_ref, fc2_b_ref,
                  lnf_g_ref, lnf_b_ref, head_w_ref, head_b_ref,
                  out_ref,
                  y2_ref, patch_ref, tok_ref):
    f32 = jnp.float32
    bf16 = jnp.bfloat16

    # ================= CNN: conv3x3+BN+ReLU twice (banded GEMMs) ============
    # Activations live as (N*H, W*C): rows = (n, h), cols = (w, c), lane-dense.
    row = jax.lax.broadcasted_iota(jnp.int32, (NH_ROWS, 1), 0)
    hh = row & (IMG - 1)                         # h within each image
    mask_up = (hh >= 1).astype(f32)              # valid rows for the dy = -1 tap
    mask_dn = (hh <= IMG - 2).astype(f32)        # valid rows for the dy = +1 tap

    def rowshift(a, dy):
        # result[r, :] = a[r + dy, :], zero-filled / masked at image boundaries
        zero = jnp.zeros((1, a.shape[1]), a.dtype)
        if dy > 0:
            return jnp.concatenate([a[dy:, :], zero], axis=0) * mask_dn
        return jnp.concatenate([zero, a[:dy, :]], axis=0) * mask_up

    inv_n = 1.0 / float(N_PIX)

    def conv_bn_relu(xin, cw_ref, gamma, beta, sel, sel_t):
        # xin: (64, IMG*cin) f32; cw_ref: (3, IMG*cin, IMG*cout) banded bf16.
        # The horizontal (dx) taps + zero padding are baked into the banded
        # weight; only the vertical (dy) taps need row shifts + row masks.
        acc = jnp.dot(xin.astype(bf16), cw_ref[1], preferred_element_type=f32)
        acc += jnp.dot(rowshift(xin, -1).astype(bf16), cw_ref[0],
                       preferred_element_type=f32)
        acc += jnp.dot(rowshift(xin, 1).astype(bf16), cw_ref[2],
                       preferred_element_type=f32)
        # TODO(synk): training-mode BatchNorm (per-forward batch statistics);
        # eval-mode running stats are unavailable for synthetic params.  The
        # Conv2d bias is omitted because batch-stat BN cancels it exactly.
        colsum = jnp.sum(acc, axis=0, keepdims=True)
        colsq = jnp.sum(acc * acc, axis=0, keepdims=True)
        ch = jnp.dot(jnp.concatenate([colsum, colsq], axis=0), sel,
                     preferred_element_type=f32)                  # (2, cout)
        mean = ch[0:1, :] * inv_n
        var = jnp.maximum(ch[1:2, :] * inv_n - mean * mean, 0.0)
        scale_ch = gamma * jax.lax.rsqrt(var + BN_EPS)
        shift_ch = beta - mean * scale_ch
        aff = jnp.dot(jnp.concatenate([scale_ch, shift_ch], axis=0), sel_t,
                      preferred_element_type=f32)                 # (2, IMG*cout)
        return jnp.maximum(acc * aff[0:1, :] + aff[1:2, :], 0.0)

    # per-channel selection matrices for conv1 (cout = 32 is a power of two)
    j1 = jax.lax.broadcasted_iota(jnp.int32, (IMG * CNN_MID, CNN_MID), 0)
    c1 = jax.lax.broadcasted_iota(jnp.int32, (IMG * CNN_MID, CNN_MID), 1)
    sel1 = ((j1 & (CNN_MID - 1)) == c1).astype(f32)               # (1024, 32)
    j1t = jax.lax.broadcasted_iota(jnp.int32, (CNN_MID, IMG * CNN_MID), 1)
    c1t = jax.lax.broadcasted_iota(jnp.int32, (CNN_MID, IMG * CNN_MID), 0)
    sel1_t = ((j1t & (CNN_MID - 1)) == c1t).astype(f32)           # (32, 1024)

    x1 = conv_bn_relu(x_ref[...], cw1_ref, g1_ref[...], bb1_ref[...],
                      sel1, sel1_t)                               # (64, 1024)
    y2 = conv_bn_relu(x1, cw2_ref, g2_ref[...], bb2_ref[...],
                      sel2_ref[...], selT2_ref[...])              # (64, 96)
    y2_ref[...] = y2

    # ================= patchify (in-kernel, VMEM -> VMEM) ====================
    # patch row t = (n, ph, pw); feature columns ordered (py, px, c)
    pwid = PATCH * IN_CH                                          # 48
    for n in range(BATCH):
        for ph in range(NUM_PATCHES_SIDE):
            for pw in range(NUM_PATCHES_SIDE):
                t = n * NUM_PATCHES + ph * NUM_PATCHES_SIDE + pw
                base = n * IMG + ph * PATCH
                csrc = pw * pwid
                for py in range(PATCH):
                    patch_ref[t:t + 1, py * pwid:(py + 1) * pwid] = \
                        y2_ref[base + py:base + py + 1, csrc:csrc + pwid]

    # ================= patch embed + cls + pos into padded tokens ============
    pe = jnp.dot(patch_ref[...].astype(bf16), pe_w_ref[...],
                 preferred_element_type=f32) + pe_b_ref[...]      # (8, 64)
    for n in range(BATCH):
        r0 = n * T_PAD
        tok_ref[r0:r0 + 1, :] = cls_ref[...] + pos_ref[0:1, :]
        tok_ref[r0 + 1:r0 + 1 + NUM_PATCHES, :] = (
            pe[n * NUM_PATCHES:(n + 1) * NUM_PATCHES, :]
            + pos_ref[1:NUM_TOKENS, :])
        tok_ref[r0 + NUM_TOKENS:r0 + T_PAD, :] = jnp.zeros(
            (T_PAD - NUM_TOKENS, EMBED_DIM), f32)
    tok = tok_ref[...]                                            # (16, 64)

    # ================= transformer blocks =====================================
    NT = BATCH * T_PAD
    qi = jax.lax.broadcasted_iota(jnp.int32, (NT, NT), 0)
    ki = jax.lax.broadcasted_iota(jnp.int32, (NT, NT), 1)
    valid = jnp.logical_and((qi >> 3) == (ki >> 3),
                            (ki & (T_PAD - 1)) < NUM_TOKENS)
    attn_bias = jnp.where(valid, 0.0, -1e30).astype(f32)          # block-diag mask

    def layer_norm(v, g, b):
        mean = jnp.mean(v, axis=-1, keepdims=True)
        var = jnp.maximum(
            jnp.mean(v * v, axis=-1, keepdims=True) - mean * mean, 0.0)
        return (v - mean) * jax.lax.rsqrt(var + LN_EPS) * g + b

    def gelu(v):
        # TODO(synk): timm ViT uses exact erf-GELU; tanh approximation here.
        c = jnp.sqrt(2.0 / jnp.pi).astype(v.dtype)
        return 0.5 * v * (1.0 + jnp.tanh(c * (v + 0.044715 * v * v * v)))

    scale = HEAD_DIM ** -0.5
    for d in range(DEPTH):
        xn = layer_norm(tok, ln1_g_ref[d], ln1_b_ref[d])
        qkv = jnp.dot(xn.astype(bf16), qkv_w_ref[d],
                      preferred_element_type=f32) + qkv_b_ref[d]  # (16, 192)
        heads = []
        for hd in range(NUM_HEADS):
            q = qkv[:, hd * HEAD_DIM:(hd + 1) * HEAD_DIM]
            k = qkv[:, EMBED_DIM + hd * HEAD_DIM:
                    EMBED_DIM + (hd + 1) * HEAD_DIM]
            v = qkv[:, 2 * EMBED_DIM + hd * HEAD_DIM:
                    2 * EMBED_DIM + (hd + 1) * HEAD_DIM]
            s = jnp.dot(q, k.T, preferred_element_type=f32) * scale + attn_bias
            s = s - jnp.max(s, axis=-1, keepdims=True)
            p = jnp.exp(s)
            p = p / jnp.sum(p, axis=-1, keepdims=True)
            heads.append(jnp.dot(p, v, preferred_element_type=f32))
        attn = jnp.concatenate(heads, axis=-1)                    # (16, 64)
        tok = tok + jnp.dot(attn.astype(bf16), proj_w_ref[d],
                            preferred_element_type=f32) + proj_b_ref[d]
        xm = layer_norm(tok, ln2_g_ref[d], ln2_b_ref[d])
        h1 = gelu(jnp.dot(xm.astype(bf16), fc1_w_ref[d],
                          preferred_element_type=f32) + fc1_b_ref[d])
        tok = tok + jnp.dot(h1.astype(bf16), fc2_w_ref[d],
                            preferred_element_type=f32) + fc2_b_ref[d]

    # ================= final LN + classification head on cls tokens ==========
    xf = layer_norm(tok, lnf_g_ref[...], lnf_b_ref[...])
    cls_rows = jnp.concatenate(
        [xf[n * T_PAD:n * T_PAD + 1, :] for n in range(BATCH)], axis=0)
    logits = jnp.dot(cls_rows.astype(bf16), head_w_ref[...],
                     preferred_element_type=f32) + head_b_ref[...]
    out_ref[...] = logits.astype(out_ref.dtype)


# ---------------- forward wrapper (only the 24 KB NCHW->rowmajor glue in XLA) ---
def cnns_vit_forward(params, x_nchw):
    p = params
    assert x_nchw.shape == (BATCH, IN_CH, IMG, IMG)
    x = jnp.transpose(x_nchw, (0, 2, 3, 1)).astype(jnp.float32)   # NCHW -> NHWC
    xg = x.reshape(NH_ROWS, ROW_FEAT)                             # (N*H, W*C)
    return pl.pallas_call(
        _fused_kernel,
        out_shape=jax.ShapeDtypeStruct((BATCH, NUM_CLASSES), jnp.float32),
        in_specs=[VMEM_SPEC] * 29,
        out_specs=VMEM_SPEC,
        scratch_shapes=[
            pltpu.VMEM((NH_ROWS, ROW_FEAT), jnp.float32),               # y2
            pltpu.VMEM((BATCH * NUM_PATCHES, PATCH_FEAT), jnp.float32),  # patches
            pltpu.VMEM((BATCH * T_PAD, EMBED_DIM), jnp.float32),        # tokens
        ],
        compiler_params=pltpu.CompilerParams(vmem_limit_bytes=VMEM_LIMIT),
    )(xg,
      p["conv1_m"], p["bn1_g"], p["bn1_b"],
      p["conv2_m"], p["bn2_g"], p["bn2_b"], p["sel2"], p["selT2"],
      p["pe_w"], p["pe_b"], p["cls"], p["pos"],
      p["ln1_g"], p["ln1_b"], p["qkv_w"], p["qkv_b"],
      p["proj_w"], p["proj_b"], p["ln2_g"], p["ln2_b"],
      p["fc1_w"], p["fc1_b"], p["fc2_w"], p["fc2_b"],
      p["lnf_g"], p["lnf_b"], p["head_w"], p["head_b"])


# ---------------- parameter construction (deterministic, synthetic) -------------
def _banded_conv_matrix(k, cin, cout):
    """Expand a 3x3 conv kernel into 3 banded (IMG*cin, IMG*cout) matrices.

    k: numpy (3, 3, cin, cout) indexed [dy+1, dx+1, cin, cout]
       (== torch Conv2d weight (cout, cin, kh, kw) transposed to (kh, kw, cin, cout)).
    M[dy][w*cin+ci, w2*cout+co] = k[dy+1, (w-w2)+1, ci, co] for |w-w2| <= 1;
    horizontal zero padding is encoded by the missing band entries.
    """
    m = np.zeros((3, IMG, cin, IMG, cout), np.float32)
    for dyi in range(3):
        for dxi in range(3):
            dx = dxi - 1
            for w2 in range(IMG):
                w = w2 + dx
                if 0 <= w < IMG:
                    m[dyi, w, :, w2, :] = k[dyi, dxi]
    return jnp.asarray(m.reshape(3, IMG * cin, IMG * cout), jnp.bfloat16)


def _channel_select(cout):
    """(IMG*cout, cout) / (cout, IMG*cout) per-channel selection matrices."""
    eye = np.eye(cout, dtype=np.float32)
    sel = np.tile(eye, (IMG, 1))
    return jnp.asarray(sel), jnp.asarray(np.ascontiguousarray(sel.T))


def init_params(key):
    # TODO(synk): pretrained timm weights cannot be loaded here; synthetic init.
    kit = iter(jax.random.split(key, 24))

    def rnd(shape, s):
        return jax.random.normal(next(kit), shape, jnp.float32) * s

    bf = jnp.bfloat16
    f32 = jnp.float32

    k1 = np.asarray(rnd((3, 3, IN_CH, CNN_MID), 0.1))
    k2 = np.asarray(rnd((3, 3, CNN_MID, IN_CH), 0.1))
    sel2, selT2 = _channel_select(IN_CH)

    p = {
        # CNN: banded conv matrices (bf16 MXU operands), BN affine in f32
        "conv1_m": _banded_conv_matrix(k1, IN_CH, CNN_MID),
        "bn1_g": jnp.ones((1, CNN_MID), f32),
        "bn1_b": jnp.zeros((1, CNN_MID), f32),
        "conv2_m": _banded_conv_matrix(k2, CNN_MID, IN_CH),
        "bn2_g": jnp.ones((1, IN_CH), f32),
        "bn2_b": jnp.zeros((1, IN_CH), f32),
        "sel2": sel2,
        "selT2": selT2,
        # ViT: MXU weights in bf16 (f32 accumulation), everything else f32.
        # pe_w rows ordered (py, px, c) to match the in-kernel patchify.
        "pe_w": rnd((PATCH_FEAT, EMBED_DIM), 0.02).astype(bf),
        "pe_b": jnp.zeros((1, EMBED_DIM), f32),
        "cls": rnd((1, EMBED_DIM), 0.02),
        "pos": rnd((NUM_TOKENS, EMBED_DIM), 0.02),
        "ln1_g": jnp.ones((DEPTH, 1, EMBED_DIM), f32),
        "ln1_b": jnp.zeros((DEPTH, 1, EMBED_DIM), f32),
        # qkv columns packed [q | k | v], head-major within each
        "qkv_w": jnp.stack([rnd((EMBED_DIM, 3 * EMBED_DIM), 0.02)
                            for _ in range(DEPTH)]).astype(bf),
        "qkv_b": jnp.zeros((DEPTH, 1, 3 * EMBED_DIM), f32),
        "proj_w": jnp.stack([rnd((EMBED_DIM, EMBED_DIM), 0.02)
                             for _ in range(DEPTH)]).astype(bf),
        "proj_b": jnp.zeros((DEPTH, 1, EMBED_DIM), f32),
        "ln2_g": jnp.ones((DEPTH, 1, EMBED_DIM), f32),
        "ln2_b": jnp.zeros((DEPTH, 1, EMBED_DIM), f32),
        "fc1_w": jnp.stack([rnd((EMBED_DIM, MLP_HIDDEN), 0.02)
                            for _ in range(DEPTH)]).astype(bf),
        "fc1_b": jnp.zeros((DEPTH, 1, MLP_HIDDEN), f32),
        "fc2_w": jnp.stack([rnd((MLP_HIDDEN, EMBED_DIM), 0.02)
                            for _ in range(DEPTH)]).astype(bf),
        "fc2_b": jnp.zeros((DEPTH, 1, EMBED_DIM), f32),
        "lnf_g": jnp.ones((1, EMBED_DIM), f32),
        "lnf_b": jnp.zeros((1, EMBED_DIM), f32),
        "head_w": rnd((EMBED_DIM, NUM_CLASSES), 0.02).astype(bf),
        "head_b": jnp.zeros((1, NUM_CLASSES), f32),
    }
    return p


# ---------------- main -----------------------------------------------------------
if __name__ == "__main__":
    root = jax.random.PRNGKey(0)
    pkey, xkey = jax.random.split(root)
    params = init_params(pkey)
    # input in PyTorch NCHW convention, as the reference module expects
    x = jax.random.normal(xkey, (BATCH, IN_CH, IMG, IMG), jnp.float32)

    fwd = jax.jit(cnns_vit_forward)
    logits = fwd(params, x)
    jax.block_until_ready(logits)
    assert logits.shape == (BATCH, NUM_CLASSES) and logits.dtype == jnp.float32
    assert bool(jnp.all(jnp.isfinite(logits)))
    print("KERNEL_OK")
</pallas_src>

<mosaic_0001>
module attributes {stable_mosaic.version = 11 : i64} {
  func.func @_fused_kernel(%arg0: memref<64x96xf32, #tpu.memory_space<vmem>>, %arg1: memref<3x96x1024xbf16, #tpu.memory_space<vmem>>, %arg2: memref<1x32xf32, #tpu.memory_space<vmem>>, %arg3: memref<1x32xf32, #tpu.memory_space<vmem>>, %arg4: memref<3x1024x96xbf16, #tpu.memory_space<vmem>>, %arg5: memref<1x3xf32, #tpu.memory_space<vmem>>, %arg6: memref<1x3xf32, #tpu.memory_space<vmem>>, %arg7: memref<96x3xf32, #tpu.memory_space<vmem>>, %arg8: memref<3x96xf32, #tpu.memory_space<vmem>>, %arg9: memref<768x64xbf16, #tpu.memory_space<vmem>>, %arg10: memref<1x64xf32, #tpu.memory_space<vmem>>, %arg11: memref<1x64xf32, #tpu.memory_space<vmem>>, %arg12: memref<5x64xf32, #tpu.memory_space<vmem>>, %arg13: memref<2x1x64xf32, #tpu.memory_space<vmem>>, %arg14: memref<2x1x64xf32, #tpu.memory_space<vmem>>, %arg15: memref<2x64x192xbf16, #tpu.memory_space<vmem>>, %arg16: memref<2x1x192xf32, #tpu.memory_space<vmem>>, %arg17: memref<2x64x64xbf16, #tpu.memory_space<vmem>>, %arg18: memref<2x1x64xf32, #tpu.memory_space<vmem>>, %arg19: memref<2x1x64xf32, #tpu.memory_space<vmem>>, %arg20: memref<2x1x64xf32, #tpu.memory_space<vmem>>, %arg21: memref<2x64x256xbf16, #tpu.memory_space<vmem>>, %arg22: memref<2x1x256xf32, #tpu.memory_space<vmem>>, %arg23: memref<2x256x64xbf16, #tpu.memory_space<vmem>>, %arg24: memref<2x1x64xf32, #tpu.memory_space<vmem>>, %arg25: memref<1x64xf32, #tpu.memory_space<vmem>>, %arg26: memref<1x64xf32, #tpu.memory_space<vmem>>, %arg27: memref<64x2xbf16, #tpu.memory_space<vmem>>, %arg28: memref<1x2xf32, #tpu.memory_space<vmem>>, %arg29: memref<2x2xf32, #tpu.memory_space<vmem>>, %arg30: memref<64x96xf32, #tpu.memory_space<vmem>>, %arg31: memref<8x768xf32, #tpu.memory_space<vmem>>, %arg32: memref<16x64xf32, #tpu.memory_space<vmem>>) attributes {dimension_semantics = [], scalar_prefetch = 0 : i64, scratch_operands = 3 : i64, tpu.core_type = #tpu.core_type<tc>} {
    %0 = tpu.iota {dimensions = array<i32: 0>} : vector<64x1xi32>
    %c31_i32 = arith.constant 31 : i32
    %1 = vector.broadcast %c31_i32 : i32 to vector<64x1xi32>
    %2 = arith.andi %0, %1 : vector<64x1xi32>
    %c1_i32 = arith.constant 1 : i32
    %3 = vector.broadcast %c1_i32 : i32 to vector<64x1xi32>
    %4 = arith.cmpi sge, %2, %3 : vector<64x1xi32>
    %5 = arith.extui %4 : vector<64x1xi1> to vector<64x1xi32>
    %6 = arith.sitofp %5 : vector<64x1xi32> to vector<64x1xf32>
    %c30_i32 = arith.constant 30 : i32
    %7 = vector.broadcast %c30_i32 : i32 to vector<64x1xi32>
    %8 = arith.cmpi sle, %2, %7 : vector<64x1xi32>
    %9 = arith.extui %8 : vector<64x1xi1> to vector<64x1xi32>
    %10 = arith.sitofp %9 : vector<64x1xi32> to vector<64x1xf32>
    %11 = tpu.iota {dimensions = array<i32: 0>} : vector<1024x32xi32>
    %12 = tpu.iota {dimensions = array<i32: 1>} : vector<1024x32xi32>
    %c31_i32_0 = arith.constant 31 : i32
    %13 = vector.broadcast %c31_i32_0 : i32 to vector<1024x32xi32>
    %14 = arith.andi %11, %13 : vector<1024x32xi32>
    %15 = arith.cmpi eq, %14, %12 : vector<1024x32xi32>
    %16 = arith.extui %15 : vector<1024x32xi1> to vector<1024x32xi32>
    %17 = arith.sitofp %16 : vector<1024x32xi32> to vector<1024x32xf32>
    %18 = tpu.iota {dimensions = array<i32: 1>} : vector<32x1024xi32>
    %19 = tpu.iota {dimensions = array<i32: 0>} : vector<32x1024xi32>
    %c31_i32_1 = arith.constant 31 : i32
    %20 = vector.broadcast %c31_i32_1 : i32 to vector<32x1024xi32>
    %21 = arith.andi %18, %20 : vector<32x1024xi32>
    %22 = arith.cmpi eq, %21, %19 : vector<32x1024xi32>
    %23 = arith.extui %22 : vector<32x1024xi1> to vector<32x1024xi32>
    %24 = arith.sitofp %23 : vector<32x1024xi32> to vector<32x1024xf32>
    %c0 = arith.constant 0 : index
    %c0_2 = arith.constant 0 : index
    %25 = vector.load %arg0[%c0, %c0_2] : memref<64x96xf32, #tpu.memory_space<vmem>>, vector<64x96xf32>
    %c0_3 = arith.constant 0 : index
    %c0_4 = arith.constant 0 : index
    %26 = vector.load %arg2[%c0_3, %c0_4] : memref<1x32xf32, #tpu.memory_space<vmem>>, vector<1x32xf32>
    %c0_5 = arith.constant 0 : index
    %c0_6 = arith.constant 0 : index
    %27 = vector.load %arg3[%c0_5, %c0_6] : memref<1x32xf32, #tpu.memory_space<vmem>>, vector<1x32xf32>
    %28 = arith.truncf %25 : vector<64x96xf32> to vector<64x96xbf16>
    %c1 = arith.constant 1 : index
    %c0_7 = arith.constant 0 : index
    %c0_8 = arith.constant 0 : index
    %29 = vector.load %arg1[%c1, %c0_7, %c0_8] : memref<3x96x1024xbf16, #tpu.memory_space<vmem>>, vector<1x96x1024xbf16>
    %30 = vector.shape_cast %29 : vector<1x96x1024xbf16> to vector<96x1024xbf16>
    %cst = arith.constant dense<0.000000e+00> : vector<64x1024xf32>
    %31 = tpu.matmul %28, %30, %cst {dimension_numbers = #tpu.dot_dimension_numbers<[1], [0], [0], [1], [0, 0, 1, 1], [], []>} : vector<64x96xbf16>, vector<96x1024xbf16>, vector<64x1024xf32> -> vector<64x1024xf32>
    %cst_9 = arith.constant 0.000000e+00 : f32
    %32 = vector.broadcast %cst_9 : f32 to vector<1x96xf32>
    %33 = vector.extract_strided_slice %25 {offsets = [0, 0], sizes = [63, 96], strides = [1, 1]} : vector<64x96xf32> to vector<63x96xf32>
    %34 = tpu.concatenate %32, %33 in 0 : vector<1x96xf32>, vector<63x96xf32> -> vector<64x96xf32>
    %35 = vector.broadcast %6 : vector<64x1xf32> to vector<64x96xf32>
    %36 = arith.mulf %34, %35 : vector<64x96xf32>
    %37 = arith.truncf %36 : vector<64x96xf32> to vector<64x96xbf16>
    %c0_10 = arith.constant 0 : index
    %c0_11 = arith.constant 0 : index
    %c0_12 = arith.constant 0 : index
    %38 = vector.load %arg1[%c0_10, %c0_11, %c0_12] : memref<3x96x1024xbf16, #tpu.memory_space<vmem>>, vector<1x96x1024xbf16>
    %39 = vector.shape_cast %38 : vector<1x96x1024xbf16> to vector<96x1024xbf16>
    %cst_13 = arith.constant dense<0.000000e+00> : vector<64x1024xf32>
    %40 = tpu.matmul %37, %39, %cst_13 {dimension_numbers = #tpu.dot_dimension_numbers<[1], [0], [0], [1], [0, 0, 1, 1], [], []>} : vector<64x96xbf16>, vector<96x1024xbf16>, vector<64x1024xf32> -> vector<64x1024xf32>
    %41 = arith.addf %31, %40 : vector<64x1024xf32>
    %cst_14 = arith.constant 0.000000e+00 : f32
    %42 = vector.broadcast %cst_14 : f32 to vector<1x96xf32>
    %43 = vector.extract_strided_slice %25 {offsets = [1, 0], sizes = [63, 96], strides = [1, 1]} : vector<64x96xf32> to vector<63x96xf32>
    %44 = tpu.concatenate %43, %42 in 0 : vector<63x96xf32>, vector<1x96xf32> -> vector<64x96xf32>
    %45 = vector.broadcast %10 : vector<64x1xf32> to vector<64x96xf32>
    %46 = arith.mulf %44, %45 : vector<64x96xf32>
    %47 = arith.truncf %46 : vector<64x96xf32> to vector<64x96xbf16>
    %c2 = arith.constant 2 : index
    %c0_15 = arith.constant 0 : index
    %c0_16 = arith.constant 0 : index
    %48 = vector.load %arg1[%c2, %c0_15, %c0_16] : memref<3x96x1024xbf16, #tpu.memory_space<vmem>>, vector<1x96x1024xbf16>
    %49 = vector.shape_cast %48 : vector<1x96x1024xbf16> to vector<96x1024xbf16>
    %cst_17 = arith.constant dense<0.000000e+00> : vector<64x1024xf32>
    %50 = tpu.matmul %47, %49, %cst_17 {dimension_numbers = #tpu.dot_dimension_numbers<[1], [0], [0], [1], [0, 0, 1, 1], [], []>} : vector<64x96xbf16>, vector<96x1024xbf16>, vector<64x1024xf32> -> vector<64x1024xf32>
    %51 = arith.addf %41, %50 : vector<64x1024xf32>
    %cst_18 = arith.constant dense<0.000000e+00> : vector<1024xf32>
    %52 = vector.multi_reduction <add>, %51, %cst_18 [0] : vector<64x1024xf32> to vector<1024xf32>
    %53 = vector.shape_cast %52 : vector<1024xf32> to vector<1x1024xf32>
    %54 = arith.mulf %51, %51 : vector<64x1024xf32>
    %cst_19 = arith.constant dense<0.000000e+00> : vector<1024xf32>
    %55 = vector.multi_reduction <add>, %54, %cst_19 [0] : vector<64x1024xf32> to vector<1024xf32>
    %56 = vector.shape_cast %55 : vector<1024xf32> to vector<1x1024xf32>
    %57 = tpu.concatenate %53, %56 in 0 : vector<1x1024xf32>, vector<1x1024xf32> -> vector<2x1024xf32>
    %cst_20 = arith.constant dense<0.000000e+00> : vector<2x32xf32>
    %58 = tpu.matmul %57, %17, %cst_20 {dimension_numbers = #tpu.dot_dimension_numbers<[1], [0], [0], [1], [0, 0, 1, 1], [], []>} : vector<2x1024xf32>, vector<1024x32xf32>, vector<2x32xf32> -> vector<2x32xf32>
    %59 = vector.extract_strided_slice %58 {offsets = [0, 0], sizes = [1, 32], strides = [1, 1]} : vector<2x32xf32> to vector<1x32xf32>
    %cst_21 = arith.constant 4.8828125E-4 : f32
    %60 = vector.broadcast %cst_21 : f32 to vector<1x32xf32>
    %61 = arith.mulf %59, %60 : vector<1x32xf32>
    %62 = vector.extract_strided_slice %58 {offsets = [1, 0], sizes = [1, 32], strides = [1, 1]} : vector<2x32xf32> to vector<1x32xf32>
    %cst_22 = arith.constant 4.8828125E-4 : f32
    %63 = vector.broadcast %cst_22 : f32 to vector<1x32xf32>
    %64 = arith.mulf %62, %63 : vector<1x32xf32>
    %65 = arith.mulf %61, %61 : vector<1x32xf32>
    %66 = arith.subf %64, %65 : vector<1x32xf32>
    %cst_23 = arith.constant 0.000000e+00 : f32
    %67 = vector.broadcast %cst_23 : f32 to vector<1x32xf32>
    %68 = arith.maximumf %66, %67 : vector<1x32xf32>
    %cst_24 = arith.constant 9.99999974E-6 : f32
    %69 = vector.broadcast %cst_24 : f32 to vector<1x32xf32>
    %70 = arith.addf %68, %69 : vector<1x32xf32>
    %71 = math.rsqrt %70 : vector<1x32xf32>
    %72 = arith.mulf %26, %71 : vector<1x32xf32>
    %73 = arith.mulf %61, %72 : vector<1x32xf32>
    %74 = arith.subf %27, %73 : vector<1x32xf32>
    %75 = tpu.concatenate %72, %74 in 0 : vector<1x32xf32>, vector<1x32xf32> -> vector<2x32xf32>
    %cst_25 = arith.constant dense<0.000000e+00> : vector<2x1024xf32>
    %76 = tpu.matmul %75, %24, %cst_25 {dimension_numbers = #tpu.dot_dimension_numbers<[1], [0], [0], [1], [0, 0, 1, 1], [], []>} : vector<2x32xf32>, vector<32x1024xf32>, vector<2x1024xf32> -> vector<2x1024xf32>
    %77 = vector.extract_strided_slice %76 {offsets = [0, 0], sizes = [1, 1024], strides = [1, 1]} : vector<2x1024xf32> to vector<1x1024xf32>
    %78 = vector.broadcast %77 : vector<1x1024xf32> to vector<64x1024xf32>
    %79 = arith.mulf %51, %78 : vector<64x1024xf32>
    %80 = vector.extract_strided_slice %76 {offsets = [1, 0], sizes = [1, 1024], strides = [1, 1]} : vector<2x1024xf32> to vector<1x1024xf32>
    %81 = vector.broadcast %80 : vector<1x1024xf32> to vector<64x1024xf32>
    %82 = arith.addf %79, %81 : vector<64x1024xf32>
    %cst_26 = arith.constant 0.000000e+00 : f32
    %83 = vector.broadcast %cst_26 : f32 to vector<64x1024xf32>
    %84 = arith.maximumf %82, %83 : vector<64x1024xf32>
    %c0_27 = arith.constant 0 : index
    %c0_28 = arith.constant 0 : index
    %85 = vector.load %arg5[%c0_27, %c0_28] : memref<1x3xf32, #tpu.memory_space<vmem>>, vector<1x3xf32>
    %c0_29 = arith.constant 0 : index
    %c0_30 = arith.constant 0 : index
    %86 = vector.load %arg6[%c0_29, %c0_30] : memref<1x3xf32, #tpu.memory_space<vmem>>, vector<1x3xf32>
    %c0_31 = arith.constant 0 : index
    %c0_32 = arith.constant 0 : index
    %87 = vector.load %arg7[%c0_31, %c0_32] : memref<96x3xf32, #tpu.memory_space<vmem>>, vector<96x3xf32>
    %c0_33 = arith.constant 0 : index
    %c0_34 = arith.constant 0 : index
    %88 = vector.load %arg8[%c0_33, %c0_34] : memref<3x96xf32, #tpu.memory_space<vmem>>, vector<3x96xf32>
    %89 = arith.truncf %84 : vector<64x1024xf32> to vector<64x1024xbf16>
    %c1_35 = arith.constant 1 : index
    %c0_36 = arith.constant 0 : index
    %c0_37 = arith.constant 0 : index
    %90 = vector.load %arg4[%c1_35, %c0_36, %c0_37] : memref<3x1024x96xbf16, #tpu.memory_space<vmem>>, vector<1x1024x96xbf16>
    %91 = vector.shape_cast %90 : vector<1x1024x96xbf16> to vector<1024x96xbf16>
    %cst_38 = arith.constant dense<0.000000e+00> : vector<64x96xf32>
    %92 = tpu.matmul %89, %91, %cst_38 {dimension_numbers = #tpu.dot_dimension_numbers<[1], [0], [0], [1], [0, 0, 1, 1], [], []>} : vector<64x1024xbf16>, vector<1024x96xbf16>, vector<64x96xf32> -> vector<64x96xf32>
    %cst_39 = arith.constant 0.000000e+00 : f32
    %93 = vector.broadcast %cst_39 : f32 to vector<1x1024xf32>
    %94 = vector.extract_strided_slice %84 {offsets = [0, 0], sizes = [63, 1024], strides = [1, 1]} : vector<64x1024xf32> to vector<63x1024xf32>
    %95 = tpu.concatenate %93, %94 in 0 : vector<1x1024xf32>, vector<63x1024xf32> -> vector<64x1024xf32>
    %96 = vector.broadcast %6 : vector<64x1xf32> to vector<64x1024xf32>
    %97 = arith.mulf %95, %96 : vector<64x1024xf32>
    %98 = arith.truncf %97 : vector<64x1024xf32> to vector<64x1024xbf16>
    %c0_40 = arith.constant 0 : index
    %c0_41 = arith.constant 0 : index
    %c0_42 = arith.constant 0 : index
    %99 = vector.load %arg4[%c0_40, %c0_41, %c0_42] : memref<3x1024x96xbf16, #tpu.memory_space<vmem>>, vector<1x1024x96xbf16>
    %100 = vector.shape_cast %99 : vector<1x1024x96xbf16> to vector<1024x96xbf16>
    %cst_43 = arith.constant dense<0.000000e+00> : vector<64x96xf32>
    %101 = tpu.matmul %98, %100, %cst_43 {dimension_numbers = #tpu.dot_dimension_numbers<[1], [0], [0], [1], [0, 0, 1, 1], [], []>} : vector<64x1024xbf16>, vector<1024x96xbf16>, vector<64x96xf32> -> vector<64x96xf32>
    %102 = arith.addf %92, %101 : vector<64x96xf32>
    %cst_44 = arith.constant 0.000000e+00 : f32
    %103 = vector.broadcast %cst_44 : f32 to vector<1x1024xf32>
    %104 = vector.extract_strided_slice %84 {offsets = [1, 0], sizes = [63, 1024], strides = [1, 1]} : vector<64x1024xf32> to vector<63x1024xf32>
    %105 = tpu.concatenate %104, %103 in 0 : vector<63x1024xf32>, vector<1x1024xf32> -> vector<64x1024xf32>
    %106 = vector.broadcast %10 : vector<64x1xf32> to vector<64x1024xf32>
    %107 = arith.mulf %105, %106 : vector<64x1024xf32>
    %108 = arith.truncf %107 : vector<64x1024xf32> to vector<64x1024xbf16>
    %c2_45 = arith.constant 2 : index
    %c0_46 = arith.constant 0 : index
    %c0_47 = arith.constant 0 : index
    %109 = vector.load %arg4[%c2_45, %c0_46, %c0_47] : memref<3x1024x96xbf16, #tpu.memory_space<vmem>>, vector<1x1024x96xbf16>
    %110 = vector.shape_cast %109 : vector<1x1024x96xbf16> to vector<1024x96xbf16>
    %cst_48 = arith.constant dense<0.000000e+00> : vector<64x96xf32>
    %111 = tpu.matmul %108, %110, %cst_48 {dimension_numbers = #tpu.dot_dimension_numbers<[1], [0], [0], [1], [0, 0, 1, 1], [], []>} : vector<64x1024xbf16>, vector<1024x96xbf16>, vector<64x96xf32> -> vector<64x96xf32>
    %112 = arith.addf %102, %111 : vector<64x96xf32>
    %cst_49 = arith.constant dense<0.000000e+00> : vector<96xf32>
    %113 = vector.multi_reduction <add>, %112, %cst_49 [0] : vector<64x96xf32> to vector<96xf32>
    %114 = vector.shape_cast %113 : vector<96xf32> to vector<1x96xf32>
    %115 = arith.mulf %112, %112 : vector<64x96xf32>
    %cst_50 = arith.constant dense<0.000000e+00> : vector<96xf32>
    %116 = vector.multi_reduction <add>, %115, %cst_50 [0] : vector<64x96xf32> to vector<96xf32>
    %117 = vector.shape_cast %116 : vector<96xf32> to vector<1x96xf32>
    %118 = tpu.concatenate %114, %117 in 0 : vector<1x96xf32>, vector<1x96xf32> -> vector<2x96xf32>
    %cst_51 = arith.constant dense<0.000000e+00> : vector<2x3xf32>
    %119 = tpu.matmul %118, %87, %cst_51 {dimension_numbers = #tpu.dot_dimension_numbers<[1], [0], [0], [1], [0, 0, 1, 1], [], []>} : vector<2x96xf32>, vector<96x3xf32>, vector<2x3xf32> -> vector<2x3xf32>
    %120 = vector.extract_strided_slice %119 {offsets = [0, 0], sizes = [1, 3], strides = [1, 1]} : vector<2x3xf32> to vector<1x3xf32>
    %cst_52 = arith.constant 4.8828125E-4 : f32
    %121 = vector.broadcast %cst_52 : f32 to vector<1x3xf32>
    %122 = arith.mulf %120, %121 : vector<1x3xf32>
    %123 = vector.extract_strided_slice %119 {offsets = [1, 0], sizes = [1, 3], strides = [1, 1]} : vector<2x3xf32> to vector<1x3xf32>
    %cst_53 = arith.constant 4.8828125E-4 : f32
    %124 = vector.broadcast %cst_53 : f32 to vector<1x3xf32>
    %125 = arith.mulf %123, %124 : vector<1x3xf32>
    %126 = arith.mulf %122, %122 : vector<1x3xf32>
    %127 = arith.subf %125, %126 : vector<1x3xf32>
    %cst_54 = arith.constant 0.000000e+00 : f32
    %128 = vector.broadcast %cst_54 : f32 to vector<1x3xf32>
    %129 = arith.maximumf %127, %128 : vector<1x3xf32>
    %cst_55 = arith.constant 9.99999974E-6 : f32
    %130 = vector.broadcast %cst_55 : f32 to vector<1x3xf32>
    %131 = arith.addf %129, %130 : vector<1x3xf32>
    %132 = math.rsqrt %131 : vector<1x3xf32>
    %133 = arith.mulf %85, %132 : vector<1x3xf32>
    %134 = arith.mulf %122, %133 : vector<1x3xf32>
    %135 = arith.subf %86, %134 : vector<1x3xf32>
    %136 = tpu.concatenate %133, %135 in 0 : vector<1x3xf32>, vector<1x3xf32> -> vector<2x3xf32>
    %cst_56 = arith.constant dense<0.000000e+00> : vector<2x96xf32>
    %137 = tpu.matmul %136, %88, %cst_56 {dimension_numbers = #tpu.dot_dimension_numbers<[1], [0], [0], [1], [0, 0, 1, 1], [], []>} : vector<2x3xf32>, vector<3x96xf32>, vector<2x96xf32> -> vector<2x96xf32>
    %138 = vector.extract_strided_slice %137 {offsets = [0, 0], sizes = [1, 96], strides = [1, 1]} : vector<2x96xf32> to vector<1x96xf32>
    %139 = vector.broadcast %138 : vector<1x96xf32> to vector<64x96xf32>
    %140 = arith.mulf %112, %139 : vector<64x96xf32>
    %141 = vector.extract_strided_slice %137 {offsets = [1, 0], sizes = [1, 96], strides = [1, 1]} : vector<2x96xf32> to vector<1x96xf32>
    %142 = vector.broadcast %141 : vector<1x96xf32> to vector<64x96xf32>
    %143 = arith.addf %140, %142 : vector<64x96xf32>
    %cst_57 = arith.constant 0.000000e+00 : f32
    %144 = vector.broadcast %cst_57 : f32 to vector<64x96xf32>
    %145 = arith.maximumf %143, %144 : vector<64x96xf32>
    %c0_58 = arith.constant 0 : index
    %c0_59 = arith.constant 0 : index
    %146 = vector.load %arg30[%c0_58, %c0_59] : memref<64x96xf32, #tpu.memory_space<vmem>>, vector<64x96xf32>
    tpu.vector_store %arg30[%c0_58, %c0_59], %145 {strides = array<i32>} : memref<64x96xf32, #tpu.memory_space<vmem>>, vector<64x96xf32>,
    %c0_60 = arith.constant 0 : index
    %c0_61 = arith.constant 0 : index
    %147 = vector.load %arg30[%c0_60, %c0_61] : memref<64x96xf32, #tpu.memory_space<vmem>>, vector<1x48xf32>
    %c0_62 = arith.constant 0 : index
    %c0_63 = arith.constant 0 : index
    %148 = vector.load %arg31[%c0_62, %c0_63] : memref<8x768xf32, #tpu.memory_space<vmem>>, vector<1x48xf32>
    tpu.vector_store %arg31[%c0_62, %c0_63], %147 {strides = array<i32>} : memref<8x768xf32, #tpu.memory_space<vmem>>, vector<1x48xf32>,
    %c1_64 = arith.constant 1 : index
    %c0_65 = arith.constant 0 : index
    %149 = vector.load %arg30[%c1_64, %c0_65] : memref<64x96xf32, #tpu.memory_space<vmem>>, vector<1x48xf32>
    %c0_66 = arith.constant 0 : index
    %c48 = arith.constant 48 : index
    %150 = vector.load %arg31[%c0_66, %c48] : memref<8x768xf32, #tpu.memory_space<vmem>>, vector<1x48xf32>
    tpu.vector_store %arg31[%c0_66, %c48], %149 {strides = array<i32>} : memref<8x768xf32, #tpu.memory_space<vmem>>, vector<1x48xf32>,
    %c2_67 = arith.constant 2 : index
    %c0_68 = arith.constant 0 : index
    %151 = vector.load %arg30[%c2_67, %c0_68] : memref<64x96xf32, #tpu.memory_space<vmem>>, vector<1x48xf32>
    %c0_69 = arith.constant 0 : index
    %c96 = arith.constant 96 : index
    %152 = vector.load %arg31[%c0_69, %c96] : memref<8x768xf32, #tpu.memory_space<vmem>>, vector<1x48xf32>
    tpu.vector_store %arg31[%c0_69, %c96], %151 {strides = array<i32>} : memref<8x768xf32, #tpu.memory_space<vmem>>, vector<1x48xf32>,
    %c3 = arith.constant 3 : index
    %c0_70 = arith.constant 0 : index
    %153 = vector.load %arg30[%c3, %c0_70] : memref<64x96xf32, #tpu.memory_space<vmem>>, vector<1x48xf32>
    %c0_71 = arith.constant 0 : index
    %c144 = arith.constant 144 : index
    %154 = vector.load %arg31[%c0_71, %c144] : memref<8x768xf32, #tpu.memory_space<vmem>>, vector<1x48xf32>
    tpu.vector_store %arg31[%c0_71, %c144], %153 {strides = array<i32>} : memref<8x768xf32, #tpu.memory_space<vmem>>, vector<1x48xf32>,
    %c4 = arith.constant 4 : index
    %c0_72 = arith.constant 0 : index
    %155 = vector.load %arg30[%c4, %c0_72] : memref<64x96xf32, #tpu.memory_space<vmem>>, vector<1x48xf32>
    %c0_73 = arith.constant 0 : index
    %c192 = arith.constant 192 : index
    %156 = vector.load %arg31[%c0_73, %c192] : memref<8x768xf32, #tpu.memory_space<vmem>>, vector<1x48xf32>
    tpu.vector_store %arg31[%c0_73, %c192], %155 {strides = array<i32>} : memref<8x768xf32, #tpu.memory_space<vmem>>, vector<1x48xf32>,
    %c5 = arith.constant 5 : index
    %c0_74 = arith.constant 0 : index
    %157 = vector.load %arg30[%c5, %c0_74] : memref<64x96xf32, #tpu.memory_space<vmem>>, vector<1x48xf32>
    %c0_75 = arith.constant 0 : index
    %c240 = arith.constant 240 : index
    %158 = vector.load %arg31[%c0_75, %c240] : memref<8x768xf32, #tpu.memory_space<vmem>>, vector<1x48xf32>
    tpu.vector_store %arg31[%c0_75, %c240], %157 {strides = array<i32>} : memref<8x768xf32, #tpu.memory_space<vmem>>, vector<1x48xf32>,
    %c6 = arith.constant 6 : index
    %c0_76 = arith.constant 0 : index
    %159 = vector.load %arg30[%c6, %c0_76] : memref<64x96xf32, #tpu.memory_space<vmem>>, vector<1x48xf32>
    %c0_77 = arith.constant 0 : index
    %c288 = arith.constant 288 : index
    %160 = vector.load %arg31[%c0_77, %c288] : memref<8x768xf32, #tpu.memory_space<vmem>>, vector<1x48xf32>
    tpu.vector_store %arg31[%c0_77, %c288], %159 {strides = array<i32>} : memref<8x768xf32, #tpu.memory_space<vmem>>, vector<1x48xf32>,
    %c7 = arith.constant 7 : index
    %c0_78 = arith.constant 0 : index
    %161 = vector.load %arg30[%c7, %c0_78] : memref<64x96xf32, #tpu.memory_space<vmem>>, vector<1x48xf32>
    %c0_79 = arith.constant 0 : index
    %c336 = arith.constant 336 : index
    %162 = vector.load %arg31[%c0_79, %c336] : memref<8x768xf32, #tpu.memory_space<vmem>>, vector<1x48xf32>
    tpu.vector_store %arg31[%c0_79, %c336], %161 {strides = array<i32>} : memref<8x768xf32, #tpu.memory_space<vmem>>, vector<1x48xf32>,
    %c8 = arith.constant 8 : index
    %c0_80 = arith.constant 0 : index
    %163 = vector.load %arg30[%c8, %c0_80] : memref<64x96xf32, #tpu.memory_space<vmem>>, vector<1x48xf32>
    %c0_81 = arith.constant 0 : index
    %c384 = arith.constant 384 : index
    %164 = vector.load %arg31[%c0_81, %c384] : memref<8x768xf32, #tpu.memory_space<vmem>>, vector<1x48xf32>
    tpu.vector_store %arg31[%c0_81, %c384], %163 {strides = array<i32>} : memref<8x768xf32, #tpu.memory_space<vmem>>, vector<1x48xf32>,
    %c9 = arith.constant 9 : index
    %c0_82 = arith.constant 0 : index
    %165 = vector.load %arg30[%c9, %c0_82] : memref<64x96xf32, #tpu.memory_space<vmem>>, vector<1x48xf32>
    %c0_83 = arith.constant 0 : index
    %c432 = arith.constant 432 : index
    %166 = vector.load %arg31[%c0_83, %c432] : memref<8x768xf32, #tpu.memory_space<vmem>>, vector<1x48xf32>
    tpu.vector_store %arg31[%c0_83, %c432], %165 {strides = array<i32>} : memref<8x768xf32, #tpu.memory_space<vmem>>, vector<1x48xf32>,
    %c10 = arith.constant 10 : index
    %c0_84 = arith.constant 0 : index
    %167 = vector.load %arg30[%c10, %c0_84] : memref<64x96xf32, #tpu.memory_space<vmem>>, vector<1x48xf32>
    %c0_85 = arith.constant 0 : index
    %c480 = arith.constant 480 : index
    %168 = vector.load %arg31[%c0_85, %c480] : memref<8x768xf32, #tpu.memory_space<vmem>>, vector<1x48xf32>
    tpu.vector_store %arg31[%c0_85, %c480], %167 {strides = array<i32>} : memref<8x768xf32, #tpu.memory_space<vmem>>, vector<1x48xf32>,
    %c11 = arith.constant 11 : index
    %c0_86 = arith.constant 0 : index
    %169 = vector.load %arg30[%c11, %c0_86] : memref<64x96xf32, #tpu.memory_space<vmem>>, vector<1x48xf32>
    %c0_87 = arith.constant 0 : index
    %c528 = arith.constant 528 : index
    %170 = vector.load %arg31[%c0_87, %c528] : memref<8x768xf32, #tpu.memory_space<vmem>>, vector<1x48xf32>
    tpu.vector_store %arg31[%c0_87, %c528], %169 {strides = array<i32>} : memref<8x768xf32, #tpu.memory_space<vmem>>, vector<1x48xf32>,
    %c12 = arith.constant 12 : index
    %c0_88 = arith.constant 0 : index
    %171 = vector.load %arg30[%c12, %c0_88] : memref<64x96xf32, #tpu.memory_space<vmem>>, vector<1x48xf32>
    %c0_89 = arith.constant 0 : index
    %c576 = arith.constant 576 : index
    %172 = vector.load %arg31[%c0_89, %c576] : memref<8x768xf32, #tpu.memory_space<vmem>>, vector<1x48xf32>
    tpu.vector_store %arg31[%c0_89, %c576], %171 {strides = array<i32>} : memref<8x768xf32, #tpu.memory_space<vmem>>, vector<1x48xf32>,
    %c13 = arith.constant 13 : index
    %c0_90 = arith.constant 0 : index
    %173 = vector.load %arg30[%c13, %c0_90] : memref<64x96xf32, #tpu.memory_space<vmem>>, vector<1x48xf32>
    %c0_91 = arith.constant 0 : index
    %c624 = arith.constant 624 : index
    %174 = vector.load %arg31[%c0_91, %c624] : memref<8x768xf32, #tpu.memory_space<vmem>>, vector<1x48xf32>
    tpu.vector_store %arg31[%c0_91, %c624], %173 {strides = array<i32>} : memref<8x768xf32, #tpu.memory_space<vmem>>, vector<1x48xf32>,
    %c14 = arith.constant 14 : index
    %c0_92 = arith.constant 0 : index
    %175 = vector.load %arg30[%c14, %c0_92] : memref<64x96xf32, #tpu.memory_space<vmem>>, vector<1x48xf32>
    %c0_93 = arith.constant 0 : index
    %c672 = arith.constant 672 : index
    %176 = vector.load %arg31[%c0_93, %c672] : memref<8x768xf32, #tpu.memory_space<vmem>>, vector<1x48xf32>
    tpu.vector_store %arg31[%c0_93, %c672], %175 {strides = array<i32>} : memref<8x768xf32, #tpu.memory_space<vmem>>, vector<1x48xf32>,
    %c15 = arith.constant 15 : index
    %c0_94 = arith.constant 0 : index
    %177 = vector.load %arg30[%c15, %c0_94] : memref<64x96xf32, #tpu.memory_space<vmem>>, vector<1x48xf32>
    %c0_95 = arith.constant 0 : index
    %c720 = arith.constant 720 : index
    %178 = vector.load %arg31[%c0_95, %c720] : memref<8x768xf32, #tpu.memory_space<vmem>>, vector<1x48xf32>
    tpu.vector_store %arg31[%c0_95, %c720], %177 {strides = array<i32>} : memref<8x768xf32, #tpu.memory_space<vmem>>, vector<1x48xf32>,
    %c0_96 = arith.constant 0 : index
    %c48_97 = arith.constant 48 : index
    %179 = vector.load %arg30[%c0_96, %c48_97] : memref<64x96xf32, #tpu.memory_space<vmem>>, vector<1x48xf32>
    %c1_98 = arith.constant 1 : index
    %c0_99 = arith.constant 0 : index
    %180 = vector.load %arg31[%c1_98, %c0_99] : memref<8x768xf32, #tpu.memory_space<vmem>>, vector<1x48xf32>
    tpu.vector_store %arg31[%c1_98, %c0_99], %179 {strides = array<i32>} : memref<8x768xf32, #tpu.memory_space<vmem>>, vector<1x48xf32>,
    %c1_100 = arith.constant 1 : index
    %c48_101 = arith.constant 48 : index
    %181 = vector.load %arg30[%c1_100, %c48_101] : memref<64x96xf32, #tpu.memory_space<vmem>>, vector<1x48xf32>
    %c1_102 = arith.constant 1 : index
    %c48_103 = arith.constant 48 : index
    %182 = vector.load %arg31[%c1_102, %c48_103] : memref<8x768xf32, #tpu.memory_space<vmem>>, vector<1x48xf32>
    tpu.vector_store %arg31[%c1_102, %c48_103], %181 {strides = array<i32>} : memref<8x768xf32, #tpu.memory_space<vmem>>, vector<1x48xf32>,
    %c2_104 = arith.constant 2 : index
    %c48_105 = arith.constant 48 : index
    %183 = vector.load %arg30[%c2_104, %c48_105] : memref<64x96xf32, #tpu.memory_space<vmem>>, vector<1x48xf32>
    %c1_106 = arith.constant 1 : index
    %c96_107 = arith.constant 96 : index
    %184 = vector.load %arg31[%c1_106, %c96_107] : memref<8x768xf32, #tpu.memory_space<vmem>>, vector<1x48xf32>
    tpu.vector_store %arg31[%c1_106, %c96_107], %183 {strides = array<i32>} : memref<8x768xf32, #tpu.memory_space<vmem>>, vector<1x48xf32>,
    %c3_108 = arith.constant 3 : index
    %c48_109 = arith.constant 48 : index
    %185 = vector.load %arg30[%c3_108, %c48_109] : memref<64x96xf32, #tpu.memory_space<vmem>>, vector<1x48xf32>
    %c1_110 = arith.constant 1 : index
    %c144_111 = arith.constant 144 : index
    %186 = vector.load %arg31[%c1_110, %c144_111] : memref<8x768xf32, #tpu.memory_space<vmem>>, vector<1x48xf32>
    tpu.vector_store %arg31[%c1_110, %c144_111], %185 {strides = array<i32>} : memref<8x768xf32, #tpu.memory_space<vmem>>, vector<1x48xf32>,
    %c4_112 = arith.constant 4 : index
    %c48_113 = arith.constant 48 : index
    %187 = vector.load %arg30[%c4_112, %c48_113] : memref<64x96xf32, #tpu.memory_space<vmem>>, vector<1x48xf32>
    %c1_114 = arith.constant 1 : index
    %c192_115 = arith.constant 192 : index
    %188 = vector.load %arg31[%c1_114, %c192_115] : memref<8x768xf32, #tpu.memory_space<vmem>>, vector<1x48xf32>
    tpu.vector_store %arg31[%c1_114, %c192_115], %187 {strides = array<i32>} : memref<8x768xf32, #tpu.memory_space<vmem>>, vector<1x48xf32>,
    %c5_116 = arith.constant 5 : index
    %c48_117 = arith.constant 48 : index
    %189 = vector.load %arg30[%c5_116, %c48_117] : memref<64x96xf32, #tpu.memory_space<vmem>>, vector<1x48xf32>
    %c1_118 = arith.constant 1 : index
    %c240_119 = arith.constant 240 : index
    %190 = vector.load %arg31[%c1_118, %c240_119] : memref<8x768xf32, #tpu.memory_space<vmem>>, vector<1x48xf32>
    tpu.vector_store %arg31[%c1_118, %c240_119], %189 {strides = array<i32>} : memref<8x768xf32, #tpu.memory_space<vmem>>, vector<1x48xf32>,
    %c6_120 = arith.constant 6 : index
    %c48_121 = arith.constant 48 : index
    %191 = vector.load %arg30[%c6_120, %c48_121] : memref<64x96xf32, #tpu.memory_space<vmem>>, vector<1x48xf32>
    %c1_122 = arith.constant 1 : index
    %c288_123 = arith.constant 288 : index
    %192 = vector.load %arg31[%c1_122, %c288_123] : memref<8x768xf32, #tpu.memory_space<vmem>>, vector<1x48xf32>
    tpu.vector_store %arg31[%c1_122, %c288_123], %191 {strides = array<i32>} : memref<8x768xf32, #tpu.memory_space<vmem>>, vector<1x48xf32>,
    %c7_124 = arith.constant 7 : index
    %c48_125 = arith.constant 48 : index
    %193 = vector.load %arg30[%c7_124, %c48_125] : memref<64x96xf32, #tpu.memory_space<vmem>>, vector<1x48xf32>
    %c1_126 = arith.constant 1 : index
    %c336_127 = arith.constant 336 : index
    %194 = vector.load %arg31[%c1_126, %c336_127] : memref<8x768xf32, #tpu.memory_space<vmem>>, vector<1x48xf32>
    tpu.vector_store %arg31[%c1_126, %c336_127], %193 {strides = array<i32>} : memref<8x768xf32, #tpu.memory_space<vmem>>, vector<1x48xf32>,
    %c8_128 = arith.constant 8 : index
    %c48_129 = arith.constant 48 : index
    %195 = vector.load %arg30[%c8_128, %c48_129] : memref<64x96xf32, #tpu.memory_space<vmem>>, vector<1x48xf32>
    %c1_130 = arith.constant 1 : index
    %c384_131 = arith.constant 384 : index
    %196 = vector.load %arg31[%c1_130, %c384_131] : memref<8x768xf32, #tpu.memory_space<vmem>>, vector<1x48xf32>
    tpu.vector_store %arg31[%c1_130, %c384_131], %195 {strides = array<i32>} : memref<8x768xf32, #tpu.memory_space<vmem>>, vector<1x48xf32>,
    %c9_132 = arith.constant 9 : index
    %c48_133 = arith.constant 48 : index
    %197 = vector.load %arg30[%c9_132, %c48_133] : memref<64x96xf32, #tpu.memory_space<vmem>>, vector<1x48xf32>
    %c1_134 = arith.constant 1 : index
    %c432_135 = arith.constant 432 : index
    %198 = vector.load %arg31[%c1_134, %c432_135] : memref<8x768xf32, #tpu.memory_space<vmem>>, vector<1x48xf32>
    tpu.vector_store %arg31[%c1_134, %c432_135], %197 {strides = array<i32>} : memref<8x768xf32, #tpu.memory_space<vmem>>, vector<1x48xf32>,
    %c10_136 = arith.constant 10 : index
    %c48_137 = arith.constant 48 : index
    %199 = vector.load %arg30[%c10_136, %c48_137] : memref<64x96xf32, #tpu.memory_space<vmem>>, vector<1x48xf32>
    %c1_138 = arith.constant 1 : index
    %c480_139 = arith.constant 480 : index
    %200 = vector.load %arg31[%c1_138, %c480_139] : memref<8x768xf32, #tpu.memory_space<vmem>>, vector<1x48xf32>
    tpu.vector_store %arg31[%c1_138, %c480_139], %199 {strides = array<i32>} : memref<8x768xf32, #tpu.memory_space<vmem>>, vector<1x48xf32>,
    %c11_140 = arith.constant 11 : index
    %c48_141 = arith.constant 48 : index
    %201 = vector.load %arg30[%c11_140, %c48_141] : memref<64x96xf32, #tpu.memory_space<vmem>>, vector<1x48xf32>
    %c1_142 = arith.constant 1 : index
    %c528_143 = arith.constant 528 : index
    %202 = vector.load %arg31[%c1_142, %c528_143] : memref<8x768xf32, #tpu.memory_space<vmem>>, vector<1x48xf32>
    tpu.vector_store %arg31[%c1_142, %c528_143], %201 {strides = array<i32>} : memref<8x768xf32, #tpu.memory_space<vmem>>, vector<1x48xf32>,
    %c12_144 = arith.constant 12 : index
    %c48_145 = arith.constant 48 : index
    %203 = vector.load %arg30[%c12_144, %c48_145] : memref<64x96xf32, #tpu.memory_space<vmem>>, vector<1x48xf32>
    %c1_146 = arith.constant 1 : index
    %c576_147 = arith.constant 576 : index
    %204 = vector.load %arg31[%c1_146, %c576_147] : memref<8x768xf32, #tpu.memory_space<vmem>>, vector<1x48xf32>
    tpu.vector_store %arg31[%c1_146, %c576_147], %203 {strides = array<i32>} : memref<8x768xf32, #tpu.memory_space<vmem>>, vector<1x48xf32>,
    %c13_148 = arith.constant 13 : index
    %c48_149 = arith.constant 48 : index
    %205 = vector.load %arg30[%c13_148, %c48_149] : memref<64x96xf32, #tpu.memory_space<vmem>>, vector<1x48xf32>
    %c1_150 = arith.constant 1 : index
    %c624_151 = arith.constant 624 : index
    %206 = vector.load %arg31[%c1_150, %c624_151] : memref<8x768xf32, #tpu.memory_space<vmem>>, vector<1x48xf32>
    tpu.vector_store %arg31[%c1_150, %c624_151], %205 {strides = array<i32>} : memref<8x768xf32, #tpu.memory_space<vmem>>, vector<1x48xf32>,
    %c14_152 = arith.constant 14 : index
    %c48_153 = arith.constant 48 : index
    %207 = vector.load %arg30[%c14_152, %c48_153] : memref<64x96xf32, #tpu.memory_space<vmem>>, vector<1x48xf32>
    %c1_154 = arith.constant 1 : index
    %c672_155 = arith.constant 672 : index
    %208 = vector.load %arg31[%c1_154, %c672_155] : memref<8x768xf32, #tpu.memory_space<vmem>>, vector<1x48xf32>
    tpu.vector_store %arg31[%c1_154, %c672_155], %207 {strides = array<i32>} : memref<8x768xf32, #tpu.memory_space<vmem>>, vector<1x48xf32>,
    %c15_156 = arith.constant 15 : index
    %c48_157 = arith.constant 48 : index
    %209 = vector.load %arg30[%c15_156, %c48_157] : memref<64x96xf32, #tpu.memory_space<vmem>>, vector<1x48xf32>
    %c1_158 = arith.constant 1 : index
    %c720_159 = arith.constant 720 : index
    %210 = vector.load %arg31[%c1_158, %c720_159] : memref<8x768xf32, #tpu.memory_space<vmem>>, vector<1x48xf32>
    tpu.vector_store %arg31[%c1_158, %c720_159], %209 {strides = array<i32>} : memref<8x768xf32, #tpu.memory_space<vmem>>, vector<1x48xf32>,
    %c16 = arith.constant 16 : index
    %c0_160 = arith.constant 0 : index
    %211 = vector.load %arg30[%c16, %c0_160] : memref<64x96xf32, #tpu.memory_space<vmem>>, vector<1x48xf32>
    %c2_161 = arith.constant 2 : index
    %c0_162 = arith.constant 0 : index
    %212 = vector.load %arg31[%c2_161, %c0_162] : memref<8x768xf32, #tpu.memory_space<vmem>>, vector<1x48xf32>
    tpu.vector_store %arg31[%c2_161, %c0_162], %211 {strides = array<i32>} : memref<8x768xf32, #tpu.memory_space<vmem>>, vector<1x48xf32>,
    %c17 = arith.constant 17 : index
    %c0_163 = arith.constant 0 : index
    %213 = vector.load %arg30[%c17, %c0_163] : memref<64x96xf32, #tpu.memory_space<vmem>>, vector<1x48xf32>
    %c2_164 = arith.constant 2 : index
    %c48_165 = arith.constant 48 : index
    %214 = vector.load %arg31[%c2_164, %c48_165] : memref<8x768xf32, #tpu.memory_space<vmem>>, vector<1x48xf32>
    tpu.vector_store %arg31[%c2_164, %c48_165], %213 {strides = array<i32>} : memref<8x768xf32, #tpu.memory_space<vmem>>, vector<1x48xf32>,
    %c18 = arith.constant 18 : index
    %c0_166 = arith.constant 0 : index
    %215 = vector.load %arg30[%c18, %c0_166] : memref<64x96xf32, #tpu.memory_space<vmem>>, vector<1x48xf32>
    %c2_167 = arith.constant 2 : index
    %c96_168 = arith.constant 96 : index
    %216 = vector.load %arg31[%c2_167, %c96_168] : memref<8x768xf32, #tpu.memory_space<vmem>>, vector<1x48xf32>
    tpu.vector_store %arg31[%c2_167, %c96_168], %215 {strides = array<i32>} : memref<8x768xf32, #tpu.memory_space<vmem>>, vector<1x48xf32>,
    %c19 = arith.constant 19 : index
    %c0_169 = arith.constant 0 : index
    %217 = vector.load %arg30[%c19, %c0_169] : memref<64x96xf32, #tpu.memory_space<vmem>>, vector<1x48xf32>
    %c2_170 = arith.constant 2 : index
    %c144_171 = arith.constant 144 : index
    %218 = vector.load %arg31[%c2_170, %c144_171] : memref<8x768xf32, #tpu.memory_space<vmem>>, vector<1x48xf32>
    tpu.vector_store %arg31[%c2_170, %c144_171], %217 {strides = array<i32>} : memref<8x768xf32, #tpu.memory_space<vmem>>, vector<1x48xf32>,
    %c20 = arith.constant 20 : index
    %c0_172 = arith.constant 0 : index
    %219 = vector.load %arg30[%c20, %c0_172] : memref<64x96xf32, #tpu.memory_space<vmem>>, vector<1x48xf32>
    %c2_173 = arith.constant 2 : index
    %c192_174 = arith.constant 192 : index
    %220 = vector.load %arg31[%c2_173, %c192_174] : memref<8x768xf32, #tpu.memory_space<vmem>>, vector<1x48xf32>
    tpu.vector_store %arg31[%c2_173, %c192_174], %219 {strides = array<i32>} : memref<8x768xf32, #tpu.memory_space<vmem>>, vector<1x48xf32>,
    %c21 = arith.constant 21 : index
    %c0_175 = arith.constant 0 : index
    %221 = vector.load %arg30[%c21, %c0_175] : memref<64x96xf32, #tpu.memory_space<vmem>>, vector<1x48xf32>
    %c2_176 = arith.constant 2 : index
    %c240_177 = arith.constant 240 : index
    %222 = vector.load %arg31[%c2_176, %c240_177] : memref<8x768xf32, #tpu.memory_space<vmem>>, vector<1x48xf32>
    tpu.vector_store %arg31[%c2_176, %c240_177], %221 {strides = array<i32>} : memref<8x768xf32, #tpu.memory_space<vmem>>, vector<1x48xf32>,
    %c22 = arith.constant 22 : index
    %c0_178 = arith.constant 0 : index
    %223 = vector.load %arg30[%c22, %c0_178] : memref<64x96xf32, #tpu.memory_space<vmem>>, vector<1x48xf32>
    %c2_179 = arith.constant 2 : index
    %c288_180 = arith.constant 288 : index
    %224 = vector.load %arg31[%c2_179, %c288_180] : memref<8x768xf32, #tpu.memory_space<vmem>>, vector<1x48xf32>
    tpu.vector_store %arg31[%c2_179, %c288_180], %223 {strides = array<i32>} : memref<8x768xf32, #tpu.memory_space<vmem>>, vector<1x48xf32>,
    %c23 = arith.constant 23 : index
    %c0_181 = arith.constant 0 : index
    %225 = vector.load %arg30[%c23, %c0_181] : memref<64x96xf32, #tpu.memory_space<vmem>>, vector<1x48xf32>
    %c2_182 = arith.constant 2 : index
    %c336_183 = arith.constant 336 : index
    %226 = vector.load %arg31[%c2_182, %c336_183] : memref<8x768xf32, #tpu.memory_space<vmem>>, vector<1x48xf32>
    tpu.vector_store %arg31[%c2_182, %c336_183], %225 {strides = array<i32>} : memref<8x768xf32, #tpu.memory_space<vmem>>, vector<1x48xf32>,
    %c24 = arith.constant 24 : index
    %c0_184 = arith.constant 0 : index
    %227 = vector.load %arg30[%c24, %c0_184] : memref<64x96xf32, #tpu.memory_space<vmem>>, vector<1x48xf32>
    %c2_185 = arith.constant 2 : index
    %c384_186 = arith.constant 384 : index
    %228 = vector.load %arg31[%c2_185, %c384_186] : memref<8x768xf32, #tpu.memory_space<vmem>>, vector<1x48xf32>
    tpu.vector_store %arg31[%c2_185, %c384_186], %227 {strides = array<i32>} : memref<8x768xf32, #tpu.memory_space<vmem>>, vector<1x48xf32>,
    %c25 = arith.constant 25 : index
    %c0_187 = arith.constant 0 : index
    %229 = vector.load %arg30[%c25, %c0_187] : memref<64x96xf32, #tpu.memory_space<vmem>>, vector<1x48xf32>
    %c2_188 = arith.constant 2 : index
    %c432_189 = arith.constant 432 : index
    %230 = vector.load %arg31[%c2_188, %c432_189] : memref<8x768xf32, #tpu.memory_space<vmem>>, vector<1x48xf32>
    tpu.vector_store %arg31[%c2_188, %c432_189], %229 {strides = array<i32>} : memref<8x768xf32, #tpu.memory_space<vmem>>, vector<1x48xf32>,
    %c26 = arith.constant 26 : index
    %c0_190 = arith.constant 0 : index
    %231 = vector.load %arg30[%c26, %c0_190] : memref<64x96xf32, #tpu.memory_space<vmem>>, vector<1x48xf32>
    %c2_191 = arith.constant 2 : index
    %c480_192 = arith.constant 480 : index
    %232 = vector.load %arg31[%c2_191, %c480_192] : memref<8x768xf32, #tpu.memory_space<vmem>>, vector<1x48xf32>
    tpu.vector_store %arg31[%c2_191, %c480_192], %231 {strides = array<i32>} : memref<8x768xf32, #tpu.memory_space<vmem>>, vector<1x48xf32>,
    %c27 = arith.constant 27 : index
    %c0_193 = arith.constant 0 : index
    %233 = vector.load %arg30[%c27, %c0_193] : memref<64x96xf32, #tpu.memory_space<vmem>>, vector<1x48xf32>
    %c2_194 = arith.constant 2 : index
    %c528_195 = arith.constant 528 : index
    %234 = vector.load %arg31[%c2_194, %c528_195] : memref<8x768xf32, #tpu.memory_space<vmem>>, vector<1x48xf32>
    tpu.vector_store %arg31[%c2_194, %c528_195], %233 {strides = array<i32>} : memref<8x768xf32, #tpu.memory_space<vmem>>, vector<1x48xf32>,
    %c28 = arith.constant 28 : index
    %c0_196 = arith.constant 0 : index
    %235 = vector.load %arg30[%c28, %c0_196] : memref<64x96xf32, #tpu.memory_space<vmem>>, vector<1x48xf32>
    %c2_197 = arith.constant 2 : index
    %c576_198 = arith.constant 576 : index
    %236 = vector.load %arg31[%c2_197, %c576_198] : memref<8x768xf32, #tpu.memory_space<vmem>>, vector<1x48xf32>
    tpu.vector_store %arg31[%c2_197, %c576_198], %235 {strides = array<i32>} : memref<8x768xf32, #tpu.memory_space<vmem>>, vector<1x48xf32>,
    %c29 = arith.constant 29 : index
    %c0_199 = arith.constant 0 : index
    %237 = vector.load %arg30[%c29, %c0_199] : memref<64x96xf32, #tpu.memory_space<vmem>>, vector<1x48xf32>
    %c2_200 = arith.constant 2 : index
    %c624_201 = arith.constant 624 : index
    %238 = vector.load %arg31[%c2_200, %c624_201] : memref<8x768xf32, #tpu.memory_space<vmem>>, vector<1x48xf32>
    tpu.vector_store %arg31[%c2_200, %c624_201], %237 {strides = array<i32>} : memref<8x768xf32, #tpu.memory_space<vmem>>, vector<1x48xf32>,
    %c30 = arith.constant 30 : index
    %c0_202 = arith.constant 0 : index
    %239 = vector.load %arg30[%c30, %c0_202] : memref<64x96xf32, #tpu.memory_space<vmem>>, vector<1x48xf32>
    %c2_203 = arith.constant 2 : index
    %c672_204 = arith.constant 672 : index
    %240 = vector.load %arg31[%c2_203, %c672_204] : memref<8x768xf32, #tpu.memory_space<vmem>>, vector<1x48xf32>
    tpu.vector_store %arg31[%c2_203, %c672_204], %239 {strides = array<i32>} : memref<8x768xf32, #tpu.memory_space<vmem>>, vector<1x48xf32>,
    %c31 = arith.constant 31 : index
    %c0_205 = arith.constant 0 : index
    %241 = vector.load %arg30[%c31, %c0_205] : memref<64x96xf32, #tpu.memory_space<vmem>>, vector<1x48xf32>
    %c2_206 = arith.constant 2 : index
    %c720_207 = arith.constant 720 : index
    %242 = vector.load %arg31[%c2_206, %c720_207] : memref<8x768xf32, #tpu.memory_space<vmem>>, vector<1x48xf32>
    tpu.vector_store %arg31[%c2_206, %c720_207], %241 {strides = array<i32>} : memref<8x768xf32, #tpu.memory_space<vmem>>, vector<1x48xf32>,
    %c16_208 = arith.constant 16 : index
    %c48_209 = arith.constant 48 : index
    %243 = vector.load %arg30[%c16_208, %c48_209] : memref<64x96xf32, #tpu.memory_space<vmem>>, vector<1x48xf32>
    %c3_210 = arith.constant 3 : index
    %c0_211 = arith.constant 0 : index
    %244 = vector.load %arg31[%c3_210, %c0_211] : memref<8x768xf32, #tpu.memory_space<vmem>>, vector<1x48xf32>
    tpu.vector_store %arg31[%c3_210, %c0_211], %243 {strides = array<i32>} : memref<8x768xf32, #tpu.memory_space<vmem>>, vector<1x48xf32>,
    %c17_212 = arith.constant 17 : index
    %c48_213 = arith.constant 48 : index
    %245 = vector.load %arg30[%c17_212, %c48_213] : memref<64x96xf32, #tpu.memory_space<vmem>>, vector<1x48xf32>
    %c3_214 = arith.constant 3 : index
    %c48_215 = arith.constant 48 : index
    %246 = vector.load %arg31[%c3_214, %c48_215] : memref<8x768xf32, #tpu.memory_space<vmem>>, vector<1x48xf32>
    tpu.vector_store %arg31[%c3_214, %c48_215], %245 {strides = array<i32>} : memref<8x768xf32, #tpu.memory_space<vmem>>, vector<1x48xf32>,
    %c18_216 = arith.constant 18 : index
    %c48_217 = arith.constant 48 : index
    %247 = vector.load %arg30[%c18_216, %c48_217] : memref<64x96xf32, #tpu.memory_space<vmem>>, vector<1x48xf32>
    %c3_218 = arith.constant 3 : index
    %c96_219 = arith.constant 96 : index
    %248 = vector.load %arg31[%c3_218, %c96_219] : memref<8x768xf32, #tpu.memory_space<vmem>>, vector<1x48xf32>
    tpu.vector_store %arg31[%c3_218, %c96_219], %247 {strides = array<i32>} : memref<8x768xf32, #tpu.memory_space<vmem>>, vector<1x48xf32>,
    %c19_220 = arith.constant 19 : index
    %c48_221 = arith.constant 48 : index
    %249 = vector.load %arg30[%c19_220, %c48_221] : memref<64x96xf32, #tpu.memory_space<vmem>>, vector<1x48xf32>
    %c3_222 = arith.constant 3 : index
    %c144_223 = arith.constant 144 : index
    %250 = vector.load %arg31[%c3_222, %c144_223] : memref<8x768xf32, #tpu.memory_space<vmem>>, vector<1x48xf32>
    tpu.vector_store %arg31[%c3_222, %c144_223], %249 {strides = array<i32>} : memref<8x768xf32, #tpu.memory_space<vmem>>, vector<1x48xf32>,
    %c20_224 = arith.constant 20 : index
    %c48_225 = arith.constant 48 : index
    %251 = vector.load %arg30[%c20_224, %c48_225] : memref<64x96xf32, #tpu.memory_space<vmem>>, vector<1x48xf32>
    %c3_226 = arith.constant 3 : index
    %c192_227 = arith.constant 192 : index
    %252 = vector.load %arg31[%c3_226, %c192_227] : memref<8x768xf32, #tpu.memory_space<vmem>>, vector<1x48xf32>
    tpu.vector_store %arg31[%c3_226, %c192_227], %251 {strides = array<i32>} : memref<8x768xf32, #tpu.memory_space<vmem>>, vector<1x48xf32>,
    %c21_228 = arith.constant 21 : index
    %c48_229 = arith.constant 48 : index
    %253 = vector.load %arg30[%c21_228, %c48_229] : memref<64x96xf32, #tpu.memory_space<vmem>>, vector<1x48xf32>
    %c3_230 = arith.constant 3 : index
    %c240_231 = arith.constant 240 : index
    %254 = vector.load %arg31[%c3_230, %c240_231] : memref<8x768xf32, #tpu.memory_space<vmem>>, vector<1x48xf32>
    tpu.vector_store %arg31[%c3_230, %c240_231], %253 {strides = array<i32>} : memref<8x768xf32, #tpu.memory_space<vmem>>, vector<1x48xf32>,
    %c22_232 = arith.constant 22 : index
    %c48_233 = arith.constant 48 : index
    %255 = vector.load %arg30[%c22_232, %c48_233] : memref<64x96xf32, #tpu.memory_space<vmem>>, vector<1x48xf32>
    %c3_234 = arith.constant 3 : index
    %c288_235 = arith.constant 288 : index
    %256 = vector.load %arg31[%c3_234, %c288_235] : memref<8x768xf32, #tpu.memory_space<vmem>>, vector<1x48xf32>
    tpu.vector_store %arg31[%c3_234, %c288_235], %255 {strides = array<i32>} : memref<8x768xf32, #tpu.memory_space<vmem>>, vector<1x48xf32>,
    %c23_236 = arith.constant 23 : index
    %c48_237 = arith.constant 48 : index
    %257 = vector.load %arg30[%c23_236, %c48_237] : memref<64x96xf32, #tpu.memory_space<vmem>>, vector<1x48xf32>
    %c3_238 = arith.constant 3 : index
    %c336_239 = arith.constant 336 : index
    %258 = vector.load %arg31[%c3_238, %c336_239] : memref<8x768xf32, #tpu.memory_space<vmem>>, vector<1x48xf32>
    tpu.vector_store %arg31[%c3_238, %c336_239], %257 {strides = array<i32>} : memref<8x768xf32, #tpu.memory_space<vmem>>, vector<1x48xf32>,
    %c24_240 = arith.constant 24 : index
    %c48_241 = arith.constant 48 : index
    %259 = vector.load %arg30[%c24_240, %c48_241] : memref<64x96xf32, #tpu.memory_space<vmem>>, vector<1x48xf32>
    %c3_242 = arith.constant 3 : index
    %c384_243 = arith.constant 384 : index
    %260 = vector.load %arg31[%c3_242, %c384_243] : memref<8x768xf32, #tpu.memory_space<vmem>>, vector<1x48xf32>
    tpu.vector_store %arg31[%c3_242, %c384_243], %259 {strides = array<i32>} : memref<8x768xf32, #tpu.memory_space<vmem>>, vector<1x48xf32>,
    %c25_244 = arith.constant 25 : index
    %c48_245 = arith.constant 48 : index
    %261 = vector.load %arg30[%c25_244, %c48_245] : memref<64x96xf32, #tpu.memory_space<vmem>>, vector<1x48xf32>
    %c3_246 = arith.constant 3 : index
    %c432_247 = arith.constant 432 : index
    %262 = vector.load %arg31[%c3_246, %c432_247] : memref<8x768xf32, #tpu.memory_space<vmem>>, vector<1x48xf32>
    tpu.vector_store %arg31[%c3_246, %c432_247], %261 {strides = array<i32>} : memref<8x768xf32, #tpu.memory_space<vmem>>, vector<1x48xf32>,
    %c26_248 = arith.constant 26 : index
    %c48_249 = arith.constant 48 : index
    %263 = vector.load %arg30[%c26_248, %c48_249] : memref<64x96xf32, #tpu.memory_space<vmem>>, vector<1x48xf32>
    %c3_250 = arith.constant 3 : index
    %c480_251 = arith.constant 480 : index
    %264 = vector.load %arg31[%c3_250, %c480_251] : memref<8x768xf32, #tpu.memory_space<vmem>>, vector<1x48xf32>
    tpu.vector_store %arg31[%c3_250, %c480_251], %263 {strides = array<i32>} : memref<8x768xf32, #tpu.memory_space<vmem>>, vector<1x48xf32>,
    %c27_252 = arith.constant 27 : index
    %c48_253 = arith.constant 48 : index
    %265 = vector.load %arg30[%c27_252, %c48_253] : memref<64x96xf32, #tpu.memory_space<vmem>>, vector<1x48xf32>
    %c3_254 = arith.constant 3 : index
    %c528_255 = arith.constant 528 : index
    %266 = vector.load %arg31[%c3_254, %c528_255] : memref<8x768xf32, #tpu.memory_space<vmem>>, vector<1x48xf32>
    tpu.vector_store %arg31[%c3_254, %c528_255], %265 {strides = array<i32>} : memref<8x768xf32, #tpu.memory_space<vmem>>, vector<1x48xf32>,
    %c28_256 = arith.constant 28 : index
    %c48_257 = arith.constant 48 : index
    %267 = vector.load %arg30[%c28_256, %c48_257] : memref<64x96xf32, #tpu.memory_space<vmem>>, vector<1x48xf32>
    %c3_258 = arith.constant 3 : index
    %c576_259 = arith.constant 576 : index
    %268 = vector.load %arg31[%c3_258, %c576_259] : memref<8x768xf32, #tpu.memory_space<vmem>>, vector<1x48xf32>
    tpu.vector_store %arg31[%c3_258, %c576_259], %267 {strides = array<i32>} : memref<8x768xf32, #tpu.memory_space<vmem>>, vector<1x48xf32>,
    %c29_260 = arith.constant 29 : index
    %c48_261 = arith.constant 48 : index
    %269 = vector.load %arg30[%c29_260, %c48_261] : memref<64x96xf32, #tpu.memory_space<vmem>>, vector<1x48xf32>
    %c3_262 = arith.constant 3 : index
    %c624_263 = arith.constant 624 : index
    %270 = vector.load %arg31[%c3_262, %c624_263] : memref<8x768xf32, #tpu.memory_space<vmem>>, vector<1x48xf32>
    tpu.vector_store %arg31[%c3_262, %c624_263], %269 {strides = array<i32>} : memref<8x768xf32, #tpu.memory_space<vmem>>, vector<1x48xf32>,
    %c30_264 = arith.constant 30 : index
    %c48_265 = arith.constant 48 : index
    %271 = vector.load %arg30[%c30_264, %c48_265] : memref<64x96xf32, #tpu.memory_space<vmem>>, vector<1x48xf32>
    %c3_266 = arith.constant 3 : index
    %c672_267 = arith.constant 672 : index
    %272 = vector.load %arg31[%c3_266, %c672_267] : memref<8x768xf32, #tpu.memory_space<vmem>>, vector<1x48xf32>
    tpu.vector_store %arg31[%c3_266, %c672_267], %271 {strides = array<i32>} : memref<8x768xf32, #tpu.memory_space<vmem>>, vector<1x48xf32>,
    %c31_268 = arith.constant 31 : index
    %c48_269 = arith.constant 48 : index
    %273 = vector.load %arg30[%c31_268, %c48_269] : memref<64x96xf32, #tpu.memory_space<vmem>>, vector<1x48xf32>
    %c3_270 = arith.constant 3 : index
    %c720_271 = arith.constant 720 : index
    %274 = vector.load %arg31[%c3_270, %c720_271] : memref<8x768xf32, #tpu.memory_space<vmem>>, vector<1x48xf32>
    tpu.vector_store %arg31[%c3_270, %c720_271], %273 {strides = array<i32>} : memref<8x768xf32, #tpu.memory_space<vmem>>, vector<1x48xf32>,
    %c32 = arith.constant 32 : index
    %c0_272 = arith.constant 0 : index
    %275 = vector.load %arg30[%c32, %c0_272] : memref<64x96xf32, #tpu.memory_space<vmem>>, vector<1x48xf32>
    %c4_273 = arith.constant 4 : index
    %c0_274 = arith.constant 0 : index
    %276 = vector.load %arg31[%c4_273, %c0_274] : memref<8x768xf32, #tpu.memory_space<vmem>>, vector<1x48xf32>
    tpu.vector_store %arg31[%c4_273, %c0_274], %275 {strides = array<i32>} : memref<8x768xf32, #tpu.memory_space<vmem>>, vector<1x48xf32>,
    %c33 = arith.constant 33 : index
    %c0_275 = arith.constant 0 : index
    %277 = vector.load %arg30[%c33, %c0_275] : memref<64x96xf32, #tpu.memory_space<vmem>>, vector<1x48xf32>
    %c4_276 = arith.constant 4 : index
    %c48_277 = arith.constant 48 : index
    %278 = vector.load %arg31[%c4_276, %c48_277] : memref<8x768xf32, #tpu.memory_space<vmem>>, vector<1x48xf32>
    tpu.vector_store %arg31[%c4_276, %c48_277], %277 {strides = array<i32>} : memref<8x768xf32, #tpu.memory_space<vmem>>, vector<1x48xf32>,
    %c34 = arith.constant 34 : index
    %c0_278 = arith.constant 0 : index
    %279 = vector.load %arg30[%c34, %c0_278] : memref<64x96xf32, #tpu.memory_space<vmem>>, vector<1x48xf32>
    %c4_279 = arith.constant 4 : index
    %c96_280 = arith.constant 96 : index
    %280 = vector.load %arg31[%c4_279, %c96_280] : memref<8x768xf32, #tpu.memory_space<vmem>>, vector<1x48xf32>
    tpu.vector_store %arg31[%c4_279, %c96_280], %279 {strides = array<i32>} : memref<8x768xf32, #tpu.memory_space<vmem>>, vector<1x48xf32>,
    %c35 = arith.constant 35 : index
    %c0_281 = arith.constant 0 : index
    %281 = vector.load %arg30[%c35, %c0_281] : memref<64x96xf32, #tpu.memory_space<vmem>>, vector<1x48xf32>
    %c4_282 = arith.constant 4 : index
    %c144_283 = arith.constant 144 : index
    %282 = vector.load %arg31[%c4_282, %c144_283] : memref<8x768xf32, #tpu.memory_space<vmem>>, vector<1x48xf32>
    tpu.vector_store %arg31[%c4_282, %c144_283], %281 {strides = array<i32>} : memref<8x768xf32, #tpu.memory_space<vmem>>, vector<1x48xf32>,
    %c36 = arith.constant 36 : index
    %c0_284 = arith.constant 0 : index
    %283 = vector.load %arg30[%c36, %c0_284] : memref<64x96xf32, #tpu.memory_space<vmem>>, vector<1x48xf32>
    %c4_285 = arith.constant 4 : index
    %c192_286 = arith.constant 192 : index
    %284 = vector.load %arg31[%c4_285, %c192_286] : memref<8x768xf32, #tpu.memory_space<vmem>>, vector<1x48xf32>
    tpu.vector_store %arg31[%c4_285, %c192_286], %283 {strides = array<i32>} : memref<8x768xf32, #tpu.memory_space<vmem>>, vector<1x48xf32>,
    %c37 = arith.constant 37 : index
    %c0_287 = arith.constant 0 : index
    %285 = vector.load %arg30[%c37, %c0_287] : memref<64x96xf32, #tpu.memory_space<vmem>>, vector<1x48xf32>
    %c4_288 = arith.constant 4 : index
    %c240_289 = arith.constant 240 : index
    %286 = vector.load %arg31[%c4_288, %c240_289] : memref<8x768xf32, #tpu.memory_space<vmem>>, vector<1x48xf32>
    tpu.vector_store %arg31[%c4_288, %c240_289], %285 {strides = array<i32>} : memref<8x768xf32, #tpu.memory_space<vmem>>, vector<1x48xf32>,
    %c38 = arith.constant 38 : index
    %c0_290 = arith.constant 0 : index
    %287 = vector.load %arg30[%c38, %c0_290] : memref<64x96xf32, #tpu.memory_space<vmem>>, vector<1x48xf32>
    %c4_291 = arith.constant 4 : index
    %c288_292 = arith.constant 288 : index
    %288 = vector.load %arg31[%c4_291, %c288_292] : memref<8x768xf32, #tpu.memory_space<vmem>>, vector<1x48xf32>
    tpu.vector_store %arg31[%c4_291, %c288_292], %287 {strides = array<i32>} : memref<8x768xf32, #tpu.memory_space<vmem>>, vector<1x48xf32>,
    %c39 = arith.constant 39 : index
    %c0_293 = arith.constant 0 : index
    %289 = vector.load %arg30[%c39, %c0_293] : memref<64x96xf32, #tpu.memory_space<vmem>>, vector<1x48xf32>
    %c4_294 = arith.constant 4 : index
    %c336_295 = arith.constant 336 : index
    %290 = vector.load %arg31[%c4_294, %c336_295] : memref<8x768xf32, #tpu.memory_space<vmem>>, vector<1x48xf32>
    tpu.vector_store %arg31[%c4_294, %c336_295], %289 {strides = array<i32>} : memref<8x768xf32, #tpu.memory_space<vmem>>, vector<1x48xf32>,
    %c40 = arith.constant 40 : index
    %c0_296 = arith.constant 0 : index
    %291 = vector.load %arg30[%c40, %c0_296] : memref<64x96xf32, #tpu.memory_space<vmem>>, vector<1x48xf32>
    %c4_297 = arith.constant 4 : index
    %c384_298 = arith.constant 384 : index
    %292 = vector.load %arg31[%c4_297, %c384_298] : memref<8x768xf32, #tpu.memory_space<vmem>>, vector<1x48xf32>
    tpu.vector_store %arg31[%c4_297, %c384_298], %291 {strides = array<i32>} : memref<8x768xf32, #tpu.memory_space<vmem>>, vector<1x48xf32>,
    %c41 = arith.constant 41 : index
    %c0_299 = arith.constant 0 : index
    %293 = vector.load %arg30[%c41, %c0_299] : memref<64x96xf32, #tpu.memory_space<vmem>>, vector<1x48xf32>
    %c4_300 = arith.constant 4 : index
    %c432_301 = arith.constant 432 : index
    %294 = vector.load %arg31[%c4_300, %c432_301] : memref<8x768xf32, #tpu.memory_space<vmem>>, vector<1x48xf32>
    tpu.vector_store %arg31[%c4_300, %c432_301], %293 {strides = array<i32>} : memref<8x768xf32, #tpu.memory_space<vmem>>, vector<1x48xf32>,
    %c42 = arith.constant 42 : index
    %c0_302 = arith.constant 0 : index
    %295 = vector.load %arg30[%c42, %c0_302] : memref<64x96xf32, #tpu.memory_space<vmem>>, vector<1x48xf32>
    %c4_303 = arith.constant 4 : index
    %c480_304 = arith.constant 480 : index
    %296 = vector.load %arg31[%c4_303, %c480_304] : memref<8x768xf32, #tpu.memory_space<vmem>>, vector<1x48xf32>
    tpu.vector_store %arg31[%c4_303, %c480_304], %295 {strides = array<i32>} : memref<8x768xf32, #tpu.memory_space<vmem>>, vector<1x48xf32>,
    %c43 = arith.constant 43 : index
    %c0_305 = arith.constant 0 : index
    %297 = vector.load %arg30[%c43, %c0_305] : memref<64x96xf32, #tpu.memory_space<vmem>>, vector<1x48xf32>
    %c4_306 = arith.constant 4 : index
    %c528_307 = arith.constant 528 : index
    %298 = vector.load %arg31[%c4_306, %c528_307] : memref<8x768xf32, #tpu.memory_space<vmem>>, vector<1x48xf32>
    tpu.vector_store %arg31[%c4_306, %c528_307], %297 {strides = array<i32>} : memref<8x768xf32, #tpu.memory_space<vmem>>, vector<1x48xf32>,
    %c44 = arith.constant 44 : index
    %c0_308 = arith.constant 0 : index
    %299 = vector.load %arg30[%c44, %c0_308] : memref<64x96xf32, #tpu.memory_space<vmem>>, vector<1x48xf32>
    %c4_309 = arith.constant 4 : index
    %c576_310 = arith.constant 576 : index
    %300 = vector.load %arg31[%c4_309, %c576_310] : memref<8x768xf32, #tpu.memory_space<vmem>>, vector<1x48xf32>
    tpu.vector_store %arg31[%c4_309, %c576_310], %299 {strides = array<i32>} : memref<8x768xf32, #tpu.memory_space<vmem>>, vector<1x48xf32>,
    %c45 = arith.constant 45 : index
    %c0_311 = arith.constant 0 : index
    %301 = vector.load %arg30[%c45, %c0_311] : memref<64x96xf32, #tpu.memory_space<vmem>>, vector<1x48xf32>
    %c4_312 = arith.constant 4 : index
    %c624_313 = arith.constant 624 : index
    %302 = vector.load %arg31[%c4_312, %c624_313] : memref<8x768xf32, #tpu.memory_space<vmem>>, vector<1x48xf32>
    tpu.vector_store %arg31[%c4_312, %c624_313], %301 {strides = array<i32>} : memref<8x768xf32, #tpu.memory_space<vmem>>, vector<1x48xf32>,
    %c46 = arith.constant 46 : index
    %c0_314 = arith.constant 0 : index
    %303 = vector.load %arg30[%c46, %c0_314] : memref<64x96xf32, #tpu.memory_space<vmem>>, vector<1x48xf32>
    %c4_315 = arith.constant 4 : index
    %c672_316 = arith.constant 672 : index
    %304 = vector.load %arg31[%c4_315, %c672_316] : memref<8x768xf32, #tpu.memory_space<vmem>>, vector<1x48xf32>
    tpu.vector_store %arg31[%c4_315, %c672_316], %303 {strides = array<i32>} : memref<8x768xf32, #tpu.memory_space<vmem>>, vector<1x48xf32>,
    %c47 = arith.constant 47 : index
    %c0_317 = arith.constant 0 : index
    %305 = vector.load %arg30[%c47, %c0_317] : memref<64x96xf32, #tpu.memory_space<vmem>>, vector<1x48xf32>
    %c4_318 = arith.constant 4 : index
    %c720_319 = arith.constant 720 : index
    %306 = vector.load %arg31[%c4_318, %c720_319] : memref<8x768xf32, #tpu.memory_space<vmem>>, vector<1x48xf32>
    tpu.vector_store %arg31[%c4_318, %c720_319], %305 {strides = array<i32>} : memref<8x768xf32, #tpu.memory_space<vmem>>, vector<1x48xf32>,
    %c32_320 = arith.constant 32 : index
    %c48_321 = arith.constant 48 : index
    %307 = vector.load %arg30[%c32_320, %c48_321] : memref<64x96xf32, #tpu.memory_space<vmem>>, vector<1x48xf32>
    %c5_322 = arith.constant 5 : index
    %c0_323 = arith.constant 0 : index
    %308 = vector.load %arg31[%c5_322, %c0_323] : memref<8x768xf32, #tpu.memory_space<vmem>>, vector<1x48xf32>
    tpu.vector_store %arg31[%c5_322, %c0_323], %307 {strides = array<i32>} : memref<8x768xf32, #tpu.memory_space<vmem>>, vector<1x48xf32>,
    %c33_324 = arith.constant 33 : index
    %c48_325 = arith.constant 48 : index
    %309 = vector.load %arg30[%c33_324, %c48_325] : memref<64x96xf32, #tpu.memory_space<vmem>>, vector<1x48xf32>
    %c5_326 = arith.constant 5 : index
    %c48_327 = arith.constant 48 : index
    %310 = vector.load %arg31[%c5_326, %c48_327] : memref<8x768xf32, #tpu.memory_space<vmem>>, vector<1x48xf32>
    tpu.vector_store %arg31[%c5_326, %c48_327], %309 {strides = array<i32>} : memref<8x768xf32, #tpu.memory_space<vmem>>, vector<1x48xf32>,
    %c34_328 = arith.constant 34 : index
    %c48_329 = arith.constant 48 : index
    %311 = vector.load %arg30[%c34_328, %c48_329] : memref<64x96xf32, #tpu.memory_space<vmem>>, vector<1x48xf32>
    %c5_330 = arith.constant 5 : index
    %c96_331 = arith.constant 96 : index
    %312 = vector.load %arg31[%c5_330, %c96_331] : memref<8x768xf32, #tpu.memory_space<vmem>>, vector<1x48xf32>
    tpu.vector_store %arg31[%c5_330, %c96_331], %311 {strides = array<i32>} : memref<8x768xf32, #tpu.memory_space<vmem>>, vector<1x48xf32>,
    %c35_332 = arith.constant 35 : index
    %c48_333 = arith.constant 48 : index
    %313 = vector.load %arg30[%c35_332, %c48_333] : memref<64x96xf32, #tpu.memory_space<vmem>>, vector<1x48xf32>
    %c5_334 = arith.constant 5 : index
    %c144_335 = arith.constant 144 : index
    %314 = vector.load %arg31[%c5_334, %c144_335] : memref<8x768xf32, #tpu.memory_space<vmem>>, vector<1x48xf32>
    tpu.vector_store %arg31[%c5_334, %c144_335], %313 {strides = array<i32>} : memref<8x768xf32, #tpu.memory_space<vmem>>, vector<1x48xf32>,
    %c36_336 = arith.constant 36 : index
    %c48_337 = arith.constant 48 : index
    %315 = vector.load %arg30[%c36_336, %c48_337] : memref<64x96xf32, #tpu.memory_space<vmem>>, vector<1x48xf32>
    %c5_338 = arith.constant 5 : index
    %c192_339 = arith.constant 192 : index
    %316 = vector.load %arg31[%c5_338, %c192_339] : memref<8x768xf32, #tpu.memory_space<vmem>>, vector<1x48xf32>
    tpu.vector_store %arg31[%c5_338, %c192_339], %315 {strides = array<i32>} : memref<8x768xf32, #tpu.memory_space<vmem>>, vector<1x48xf32>,
    %c37_340 = arith.constant 37 : index
    %c48_341 = arith.constant 48 : index
    %317 = vector.load %arg30[%c37_340, %c48_341] : memref<64x96xf32, #tpu.memory_space<vmem>>, vector<1x48xf32>
    %c5_342 = arith.constant 5 : index
    %c240_343 = arith.constant 240 : index
    %318 = vector.load %arg31[%c5_342, %c240_343] : memref<8x768xf32, #tpu.memory_space<vmem>>, vector<1x48xf32>
    tpu.vector_store %arg31[%c5_342, %c240_343], %317 {strides = array<i32>} : memref<8x768xf32, #tpu.memory_space<vmem>>, vector<1x48xf32>,
    %c38_344 = arith.constant 38 : index
    %c48_345 = arith.constant 48 : index
    %319 = vector.load %arg30[%c38_344, %c48_345] : memref<64x96xf32, #tpu.memory_space<vmem>>, vector<1x48xf32>
    %c5_346 = arith.constant 5 : index
    %c288_347 = arith.constant 288 : index
    %320 = vector.load %arg31[%c5_346, %c288_347] : memref<8x768xf32, #tpu.memory_space<vmem>>, vector<1x48xf32>
    tpu.vector_store %arg31[%c5_346, %c288_347], %319 {strides = array<i32>} : memref<8x768xf32, #tpu.memory_space<vmem>>, vector<1x48xf32>,
    %c39_348 = arith.constant 39 : index
    %c48_349 = arith.constant 48 : index
    %321 = vector.load %arg30[%c39_348, %c48_349] : memref<64x96xf32, #tpu.memory_space<vmem>>, vector<1x48xf32>
    %c5_350 = arith.constant 5 : index
    %c336_351 = arith.constant 336 : index
    %322 = vector.load %arg31[%c5_350, %c336_351] : memref<8x768xf32, #tpu.memory_space<vmem>>, vector<1x48xf32>
    tpu.vector_store %arg31[%c5_350, %c336_351], %321 {strides = array<i32>} : memref<8x768xf32, #tpu.memory_space<vmem>>, vector<1x48xf32>,
    %c40_352 = arith.constant 40 : index
    %c48_353 = arith.constant 48 : index
    %323 = vector.load %arg30[%c40_352, %c48_353] : memref<64x96xf32, #tpu.memory_space<vmem>>, vector<1x48xf32>
    %c5_354 = arith.constant 5 : index
    %c384_355 = arith.constant 384 : index
    %324 = vector.load %arg31[%c5_354, %c384_355] : memref<8x768xf32, #tpu.memory_space<vmem>>, vector<1x48xf32>
    tpu.vector_store %arg31[%c5_354, %c384_355], %323 {strides = array<i32>} : memref<8x768xf32, #tpu.memory_space<vmem>>, vector<1x48xf32>,
    %c41_356 = arith.constant 41 : index
    %c48_357 = arith.constant 48 : index
    %325 = vector.load %arg30[%c41_356, %c48_357] : memref<64x96xf32, #tpu.memory_space<vmem>>, vector<1x48xf32>
    %c5_358 = arith.constant 5 : index
    %c432_359 = arith.constant 432 : index
    %326 = vector.load %arg31[%c5_358, %c432_359] : memref<8x768xf32, #tpu.memory_space<vmem>>, vector<1x48xf32>
    tpu.vector_store %arg31[%c5_358, %c432_359], %325 {strides = array<i32>} : memref<8x768xf32, #tpu.memory_space<vmem>>, vector<1x48xf32>,
    %c42_360 = arith.constant 42 : index
    %c48_361 = arith.constant 48 : index
    %327 = vector.load %arg30[%c42_360, %c48_361] : memref<64x96xf32, #tpu.memory_space<vmem>>, vector<1x48xf32>
    %c5_362 = arith.constant 5 : index
    %c480_363 = arith.constant 480 : index
    %328 = vector.load %arg31[%c5_362, %c480_363] : memref<8x768xf32, #tpu.memory_space<vmem>>, vector<1x48xf32>
    tpu.vector_store %arg31[%c5_362, %c480_363], %327 {strides = array<i32>} : memref<8x768xf32, #tpu.memory_space<vmem>>, vector<1x48xf32>,
    %c43_364 = arith.constant 43 : index
    %c48_365 = arith.constant 48 : index
    %329 = vector.load %arg30[%c43_364, %c48_365] : memref<64x96xf32, #tpu.memory_space<vmem>>, vector<1x48xf32>
    %c5_366 = arith.constant 5 : index
    %c528_367 = arith.constant 528 : index
    %330 = vector.load %arg31[%c5_366, %c528_367] : memref<8x768xf32, #tpu.memory_space<vmem>>, vector<1x48xf32>
    tpu.vector_store %arg31[%c5_366, %c528_367], %329 {strides = array<i32>} : memref<8x768xf32, #tpu.memory_space<vmem>>, vector<1x48xf32>,
    %c44_368 = arith.constant 44 : index
    %c48_369 = arith.constant 48 : index
    %331 = vector.load %arg30[%c44_368, %c48_369] : memref<64x96xf32, #tpu.memory_space<vmem>>, vector<1x48xf32>
    %c5_370 = arith.constant 5 : index
    %c576_371 = arith.constant 576 : index
    %332 = vector.load %arg31[%c5_370, %c576_371] : memref<8x768xf32, #tpu.memory_space<vmem>>, vector<1x48xf32>
    tpu.vector_store %arg31[%c5_370, %c576_371], %331 {strides = array<i32>} : memref<8x768xf32, #tpu.memory_space<vmem>>, vector<1x48xf32>,
    %c45_372 = arith.constant 45 : index
    %c48_373 = arith.constant 48 : index
    %333 = vector.load %arg30[%c45_372, %c48_373] : memref<64x96xf32, #tpu.memory_space<vmem>>, vector<1x48xf32>
    %c5_374 = arith.constant 5 : index
    %c624_375 = arith.constant 624 : index
    %334 = vector.load %arg31[%c5_374, %c624_375] : memref<8x768xf32, #tpu.memory_space<vmem>>, vector<1x48xf32>
    tpu.vector_store %arg31[%c5_374, %c624_375], %333 {strides = array<i32>} : memref<8x768xf32, #tpu.memory_space<vmem>>, vector<1x48xf32>,
    %c46_376 = arith.constant 46 : index
    %c48_377 = arith.constant 48 : index
    %335 = vector.load %arg30[%c46_376, %c48_377] : memref<64x96xf32, #tpu.memory_space<vmem>>, vector<1x48xf32>
    %c5_378 = arith.constant 5 : index
    %c672_379 = arith.constant 672 : index
    %336 = vector.load %arg31[%c5_378, %c672_379] : memref<8x768xf32, #tpu.memory_space<vmem>>, vector<1x48xf32>
    tpu.vector_store %arg31[%c5_378, %c672_379], %335 {strides = array<i32>} : memref<8x768xf32, #tpu.memory_space<vmem>>, vector<1x48xf32>,
    %c47_380 = arith.constant 47 : index
    %c48_381 = arith.constant 48 : index
    %337 = vector.load %arg30[%c47_380, %c48_381] : memref<64x96xf32, #tpu.memory_space<vmem>>, vector<1x48xf32>
    %c5_382 = arith.constant 5 : index
    %c720_383 = arith.constant 720 : index
    %338 = vector.load %arg31[%c5_382, %c720_383] : memref<8x768xf32, #tpu.memory_space<vmem>>, vector<1x48xf32>
    tpu.vector_store %arg31[%c5_382, %c720_383], %337 {strides = array<i32>} : memref<8x768xf32, #tpu.memory_space<vmem>>, vector<1x48xf32>,
    %c48_384 = arith.constant 48 : index
    %c0_385 = arith.constant 0 : index
    %339 = vector.load %arg30[%c48_384, %c0_385] : memref<64x96xf32, #tpu.memory_space<vmem>>, vector<1x48xf32>
    %c6_386 = arith.constant 6 : index
    %c0_387 = arith.constant 0 : index
    %340 = vector.load %arg31[%c6_386, %c0_387] : memref<8x768xf32, #tpu.memory_space<vmem>>, vector<1x48xf32>
    tpu.vector_store %arg31[%c6_386, %c0_387], %339 {strides = array<i32>} : memref<8x768xf32, #tpu.memory_space<vmem>>, vector<1x48xf32>,
    %c49 = arith.constant 49 : index
    %c0_388 = arith.constant 0 : index
    %341 = vector.load %arg30[%c49, %c0_388] : memref<64x96xf32, #tpu.memory_space<vmem>>, vector<1x48xf32>
    %c6_389 = arith.constant 6 : index
    %c48_390 = arith.constant 48 : index
    %342 = vector.load %arg31[%c6_389, %c48_390] : memref<8x768xf32, #tpu.memory_space<vmem>>, vector<1x48xf32>
    tpu.vector_store %arg31[%c6_389, %c48_390], %341 {strides = array<i32>} : memref<8x768xf32, #tpu.memory_space<vmem>>, vector<1x48xf32>,
    %c50 = arith.constant 50 : index
    %c0_391 = arith.constant 0 : index
    %343 = vector.load %arg30[%c50, %c0_391] : memref<64x96xf32, #tpu.memory_space<vmem>>, vector<1x48xf32>
    %c6_392 = arith.constant 6 : index
    %c96_393 = arith.constant 96 : index
    %344 = vector.load %arg31[%c6_392, %c96_393] : memref<8x768xf32, #tpu.memory_space<vmem>>, vector<1x48xf32>
    tpu.vector_store %arg31[%c6_392, %c96_393], %343 {strides = array<i32>} : memref<8x768xf32, #tpu.memory_space<vmem>>, vector<1x48xf32>,
    %c51 = arith.constant 51 : index
    %c0_394 = arith.constant 0 : index
    %345 = vector.load %arg30[%c51, %c0_394] : memref<64x96xf32, #tpu.memory_space<vmem>>, vector<1x48xf32>
    %c6_395 = arith.constant 6 : index
    %c144_396 = arith.constant 144 : index
    %346 = vector.load %arg31[%c6_395, %c144_396] : memref<8x768xf32, #tpu.memory_space<vmem>>, vector<1x48xf32>
    tpu.vector_store %arg31[%c6_395, %c144_396], %345 {strides = array<i32>} : memref<8x768xf32, #tpu.memory_space<vmem>>, vector<1x48xf32>,
    %c52 = arith.constant 52 : index
    %c0_397 = arith.constant 0 : index
    %347 = vector.load %arg30[%c52, %c0_397] : memref<64x96xf32, #tpu.memory_space<vmem>>, vector<1x48xf32>
    %c6_398 = arith.constant 6 : index
    %c192_399 = arith.constant 192 : index
    %348 = vector.load %arg31[%c6_398, %c192_399] : memref<8x768xf32, #tpu.memory_space<vmem>>, vector<1x48xf32>
    tpu.vector_store %arg31[%c6_398, %c192_399], %347 {strides = array<i32>} : memref<8x768xf32, #tpu.memory_space<vmem>>, vector<1x48xf32>,
    %c53 = arith.constant 53 : index
    %c0_400 = arith.constant 0 : index
    %349 = vector.load %arg30[%c53, %c0_400] : memref<64x96xf32, #tpu.memory_space<vmem>>, vector<1x48xf32>
    %c6_401 = arith.constant 6 : index
    %c240_402 = arith.constant 240 : index
    %350 = vector.load %arg31[%c6_401, %c240_402] : memref<8x768xf32, #tpu.memory_space<vmem>>, vector<1x48xf32>
    tpu.vector_store %arg31[%c6_401, %c240_402], %349 {strides = array<i32>} : memref<8x768xf32, #tpu.memory_space<vmem>>, vector<1x48xf32>,
    %c54 = arith.constant 54 : index
    %c0_403 = arith.constant 0 : index
    %351 = vector.load %arg30[%c54, %c0_403] : memref<64x96xf32, #tpu.memory_space<vmem>>, vector<1x48xf32>
    %c6_404 = arith.constant 6 : index
    %c288_405 = arith.constant 288 : index
    %352 = vector.load %arg31[%c6_404, %c288_405] : memref<8x768xf32, #tpu.memory_space<vmem>>, vector<1x48xf32>
    tpu.vector_store %arg31[%c6_404, %c288_405], %351 {strides = array<i32>} : memref<8x768xf32, #tpu.memory_space<vmem>>, vector<1x48xf32>,
    %c55 = arith.constant 55 : index
    %c0_406 = arith.constant 0 : index
    %353 = vector.load %arg30[%c55, %c0_406] : memref<64x96xf32, #tpu.memory_space<vmem>>, vector<1x48xf32>
    %c6_407 = arith.constant 6 : index
    %c336_408 = arith.constant 336 : index
    %354 = vector.load %arg31[%c6_407, %c336_408] : memref<8x768xf32, #tpu.memory_space<vmem>>, vector<1x48xf32>
    tpu.vector_store %arg31[%c6_407, %c336_408], %353 {strides = array<i32>} : memref<8x768xf32, #tpu.memory_space<vmem>>, vector<1x48xf32>,
    %c56 = arith.constant 56 : index
    %c0_409 = arith.constant 0 : index
    %355 = vector.load %arg30[%c56, %c0_409] : memref<64x96xf32, #tpu.memory_space<vmem>>, vector<1x48xf32>
    %c6_410 = arith.constant 6 : index
    %c384_411 = arith.constant 384 : index
    %356 = vector.load %arg31[%c6_410, %c384_411] : memref<8x768xf32, #tpu.memory_space<vmem>>, vector<1x48xf32>
    tpu.vector_store %arg31[%c6_410, %c384_411], %355 {strides = array<i32>} : memref<8x768xf32, #tpu.memory_space<vmem>>, vector<1x48xf32>,
    %c57 = arith.constant 57 : index
    %c0_412 = arith.constant 0 : index
    %357 = vector.load %arg30[%c57, %c0_412] : memref<64x96xf32, #tpu.memory_space<vmem>>, vector<1x48xf32>
    %c6_413 = arith.constant 6 : index
    %c432_414 = arith.constant 432 : index
    %358 = vector.load %arg31[%c6_413, %c432_414] : memref<8x768xf32, #tpu.memory_space<vmem>>, vector<1x48xf32>
    tpu.vector_store %arg31[%c6_413, %c432_414], %357 {strides = array<i32>} : memref<8x768xf32, #tpu.memory_space<vmem>>, vector<1x48xf32>,
    %c58 = arith.constant 58 : index
    %c0_415 = arith.constant 0 : index
    %359 = vector.load %arg30[%c58, %c0_415] : memref<64x96xf32, #tpu.memory_space<vmem>>, vector<1x48xf32>
    %c6_416 = arith.constant 6 : index
    %c480_417 = arith.constant 480 : index
    %360 = vector.load %arg31[%c6_416, %c480_417] : memref<8x768xf32, #tpu.memory_space<vmem>>, vector<1x48xf32>
    tpu.vector_store %arg31[%c6_416, %c480_417], %359 {strides = array<i32>} : memref<8x768xf32, #tpu.memory_space<vmem>>, vector<1x48xf32>,
    %c59 = arith.constant 59 : index
    %c0_418 = arith.constant 0 : index
    %361 = vector.load %arg30[%c59, %c0_418] : memref<64x96xf32, #tpu.memory_space<vmem>>, vector<1x48xf32>
    %c6_419 = arith.constant 6 : index
    %c528_420 = arith.constant 528 : index
    %362 = vector.load %arg31[%c6_419, %c528_420] : memref<8x768xf32, #tpu.memory_space<vmem>>, vector<1x48xf32>
    tpu.vector_store %arg31[%c6_419, %c528_420], %361 {strides = array<i32>} : memref<8x768xf32, #tpu.memory_space<vmem>>, vector<1x48xf32>,
    %c60 = arith.constant 60 : index
    %c0_421 = arith.constant 0 : index
    %363 = vector.load %arg30[%c60, %c0_421] : memref<64x96xf32, #tpu.memory_space<vmem>>, vector<1x48xf32>
    %c6_422 = arith.constant 6 : index
    %c576_423 = arith.constant 576 : index
    %364 = vector.load %arg31[%c6_422, %c576_423] : memref<8x768xf32, #tpu.memory_space<vmem>>, vector<1x48xf32>
    tpu.vector_store %arg31[%c6_422, %c576_423], %363 {strides = array<i32>} : memref<8x768xf32, #tpu.memory_space<vmem>>, vector<1x48xf32>,
    %c61 = arith.constant 61 : index
    %c0_424 = arith.constant 0 : index
    %365 = vector.load %arg30[%c61, %c0_424] : memref<64x96xf32, #tpu.memory_space<vmem>>, vector<1x48xf32>
    %c6_425 = arith.constant 6 : index
    %c624_426 = arith.constant 624 : index
    %366 = vector.load %arg31[%c6_425, %c624_426] : memref<8x768xf32, #tpu.memory_space<vmem>>, vector<1x48xf32>
    tpu.vector_store %arg31[%c6_425, %c624_426], %365 {strides = array<i32>} : memref<8x768xf32, #tpu.memory_space<vmem>>, vector<1x48xf32>,
    %c62 = arith.constant 62 : index
    %c0_427 = arith.constant 0 : index
    %367 = vector.load %arg30[%c62, %c0_427] : memref<64x96xf32, #tpu.memory_space<vmem>>, vector<1x48xf32>
    %c6_428 = arith.constant 6 : index
    %c672_429 = arith.constant 672 : index
    %368 = vector.load %arg31[%c6_428, %c672_429] : memref<8x768xf32, #tpu.memory_space<vmem>>, vector<1x48xf32>
    tpu.vector_store %arg31[%c6_428, %c672_429], %367 {strides = array<i32>} : memref<8x768xf32, #tpu.memory_space<vmem>>, vector<1x48xf32>,
    %c63 = arith.constant 63 : index
    %c0_430 = arith.constant 0 : index
    %369 = vector.load %arg30[%c63, %c0_430] : memref<64x96xf32, #tpu.memory_space<vmem>>, vector<1x48xf32>
    %c6_431 = arith.constant 6 : index
    %c720_432 = arith.constant 720 : index
    %370 = vector.load %arg31[%c6_431, %c720_432] : memref<8x768xf32, #tpu.memory_space<vmem>>, vector<1x48xf32>
    tpu.vector_store %arg31[%c6_431, %c720_432], %369 {strides = array<i32>} : memref<8x768xf32, #tpu.memory_space<vmem>>, vector<1x48xf32>,
    %c48_433 = arith.constant 48 : index
    %c48_434 = arith.constant 48 : index
    %371 = vector.load %arg30[%c48_433, %c48_434] : memref<64x96xf32, #tpu.memory_space<vmem>>, vector<1x48xf32>
    %c7_435 = arith.constant 7 : index
    %c0_436 = arith.constant 0 : index
    %372 = vector.load %arg31[%c7_435, %c0_436] : memref<8x768xf32, #tpu.memory_space<vmem>>, vector<1x48xf32>
    tpu.vector_store %arg31[%c7_435, %c0_436], %371 {strides = array<i32>} : memref<8x768xf32, #tpu.memory_space<vmem>>, vector<1x48xf32>,
    %c49_437 = arith.constant 49 : index
    %c48_438 = arith.constant 48 : index
    %373 = vector.load %arg30[%c49_437, %c48_438] : memref<64x96xf32, #tpu.memory_space<vmem>>, vector<1x48xf32>
    %c7_439 = arith.constant 7 : index
    %c48_440 = arith.constant 48 : index
    %374 = vector.load %arg31[%c7_439, %c48_440] : memref<8x768xf32, #tpu.memory_space<vmem>>, vector<1x48xf32>
    tpu.vector_store %arg31[%c7_439, %c48_440], %373 {strides = array<i32>} : memref<8x768xf32, #tpu.memory_space<vmem>>, vector<1x48xf32>,
    %c50_441 = arith.constant 50 : index
    %c48_442 = arith.constant 48 : index
    %375 = vector.load %arg30[%c50_441, %c48_442] : memref<64x96xf32, #tpu.memory_space<vmem>>, vector<1x48xf32>
    %c7_443 = arith.constant 7 : index
    %c96_444 = arith.constant 96 : index
    %376 = vector.load %arg31[%c7_443, %c96_444] : memref<8x768xf32, #tpu.memory_space<vmem>>, vector<1x48xf32>
    tpu.vector_store %arg31[%c7_443, %c96_444], %375 {strides = array<i32>} : memref<8x768xf32, #tpu.memory_space<vmem>>, vector<1x48xf32>,
    %c51_445 = arith.constant 51 : index
    %c48_446 = arith.constant 48 : index
    %377 = vector.load %arg30[%c51_445, %c48_446] : memref<64x96xf32, #tpu.memory_space<vmem>>, vector<1x48xf32>
    %c7_447 = arith.constant 7 : index
    %c144_448 = arith.constant 144 : index
    %378 = vector.load %arg31[%c7_447, %c144_448] : memref<8x768xf32, #tpu.memory_space<vmem>>, vector<1x48xf32>
    tpu.vector_store %arg31[%c7_447, %c144_448], %377 {strides = array<i32>} : memref<8x768xf32, #tpu.memory_space<vmem>>, vector<1x48xf32>,
    %c52_449 = arith.constant 52 : index
    %c48_450 = arith.constant 48 : index
    %379 = vector.load %arg30[%c52_449, %c48_450] : memref<64x96xf32, #tpu.memory_space<vmem>>, vector<1x48xf32>
    %c7_451 = arith.constant 7 : index
    %c192_452 = arith.constant 192 : index
    %380 = vector.load %arg31[%c7_451, %c192_452] : memref<8x768xf32, #tpu.memory_space<vmem>>, vector<1x48xf32>
    tpu.vector_store %arg31[%c7_451, %c192_452], %379 {strides = array<i32>} : memref<8x768xf32, #tpu.memory_space<vmem>>, vector<1x48xf32>,
    %c53_453 = arith.constant 53 : index
    %c48_454 = arith.constant 48 : index
    %381 = vector.load %arg30[%c53_453, %c48_454] : memref<64x96xf32, #tpu.memory_space<vmem>>, vector<1x48xf32>
    %c7_455 = arith.constant 7 : index
    %c240_456 = arith.constant 240 : index
    %382 = vector.load %arg31[%c7_455, %c240_456] : memref<8x768xf32, #tpu.memory_space<vmem>>, vector<1x48xf32>
    tpu.vector_store %arg31[%c7_455, %c240_456], %381 {strides = array<i32>} : memref<8x768xf32, #tpu.memory_space<vmem>>, vector<1x48xf32>,
    %c54_457 = arith.constant 54 : index
    %c48_458 = arith.constant 48 : index
    %383 = vector.load %arg30[%c54_457, %c48_458] : memref<64x96xf32, #tpu.memory_space<vmem>>, vector<1x48xf32>
    %c7_459 = arith.constant 7 : index
    %c288_460 = arith.constant 288 : index
    %384 = vector.load %arg31[%c7_459, %c288_460] : memref<8x768xf32, #tpu.memory_space<vmem>>, vector<1x48xf32>
    tpu.vector_store %arg31[%c7_459, %c288_460], %383 {strides = array<i32>} : memref<8x768xf32, #tpu.memory_space<vmem>>, vector<1x48xf32>,
    %c55_461 = arith.constant 55 : index
    %c48_462 = arith.constant 48 : index
    %385 = vector.load %arg30[%c55_461, %c48_462] : memref<64x96xf32, #tpu.memory_space<vmem>>, vector<1x48xf32>
    %c7_463 = arith.constant 7 : index
    %c336_464 = arith.constant 336 : index
    %386 = vector.load %arg31[%c7_463, %c336_464] : memref<8x768xf32, #tpu.memory_space<vmem>>, vector<1x48xf32>
    tpu.vector_store %arg31[%c7_463, %c336_464], %385 {strides = array<i32>} : memref<8x768xf32, #tpu.memory_space<vmem>>, vector<1x48xf32>,
    %c56_465 = arith.constant 56 : index
    %c48_466 = arith.constant 48 : index
    %387 = vector.load %arg30[%c56_465, %c48_466] : memref<64x96xf32, #tpu.memory_space<vmem>>, vector<1x48xf32>
    %c7_467 = arith.constant 7 : index
    %c384_468 = arith.constant 384 : index
    %388 = vector.load %arg31[%c7_467, %c384_468] : memref<8x768xf32, #tpu.memory_space<vmem>>, vector<1x48xf32>
    tpu.vector_store %arg31[%c7_467, %c384_468], %387 {strides = array<i32>} : memref<8x768xf32, #tpu.memory_space<vmem>>, vector<1x48xf32>,
    %c57_469 = arith.constant 57 : index
    %c48_470 = arith.constant 48 : index
    %389 = vector.load %arg30[%c57_469, %c48_470] : memref<64x96xf32, #tpu.memory_space<vmem>>, vector<1x48xf32>
    %c7_471 = arith.constant 7 : index
    %c432_472 = arith.constant 432 : index
    %390 = vector.load %arg31[%c7_471, %c432_472] : memref<8x768xf32, #tpu.memory_space<vmem>>, vector<1x48xf32>
    tpu.vector_store %arg31[%c7_471, %c432_472], %389 {strides = array<i32>} : memref<8x768xf32, #tpu.memory_space<vmem>>, vector<1x48xf32>,
    %c58_473 = arith.constant 58 : index
    %c48_474 = arith.constant 48 : index
    %391 = vector.load %arg30[%c58_473, %c48_474] : memref<64x96xf32, #tpu.memory_space<vmem>>, vector<1x48xf32>
    %c7_475 = arith.constant 7 : index
    %c480_476 = arith.constant 480 : index
    %392 = vector.load %arg31[%c7_475, %c480_476] : memref<8x768xf32, #tpu.memory_space<vmem>>, vector<1x48xf32>
    tpu.vector_store %arg31[%c7_475, %c480_476], %391 {strides = array<i32>} : memref<8x768xf32, #tpu.memory_space<vmem>>, vector<1x48xf32>,
    %c59_477 = arith.constant 59 : index
    %c48_478 = arith.constant 48 : index
    %393 = vector.load %arg30[%c59_477, %c48_478] : memref<64x96xf32, #tpu.memory_space<vmem>>, vector<1x48xf32>
    %c7_479 = arith.constant 7 : index
    %c528_480 = arith.constant 528 : index
    %394 = vector.load %arg31[%c7_479, %c528_480] : memref<8x768xf32, #tpu.memory_space<vmem>>, vector<1x48xf32>
    tpu.vector_store %arg31[%c7_479, %c528_480], %393 {strides = array<i32>} : memref<8x768xf32, #tpu.memory_space<vmem>>, vector<1x48xf32>,
    %c60_481 = arith.constant 60 : index
    %c48_482 = arith.constant 48 : index
    %395 = vector.load %arg30[%c60_481, %c48_482] : memref<64x96xf32, #tpu.memory_space<vmem>>, vector<1x48xf32>
    %c7_483 = arith.constant 7 : index
    %c576_484 = arith.constant 576 : index
    %396 = vector.load %arg31[%c7_483, %c576_484] : memref<8x768xf32, #tpu.memory_space<vmem>>, vector<1x48xf32>
    tpu.vector_store %arg31[%c7_483, %c576_484], %395 {strides = array<i32>} : memref<8x768xf32, #tpu.memory_space<vmem>>, vector<1x48xf32>,
    %c61_485 = arith.constant 61 : index
    %c48_486 = arith.constant 48 : index
    %397 = vector.load %arg30[%c61_485, %c48_486] : memref<64x96xf32, #tpu.memory_space<vmem>>, vector<1x48xf32>
    %c7_487 = arith.constant 7 : index
    %c624_488 = arith.constant 624 : index
    %398 = vector.load %arg31[%c7_487, %c624_488] : memref<8x768xf32, #tpu.memory_space<vmem>>, vector<1x48xf32>
    tpu.vector_store %arg31[%c7_487, %c624_488], %397 {strides = array<i32>} : memref<8x768xf32, #tpu.memory_space<vmem>>, vector<1x48xf32>,
    %c62_489 = arith.constant 62 : index
    %c48_490 = arith.constant 48 : index
    %399 = vector.load %arg30[%c62_489, %c48_490] : memref<64x96xf32, #tpu.memory_space<vmem>>, vector<1x48xf32>
    %c7_491 = arith.constant 7 : index
    %c672_492 = arith.constant 672 : index
    %400 = vector.load %arg31[%c7_491, %c672_492] : memref<8x768xf32, #tpu.memory_space<vmem>>, vector<1x48xf32>
    tpu.vector_store %arg31[%c7_491, %c672_492], %399 {strides = array<i32>} : memref<8x768xf32, #tpu.memory_space<vmem>>, vector<1x48xf32>,
    %c63_493 = arith.constant 63 : index
    %c48_494 = arith.constant 48 : index
    %401 = vector.load %arg30[%c63_493, %c48_494] : memref<64x96xf32, #tpu.memory_space<vmem>>, vector<1x48xf32>
    %c7_495 = arith.constant 7 : index
    %c720_496 = arith.constant 720 : index
    %402 = vector.load %arg31[%c7_495, %c720_496] : memref<8x768xf32, #tpu.memory_space<vmem>>, vector<1x48xf32>
    tpu.vector_store %arg31[%c7_495, %c720_496], %401 {strides = array<i32>} : memref<8x768xf32, #tpu.memory_space<vmem>>, vector<1x48xf32>,
    %c0_497 = arith.constant 0 : index
    %c0_498 = arith.constant 0 : index
    %403 = vector.load %arg31[%c0_497, %c0_498] : memref<8x768xf32, #tpu.memory_space<vmem>>, vector<8x768xf32>
    %404 = arith.truncf %403 : vector<8x768xf32> to vector<8x768xbf16>
    %c0_499 = arith.constant 0 : index
    %c0_500 = arith.constant 0 : index
    %405 = vector.load %arg9[%c0_499, %c0_500] : memref<768x64xbf16, #tpu.memory_space<vmem>>, vector<768x64xbf16>
    %cst_501 = arith.constant dense<0.000000e+00> : vector<8x64xf32>
    %406 = tpu.matmul %404, %405, %cst_501 {dimension_numbers = #tpu.dot_dimension_numbers<[1], [0], [0], [1], [0, 0, 1, 1], [], []>} : vector<8x768xbf16>, vector<768x64xbf16>, vector<8x64xf32> -> vector<8x64xf32>
    %c0_502 = arith.constant 0 : index
    %c0_503 = arith.constant 0 : index
    %407 = vector.load %arg10[%c0_502, %c0_503] : memref<1x64xf32, #tpu.memory_space<vmem>>, vector<1x64xf32>
    %408 = vector.broadcast %407 : vector<1x64xf32> to vector<8x64xf32>
    %409 = arith.addf %406, %408 : vector<8x64xf32>
    %c0_504 = arith.constant 0 : index
    %c0_505 = arith.constant 0 : index
    %410 = vector.load %arg11[%c0_504, %c0_505] : memref<1x64xf32, #tpu.memory_space<vmem>>, vector<1x64xf32>
    %c0_506 = arith.constant 0 : index
    %c0_507 = arith.constant 0 : index
    %411 = vector.load %arg12[%c0_506, %c0_507] : memref<5x64xf32, #tpu.memory_space<vmem>>, vector<1x64xf32>
    %412 = arith.addf %410, %411 : vector<1x64xf32>
    %c0_508 = arith.constant 0 : index
    %c0_509 = arith.constant 0 : index
    %413 = vector.load %arg32[%c0_508, %c0_509] : memref<16x64xf32, #tpu.memory_space<vmem>>, vector<1x64xf32>
    tpu.vector_store %arg32[%c0_508, %c0_509], %412 {strides = array<i32>} : memref<16x64xf32, #tpu.memory_space<vmem>>, vector<1x64xf32>,
    %414 = vector.extract_strided_slice %409 {offsets = [0, 0], sizes = [4, 64], strides = [1, 1]} : vector<8x64xf32> to vector<4x64xf32>
    %c1_510 = arith.constant 1 : index
    %c0_511 = arith.constant 0 : index
    %415 = vector.load %arg12[%c1_510, %c0_511] : memref<5x64xf32, #tpu.memory_space<vmem>>, vector<4x64xf32>
    %416 = arith.addf %414, %415 : vector<4x64xf32>
    %c1_512 = arith.constant 1 : index
    %c0_513 = arith.constant 0 : index
    %417 = vector.load %arg32[%c1_512, %c0_513] : memref<16x64xf32, #tpu.memory_space<vmem>>, vector<4x64xf32>
    tpu.vector_store %arg32[%c1_512, %c0_513], %416 {strides = array<i32>} : memref<16x64xf32, #tpu.memory_space<vmem>>, vector<4x64xf32>,
    %cst_514 = arith.constant 0.000000e+00 : f32
    %418 = vector.broadcast %cst_514 : f32 to vector<3x64xf32>
    %c5_515 = arith.constant 5 : index
    %c0_516 = arith.constant 0 : index
    %419 = vector.load %arg32[%c5_515, %c0_516] : memref<16x64xf32, #tpu.memory_space<vmem>>, vector<3x64xf32>
    tpu.vector_store %arg32[%c5_515, %c0_516], %418 {strides = array<i32>} : memref<16x64xf32, #tpu.memory_space<vmem>>, vector<3x64xf32>,
    %c0_517 = arith.constant 0 : index
    %c0_518 = arith.constant 0 : index
    %420 = vector.load %arg11[%c0_517, %c0_518] : memref<1x64xf32, #tpu.memory_space<vmem>>, vector<1x64xf32>
    %c0_519 = arith.constant 0 : index
    %c0_520 = arith.constant 0 : index
    %421 = vector.load %arg12[%c0_519, %c0_520] : memref<5x64xf32, #tpu.memory_space<vmem>>, vector<1x64xf32>
    %422 = arith.addf %420, %421 : vector<1x64xf32>
    %c8_521 = arith.constant 8 : index
    %c0_522 = arith.constant 0 : index
    %423 = vector.load %arg32[%c8_521, %c0_522] : memref<16x64xf32, #tpu.memory_space<vmem>>, vector<1x64xf32>
    tpu.vector_store %arg32[%c8_521, %c0_522], %422 {strides = array<i32>} : memref<16x64xf32, #tpu.memory_space<vmem>>, vector<1x64xf32>,
    %424 = vector.extract_strided_slice %409 {offsets = [4, 0], sizes = [4, 64], strides = [1, 1]} : vector<8x64xf32> to vector<4x64xf32>
    %c1_523 = arith.constant 1 : index
    %c0_524 = arith.constant 0 : index
    %425 = vector.load %arg12[%c1_523, %c0_524] : memref<5x64xf32, #tpu.memory_space<vmem>>, vector<4x64xf32>
    %426 = arith.addf %424, %425 : vector<4x64xf32>
    %c9_525 = arith.constant 9 : index
    %c0_526 = arith.constant 0 : index
    %427 = vector.load %arg32[%c9_525, %c0_526] : memref<16x64xf32, #tpu.memory_space<vmem>>, vector<4x64xf32>
    tpu.vector_store %arg32[%c9_525, %c0_526], %426 {strides = array<i32>} : memref<16x64xf32, #tpu.memory_space<vmem>>, vector<4x64xf32>,
    %cst_527 = arith.constant 0.000000e+00 : f32
    %428 = vector.broadcast %cst_527 : f32 to vector<3x64xf32>
    %c13_528 = arith.constant 13 : index
    %c0_529 = arith.constant 0 : index
    %429 = vector.load %arg32[%c13_528, %c0_529] : memref<16x64xf32, #tpu.memory_space<vmem>>, vector<3x64xf32>
    tpu.vector_store %arg32[%c13_528, %c0_529], %428 {strides = array<i32>} : memref<16x64xf32, #tpu.memory_space<vmem>>, vector<3x64xf32>,
    %c0_530 = arith.constant 0 : index
    %c0_531 = arith.constant 0 : index
    %430 = vector.load %arg32[%c0_530, %c0_531] : memref<16x64xf32, #tpu.memory_space<vmem>>, vector<16x64xf32>
    %431 = tpu.iota {dimensions = array<i32: 0>} : vector<16x16xi32>
    %432 = tpu.iota {dimensions = array<i32: 1>} : vector<16x16xi32>
    %c3_i32 = arith.constant 3 : i32
    %433 = vector.broadcast %c3_i32 : i32 to vector<16x16xi32>
    %434 = arith.shrsi %431, %433 : vector<16x16xi32>
    %c3_i32_532 = arith.constant 3 : i32
    %435 = vector.broadcast %c3_i32_532 : i32 to vector<16x16xi32>
    %436 = arith.shrsi %432, %435 : vector<16x16xi32>
    %437 = arith.cmpi eq, %434, %436 : vector<16x16xi32>
    %c7_i32 = arith.constant 7 : i32
    %438 = vector.broadcast %c7_i32 : i32 to vector<16x16xi32>
    %439 = arith.andi %432, %438 : vector<16x16xi32>
    %c5_i32 = arith.constant 5 : i32
    %440 = vector.broadcast %c5_i32 : i32 to vector<16x16xi32>
    %441 = arith.cmpi slt, %439, %440 : vector<16x16xi32>
    %442 = arith.andi %437, %441 : vector<16x16xi1>
    %cst_533 = arith.constant 0.000000e+00 : f32
    %cst_534 = arith.constant -1.000000e+30 : f32
    %443 = vector.broadcast %cst_533 : f32 to vector<16x16xf32>
    %444 = vector.broadcast %cst_534 : f32 to vector<16x16xf32>
    %445 = arith.select %442, %443, %444 : vector<16x16xi1>, vector<16x16xf32>
    %c0_535 = arith.constant 0 : index
    %c0_536 = arith.constant 0 : index
    %c0_537 = arith.constant 0 : index
    %446 = vector.load %arg13[%c0_535, %c0_536, %c0_537] : memref<2x1x64xf32, #tpu.memory_space<vmem>>, vector<1x1x64xf32>
    %447 = vector.shape_cast %446 : vector<1x1x64xf32> to vector<1x64xf32>
    %c0_538 = arith.constant 0 : index
    %c0_539 = arith.constant 0 : index
    %c0_540 = arith.constant 0 : index
    %448 = vector.load %arg14[%c0_538, %c0_539, %c0_540] : memref<2x1x64xf32, #tpu.memory_space<vmem>>, vector<1x1x64xf32>
    %449 = vector.shape_cast %448 : vector<1x1x64xf32> to vector<1x64xf32>
    %cst_541 = arith.constant dense<0.000000e+00> : vector<16xf32>
    %450 = vector.multi_reduction <add>, %430, %cst_541 [1] : vector<16x64xf32> to vector<16xf32>
    %451 = vector.shape_cast %450 : vector<16xf32> to vector<16x1xf32>
    %cst_542 = arith.constant 6.400000e+01 : f32
    %452 = vector.broadcast %cst_542 : f32 to vector<16x1xf32>
    %453 = arith.divf %451, %452 : vector<16x1xf32>
    %454 = arith.mulf %430, %430 : vector<16x64xf32>
    %cst_543 = arith.constant dense<0.000000e+00> : vector<16xf32>
    %455 = vector.multi_reduction <add>, %454, %cst_543 [1] : vector<16x64xf32> to vector<16xf32>
    %456 = vector.shape_cast %455 : vector<16xf32> to vector<16x1xf32>
    %cst_544 = arith.constant 6.400000e+01 : f32
    %457 = vector.broadcast %cst_544 : f32 to vector<16x1xf32>
    %458 = arith.divf %456, %457 : vector<16x1xf32>
    %459 = arith.mulf %453, %453 : vector<16x1xf32>
    %460 = arith.subf %458, %459 : vector<16x1xf32>
    %cst_545 = arith.constant 0.000000e+00 : f32
    %461 = vector.broadcast %cst_545 : f32 to vector<16x1xf32>
    %462 = arith.maximumf %460, %461 : vector<16x1xf32>
    %463 = vector.broadcast %453 : vector<16x1xf32> to vector<16x64xf32>
    %464 = arith.subf %430, %463 : vector<16x64xf32>
    %cst_546 = arith.constant 9.99999997E-7 : f32
    %465 = vector.broadcast %cst_546 : f32 to vector<16x1xf32>
    %466 = arith.addf %462, %465 : vector<16x1xf32>
    %467 = math.rsqrt %466 : vector<16x1xf32>
    %468 = vector.broadcast %467 : vector<16x1xf32> to vector<16x64xf32>
    %469 = arith.mulf %464, %468 : vector<16x64xf32>
    %470 = vector.broadcast %447 : vector<1x64xf32> to vector<16x64xf32>
    %471 = arith.mulf %469, %470 : vector<16x64xf32>
    %472 = vector.broadcast %449 : vector<1x64xf32> to vector<16x64xf32>
    %473 = arith.addf %471, %472 : vector<16x64xf32>
    %474 = arith.truncf %473 : vector<16x64xf32> to vector<16x64xbf16>
    %c0_547 = arith.constant 0 : index
    %c0_548 = arith.constant 0 : index
    %c0_549 = arith.constant 0 : index
    %475 = vector.load %arg15[%c0_547, %c0_548, %c0_549] : memref<2x64x192xbf16, #tpu.memory_space<vmem>>, vector<1x64x192xbf16>
    %476 = vector.shape_cast %475 : vector<1x64x192xbf16> to vector<64x192xbf16>
    %cst_550 = arith.constant dense<0.000000e+00> : vector<16x192xf32>
    %477 = tpu.matmul %474, %476, %cst_550 {dimension_numbers = #tpu.dot_dimension_numbers<[1], [0], [0], [1], [0, 0, 1, 1], [], []>} : vector<16x64xbf16>, vector<64x192xbf16>, vector<16x192xf32> -> vector<16x192xf32>
    %c0_551 = arith.constant 0 : index
    %c0_552 = arith.constant 0 : index
    %c0_553 = arith.constant 0 : index
    %478 = vector.load %arg16[%c0_551, %c0_552, %c0_553] : memref<2x1x192xf32, #tpu.memory_space<vmem>>, vector<1x1x192xf32>
    %479 = vector.shape_cast %478 : vector<1x1x192xf32> to vector<1x192xf32>
    %480 = vector.broadcast %479 : vector<1x192xf32> to vector<16x192xf32>
    %481 = arith.addf %477, %480 : vector<16x192xf32>
    %482 = vector.extract_strided_slice %481 {offsets = [0, 0], sizes = [16, 16], strides = [1, 1]} : vector<16x192xf32> to vector<16x16xf32>
    %483 = vector.extract_strided_slice %481 {offsets = [0, 64], sizes = [16, 16], strides = [1, 1]} : vector<16x192xf32> to vector<16x16xf32>
    %484 = vector.extract_strided_slice %481 {offsets = [0, 128], sizes = [16, 16], strides = [1, 1]} : vector<16x192xf32> to vector<16x16xf32>
    %485 = tpu.transpose %483, [1, 0] : vector<16x16xf32> -> vector<16x16xf32>
    %cst_554 = arith.constant dense<0.000000e+00> : vector<16x16xf32>
    %486 = tpu.matmul %482, %485, %cst_554 {dimension_numbers = #tpu.dot_dimension_numbers<[1], [0], [0], [1], [0, 0, 1, 1], [], []>} : vector<16x16xf32>, vector<16x16xf32>, vector<16x16xf32> -> vector<16x16xf32>
    %cst_555 = arith.constant 2.500000e-01 : f32
    %487 = vector.broadcast %cst_555 : f32 to vector<16x16xf32>
    %488 = arith.mulf %486, %487 : vector<16x16xf32>
    %489 = arith.addf %488, %445 : vector<16x16xf32>
    %cst_556 = arith.constant dense<0xFF800000> : vector<16xf32>
    %490 = vector.multi_reduction <maximumf>, %489, %cst_556 [1] : vector<16x16xf32> to vector<16xf32>
    %491 = vector.shape_cast %490 : vector<16xf32> to vector<16x1xf32>
    %492 = vector.broadcast %491 : vector<16x1xf32> to vector<16x16xf32>
    %493 = arith.subf %489, %492 : vector<16x16xf32>
    %494 = math.exp %493 : vector<16x16xf32>
    %cst_557 = arith.constant dense<0.000000e+00> : vector<16xf32>
    %495 = vector.multi_reduction <add>, %494, %cst_557 [1] : vector<16x16xf32> to vector<16xf32>
    %496 = vector.shape_cast %495 : vector<16xf32> to vector<16x1xf32>
    %497 = vector.broadcast %496 : vector<16x1xf32> to vector<16x16xf32>
    %498 = arith.divf %494, %497 : vector<16x16xf32>
    %cst_558 = arith.constant dense<0.000000e+00> : vector<16x16xf32>
    %499 = tpu.matmul %498, %484, %cst_558 {dimension_numbers = #tpu.dot_dimension_numbers<[1], [0], [0], [1], [0, 0, 1, 1], [], []>} : vector<16x16xf32>, vector<16x16xf32>, vector<16x16xf32> -> vector<16x16xf32>
    %500 = vector.extract_strided_slice %481 {offsets = [0, 16], sizes = [16, 16], strides = [1, 1]} : vector<16x192xf32> to vector<16x16xf32>
    %501 = vector.extract_strided_slice %481 {offsets = [0, 80], sizes = [16, 16], strides = [1, 1]} : vector<16x192xf32> to vector<16x16xf32>
    %502 = vector.extract_strided_slice %481 {offsets = [0, 144], sizes = [16, 16], strides = [1, 1]} : vector<16x192xf32> to vector<16x16xf32>
    %503 = tpu.transpose %501, [1, 0] : vector<16x16xf32> -> vector<16x16xf32>
    %cst_559 = arith.constant dense<0.000000e+00> : vector<16x16xf32>
    %504 = tpu.matmul %500, %503, %cst_559 {dimension_numbers = #tpu.dot_dimension_numbers<[1], [0], [0], [1], [0, 0, 1, 1], [], []>} : vector<16x16xf32>, vector<16x16xf32>, vector<16x16xf32> -> vector<16x16xf32>
    %cst_560 = arith.constant 2.500000e-01 : f32
    %505 = vector.broadcast %cst_560 : f32 to vector<16x16xf32>
    %506 = arith.mulf %504, %505 : vector<16x16xf32>
    %507 = arith.addf %506, %445 : vector<16x16xf32>
    %cst_561 = arith.constant dense<0xFF800000> : vector<16xf32>
    %508 = vector.multi_reduction <maximumf>, %507, %cst_561 [1] : vector<16x16xf32> to vector<16xf32>
    %509 = vector.shape_cast %508 : vector<16xf32> to vector<16x1xf32>
    %510 = vector.broadcast %509 : vector<16x1xf32> to vector<16x16xf32>
    %511 = arith.subf %507, %510 : vector<16x16xf32>
    %512 = math.exp %511 : vector<16x16xf32>
    %cst_562 = arith.constant dense<0.000000e+00> : vector<16xf32>
    %513 = vector.multi_reduction <add>, %512, %cst_562 [1] : vector<16x16xf32> to vector<16xf32>
    %514 = vector.shape_cast %513 : vector<16xf32> to vector<16x1xf32>
    %515 = vector.broadcast %514 : vector<16x1xf32> to vector<16x16xf32>
    %516 = arith.divf %512, %515 : vector<16x16xf32>
    %cst_563 = arith.constant dense<0.000000e+00> : vector<16x16xf32>
    %517 = tpu.matmul %516, %502, %cst_563 {dimension_numbers = #tpu.dot_dimension_numbers<[1], [0], [0], [1], [0, 0, 1, 1], [], []>} : vector<16x16xf32>, vector<16x16xf32>, vector<16x16xf32> -> vector<16x16xf32>
    %518 = vector.extract_strided_slice %481 {offsets = [0, 32], sizes = [16, 16], strides = [1, 1]} : vector<16x192xf32> to vector<16x16xf32>
    %519 = vector.extract_strided_slice %481 {offsets = [0, 96], sizes = [16, 16], strides = [1, 1]} : vector<16x192xf32> to vector<16x16xf32>
    %520 = vector.extract_strided_slice %481 {offsets = [0, 160], sizes = [16, 16], strides = [1, 1]} : vector<16x192xf32> to vector<16x16xf32>
    %521 = tpu.transpose %519, [1, 0] : vector<16x16xf32> -> vector<16x16xf32>
    %cst_564 = arith.constant dense<0.000000e+00> : vector<16x16xf32>
    %522 = tpu.matmul %518, %521, %cst_564 {dimension_numbers = #tpu.dot_dimension_numbers<[1], [0], [0], [1], [0, 0, 1, 1], [], []>} : vector<16x16xf32>, vector<16x16xf32>, vector<16x16xf32> -> vector<16x16xf32>
    %cst_565 = arith.constant 2.500000e-01 : f32
    %523 = vector.broadcast %cst_565 : f32 to vector<16x16xf32>
    %524 = arith.mulf %522, %523 : vector<16x16xf32>
    %525 = arith.addf %524, %445 : vector<16x16xf32>
    %cst_566 = arith.constant dense<0xFF800000> : vector<16xf32>
    %526 = vector.multi_reduction <maximumf>, %525, %cst_566 [1] : vector<16x16xf32> to vector<16xf32>
    %527 = vector.shape_cast %526 : vector<16xf32> to vector<16x1xf32>
    %528 = vector.broadcast %527 : vector<16x1xf32> to vector<16x16xf32>
    %529 = arith.subf %525, %528 : vector<16x16xf32>
    %530 = math.exp %529 : vector<16x16xf32>
    %cst_567 = arith.constant dense<0.000000e+00> : vector<16xf32>
    %531 = vector.multi_reduction <add>, %530, %cst_567 [1] : vector<16x16xf32> to vector<16xf32>
    %532 = vector.shape_cast %531 : vector<16xf32> to vector<16x1xf32>
    %533 = vector.broadcast %532 : vector<16x1xf32> to vector<16x16xf32>
    %534 = arith.divf %530, %533 : vector<16x16xf32>
    %cst_568 = arith.constant dense<0.000000e+00> : vector<16x16xf32>
    %535 = tpu.matmul %534, %520, %cst_568 {dimension_numbers = #tpu.dot_dimension_numbers<[1], [0], [0], [1], [0, 0, 1, 1], [], []>} : vector<16x16xf32>, vector<16x16xf32>, vector<16x16xf32> -> vector<16x16xf32>
    %536 = vector.extract_strided_slice %481 {offsets = [0, 48], sizes = [16, 16], strides = [1, 1]} : vector<16x192xf32> to vector<16x16xf32>
    %537 = vector.extract_strided_slice %481 {offsets = [0, 112], sizes = [16, 16], strides = [1, 1]} : vector<16x192xf32> to vector<16x16xf32>
    %538 = vector.extract_strided_slice %481 {offsets = [0, 176], sizes = [16, 16], strides = [1, 1]} : vector<16x192xf32> to vector<16x16xf32>
    %539 = tpu.transpose %537, [1, 0] : vector<16x16xf32> -> vector<16x16xf32>
    %cst_569 = arith.constant dense<0.000000e+00> : vector<16x16xf32>
    %540 = tpu.matmul %536, %539, %cst_569 {dimension_numbers = #tpu.dot_dimension_numbers<[1], [0], [0], [1], [0, 0, 1, 1], [], []>} : vector<16x16xf32>, vector<16x16xf32>, vector<16x16xf32> -> vector<16x16xf32>
    %cst_570 = arith.constant 2.500000e-01 : f32
    %541 = vector.broadcast %cst_570 : f32 to vector<16x16xf32>
    %542 = arith.mulf %540, %541 : vector<16x16xf32>
    %543 = arith.addf %542, %445 : vector<16x16xf32>
    %cst_571 = arith.constant dense<0xFF800000> : vector<16xf32>
    %544 = vector.multi_reduction <maximumf>, %543, %cst_571 [1] : vector<16x16xf32> to vector<16xf32>
    %545 = vector.shape_cast %544 : vector<16xf32> to vector<16x1xf32>
    %546 = vector.broadcast %545 : vector<16x1xf32> to vector<16x16xf32>
    %547 = arith.subf %543, %546 : vector<16x16xf32>
    %548 = math.exp %547 : vector<16x16xf32>
    %cst_572 = arith.constant dense<0.000000e+00> : vector<16xf32>
    %549 = vector.multi_reduction <add>, %548, %cst_572 [1] : vector<16x16xf32> to vector<16xf32>
    %550 = vector.shape_cast %549 : vector<16xf32> to vector<16x1xf32>
    %551 = vector.broadcast %550 : vector<16x1xf32> to vector<16x16xf32>
    %552 = arith.divf %548, %551 : vector<16x16xf32>
    %cst_573 = arith.constant dense<0.000000e+00> : vector<16x16xf32>
    %553 = tpu.matmul %552, %538, %cst_573 {dimension_numbers = #tpu.dot_dimension_numbers<[1], [0], [0], [1], [0, 0, 1, 1], [], []>} : vector<16x16xf32>, vector<16x16xf32>, vector<16x16xf32> -> vector<16x16xf32>
    %554 = tpu.concatenate %499, %517, %535, %553 in 1 : vector<16x16xf32>, vector<16x16xf32>, vector<16x16xf32>, vector<16x16xf32> -> vector<16x64xf32>
    %555 = arith.truncf %554 : vector<16x64xf32> to vector<16x64xbf16>
    %c0_574 = arith.constant 0 : index
    %c0_575 = arith.constant 0 : index
    %c0_576 = arith.constant 0 : index
    %556 = vector.load %arg17[%c0_574, %c0_575, %c0_576] : memref<2x64x64xbf16, #tpu.memory_space<vmem>>, vector<1x64x64xbf16>
    %557 = vector.shape_cast %556 : vector<1x64x64xbf16> to vector<64x64xbf16>
    %cst_577 = arith.constant dense<0.000000e+00> : vector<16x64xf32>
    %558 = tpu.matmul %555, %557, %cst_577 {dimension_numbers = #tpu.dot_dimension_numbers<[1], [0], [0], [1], [0, 0, 1, 1], [], []>} : vector<16x64xbf16>, vector<64x64xbf16>, vector<16x64xf32> -> vector<16x64xf32>
    %559 = arith.addf %430, %558 : vector<16x64xf32>
    %c0_578 = arith.constant 0 : index
    %c0_579 = arith.constant 0 : index
    %c0_580 = arith.constant 0 : index
    %560 = vector.load %arg18[%c0_578, %c0_579, %c0_580] : memref<2x1x64xf32, #tpu.memory_space<vmem>>, vector<1x1x64xf32>
    %561 = vector.shape_cast %560 : vector<1x1x64xf32> to vector<1x64xf32>
    %562 = vector.broadcast %561 : vector<1x64xf32> to vector<16x64xf32>
    %563 = arith.addf %559, %562 : vector<16x64xf32>
    %c0_581 = arith.constant 0 : index
    %c0_582 = arith.constant 0 : index
    %c0_583 = arith.constant 0 : index
    %564 = vector.load %arg19[%c0_581, %c0_582, %c0_583] : memref<2x1x64xf32, #tpu.memory_space<vmem>>, vector<1x1x64xf32>
    %565 = vector.shape_cast %564 : vector<1x1x64xf32> to vector<1x64xf32>
    %c0_584 = arith.constant 0 : index
    %c0_585 = arith.constant 0 : index
    %c0_586 = arith.constant 0 : index
    %566 = vector.load %arg20[%c0_584, %c0_585, %c0_586] : memref<2x1x64xf32, #tpu.memory_space<vmem>>, vector<1x1x64xf32>
    %567 = vector.shape_cast %566 : vector<1x1x64xf32> to vector<1x64xf32>
    %cst_587 = arith.constant dense<0.000000e+00> : vector<16xf32>
    %568 = vector.multi_reduction <add>, %563, %cst_587 [1] : vector<16x64xf32> to vector<16xf32>
    %569 = vector.shape_cast %568 : vector<16xf32> to vector<16x1xf32>
    %cst_588 = arith.constant 6.400000e+01 : f32
    %570 = vector.broadcast %cst_588 : f32 to vector<16x1xf32>
    %571 = arith.divf %569, %570 : vector<16x1xf32>
    %572 = arith.mulf %563, %563 : vector<16x64xf32>
    %cst_589 = arith.constant dense<0.000000e+00> : vector<16xf32>
    %573 = vector.multi_reduction <add>, %572, %cst_589 [1] : vector<16x64xf32> to vector<16xf32>
    %574 = vector.shape_cast %573 : vector<16xf32> to vector<16x1xf32>
    %cst_590 = arith.constant 6.400000e+01 : f32
    %575 = vector.broadcast %cst_590 : f32 to vector<16x1xf32>
    %576 = arith.divf %574, %575 : vector<16x1xf32>
    %577 = arith.mulf %571, %571 : vector<16x1xf32>
    %578 = arith.subf %576, %577 : vector<16x1xf32>
    %cst_591 = arith.constant 0.000000e+00 : f32
    %579 = vector.broadcast %cst_591 : f32 to vector<16x1xf32>
    %580 = arith.maximumf %578, %579 : vector<16x1xf32>
    %581 = vector.broadcast %571 : vector<16x1xf32> to vector<16x64xf32>
    %582 = arith.subf %563, %581 : vector<16x64xf32>
    %cst_592 = arith.constant 9.99999997E-7 : f32
    %583 = vector.broadcast %cst_592 : f32 to vector<16x1xf32>
    %584 = arith.addf %580, %583 : vector<16x1xf32>
    %585 = math.rsqrt %584 : vector<16x1xf32>
    %586 = vector.broadcast %585 : vector<16x1xf32> to vector<16x64xf32>
    %587 = arith.mulf %582, %586 : vector<16x64xf32>
    %588 = vector.broadcast %565 : vector<1x64xf32> to vector<16x64xf32>
    %589 = arith.mulf %587, %588 : vector<16x64xf32>
    %590 = vector.broadcast %567 : vector<1x64xf32> to vector<16x64xf32>
    %591 = arith.addf %589, %590 : vector<16x64xf32>
    %592 = arith.truncf %591 : vector<16x64xf32> to vector<16x64xbf16>
    %c0_593 = arith.constant 0 : index
    %c0_594 = arith.constant 0 : index
    %c0_595 = arith.constant 0 : index
    %593 = vector.load %arg21[%c0_593, %c0_594, %c0_595] : memref<2x64x256xbf16, #tpu.memory_space<vmem>>, vector<1x64x256xbf16>
    %594 = vector.shape_cast %593 : vector<1x64x256xbf16> to vector<64x256xbf16>
    %cst_596 = arith.constant dense<0.000000e+00> : vector<16x256xf32>
    %595 = tpu.matmul %592, %594, %cst_596 {dimension_numbers = #tpu.dot_dimension_numbers<[1], [0], [0], [1], [0, 0, 1, 1], [], []>} : vector<16x64xbf16>, vector<64x256xbf16>, vector<16x256xf32> -> vector<16x256xf32>
    %c0_597 = arith.constant 0 : index
    %c0_598 = arith.constant 0 : index
    %c0_599 = arith.constant 0 : index
    %596 = vector.load %arg22[%c0_597, %c0_598, %c0_599] : memref<2x1x256xf32, #tpu.memory_space<vmem>>, vector<1x1x256xf32>
    %597 = vector.shape_cast %596 : vector<1x1x256xf32> to vector<1x256xf32>
    %598 = vector.broadcast %597 : vector<1x256xf32> to vector<16x256xf32>
    %599 = arith.addf %595, %598 : vector<16x256xf32>
    %cst_600 = arith.constant 0.636619746 : f32
    %600 = math.sqrt %cst_600 : f32
    %cst_601 = arith.constant 5.000000e-01 : f32
    %601 = vector.broadcast %cst_601 : f32 to vector<16x256xf32>
    %602 = arith.mulf %601, %599 : vector<16x256xf32>
    %cst_602 = arith.constant 4.471500e-02 : f32
    %603 = vector.broadcast %cst_602 : f32 to vector<16x256xf32>
    %604 = arith.mulf %603, %599 : vector<16x256xf32>
    %605 = arith.mulf %604, %599 : vector<16x256xf32>
    %606 = arith.mulf %605, %599 : vector<16x256xf32>
    %607 = arith.addf %599, %606 : vector<16x256xf32>
    %608 = vector.broadcast %600 : f32 to vector<16x256xf32>
    %609 = arith.mulf %608, %607 : vector<16x256xf32>
    %610 = math.tanh %609 : vector<16x256xf32>
    %cst_603 = arith.constant 1.000000e+00 : f32
    %611 = vector.broadcast %cst_603 : f32 to vector<16x256xf32>
    %612 = arith.addf %611, %610 : vector<16x256xf32>
    %613 = arith.mulf %602, %612 : vector<16x256xf32>
    %614 = arith.truncf %613 : vector<16x256xf32> to vector<16x256xbf16>
    %c0_604 = arith.constant 0 : index
    %c0_605 = arith.constant 0 : index
    %c0_606 = arith.constant 0 : index
    %615 = vector.load %arg23[%c0_604, %c0_605, %c0_606] : memref<2x256x64xbf16, #tpu.memory_space<vmem>>, vector<1x256x64xbf16>
    %616 = vector.shape_cast %615 : vector<1x256x64xbf16> to vector<256x64xbf16>
    %cst_607 = arith.constant dense<0.000000e+00> : vector<16x64xf32>
    %617 = tpu.matmul %614, %616, %cst_607 {dimension_numbers = #tpu.dot_dimension_numbers<[1], [0], [0], [1], [0, 0, 1, 1], [], []>} : vector<16x256xbf16>, vector<256x64xbf16>, vector<16x64xf32> -> vector<16x64xf32>
    %618 = arith.addf %563, %617 : vector<16x64xf32>
    %c0_608 = arith.constant 0 : index
    %c0_609 = arith.constant 0 : index
    %c0_610 = arith.constant 0 : index
    %619 = vector.load %arg24[%c0_608, %c0_609, %c0_610] : memref<2x1x64xf32, #tpu.memory_space<vmem>>, vector<1x1x64xf32>
    %620 = vector.shape_cast %619 : vector<1x1x64xf32> to vector<1x64xf32>
    %621 = vector.broadcast %620 : vector<1x64xf32> to vector<16x64xf32>
    %622 = arith.addf %618, %621 : vector<16x64xf32>
    %c1_611 = arith.constant 1 : index
    %c0_612 = arith.constant 0 : index
    %c0_613 = arith.constant 0 : index
    %623 = vector.load %arg13[%c1_611, %c0_612, %c0_613] : memref<2x1x64xf32, #tpu.memory_space<vmem>>, vector<1x1x64xf32>
    %624 = vector.shape_cast %623 : vector<1x1x64xf32> to vector<1x64xf32>
    %c1_614 = arith.constant 1 : index
    %c0_615 = arith.constant 0 : index
    %c0_616 = arith.constant 0 : index
    %625 = vector.load %arg14[%c1_614, %c0_615, %c0_616] : memref<2x1x64xf32, #tpu.memory_space<vmem>>, vector<1x1x64xf32>
    %626 = vector.shape_cast %625 : vector<1x1x64xf32> to vector<1x64xf32>
    %cst_617 = arith.constant dense<0.000000e+00> : vector<16xf32>
    %627 = vector.multi_reduction <add>, %622, %cst_617 [1] : vector<16x64xf32> to vector<16xf32>
    %628 = vector.shape_cast %627 : vector<16xf32> to vector<16x1xf32>
    %cst_618 = arith.constant 6.400000e+01 : f32
    %629 = vector.broadcast %cst_618 : f32 to vector<16x1xf32>
    %630 = arith.divf %628, %629 : vector<16x1xf32>
    %631 = arith.mulf %622, %622 : vector<16x64xf32>
    %cst_619 = arith.constant dense<0.000000e+00> : vector<16xf32>
    %632 = vector.multi_reduction <add>, %631, %cst_619 [1] : vector<16x64xf32> to vector<16xf32>
    %633 = vector.shape_cast %632 : vector<16xf32> to vector<16x1xf32>
    %cst_620 = arith.constant 6.400000e+01 : f32
    %634 = vector.broadcast %cst_620 : f32 to vector<16x1xf32>
    %635 = arith.divf %633, %634 : vector<16x1xf32>
    %636 = arith.mulf %630, %630 : vector<16x1xf32>
    %637 = arith.subf %635, %636 : vector<16x1xf32>
    %cst_621 = arith.constant 0.000000e+00 : f32
    %638 = vector.broadcast %cst_621 : f32 to vector<16x1xf32>
    %639 = arith.maximumf %637, %638 : vector<16x1xf32>
    %640 = vector.broadcast %630 : vector<16x1xf32> to vector<16x64xf32>
    %641 = arith.subf %622, %640 : vector<16x64xf32>
    %cst_622 = arith.constant 9.99999997E-7 : f32
    %642 = vector.broadcast %cst_622 : f32 to vector<16x1xf32>
    %643 = arith.addf %639, %642 : vector<16x1xf32>
    %644 = math.rsqrt %643 : vector<16x1xf32>
    %645 = vector.broadcast %644 : vector<16x1xf32> to vector<16x64xf32>
    %646 = arith.mulf %641, %645 : vector<16x64xf32>
    %647 = vector.broadcast %624 : vector<1x64xf32> to vector<16x64xf32>
    %648 = arith.mulf %646, %647 : vector<16x64xf32>
    %649 = vector.broadcast %626 : vector<1x64xf32> to vector<16x64xf32>
    %650 = arith.addf %648, %649 : vector<16x64xf32>
    %651 = arith.truncf %650 : vector<16x64xf32> to vector<16x64xbf16>
    %c1_623 = arith.constant 1 : index
    %c0_624 = arith.constant 0 : index
    %c0_625 = arith.constant 0 : index
    %652 = vector.load %arg15[%c1_623, %c0_624, %c0_625] : memref<2x64x192xbf16, #tpu.memory_space<vmem>>, vector<1x64x192xbf16>
    %653 = vector.shape_cast %652 : vector<1x64x192xbf16> to vector<64x192xbf16>
    %cst_626 = arith.constant dense<0.000000e+00> : vector<16x192xf32>
    %654 = tpu.matmul %651, %653, %cst_626 {dimension_numbers = #tpu.dot_dimension_numbers<[1], [0], [0], [1], [0, 0, 1, 1], [], []>} : vector<16x64xbf16>, vector<64x192xbf16>, vector<16x192xf32> -> vector<16x192xf32>
    %c1_627 = arith.constant 1 : index
    %c0_628 = arith.constant 0 : index
    %c0_629 = arith.constant 0 : index
    %655 = vector.load %arg16[%c1_627, %c0_628, %c0_629] : memref<2x1x192xf32, #tpu.memory_space<vmem>>, vector<1x1x192xf32>
    %656 = vector.shape_cast %655 : vector<1x1x192xf32> to vector<1x192xf32>
    %657 = vector.broadcast %656 : vector<1x192xf32> to vector<16x192xf32>
    %658 = arith.addf %654, %657 : vector<16x192xf32>
    %659 = vector.extract_strided_slice %658 {offsets = [0, 0], sizes = [16, 16], strides = [1, 1]} : vector<16x192xf32> to vector<16x16xf32>
    %660 = vector.extract_strided_slice %658 {offsets = [0, 64], sizes = [16, 16], strides = [1, 1]} : vector<16x192xf32> to vector<16x16xf32>
    %661 = vector.extract_strided_slice %658 {offsets = [0, 128], sizes = [16, 16], strides = [1, 1]} : vector<16x192xf32> to vector<16x16xf32>
    %662 = tpu.transpose %660, [1, 0] : vector<16x16xf32> -> vector<16x16xf32>
    %cst_630 = arith.constant dense<0.000000e+00> : vector<16x16xf32>
    %663 = tpu.matmul %659, %662, %cst_630 {dimension_numbers = #tpu.dot_dimension_numbers<[1], [0], [0], [1], [0, 0, 1, 1], [], []>} : vector<16x16xf32>, vector<16x16xf32>, vector<16x16xf32> -> vector<16x16xf32>
    %cst_631 = arith.constant 2.500000e-01 : f32
    %664 = vector.broadcast %cst_631 : f32 to vector<16x16xf32>
    %665 = arith.mulf %663, %664 : vector<16x16xf32>
    %666 = arith.addf %665, %445 : vector<16x16xf32>
    %cst_632 = arith.constant dense<0xFF800000> : vector<16xf32>
    %667 = vector.multi_reduction <maximumf>, %666, %cst_632 [1] : vector<16x16xf32> to vector<16xf32>
    %668 = vector.shape_cast %667 : vector<16xf32> to vector<16x1xf32>
    %669 = vector.broadcast %668 : vector<16x1xf32> to vector<16x16xf32>
    %670 = arith.subf %666, %669 : vector<16x16xf32>
    %671 = math.exp %670 : vector<16x16xf32>
    %cst_633 = arith.constant dense<0.000000e+00> : vector<16xf32>
    %672 = vector.multi_reduction <add>, %671, %cst_633 [1] : vector<16x16xf32> to vector<16xf32>
    %673 = vector.shape_cast %672 : vector<16xf32> to vector<16x1xf32>
    %674 = vector.broadcast %673 : vector<16x1xf32> to vector<16x16xf32>
    %675 = arith.divf %671, %674 : vector<16x16xf32>
    %cst_634 = arith.constant dense<0.000000e+00> : vector<16x16xf32>
    %676 = tpu.matmul %675, %661, %cst_634 {dimension_numbers = #tpu.dot_dimension_numbers<[1], [0], [0], [1], [0, 0, 1, 1], [], []>} : vector<16x16xf32>, vector<16x16xf32>, vector<16x16xf32> -> vector<16x16xf32>
    %677 = vector.extract_strided_slice %658 {offsets = [0, 16], sizes = [16, 16], strides = [1, 1]} : vector<16x192xf32> to vector<16x16xf32>
    %678 = vector.extract_strided_slice %658 {offsets = [0, 80], sizes = [16, 16], strides = [1, 1]} : vector<16x192xf32> to vector<16x16xf32>
    %679 = vector.extract_strided_slice %658 {offsets = [0, 144], sizes = [16, 16], strides = [1, 1]} : vector<16x192xf32> to vector<16x16xf32>
    %680 = tpu.transpose %678, [1, 0] : vector<16x16xf32> -> vector<16x16xf32>
    %cst_635 = arith.constant dense<0.000000e+00> : vector<16x16xf32>
    %681 = tpu.matmul %677, %680, %cst_635 {dimension_numbers = #tpu.dot_dimension_numbers<[1], [0], [0], [1], [0, 0, 1, 1], [], []>} : vector<16x16xf32>, vector<16x16xf32>, vector<16x16xf32> -> vector<16x16xf32>
    %cst_636 = arith.constant 2.500000e-01 : f32
    %682 = vector.broadcast %cst_636 : f32 to vector<16x16xf32>
    %683 = arith.mulf %681, %682 : vector<16x16xf32>
    %684 = arith.addf %683, %445 : vector<16x16xf32>
    %cst_637 = arith.constant dense<0xFF800000> : vector<16xf32>
    %685 = vector.multi_reduction <maximumf>, %684, %cst_637 [1] : vector<16x16xf32> to vector<16xf32>
    %686 = vector.shape_cast %685 : vector<16xf32> to vector<16x1xf32>
    %687 = vector.broadcast %686 : vector<16x1xf32> to vector<16x16xf32>
    %688 = arith.subf %684, %687 : vector<16x16xf32>
    %689 = math.exp %688 : vector<16x16xf32>
    %cst_638 = arith.constant dense<0.000000e+00> : vector<16xf32>
    %690 = vector.multi_reduction <add>, %689, %cst_638 [1] : vector<16x16xf32> to vector<16xf32>
    %691 = vector.shape_cast %690 : vector<16xf32> to vector<16x1xf32>
    %692 = vector.broadcast %691 : vector<16x1xf32> to vector<16x16xf32>
    %693 = arith.divf %689, %692 : vector<16x16xf32>
    %cst_639 = arith.constant dense<0.000000e+00> : vector<16x16xf32>
    %694 = tpu.matmul %693, %679, %cst_639 {dimension_numbers = #tpu.dot_dimension_numbers<[1], [0], [0], [1], [0, 0, 1, 1], [], []>} : vector<16x16xf32>, vector<16x16xf32>, vector<16x16xf32> -> vector<16x16xf32>
    %695 = vector.extract_strided_slice %658 {offsets = [0, 32], sizes = [16, 16], strides = [1, 1]} : vector<16x192xf32> to vector<16x16xf32>
    %696 = vector.extract_strided_slice %658 {offsets = [0, 96], sizes = [16, 16], strides = [1, 1]} : vector<16x192xf32> to vector<16x16xf32>
    %697 = vector.extract_strided_slice %658 {offsets = [0, 160], sizes = [16, 16], strides = [1, 1]} : vector<16x192xf32> to vector<16x16xf32>
    %698 = tpu.transpose %696, [1, 0] : vector<16x16xf32> -> vector<16x16xf32>
    %cst_640 = arith.constant dense<0.000000e+00> : vector<16x16xf32>
    %699 = tpu.matmul %695, %698, %cst_640 {dimension_numbers = #tpu.dot_dimension_numbers<[1], [0], [0], [1], [0, 0, 1, 1], [], []>} : vector<16x16xf32>, vector<16x16xf32>, vector<16x16xf32> -> vector<16x16xf32>
    %cst_641 = arith.constant 2.500000e-01 : f32
    %700 = vector.broadcast %cst_641 : f32 to vector<16x16xf32>
    %701 = arith.mulf %699, %700 : vector<16x16xf32>
    %702 = arith.addf %701, %445 : vector<16x16xf32>
    %cst_642 = arith.constant dense<0xFF800000> : vector<16xf32>
    %703 = vector.multi_reduction <maximumf>, %702, %cst_642 [1] : vector<16x16xf32> to vector<16xf32>
    %704 = vector.shape_cast %703 : vector<16xf32> to vector<16x1xf32>
    %705 = vector.broadcast %704 : vector<16x1xf32> to vector<16x16xf32>
    %706 = arith.subf %702, %705 : vector<16x16xf32>
    %707 = math.exp %706 : vector<16x16xf32>
    %cst_643 = arith.constant dense<0.000000e+00> : vector<16xf32>
    %708 = vector.multi_reduction <add>, %707, %cst_643 [1] : vector<16x16xf32> to vector<16xf32>
    %709 = vector.shape_cast %708 : vector<16xf32> to vector<16x1xf32>
    %710 = vector.broadcast %709 : vector<16x1xf32> to vector<16x16xf32>
    %711 = arith.divf %707, %710 : vector<16x16xf32>
    %cst_644 = arith.constant dense<0.000000e+00> : vector<16x16xf32>
    %712 = tpu.matmul %711, %697, %cst_644 {dimension_numbers = #tpu.dot_dimension_numbers<[1], [0], [0], [1], [0, 0, 1, 1], [], []>} : vector<16x16xf32>, vector<16x16xf32>, vector<16x16xf32> -> vector<16x16xf32>
    %713 = vector.extract_strided_slice %658 {offsets = [0, 48], sizes = [16, 16], strides = [1, 1]} : vector<16x192xf32> to vector<16x16xf32>
    %714 = vector.extract_strided_slice %658 {offsets = [0, 112], sizes = [16, 16], strides = [1, 1]} : vector<16x192xf32> to vector<16x16xf32>
    %715 = vector.extract_strided_slice %658 {offsets = [0, 176], sizes = [16, 16], strides = [1, 1]} : vector<16x192xf32> to vector<16x16xf32>
    %716 = tpu.transpose %714, [1, 0] : vector<16x16xf32> -> vector<16x16xf32>
    %cst_645 = arith.constant dense<0.000000e+00> : vector<16x16xf32>
    %717 = tpu.matmul %713, %716, %cst_645 {dimension_numbers = #tpu.dot_dimension_numbers<[1], [0], [0], [1], [0, 0, 1, 1], [], []>} : vector<16x16xf32>, vector<16x16xf32>, vector<16x16xf32> -> vector<16x16xf32>
    %cst_646 = arith.constant 2.500000e-01 : f32
    %718 = vector.broadcast %cst_646 : f32 to vector<16x16xf32>
    %719 = arith.mulf %717, %718 : vector<16x16xf32>
    %720 = arith.addf %719, %445 : vector<16x16xf32>
    %cst_647 = arith.constant dense<0xFF800000> : vector<16xf32>
    %721 = vector.multi_reduction <maximumf>, %720, %cst_647 [1] : vector<16x16xf32> to vector<16xf32>
    %722 = vector.shape_cast %721 : vector<16xf32> to vector<16x1xf32>
    %723 = vector.broadcast %722 : vector<16x1xf32> to vector<16x16xf32>
    %724 = arith.subf %720, %723 : vector<16x16xf32>
    %725 = math.exp %724 : vector<16x16xf32>
    %cst_648 = arith.constant dense<0.000000e+00> : vector<16xf32>
    %726 = vector.multi_reduction <add>, %725, %cst_648 [1] : vector<16x16xf32> to vector<16xf32>
    %727 = vector.shape_cast %726 : vector<16xf32> to vector<16x1xf32>
    %728 = vector.broadcast %727 : vector<16x1xf32> to vector<16x16xf32>
    %729 = arith.divf %725, %728 : vector<16x16xf32>
    %cst_649 = arith.constant dense<0.000000e+00> : vector<16x16xf32>
    %730 = tpu.matmul %729, %715, %cst_649 {dimension_numbers = #tpu.dot_dimension_numbers<[1], [0], [0], [1], [0, 0, 1, 1], [], []>} : vector<16x16xf32>, vector<16x16xf32>, vector<16x16xf32> -> vector<16x16xf32>
    %731 = tpu.concatenate %676, %694, %712, %730 in 1 : vector<16x16xf32>, vector<16x16xf32>, vector<16x16xf32>, vector<16x16xf32> -> vector<16x64xf32>
    %732 = arith.truncf %731 : vector<16x64xf32> to vector<16x64xbf16>
    %c1_650 = arith.constant 1 : index
    %c0_651 = arith.constant 0 : index
    %c0_652 = arith.constant 0 : index
    %733 = vector.load %arg17[%c1_650, %c0_651, %c0_652] : memref<2x64x64xbf16, #tpu.memory_space<vmem>>, vector<1x64x64xbf16>
    %734 = vector.shape_cast %733 : vector<1x64x64xbf16> to vector<64x64xbf16>
    %cst_653 = arith.constant dense<0.000000e+00> : vector<16x64xf32>
    %735 = tpu.matmul %732, %734, %cst_653 {dimension_numbers = #tpu.dot_dimension_numbers<[1], [0], [0], [1], [0, 0, 1, 1], [], []>} : vector<16x64xbf16>, vector<64x64xbf16>, vector<16x64xf32> -> vector<16x64xf32>
    %736 = arith.addf %622, %735 : vector<16x64xf32>
    %c1_654 = arith.constant 1 : index
    %c0_655 = arith.constant 0 : index
    %c0_656 = arith.constant 0 : index
    %737 = vector.load %arg18[%c1_654, %c0_655, %c0_656] : memref<2x1x64xf32, #tpu.memory_space<vmem>>, vector<1x1x64xf32>
    %738 = vector.shape_cast %737 : vector<1x1x64xf32> to vector<1x64xf32>
    %739 = vector.broadcast %738 : vector<1x64xf32> to vector<16x64xf32>
    %740 = arith.addf %736, %739 : vector<16x64xf32>
    %c1_657 = arith.constant 1 : index
    %c0_658 = arith.constant 0 : index
    %c0_659 = arith.constant 0 : index
    %741 = vector.load %arg19[%c1_657, %c0_658, %c0_659] : memref<2x1x64xf32, #tpu.memory_space<vmem>>, vector<1x1x64xf32>
    %742 = vector.shape_cast %741 : vector<1x1x64xf32> to vector<1x64xf32>
    %c1_660 = arith.constant 1 : index
    %c0_661 = arith.constant 0 : index
    %c0_662 = arith.constant 0 : index
    %743 = vector.load %arg20[%c1_660, %c0_661, %c0_662] : memref<2x1x64xf32, #tpu.memory_space<vmem>>, vector<1x1x64xf32>
    %744 = vector.shape_cast %743 : vector<1x1x64xf32> to vector<1x64xf32>
    %cst_663 = arith.constant dense<0.000000e+00> : vector<16xf32>
    %745 = vector.multi_reduction <add>, %740, %cst_663 [1] : vector<16x64xf32> to vector<16xf32>
    %746 = vector.shape_cast %745 : vector<16xf32> to vector<16x1xf32>
    %cst_664 = arith.constant 6.400000e+01 : f32
    %747 = vector.broadcast %cst_664 : f32 to vector<16x1xf32>
    %748 = arith.divf %746, %747 : vector<16x1xf32>
    %749 = arith.mulf %740, %740 : vector<16x64xf32>
    %cst_665 = arith.constant dense<0.000000e+00> : vector<16xf32>
    %750 = vector.multi_reduction <add>, %749, %cst_665 [1] : vector<16x64xf32> to vector<16xf32>
    %751 = vector.shape_cast %750 : vector<16xf32> to vector<16x1xf32>
    %cst_666 = arith.constant 6.400000e+01 : f32
    %752 = vector.broadcast %cst_666 : f32 to vector<16x1xf32>
    %753 = arith.divf %751, %752 : vector<16x1xf32>
    %754 = arith.mulf %748, %748 : vector<16x1xf32>
    %755 = arith.subf %753, %754 : vector<16x1xf32>
    %cst_667 = arith.constant 0.000000e+00 : f32
    %756 = vector.broadcast %cst_667 : f32 to vector<16x1xf32>
    %757 = arith.maximumf %755, %756 : vector<16x1xf32>
    %758 = vector.broadcast %748 : vector<16x1xf32> to vector<16x64xf32>
    %759 = arith.subf %740, %758 : vector<16x64xf32>
    %cst_668 = arith.constant 9.99999997E-7 : f32
    %760 = vector.broadcast %cst_668 : f32 to vector<16x1xf32>
    %761 = arith.addf %757, %760 : vector<16x1xf32>
    %762 = math.rsqrt %761 : vector<16x1xf32>
    %763 = vector.broadcast %762 : vector<16x1xf32> to vector<16x64xf32>
    %764 = arith.mulf %759, %763 : vector<16x64xf32>
    %765 = vector.broadcast %742 : vector<1x64xf32> to vector<16x64xf32>
    %766 = arith.mulf %764, %765 : vector<16x64xf32>
    %767 = vector.broadcast %744 : vector<1x64xf32> to vector<16x64xf32>
    %768 = arith.addf %766, %767 : vector<16x64xf32>
    %769 = arith.truncf %768 : vector<16x64xf32> to vector<16x64xbf16>
    %c1_669 = arith.constant 1 : index
    %c0_670 = arith.constant 0 : index
    %c0_671 = arith.constant 0 : index
    %770 = vector.load %arg21[%c1_669, %c0_670, %c0_671] : memref<2x64x256xbf16, #tpu.memory_space<vmem>>, vector<1x64x256xbf16>
    %771 = vector.shape_cast %770 : vector<1x64x256xbf16> to vector<64x256xbf16>
    %cst_672 = arith.constant dense<0.000000e+00> : vector<16x256xf32>
    %772 = tpu.matmul %769, %771, %cst_672 {dimension_numbers = #tpu.dot_dimension_numbers<[1], [0], [0], [1], [0, 0, 1, 1], [], []>} : vector<16x64xbf16>, vector<64x256xbf16>, vector<16x256xf32> -> vector<16x256xf32>
    %c1_673 = arith.constant 1 : index
    %c0_674 = arith.constant 0 : index
    %c0_675 = arith.constant 0 : index
    %773 = vector.load %arg22[%c1_673, %c0_674, %c0_675] : memref<2x1x256xf32, #tpu.memory_space<vmem>>, vector<1x1x256xf32>
    %774 = vector.shape_cast %773 : vector<1x1x256xf32> to vector<1x256xf32>
    %775 = vector.broadcast %774 : vector<1x256xf32> to vector<16x256xf32>
    %776 = arith.addf %772, %775 : vector<16x256xf32>
    %cst_676 = arith.constant 0.636619746 : f32
    %777 = math.sqrt %cst_676 : f32
    %cst_677 = arith.constant 5.000000e-01 : f32
    %778 = vector.broadcast %cst_677 : f32 to vector<16x256xf32>
    %779 = arith.mulf %778, %776 : vector<16x256xf32>
    %cst_678 = arith.constant 4.471500e-02 : f32
    %780 = vector.broadcast %cst_678 : f32 to vector<16x256xf32>
    %781 = arith.mulf %780, %776 : vector<16x256xf32>
    %782 = arith.mulf %781, %776 : vector<16x256xf32>
    %783 = arith.mulf %782, %776 : vector<16x256xf32>
    %784 = arith.addf %776, %783 : vector<16x256xf32>
    %785 = vector.broadcast %777 : f32 to vector<16x256xf32>
    %786 = arith.mulf %785, %784 : vector<16x256xf32>
    %787 = math.tanh %786 : vector<16x256xf32>
    %cst_679 = arith.constant 1.000000e+00 : f32
    %788 = vector.broadcast %cst_679 : f32 to vector<16x256xf32>
    %789 = arith.addf %788, %787 : vector<16x256xf32>
    %790 = arith.mulf %779, %789 : vector<16x256xf32>
    %791 = arith.truncf %790 : vector<16x256xf32> to vector<16x256xbf16>
    %c1_680 = arith.constant 1 : index
    %c0_681 = arith.constant 0 : index
    %c0_682 = arith.constant 0 : index
    %792 = vector.load %arg23[%c1_680, %c0_681, %c0_682] : memref<2x256x64xbf16, #tpu.memory_space<vmem>>, vector<1x256x64xbf16>
    %793 = vector.shape_cast %792 : vector<1x256x64xbf16> to vector<256x64xbf16>
    %cst_683 = arith.constant dense<0.000000e+00> : vector<16x64xf32>
    %794 = tpu.matmul %791, %793, %cst_683 {dimension_numbers = #tpu.dot_dimension_numbers<[1], [0], [0], [1], [0, 0, 1, 1], [], []>} : vector<16x256xbf16>, vector<256x64xbf16>, vector<16x64xf32> -> vector<16x64xf32>
    %795 = arith.addf %740, %794 : vector<16x64xf32>
    %c1_684 = arith.constant 1 : index
    %c0_685 = arith.constant 0 : index
    %c0_686 = arith.constant 0 : index
    %796 = vector.load %arg24[%c1_684, %c0_685, %c0_686] : memref<2x1x64xf32, #tpu.memory_space<vmem>>, vector<1x1x64xf32>
    %797 = vector.shape_cast %796 : vector<1x1x64xf32> to vector<1x64xf32>
    %798 = vector.broadcast %797 : vector<1x64xf32> to vector<16x64xf32>
    %799 = arith.addf %795, %798 : vector<16x64xf32>
    %c0_687 = arith.constant 0 : index
    %c0_688 = arith.constant 0 : index
    %800 = vector.load %arg25[%c0_687, %c0_688] : memref<1x64xf32, #tpu.memory_space<vmem>>, vector<1x64xf32>
    %c0_689 = arith.constant 0 : index
    %c0_690 = arith.constant 0 : index
    %801 = vector.load %arg26[%c0_689, %c0_690] : memref<1x64xf32, #tpu.memory_space<vmem>>, vector<1x64xf32>
    %cst_691 = arith.constant dense<0.000000e+00> : vector<16xf32>
    %802 = vector.multi_reduction <add>, %799, %cst_691 [1] : vector<16x64xf32> to vector<16xf32>
    %803 = vector.shape_cast %802 : vector<16xf32> to vector<16x1xf32>
    %cst_692 = arith.constant 6.400000e+01 : f32
    %804 = vector.broadcast %cst_692 : f32 to vector<16x1xf32>
    %805 = arith.divf %803, %804 : vector<16x1xf32>
    %806 = arith.mulf %799, %799 : vector<16x64xf32>
    %cst_693 = arith.constant dense<0.000000e+00> : vector<16xf32>
    %807 = vector.multi_reduction <add>, %806, %cst_693 [1] : vector<16x64xf32> to vector<16xf32>
    %808 = vector.shape_cast %807 : vector<16xf32> to vector<16x1xf32>
    %cst_694 = arith.constant 6.400000e+01 : f32
    %809 = vector.broadcast %cst_694 : f32 to vector<16x1xf32>
    %810 = arith.divf %808, %809 : vector<16x1xf32>
    %811 = arith.mulf %805, %805 : vector<16x1xf32>
    %812 = arith.subf %810, %811 : vector<16x1xf32>
    %cst_695 = arith.constant 0.000000e+00 : f32
    %813 = vector.broadcast %cst_695 : f32 to vector<16x1xf32>
    %814 = arith.maximumf %812, %813 : vector<16x1xf32>
    %815 = vector.broadcast %805 : vector<16x1xf32> to vector<16x64xf32>
    %816 = arith.subf %799, %815 : vector<16x64xf32>
    %cst_696 = arith.constant 9.99999997E-7 : f32
    %817 = vector.broadcast %cst_696 : f32 to vector<16x1xf32>
    %818 = arith.addf %814, %817 : vector<16x1xf32>
    %819 = math.rsqrt %818 : vector<16x1xf32>
    %820 = vector.broadcast %819 : vector<16x1xf32> to vector<16x64xf32>
    %821 = arith.mulf %816, %820 : vector<16x64xf32>
    %822 = vector.broadcast %800 : vector<1x64xf32> to vector<16x64xf32>
    %823 = arith.mulf %821, %822 : vector<16x64xf32>
    %824 = vector.broadcast %801 : vector<1x64xf32> to vector<16x64xf32>
    %825 = arith.addf %823, %824 : vector<16x64xf32>
    %826 = vector.extract_strided_slice %825 {offsets = [0, 0], sizes = [1, 64], strides = [1, 1]} : vector<16x64xf32> to vector<1x64xf32>
    %827 = vector.extract_strided_slice %825 {offsets = [8, 0], sizes = [1, 64], strides = [1, 1]} : vector<16x64xf32> to vector<1x64xf32>
    %828 = tpu.concatenate %826, %827 in 0 : vector<1x64xf32>, vector<1x64xf32> -> vector<2x64xf32>
    %829 = arith.truncf %828 : vector<2x64xf32> to vector<2x64xbf16>
    %c0_697 = arith.constant 0 : index
    %c0_698 = arith.constant 0 : index
    %830 = vector.load %arg27[%c0_697, %c0_698] : memref<64x2xbf16, #tpu.memory_space<vmem>>, vector<64x2xbf16>
    %cst_699 = arith.constant dense<0.000000e+00> : vector<2x2xf32>
    %831 = tpu.matmul %829, %830, %cst_699 {dimension_numbers = #tpu.dot_dimension_numbers<[1], [0], [0], [1], [0, 0, 1, 1], [], []>} : vector<2x64xbf16>, vector<64x2xbf16>, vector<2x2xf32> -> vector<2x2xf32>
    %c0_700 = arith.constant 0 : index
    %c0_701 = arith.constant 0 : index
    %832 = vector.load %arg28[%c0_700, %c0_701] : memref<1x2xf32, #tpu.memory_space<vmem>>, vector<1x2xf32>
    %833 = vector.broadcast %832 : vector<1x2xf32> to vector<2x2xf32>
    %834 = arith.addf %831, %833 : vector<2x2xf32>
    %c0_702 = arith.constant 0 : index
    %c0_703 = arith.constant 0 : index
    %835 = vector.load %arg29[%c0_702, %c0_703] : memref<2x2xf32, #tpu.memory_space<vmem>>, vector<2x2xf32>
    tpu.vector_store %arg29[%c0_702, %c0_703], %834 {strides = array<i32>} : memref<2x2xf32, #tpu.memory_space<vmem>>, vector<2x2xf32>,
    return
  }
}

</mosaic_0001>

<llo_original>
// kernel: cnns_vit_forward.1
$region0: #{cnns_vit_forward.1}
  #allocation0 [shape = 'u32[]', space=smem, size = 0x4, offset = 0x4, fixed_abs, tag = 'smem constant byte address 0x4 - core index']
  #allocation1 [shape = 'u32[72,128]{1,0:T(1,128)}', space=vmem, size = 0x9000, scoped, tag = 'internal scratch']
  #allocation2 [shape = 'f32[64,96]{1,0:T(8,128)}', space=vmem, size = 0x8000, scoped, tag = 'scratch operand']
  #allocation3 [shape = 'f32[8,768]{1,0:T(8,128)}', space=vmem, size = 0x6000, scoped, tag = 'scratch operand']
  #allocation4 [shape = 'f32[16,64]{1,0:T(8,128)}', space=vmem, size = 0x2000, scoped, tag = 'scratch operand']
  %s0 = inlined_call_operand.smem [shape: u32[30], index: -1, kind: input, shape index: {}]
  %s1 = sld [smem:[%s0]]
  %s2 = scalar_lea.smem %s0, 1
  %s3 = sld [smem:[%s2]]
  %s4 = scalar_lea.smem %s0, 2
  %s5 = sld [smem:[%s4]]
  %s6 = scalar_lea.smem %s0, 3
  %s7 = sld [smem:[%s6]]
  %s8 = scalar_lea.smem %s0, 4
  %s9 = sld [smem:[%s8]]
  %s10 = scalar_lea.smem %s0, 5
  %s11 = sld [smem:[%s10]]
  %s12 = scalar_lea.smem %s0, 6
  %s13 = sld [smem:[%s12]]
  %s14 = scalar_lea.smem %s0, 7
  %s15 = sld [smem:[%s14]]
  %s16 = scalar_lea.smem %s0, 8
  %s17 = sld [smem:[%s16]]
  %s18 = scalar_lea.smem %s0, 9
  %s19 = sld [smem:[%s18]]
  %s20 = scalar_lea.smem %s0, 10
  %s21 = sld [smem:[%s20]]
  %s22 = scalar_lea.smem %s0, 11
  %s23 = sld [smem:[%s22]]
  %s24 = scalar_lea.smem %s0, 12
  %s25 = sld [smem:[%s24]]
  %s26 = scalar_lea.smem %s0, 13
  %s27 = sld [smem:[%s26]]
  %s28 = scalar_lea.smem %s0, 14
  %s29 = sld [smem:[%s28]]
  %s30 = scalar_lea.smem %s0, 15
  %s31 = sld [smem:[%s30]]
  %s32 = scalar_lea.smem %s0, 16
  %s33 = sld [smem:[%s32]]
  %s34 = scalar_lea.smem %s0, 17
  %s35 = sld [smem:[%s34]]
  %s36 = scalar_lea.smem %s0, 18
  %s37 = sld [smem:[%s36]]
  %s38 = scalar_lea.smem %s0, 19
  %s39 = sld [smem:[%s38]]
  %s40 = scalar_lea.smem %s0, 20
  %s41 = sld [smem:[%s40]]
  %s42 = scalar_lea.smem %s0, 21
  %s43 = sld [smem:[%s42]]
  %s44 = scalar_lea.smem %s0, 22
  %s45 = sld [smem:[%s44]]
  %s46 = scalar_lea.smem %s0, 23
  %s47 = sld [smem:[%s46]]
  %s48 = scalar_lea.smem %s0, 24
  %s49 = sld [smem:[%s48]]
  %s50 = scalar_lea.smem %s0, 25
  %s51 = sld [smem:[%s50]]
  %s52 = scalar_lea.smem %s0, 26
  %s53 = sld [smem:[%s52]]
  %s54 = scalar_lea.smem %s0, 27
  %s55 = sld [smem:[%s54]]
  %s56 = scalar_lea.smem %s0, 28
  %s57 = sld [smem:[%s56]]
  %s58 = scalar_lea.smem %s0, 29
  %s59 = sld [smem:[%s58]]
  %s60 = sld [smem:[#allocation0]]
  $region126: #{cnns_vit_forward.1} parent=0
    _
  %s62 = ssub.s32 1, %s60
  %s63 = scalar_select 0, %s62, %s60
  $region1: #{cnns_vit_forward.1} parent=0
    #allocation5 [shape = 'u8[1024]{0}', space=vmem, size = 0x400, scoped, tag = 'output window, operand 0, single buffered']
    #allocation6 [shape = 's32[1]{0}', space=sflag, size = 0x4, scoped, tag = 'scoped memory for cnns_vit_forward.1']
    %64 = vsyncpa [#allocation6], 0
    // Predicated region
    $region2: #{cnns_vit_forward.1} parent=1 // pred_check
      _
    $region3: #{cnns_vit_forward.1} parent=1 // pred_check_branch
      %66 = sbr.rel (0) target = $region5
    $region4: #{cnns_vit_forward.1} parent=1 // pred_region
      _
    $region5: #{cnns_vit_forward.1} parent=1 // pred_fallthru
      _
    // Predicated region
    $region6: #{cnns_vit_forward.1} parent=1 // pred_check
      _
    $region7: #{cnns_vit_forward.1} parent=1 // pred_check_branch
      %68 = sbr.rel (0) target = $region9
    $region8: #{cnns_vit_forward.1} parent=1 // pred_region
      _
    $region9: #{cnns_vit_forward.1} parent=1 // pred_fallthru
      _
    // Predicated region
    $region10: #{cnns_vit_forward.1} parent=1 // pred_check
      _
    $region11: #{cnns_vit_forward.1} parent=1 // pred_check_branch
      %70 = sbr.rel (0) target = $region13
    $region12: #{cnns_vit_forward.1} parent=1 // pred_region
      _
    $region13: #{cnns_vit_forward.1} parent=1 // pred_fallthru
      _
    // Predicated region
    $region14: #{cnns_vit_forward.1} parent=1 // pred_check
      _
    $region15: #{cnns_vit_forward.1} parent=1 // pred_check_branch
      %72 = sbr.rel (0) target = $region17
    $region16: #{cnns_vit_forward.1} parent=1 // pred_region
      _
    $region17: #{cnns_vit_forward.1} parent=1 // pred_fallthru
      _
    // Predicated region
    $region18: #{cnns_vit_forward.1} parent=1 // pred_check
      _
    $region19: #{cnns_vit_forward.1} parent=1 // pred_check_branch
      %74 = sbr.rel (0) target = $region21
    $region20: #{cnns_vit_forward.1} parent=1 // pred_region
      _
    $region21: #{cnns_vit_forward.1} parent=1 // pred_fallthru
      _
    // Predicated region
    $region22: #{cnns_vit_forward.1} parent=1 // pred_check
      _
    $region23: #{cnns_vit_forward.1} parent=1 // pred_check_branch
      %76 = sbr.rel (0) target = $region25
    $region24: #{cnns_vit_forward.1} parent=1 // pred_region
      _
    $region25: #{cnns_vit_forward.1} parent=1 // pred_fallthru
      _
    // Predicated region
    $region26: #{cnns_vit_forward.1} parent=1 // pred_check
      _
    $region27: #{cnns_vit_forward.1} parent=1 // pred_check_branch
      %78 = sbr.rel (0) target = $region29
    $region28: #{cnns_vit_forward.1} parent=1 // pred_region
      _
    $region29: #{cnns_vit_forward.1} parent=1 // pred_fallthru
      _
    // Predicated region
    $region30: #{cnns_vit_forward.1} parent=1 // pred_check
      _
    $region31: #{cnns_vit_forward.1} parent=1 // pred_check_branch
      %80 = sbr.rel (0) target = $region33
    $region32: #{cnns_vit_forward.1} parent=1 // pred_region
      _
    $region33: #{cnns_vit_forward.1} parent=1 // pred_fallthru
      _
    // Predicated region
    $region34: #{cnns_vit_forward.1} parent=1 // pred_check
      _
    $region35: #{cnns_vit_forward.1} parent=1 // pred_check_branch
      %82 = sbr.rel (0) target = $region37
    $region36: #{cnns_vit_forward.1} parent=1 // pred_region
      _
    $region37: #{cnns_vit_forward.1} parent=1 // pred_fallthru
      _
    // Predicated region
    $region38: #{cnns_vit_forward.1} parent=1 // pred_check
      _
    $region39: #{cnns_vit_forward.1} parent=1 // pred_check_branch
      %84 = sbr.rel (0) target = $region41
    $region40: #{cnns_vit_forward.1} parent=1 // pred_region
      _
    $region41: #{cnns_vit_forward.1} parent=1 // pred_fallthru
      _
    // Predicated region
    $region42: #{cnns_vit_forward.1} parent=1 // pred_check
      _
    $region43: #{cnns_vit_forward.1} parent=1 // pred_check_branch
      %86 = sbr.rel (0) target = $region45
    $region44: #{cnns_vit_forward.1} parent=1 // pred_region
      _
    $region45: #{cnns_vit_forward.1} parent=1 // pred_fallthru
      _
    // Predicated region
    $region46: #{cnns_vit_forward.1} parent=1 // pred_check
      _
    $region47: #{cnns_vit_forward.1} parent=1 // pred_check_branch
      %88 = sbr.rel (0) target = $region49
    $region48: #{cnns_vit_forward.1} parent=1 // pred_region
      _
    $region49: #{cnns_vit_forward.1} parent=1 // pred_fallthru
      _
    // Predicated region
    $region50: #{cnns_vit_forward.1} parent=1 // pred_check
      _
    $region51: #{cnns_vit_forward.1} parent=1 // pred_check_branch
      %90 = sbr.rel (0) target = $region53
    $region52: #{cnns_vit_forward.1} parent=1 // pred_region
      _
    $region53: #{cnns_vit_forward.1} parent=1 // pred_fallthru
      _
    // Predicated region
    $region54: #{cnns_vit_forward.1} parent=1 // pred_check
      _
    $region55: #{cnns_vit_forward.1} parent=1 // pred_check_branch
      %92 = sbr.rel (0) target = $region57
    $region56: #{cnns_vit_forward.1} parent=1 // pred_region
      _
    $region57: #{cnns_vit_forward.1} parent=1 // pred_fallthru
      _
    // Predicated region
    $region58: #{cnns_vit_forward.1} parent=1 // pred_check
      _
    $region59: #{cnns_vit_forward.1} parent=1 // pred_check_branch
      %94 = sbr.rel (0) target = $region61
    $region60: #{cnns_vit_forward.1} parent=1 // pred_region
      _
    $region61: #{cnns_vit_forward.1} parent=1 // pred_fallthru
      _
    // Predicated region
    $region62: #{cnns_vit_forward.1} parent=1 // pred_check
      _
    $region63: #{cnns_vit_forward.1} parent=1 // pred_check_branch
      %96 = sbr.rel (0) target = $region65
    $region64: #{cnns_vit_forward.1} parent=1 // pred_region
      _
    $region65: #{cnns_vit_forward.1} parent=1 // pred_fallthru
      _
    // Predicated region
    $region66: #{cnns_vit_forward.1} parent=1 // pred_check
      _
    $region67: #{cnns_vit_forward.1} parent=1 // pred_check_branch
      %98 = sbr.rel (0) target = $region69
    $region68: #{cnns_vit_forward.1} parent=1 // pred_region
      _
    $region69: #{cnns_vit_forward.1} parent=1 // pred_fallthru
      _
    // Predicated region
    $region70: #{cnns_vit_forward.1} parent=1 // pred_check
      _
    $region71: #{cnns_vit_forward.1} parent=1 // pred_check_branch
      %100 = sbr.rel (0) target = $region73
    $region72: #{cnns_vit_forward.1} parent=1 // pred_region
      _
    $region73: #{cnns_vit_forward.1} parent=1 // pred_fallthru
      _
    // Predicated region
    $region74: #{cnns_vit_forward.1} parent=1 // pred_check
      _
    $region75: #{cnns_vit_forward.1} parent=1 // pred_check_branch
      %102 = sbr.rel (0) target = $region77
    $region76: #{cnns_vit_forward.1} parent=1 // pred_region
      _
    $region77: #{cnns_vit_forward.1} parent=1 // pred_fallthru
      _
    // Predicated region
    $region78: #{cnns_vit_forward.1} parent=1 // pred_check
      _
    $region79: #{cnns_vit_forward.1} parent=1 // pred_check_branch
      %104 = sbr.rel (0) target = $region81
    $region80: #{cnns_vit_forward.1} parent=1 // pred_region
      _
    $region81: #{cnns_vit_forward.1} parent=1 // pred_fallthru
      _
    // Predicated region
    $region82: #{cnns_vit_forward.1} parent=1 // pred_check
      _
    $region83: #{cnns_vit_forward.1} parent=1 // pred_check_branch
      %106 = sbr.rel (0) target = $region85
    $region84: #{cnns_vit_forward.1} parent=1 // pred_region
      _
    $region85: #{cnns_vit_forward.1} parent=1 // pred_fallthru
      _
    // Predicated region
    $region86: #{cnns_vit_forward.1} parent=1 // pred_check
      _
    $region87: #{cnns_vit_forward.1} parent=1 // pred_check_branch
      %108 = sbr.rel (0) target = $region89
    $region88: #{cnns_vit_forward.1} parent=1 // pred_region
      _
    $region89: #{cnns_vit_forward.1} parent=1 // pred_fallthru
      _
    // Predicated region
    $region90: #{cnns_vit_forward.1} parent=1 // pred_check
      _
    $region91: #{cnns_vit_forward.1} parent=1 // pred_check_branch
      %110 = sbr.rel (0) target = $region93
    $region92: #{cnns_vit_forward.1} parent=1 // pred_region
      _
    $region93: #{cnns_vit_forward.1} parent=1 // pred_fallthru
      _
    // Predicated region
    $region94: #{cnns_vit_forward.1} parent=1 // pred_check
      _
    $region95: #{cnns_vit_forward.1} parent=1 // pred_check_branch
      %112 = sbr.rel (0) target = $region97
    $region96: #{cnns_vit_forward.1} parent=1 // pred_region
      _
    $region97: #{cnns_vit_forward.1} parent=1 // pred_fallthru
      _
    // Predicated region
    $region98: #{cnns_vit_forward.1} parent=1 // pred_check
      _
    $region99: #{cnns_vit_forward.1} parent=1 // pred_check_branch
      %114 = sbr.rel (0) target = $region101
    $region100: #{cnns_vit_forward.1} parent=1 // pred_region
      _
    $region101: #{cnns_vit_forward.1} parent=1 // pred_fallthru
      _
    // Predicated region
    $region102: #{cnns_vit_forward.1} parent=1 // pred_check
      _
    $region103: #{cnns_vit_forward.1} parent=1 // pred_check_branch
      %116 = sbr.rel (0) target = $region105
    $region104: #{cnns_vit_forward.1} parent=1 // pred_region
      _
    $region105: #{cnns_vit_forward.1} parent=1 // pred_fallthru
      _
    // Predicated region
    $region106: #{cnns_vit_forward.1} parent=1 // pred_check
      _
    $region107: #{cnns_vit_forward.1} parent=1 // pred_check_branch
      %118 = sbr.rel (0) target = $region109
    $region108: #{cnns_vit_forward.1} parent=1 // pred_region
      _
    $region109: #{cnns_vit_forward.1} parent=1 // pred_fallthru
      _
    // Predicated region
    $region110: #{cnns_vit_forward.1} parent=1 // pred_check
      _
    $region111: #{cnns_vit_forward.1} parent=1 // pred_check_branch
      %120 = sbr.rel (0) target = $region113
    $region112: #{cnns_vit_forward.1} parent=1 // pred_region
      _
    $region113: #{cnns_vit_forward.1} parent=1 // pred_fallthru
      _
    // Predicated region
    $region114: #{cnns_vit_forward.1} parent=1 // pred_check
      _
    $region115: #{cnns_vit_forward.1} parent=1 // pred_check_branch
      %122 = sbr.rel (0) target = $region117
    $region116: #{cnns_vit_forward.1} parent=1 // pred_region
      _
    $region117: #{cnns_vit_forward.1} parent=1 // pred_fallthru
      _
    %v124 = vlaneseq
    %v125 = vshrl.u32 %v124, 7
    %v126 = vadd.s32 %v125, 8
    %v127 = vadd.s32 %v125, 16
    %v128 = vadd.s32 %v125, 24
    %v129 = vadd.s32 %v125, 32
    %v130 = vadd.s32 %v125, 40
    %v131 = vadd.s32 %v125, 48
    %v132 = vadd.s32 %v125, 56
    %v133 = vand.u32 %v125, 31
    %v134 = vand.u32 %v126, 31
    %v135 = vand.u32 %v127, 31
    %v136 = vand.u32 %v128, 31
    %v137 = vand.u32 %v129, 31
    %v138 = vand.u32 %v130, 31
    %v139 = vand.u32 %v131, 31
    %v140 = vand.u32 %v132, 31
    %vm141 = vcmp.ge.s32.totalorder %v133, 1
    %vm142 = vcmp.ge.s32.totalorder %v134, 1
    %vm143 = vcmp.ge.s32.totalorder %v135, 1
    %vm144 = vcmp.ge.s32.totalorder %v136, 1
    %vm145 = vcmp.ge.s32.totalorder %v137, 1
    %vm146 = vcmp.ge.s32.totalorder %v138, 1
    %vm147 = vcmp.ge.s32.totalorder %v139, 1
    %vm148 = vcmp.ge.s32.totalorder %v140, 1
    %v149 = vsel %vm141, 1, 0
    %v150 = vsel %vm142, 1, 0
    %v151 = vsel %vm143, 1, 0
    %v152 = vsel %vm144, 1, 0
    %v153 = vsel %vm145, 1, 0
    %v154 = vsel %vm146, 1, 0
    %v155 = vsel %vm147, 1, 0
    %v156 = vsel %vm148, 1, 0
    %v157 = vcvt.s32.f32 %v149
    %v158 = vcvt.s32.f32 %v150
    %v159 = vcvt.s32.f32 %v151
    %v160 = vcvt.s32.f32 %v152
    %v161 = vcvt.s32.f32 %v153
    %v162 = vcvt.s32.f32 %v154
    %v163 = vcvt.s32.f32 %v155
    %v164 = vcvt.s32.f32 %v156
    %vm165 = vcmp.le.s32.totalorder %v133, 30
    %vm166 = vcmp.le.s32.totalorder %v134, 30
    %vm167 = vcmp.le.s32.totalorder %v135, 30
    %vm168 = vcmp.le.s32.totalorder %v136, 30
    %vm169 = vcmp.le.s32.totalorder %v137, 30
    %vm170 = vcmp.le.s32.totalorder %v138, 30
    %vm171 = vcmp.le.s32.totalorder %v139, 30
    %vm172 = vcmp.le.s32.totalorder %v140, 30
    %v173 = vsel %vm165, 1, 0
    %v174 = vsel %vm166, 1, 0
    %v175 = vsel %vm167, 1, 0
    %v176 = vsel %vm168, 1, 0
    %v177 = vsel %vm169, 1, 0
    %v178 = vsel %vm170, 1, 0
    %v179 = vsel %vm171, 1, 0
    %v180 = vsel %vm172, 1, 0
    %v181 = vcvt.s32.f32 %v173
    %v182 = vcvt.s32.f32 %v174
    %v183 = vcvt.s32.f32 %v175
    %v184 = vcvt.s32.f32 %v176
    %v185 = vcvt.s32.f32 %v177
    %v186 = vcvt.s32.f32 %v178
    %v187 = vcvt.s32.f32 %v179
    %v188 = vcvt.s32.f32 %v180
    %v189 = vadd.s32 %v125, 64
    %v190 = vadd.s32 %v125, 72
    %v191 = vadd.s32 %v125, 80
    %v192 = vadd.s32 %v125, 88
    %v193 = vadd.s32 %v125, 96
    %v194 = vadd.s32 %v125, 104
    %v195 = vadd.s32 %v125, 112
    %v196 = vadd.s32 %v125, 120
    %v197 = vadd.s32 %v125, 128
    %v198 = vadd.s32 %v125, 136
    %v199 = vadd.s32 %v125, 144
    %v200 = vadd.s32 %v125, 152
    %v201 = vadd.s32 %v125, 160
    %v202 = vadd.s32 %v125, 168
    %v203 = vadd.s32 %v125, 176
    %v204 = vadd.s32 %v125, 184
    %v205 = vadd.s32 %v125, 192
    %v206 = vadd.s32 %v125, 200
    %v207 = vadd.s32 %v125, 208
    %v208 = vadd.s32 %v125, 216
    %v209 = vadd.s32 %v125, 224
    %v210 = vadd.s32 %v125, 232
    %v211 = vadd.s32 %v125, 240
    %v212 = vadd.s32 %v125, 248
    %v213 = vadd.s32 %v125, 256
    %v214 = vadd.s32 %v125, 264
    %v215 = vadd.s32 %v125, 272
    %v216 = vadd.s32 %v125, 280
    %v217 = vadd.s32 %v125, 288
    %v218 = vadd.s32 %v125, 296
    %v219 = vadd.s32 %v125, 304
    %v220 = vadd.s32 %v125, 312
    %v221 = vadd.s32 %v125, 320
    %v222 = vadd.s32 %v125, 328
    %v223 = vadd.s32 %v125, 336
    %v224 = vadd.s32 %v125, 344
    %v225 = vadd.s32 %v125, 352
    %v226 = vadd.s32 %v125, 360
    %v227 = vadd.s32 %v125, 368
    %v228 = vadd.s32 %v125, 376
    %v229 = vadd.s32 %v125, 384
    %v230 = vadd.s32 %v125, 392
    %v231 = vadd.s32 %v125, 400
    %v232 = vadd.s32 %v125, 408
    %v233 = vadd.s32 %v125, 416
    %v234 = vadd.s32 %v125, 424
    %v235 = vadd.s32 %v125, 432
    %v236 = vadd.s32 %v125, 440
    %v237 = vadd.s32 %v125, 448
    %v238 = vadd.s32 %v125, 456
    %v239 = vadd.s32 %v125, 464
    %v240 = vadd.s32 %v125, 472
    %v241 = vadd.s32 %v125, 480
    %v242 = vadd.s32 %v125, 488
    %v243 = vadd.s32 %v125, 496
    %v244 = vadd.s32 %v125, 504
    %v245 = vadd.s32 %v125, 512
    %v246 = vadd.s32 %v125, 520
    %v247 = vadd.s32 %v125, 528
    %v248 = vadd.s32 %v125, 536
    %v249 = vadd.s32 %v125, 544
    %v250 = vadd.s32 %v125, 552
    %v251 = vadd.s32 %v125, 560
    %v252 = vadd.s32 %v125, 568
    %v253 = vadd.s32 %v125, 576
    %v254 = vadd.s32 %v125, 584
    %v255 = vadd.s32 %v125, 592
    %v256 = vadd.s32 %v125, 600
    %v257 = vadd.s32 %v125, 608
    %v258 = vadd.s32 %v125, 616
    %v259 = vadd.s32 %v125, 624
    %v260 = vadd.s32 %v125, 632
    %v261 = vadd.s32 %v125, 640
    %v262 = vadd.s32 %v125, 648
    %v263 = vadd.s32 %v125, 656
    %v264 = vadd.s32 %v125, 664
    %v265 = vadd.s32 %v125, 672
    %v266 = vadd.s32 %v125, 680
    %v267 = vadd.s32 %v125, 688
    %v268 = vadd.s32 %v125, 696
    %v269 = vadd.s32 %v125, 704
    %v270 = vadd.s32 %v125, 712
    %v271 = vadd.s32 %v125, 720
    %v272 = vadd.s32 %v125, 728
    %v273 = vadd.s32 %v125, 736
    %v274 = vadd.s32 %v125, 744
    %v275 = vadd.s32 %v125, 752
    %v276 = vadd.s32 %v125, 760
    %v277 = vadd.s32 %v125, 768
    %v278 = vadd.s32 %v125, 776
    %v279 = vadd.s32 %v125, 784
    %v280 = vadd.s32 %v125, 792
    %v281 = vadd.s32 %v125, 800
    %v282 = vadd.s32 %v125, 808
    %v283 = vadd.s32 %v125, 816
    %v284 = vadd.s32 %v125, 824
    %v285 = vadd.s32 %v125, 832
    %v286 = vadd.s32 %v125, 840
    %v287 = vadd.s32 %v125, 848
    %v288 = vadd.s32 %v125, 856
    %v289 = vadd.s32 %v125, 864
    %v290 = vadd.s32 %v125, 872
    %v291 = vadd.s32 %v125, 880
    %v292 = vadd.s32 %v125, 888
    %v293 = vadd.s32 %v125, 896
    %v294 = vadd.s32 %v125, 904
    %v295 = vadd.s32 %v125, 912
    %v296 = vadd.s32 %v125, 920
    %v297 = vadd.s32 %v125, 928
    %v298 = vadd.s32 %v125, 936
    %v299 = vadd.s32 %v125, 944
    %v300 = vadd.s32 %v125, 952
    %v301 = vadd.s32 %v125, 960
    %v302 = vadd.s32 %v125, 968
    %v303 = vadd.s32 %v125, 976
    %v304 = vadd.s32 %v125, 984
    %v305 = vadd.s32 %v125, 992
    %v306 = vadd.s32 %v125, 1000
    %v307 = vadd.s32 %v125, 1008
    %v308 = vadd.s32 %v125, 1016
    %v309 = vlaneseq
    %v310 = vand.u32 %v309, 127
    %v311 = vand.u32 %v189, 31
    %v312 = vand.u32 %v190, 31
    %v313 = vand.u32 %v191, 31
    %v314 = vand.u32 %v192, 31
    %v315 = vand.u32 %v193, 31
    %v316 = vand.u32 %v194, 31
    %v317 = vand.u32 %v195, 31
    %v318 = vand.u32 %v196, 31
    %v319 = vand.u32 %v197, 31
    %v320 = vand.u32 %v198, 31
    %v321 = vand.u32 %v199, 31
    %v322 = vand.u32 %v200, 31
    %v323 = vand.u32 %v201, 31
    %v324 = vand.u32 %v202, 31
    %v325 = vand.u32 %v203, 31
    %v326 = vand.u32 %v204, 31
    %v327 = vand.u32 %v205, 31
    %v328 = vand.u32 %v206, 31
    %v329 = vand.u32 %v207, 31
    %v330 = vand.u32 %v208, 31
    %v331 = vand.u32 %v209, 31
    %v332 = vand.u32 %v210, 31
    %v333 = vand.u32 %v211, 31
    %v334 = vand.u32 %v212, 31
    %v335 = vand.u32 %v213, 31
    %v336 = vand.u32 %v214, 31
    %v337 = vand.u32 %v215, 31
    %v338 = vand.u32 %v216, 31
    %v339 = vand.u32 %v217, 31
    %v340 = vand.u32 %v218, 31
    %v341 = vand.u32 %v219, 31
    %v342 = vand.u32 %v220, 31
    %v343 = vand.u32 %v221, 31
    %v344 = vand.u32 %v222, 31
    %v345 = vand.u32 %v223, 31
    %v346 = vand.u32 %v224, 31
    %v347 = vand.u32 %v225, 31
    %v348 = vand.u32 %v226, 31
    %v349 = vand.u32 %v227, 31
    %v350 = vand.u32 %v228, 31
    %v351 = vand.u32 %v229, 31
    %v352 = vand.u32 %v230, 31
    %v353 = vand.u32 %v231, 31
    %v354 = vand.u32 %v232, 31
    %v355 = vand.u32 %v233, 31
    %v356 = vand.u32 %v234, 31
    %v357 = vand.u32 %v235, 31
    %v358 = vand.u32 %v236, 31
    %v359 = vand.u32 %v237, 31
    %v360 = vand.u32 %v238, 31
    %v361 = vand.u32 %v239, 31
    %v362 = vand.u32 %v240, 31
    %v363 = vand.u32 %v241, 31
    %v364 = vand.u32 %v242, 31
    %v365 = vand.u32 %v243, 31
    %v366 = vand.u32 %v244, 31
    %v367 = vand.u32 %v245, 31
    %v368 = vand.u32 %v246, 31
    %v369 = vand.u32 %v247, 31
    %v370 = vand.u32 %v248, 31
    %v371 = vand.u32 %v249, 31
    %v372 = vand.u32 %v250, 31
    %v373 = vand.u32 %v251, 31
    %v374 = vand.u32 %v252, 31
    %v375 = vand.u32 %v253, 31
    %v376 = vand.u32 %v254, 31
    %v377 = vand.u32 %v255, 31
    %v378 = vand.u32 %v256, 31
    %v379 = vand.u32 %v257, 31
    %v380 = vand.u32 %v258, 31
    %v381 = vand.u32 %v259, 31
    %v382 = vand.u32 %v260, 31
    %v383 = vand.u32 %v261, 31
    %v384 = vand.u32 %v262, 31
    %v385 = vand.u32 %v263, 31
    %v386 = vand.u32 %v264, 31
    %v387 = vand.u32 %v265, 31
    %v388 = vand.u32 %v266, 31
    %v389 = vand.u32 %v267, 31
    %v390 = vand.u32 %v268, 31
    %v391 = vand.u32 %v269, 31
    %v392 = vand.u32 %v270, 31
    %v393 = vand.u32 %v271, 31
    %v394 = vand.u32 %v272, 31
    %v395 = vand.u32 %v273, 31
    %v396 = vand.u32 %v274, 31
    %v397 = vand.u32 %v275, 31
    %v398 = vand.u32 %v276, 31
    %v399 = vand.u32 %v277, 31
    %v400 = vand.u32 %v278, 31
    %v401 = vand.u32 %v279, 31
    %v402 = vand.u32 %v280, 31
    %v403 = vand.u32 %v281, 31
    %v404 = vand.u32 %v282, 31
    %v405 = vand.u32 %v283, 31
    %v406 = vand.u32 %v284, 31
    %v407 = vand.u32 %v285, 31
    %v408 = vand.u32 %v286, 31
    %v409 = vand.u32 %v287, 31
    %v410 = vand.u32 %v288, 31
    %v411 = vand.u32 %v289, 31
    %v412 = vand.u32 %v290, 31
    %v413 = vand.u32 %v291, 31
    %v414 = vand.u32 %v292, 31
    %v415 = vand.u32 %v293, 31
    %v416 = vand.u32 %v294, 31
    %v417 = vand.u32 %v295, 31
    %v418 = vand.u32 %v296, 31
    %v419 = vand.u32 %v297, 31
    %v420 = vand.u32 %v298, 31
    %v421 = vand.u32 %v299, 31
    %v422 = vand.u32 %v300, 31
    %v423 = vand.u32 %v301, 31
    %v424 = vand.u32 %v302, 31
    %v425 = vand.u32 %v303, 31
    %v426 = vand.u32 %v304, 31
    %v427 = vand.u32 %v305, 31
    %v428 = vand.u32 %v306, 31
    %v429 = vand.u32 %v307, 31
    %v430 = vand.u32 %v308, 31
    %vm431 = vcmp.eq.s32.totalorder %v133, %v310
    %vm432 = vcmp.eq.s32.totalorder %v134, %v310
    %vm433 = vcmp.eq.s32.totalorder %v135, %v310
    %vm434 = vcmp.eq.s32.totalorder %v136, %v310
    %vm435 = vcmp.eq.s32.totalorder %v137, %v310
    %vm436 = vcmp.eq.s32.totalorder %v138, %v310
    %vm437 = vcmp.eq.s32.totalorder %v139, %v310
    %vm438 = vcmp.eq.s32.totalorder %v140, %v310
    %vm439 = vcmp.eq.s32.totalorder %v311, %v310
    %vm440 = vcmp.eq.s32.totalorder %v312, %v310
    %vm441 = vcmp.eq.s32.totalorder %v313, %v310
    %vm442 = vcmp.eq.s32.totalorder %v314, %v310
    %vm443 = vcmp.eq.s32.totalorder %v315, %v310
    %vm444 = vcmp.eq.s32.totalorder %v316, %v310
    %vm445 = vcmp.eq.s32.totalorder %v317, %v310
    %vm446 = vcmp.eq.s32.totalorder %v318, %v310
    %vm447 = vcmp.eq.s32.totalorder %v319, %v310
    %vm448 = vcmp.eq.s32.totalorder %v320, %v310
    %vm449 = vcmp.eq.s32.totalorder %v321, %v310
    %vm450 = vcmp.eq.s32.totalorder %v322, %v310
    %vm451 = vcmp.eq.s32.totalorder %v323, %v310
    %vm452 = vcmp.eq.s32.totalorder %v324, %v310
    %vm453 = vcmp.eq.s32.totalorder %v325, %v310
    %vm454 = vcmp.eq.s32.totalorder %v326, %v310
    %vm455 = vcmp.eq.s32.totalorder %v327, %v310
    %vm456 = vcmp.eq.s32.totalorder %v328, %v310
    %vm457 = vcmp.eq.s32.totalorder %v329, %v310
    %vm458 = vcmp.eq.s32.totalorder %v330, %v310
    %vm459 = vcmp.eq.s32.totalorder %v331, %v310
    %vm460 = vcmp.eq.s32.totalorder %v332, %v310
    %vm461 = vcmp.eq.s32.totalorder %v333, %v310
    %vm462 = vcmp.eq.s32.totalorder %v334, %v310
    %vm463 = vcmp.eq.s32.totalorder %v335, %v310
    %vm464 = vcmp.eq.s32.totalorder %v336, %v310
    %vm465 = vcmp.eq.s32.totalorder %v337, %v310
    %vm466 = vcmp.eq.s32.totalorder %v338, %v310
    %vm467 = vcmp.eq.s32.totalorder %v339, %v310
    %vm468 = vcmp.eq.s32.totalorder %v340, %v310
    %vm469 = vcmp.eq.s32.totalorder %v341, %v310
    %vm470 = vcmp.eq.s32.totalorder %v342, %v310
    %vm471 = vcmp.eq.s32.totalorder %v343, %v310
    %vm472 = vcmp.eq.s32.totalorder %v344, %v310
    %vm473 = vcmp.eq.s32.totalorder %v345, %v310
    %vm474 = vcmp.eq.s32.totalorder %v346, %v310
    %vm475 = vcmp.eq.s32.totalorder %v347, %v310
    %vm476 = vcmp.eq.s32.totalorder %v348, %v310
    %vm477 = vcmp.eq.s32.totalorder %v349, %v310
    %vm478 = vcmp.eq.s32.totalorder %v350, %v310
    %vm479 = vcmp.eq.s32.totalorder %v351, %v310
    %vm480 = vcmp.eq.s32.totalorder %v352, %v310
    %vm481 = vcmp.eq.s32.totalorder %v353, %v310
    %vm482 = vcmp.eq.s32.totalorder %v354, %v310
    %vm483 = vcmp.eq.s32.totalorder %v355, %v310
    %vm484 = vcmp.eq.s32.totalorder %v356, %v310
    %vm485 = vcmp.eq.s32.totalorder %v357, %v310
    %vm486 = vcmp.eq.s32.totalorder %v358, %v310
    %vm487 = vcmp.eq.s32.totalorder %v359, %v310
    %vm488 = vcmp.eq.s32.totalorder %v360, %v310
    %vm489 = vcmp.eq.s32.totalorder %v361, %v310
    %vm490 = vcmp.eq.s32.totalorder %v362, %v310
    %vm491 = vcmp.eq.s32.totalorder %v363, %v310
    %vm492 = vcmp.eq.s32.totalorder %v364, %v310
    %vm493 = vcmp.eq.s32.totalorder %v365, %v310
    %vm494 = vcmp.eq.s32.totalorder %v366, %v310
    %vm495 = vcmp.eq.s32.totalorder %v367, %v310
    %vm496 = vcmp.eq.s32.totalorder %v368, %v310
    %vm497 = vcmp.eq.s32.totalorder %v369, %v310
    %vm498 = vcmp.eq.s32.totalorder %v370, %v310
    %vm499 = vcmp.eq.s32.totalorder %v371, %v310
    %vm500 = vcmp.eq.s32.totalorder %v372, %v310
    %vm501 = vcmp.eq.s32.totalorder %v373, %v310
    %vm502 = vcmp.eq.s32.totalorder %v374, %v310
    %vm503 = vcmp.eq.s32.totalorder %v375, %v310
    %vm504 = vcmp.eq.s32.totalorder %v376, %v310
    %vm505 = vcmp.eq.s32.totalorder %v377, %v310
    %vm506 = vcmp.eq.s32.totalorder %v378, %v310
    %vm507 = vcmp.eq.s32.totalorder %v379, %v310
    %vm508 = vcmp.eq.s32.totalorder %v380, %v310
    %vm509 = vcmp.eq.s32.totalorder %v381, %v310
    %vm510 = vcmp.eq.s32.totalorder %v382, %v310
    %vm511 = vcmp.eq.s32.totalorder %v383, %v310
    %vm512 = vcmp.eq.s32.totalorder %v384, %v310
    %vm513 = vcmp.eq.s32.totalorder %v385, %v310
    %vm514 = vcmp.eq.s32.totalorder %v386, %v310
    %vm515 = vcmp.eq.s32.totalorder %v387, %v310
    %vm516 = vcmp.eq.s32.totalorder %v388, %v310
    %vm517 = vcmp.eq.s32.totalorder %v389, %v310
    %vm518 = vcmp.eq.s32.totalorder %v390, %v310
    %vm519 = vcmp.eq.s32.totalorder %v391, %v310
    %vm520 = vcmp.eq.s32.totalorder %v392, %v310
    %vm521 = vcmp.eq.s32.totalorder %v393, %v310
    %vm522 = vcmp.eq.s32.totalorder %v394, %v310
    %vm523 = vcmp.eq.s32.totalorder %v395, %v310
    %vm524 = vcmp.eq.s32.totalorder %v396, %v310
    %vm525 = vcmp.eq.s32.totalorder %v397, %v310
    %vm526 = vcmp.eq.s32.totalorder %v398, %v310
    %vm527 = vcmp.eq.s32.totalorder %v399, %v310
    %vm528 = vcmp.eq.s32.totalorder %v400, %v310
    %vm529 = vcmp.eq.s32.totalorder %v401, %v310
    %vm530 = vcmp.eq.s32.totalorder %v402, %v310
    %vm531 = vcmp.eq.s32.totalorder %v403, %v310
    %vm532 = vcmp.eq.s32.totalorder %v404, %v310
    %vm533 = vcmp.eq.s32.totalorder %v405, %v310
    %vm534 = vcmp.eq.s32.totalorder %v406, %v310
    %vm535 = vcmp.eq.s32.totalorder %v407, %v310
    %vm536 = vcmp.eq.s32.totalorder %v408, %v310
    %vm537 = vcmp.eq.s32.totalorder %v409, %v310
    %vm538 = vcmp.eq.s32.totalorder %v410, %v310
    %vm539 = vcmp.eq.s32.totalorder %v411, %v310
    %vm540 = vcmp.eq.s32.totalorder %v412, %v310
    %vm541 = vcmp.eq.s32.totalorder %v413, %v310
    %vm542 = vcmp.eq.s32.totalorder %v414, %v310
    %vm543 = vcmp.eq.s32.totalorder %v415, %v310
    %vm544 = vcmp.eq.s32.totalorder %v416, %v310
    %vm545 = vcmp.eq.s32.totalorder %v417, %v310
    %vm546 = vcmp.eq.s32.totalorder %v418, %v310
    %vm547 = vcmp.eq.s32.totalorder %v419, %v310
    %vm548 = vcmp.eq.s32.totalorder %v420, %v310
    %vm549 = vcmp.eq.s32.totalorder %v421, %v310
    %vm550 = vcmp.eq.s32.totalorder %v422, %v310
    %vm551 = vcmp.eq.s32.totalorder %v423, %v310
    %vm552 = vcmp.eq.s32.totalorder %v424, %v310
    %vm553 = vcmp.eq.s32.totalorder %v425, %v310
    %vm554 = vcmp.eq.s32.totalorder %v426, %v310
    %vm555 = vcmp.eq.s32.totalorder %v427, %v310
    %vm556 = vcmp.eq.s32.totalorder %v428, %v310
    %vm557 = vcmp.eq.s32.totalorder %v429, %v310
    %vm558 = vcmp.eq.s32.totalorder %v430, %v310
    %v559 = vsel %vm431, 1, 0
    %v560 = vsel %vm432, 1, 0
    %v561 = vsel %vm433, 1, 0
    %v562 = vsel %vm434, 1, 0
    %v563 = vsel %vm435, 1, 0
    %v564 = vsel %vm436, 1, 0
    %v565 = vsel %vm437, 1, 0
    %v566 = vsel %vm438, 1, 0
    %v567 = vsel %vm439, 1, 0
    %v568 = vsel %vm440, 1, 0
    %v569 = vsel %vm441, 1, 0
    %v570 = vsel %vm442, 1, 0
    %v571 = vsel %vm443, 1, 0
    %v572 = vsel %vm444, 1, 0
    %v573 = vsel %vm445, 1, 0
    %v574 = vsel %vm446, 1, 0
    %v575 = vsel %vm447, 1, 0
    %v576 = vsel %vm448, 1, 0
    %v577 = vsel %vm449, 1, 0
    %v578 = vsel %vm450, 1, 0
    %v579 = vsel %vm451, 1, 0
    %v580 = vsel %vm452, 1, 0
    %v581 = vsel %vm453, 1, 0
    %v582 = vsel %vm454, 1, 0
    %v583 = vsel %vm455, 1, 0
    %v584 = vsel %vm456, 1, 0
    %v585 = vsel %vm457, 1, 0
    %v586 = vsel %vm458, 1, 0
    %v587 = vsel %vm459, 1, 0
    %v588 = vsel %vm460, 1, 0
    %v589 = vsel %vm461, 1, 0
    %v590 = vsel %vm462, 1, 0
    %v591 = vsel %vm463, 1, 0
    %v592 = vsel %vm464, 1, 0
    %v593 = vsel %vm465, 1, 0
    %v594 = vsel %vm466, 1, 0
    %v595 = vsel %vm467, 1, 0
    %v596 = vsel %vm468, 1, 0
    %v597 = vsel %vm469, 1, 0
    %v598 = vsel %vm470, 1, 0
    %v599 = vsel %vm471, 1, 0
    %v600 = vsel %vm472, 1, 0
    %v601 = vsel %vm473, 1, 0
    %v602 = vsel %vm474, 1, 0
    %v603 = vsel %vm475, 1, 0
    %v604 = vsel %vm476, 1, 0
    %v605 = vsel %vm477, 1, 0
    %v606 = vsel %vm478, 1, 0
    %v607 = vsel %vm479, 1, 0
    %v608 = vsel %vm480, 1, 0
    %v609 = vsel %vm481, 1, 0
    %v610 = vsel %vm482, 1, 0
    %v611 = vsel %vm483, 1, 0
    %v612 = vsel %vm484, 1, 0
    %v613 = vsel %vm485, 1, 0
    %v614 = vsel %vm486, 1, 0
    %v615 = vsel %vm487, 1, 0
    %v616 = vsel %vm488, 1, 0
    %v617 = vsel %vm489, 1, 0
    %v618 = vsel %vm490, 1, 0
    %v619 = vsel %vm491, 1, 0
    %v620 = vsel %vm492, 1, 0
    %v621 = vsel %vm493, 1, 0
    %v622 = vsel %vm494, 1, 0
    %v623 = vsel %vm495, 1, 0
    %v624 = vsel %vm496, 1, 0
    %v625 = vsel %vm497, 1, 0
    %v626 = vsel %vm498, 1, 0
    %v627 = vsel %vm499, 1, 0
    %v628 = vsel %vm500, 1, 0
    %v629 = vsel %vm501, 1, 0
    %v630 = vsel %vm502, 1, 0
    %v631 = vsel %vm503, 1, 0
    %v632 = vsel %vm504, 1, 0
    %v633 = vsel %vm505, 1, 0
    %v634 = vsel %vm506, 1, 0
    %v635 = vsel %vm507, 1, 0
    %v636 = vsel %vm508, 1, 0
    %v637 = vsel %vm509, 1, 0
    %v638 = vsel %vm510, 1, 0
    %v639 = vsel %vm511, 1, 0
    %v640 = vsel %vm512, 1, 0
    %v641 = vsel %vm513, 1, 0
    %v642 = vsel %vm514, 1, 0
    %v643 = vsel %vm515, 1, 0
    %v644 = vsel %vm516, 1, 0
    %v645 = vsel %vm517, 1, 0
    %v646 = vsel %vm518, 1, 0
    %v647 = vsel %vm519, 1, 0
    %v648 = vsel %vm520, 1, 0
    %v649 = vsel %vm521, 1, 0
    %v650 = vsel %vm522, 1, 0
    %v651 = vsel %vm523, 1, 0
    %v652 = vsel %vm524, 1, 0
    %v653 = vsel %vm525, 1, 0
    %v654 = vsel %vm526, 1, 0
    %v655 = vsel %vm527, 1, 0
    %v656 = vsel %vm528, 1, 0
    %v657 = vsel %vm529, 1, 0
    %v658 = vsel %vm530, 1, 0
    %v659 = vsel %vm531, 1, 0
    %v660 = vsel %vm532, 1, 0
    %v661 = vsel %vm533, 1, 0
    %v662 = vsel %vm534, 1, 0
    %v663 = vsel %vm535, 1, 0
    %v664 = vsel %vm536, 1, 0
    %v665 = vsel %vm537, 1, 0
    %v666 = vsel %vm538, 1, 0
    %v667 = vsel %vm539, 1, 0
    %v668 = vsel %vm540, 1, 0
    %v669 = vsel %vm541, 1, 0
    %v670 = vsel %vm542, 1, 0
    %v671 = vsel %vm543, 1, 0
    %v672 = vsel %vm544, 1, 0
    %v673 = vsel %vm545, 1, 0
    %v674 = vsel %vm546, 1, 0
    %v675 = vsel %vm547, 1, 0
    %v676 = vsel %vm548, 1, 0
    %v677 = vsel %vm549, 1, 0
    %v678 = vsel %vm550, 1, 0
    %v679 = vsel %vm551, 1, 0
    %v680 = vsel %vm552, 1, 0
    %v681 = vsel %vm553, 1, 0
    %v682 = vsel %vm554, 1, 0
    %v683 = vsel %vm555, 1, 0
    %v684 = vsel %vm556, 1, 0
    %v685 = vsel %vm557, 1, 0
    %v686 = vsel %vm558, 1, 0
    %v687 = vcvt.s32.f32 %v559
    %v688 = vcvt.s32.f32 %v560
    %v689 = vcvt.s32.f32 %v561
    %v690 = vcvt.s32.f32 %v562
    %v691 = vcvt.s32.f32 %v563
    %v692 = vcvt.s32.f32 %v564
    %v693 = vcvt.s32.f32 %v565
    %v694 = vcvt.s32.f32 %v566
    %v695 = vcvt.s32.f32 %v567
    %v696 = vcvt.s32.f32 %v568
    %v697 = vcvt.s32.f32 %v569
    %v698 = vcvt.s32.f32 %v570
    %v699 = vcvt.s32.f32 %v571
    %v700 = vcvt.s32.f32 %v572
    %v701 = vcvt.s32.f32 %v573
    %v702 = vcvt.s32.f32 %v574
    %v703 = vcvt.s32.f32 %v575
    %v704 = vcvt.s32.f32 %v576
    %v705 = vcvt.s32.f32 %v577
    %v706 = vcvt.s32.f32 %v578
    %v707 = vcvt.s32.f32 %v579
    %v708 = vcvt.s32.f32 %v580
    %v709 = vcvt.s32.f32 %v581
    %v710 = vcvt.s32.f32 %v582
    %v711 = vcvt.s32.f32 %v583
    %v712 = vcvt.s32.f32 %v584
    %v713 = vcvt.s32.f32 %v585
    %v714 = vcvt.s32.f32 %v586
    %v715 = vcvt.s32.f32 %v587
    %v716 = vcvt.s32.f32 %v588
    %v717 = vcvt.s32.f32 %v589
    %v718 = vcvt.s32.f32 %v590
    %v719 = vcvt.s32.f32 %v591
    %v720 = vcvt.s32.f32 %v592
    %v721 = vcvt.s32.f32 %v593
    %v722 = vcvt.s32.f32 %v594
    %v723 = vcvt.s32.f32 %v595
    %v724 = vcvt.s32.f32 %v596
    %v725 = vcvt.s32.f32 %v597
    %v726 = vcvt.s32.f32 %v598
    %v727 = vcvt.s32.f32 %v599
    %v728 = vcvt.s32.f32 %v600
    %v729 = vcvt.s32.f32 %v601
    %v730 = vcvt.s32.f32 %v602
    %v731 = vcvt.s32.f32 %v603
    %v732 = vcvt.s32.f32 %v604
    %v733 = vcvt.s32.f32 %v605
    %v734 = vcvt.s32.f32 %v606
    %v735 = vcvt.s32.f32 %v607
    %v736 = vcvt.s32.f32 %v608
    %v737 = vcvt.s32.f32 %v609
    %v738 = vcvt.s32.f32 %v610
    %v739 = vcvt.s32.f32 %v611
    %v740 = vcvt.s32.f32 %v612
    %v741 = vcvt.s32.f32 %v613
    %v742 = vcvt.s32.f32 %v614
    %v743 = vcvt.s32.f32 %v615
    %v744 = vcvt.s32.f32 %v616
    %v745 = vcvt.s32.f32 %v617
    %v746 = vcvt.s32.f32 %v618
    %v747 = vcvt.s32.f32 %v619
    %v748 = vcvt.s32.f32 %v620
    %v749 = vcvt.s32.f32 %v621
    %v750 = vcvt.s32.f32 %v622
    %v751 = vcvt.s32.f32 %v623
    %v752 = vcvt.s32.f32 %v624
    %v753 = vcvt.s32.f32 %v625
    %v754 = vcvt.s32.f32 %v626
    %v755 = vcvt.s32.f32 %v627
    %v756 = vcvt.s32.f32 %v628
    %v757 = vcvt.s32.f32 %v629
    %v758 = vcvt.s32.f32 %v630
    %v759 = vcvt.s32.f32 %v631
    %v760 = vcvt.s32.f32 %v632
    %v761 = vcvt.s32.f32 %v633
    %v762 = vcvt.s32.f32 %v634
    %v763 = vcvt.s32.f32 %v635
    %v764 = vcvt.s32.f32 %v636
    %v765 = vcvt.s32.f32 %v637
    %v766 = vcvt.s32.f32 %v638
    %v767 = vcvt.s32.f32 %v639
    %v768 = vcvt.s32.f32 %v640
    %v769 = vcvt.s32.f32 %v641
    %v770 = vcvt.s32.f32 %v642
    %v771 = vcvt.s32.f32 %v643
    %v772 = vcvt.s32.f32 %v644
    %v773 = vcvt.s32.f32 %v645
    %v774 = vcvt.s32.f32 %v646
    %v775 = vcvt.s32.f32 %v647
    %v776 = vcvt.s32.f32 %v648
    %v777 = vcvt.s32.f32 %v649
    %v778 = vcvt.s32.f32 %v650
    %v779 = vcvt.s32.f32 %v651
    %v780 = vcvt.s32.f32 %v652
    %v781 = vcvt.s32.f32 %v653
    %v782 = vcvt.s32.f32 %v654
    %v783 = vcvt.s32.f32 %v655
    %v784 = vcvt.s32.f32 %v656
    %v785 = vcvt.s32.f32 %v657
    %v786 = vcvt.s32.f32 %v658
    %v787 = vcvt.s32.f32 %v659
    %v788 = vcvt.s32.f32 %v660
    %v789 = vcvt.s32.f32 %v661
    %v790 = vcvt.s32.f32 %v662
    %v791 = vcvt.s32.f32 %v663
    %v792 = vcvt.s32.f32 %v664
    %v793 = vcvt.s32.f32 %v665
    %v794 = vcvt.s32.f32 %v666
    %v795 = vcvt.s32.f32 %v667
    %v796 = vcvt.s32.f32 %v668
    %v797 = vcvt.s32.f32 %v669
    %v798 = vcvt.s32.f32 %v670
    %v799 = vcvt.s32.f32 %v671
    %v800 = vcvt.s32.f32 %v672
    %v801 = vcvt.s32.f32 %v673
    %v802 = vcvt.s32.f32 %v674
    %v803 = vcvt.s32.f32 %v675
    %v804 = vcvt.s32.f32 %v676
    %v805 = vcvt.s32.f32 %v677
    %v806 = vcvt.s32.f32 %v678
    %v807 = vcvt.s32.f32 %v679
    %v808 = vcvt.s32.f32 %v680
    %v809 = vcvt.s32.f32 %v681
    %v810 = vcvt.s32.f32 %v682
    %v811 = vcvt.s32.f32 %v683
    %v812 = vcvt.s32.f32 %v684
    %v813 = vcvt.s32.f32 %v685
    %v814 = vcvt.s32.f32 %v686
    %v815 = vadd.s32 %v310, 128
    %v816 = vadd.s32 %v310, 256
    %v817 = vadd.s32 %v310, 384
    %v818 = vadd.s32 %v310, 512
    %v819 = vadd.s32 %v310, 640
    %v820 = vadd.s32 %v310, 768
    %v821 = vadd.s32 %v310, 896
    %v822 = vand.u32 %v310, 31
    %v823 = vand.u32 %v815, 31
    %v824 = vand.u32 %v816, 31
    %v825 = vand.u32 %v817, 31
    %v826 = vand.u32 %v818, 31
    %v827 = vand.u32 %v819, 31
    %v828 = vand.u32 %v820, 31
    %v829 = vand.u32 %v821, 31
    %vm830 = vcmp.eq.s32.totalorder %v822, %v125
    %vm831 = vcmp.eq.s32.totalorder %v823, %v125
    %vm832 = vcmp.eq.s32.totalorder %v824, %v125
    %vm833 = vcmp.eq.s32.totalorder %v825, %v125
    %vm834 = vcmp.eq.s32.totalorder %v826, %v125
    %vm835 = vcmp.eq.s32.totalorder %v827, %v125
    %vm836 = vcmp.eq.s32.totalorder %v828, %v125
    %vm837 = vcmp.eq.s32.totalorder %v829, %v125
    %vm838 = vcmp.eq.s32.totalorder %v822, %v126
    %vm839 = vcmp.eq.s32.totalorder %v823, %v126
    %vm840 = vcmp.eq.s32.totalorder %v824, %v126
    %vm841 = vcmp.eq.s32.totalorder %v825, %v126
    %vm842 = vcmp.eq.s32.totalorder %v826, %v126
    %vm843 = vcmp.eq.s32.totalorder %v827, %v126
    %vm844 = vcmp.eq.s32.totalorder %v828, %v126
    %vm845 = vcmp.eq.s32.totalorder %v829, %v126
    %vm846 = vcmp.eq.s32.totalorder %v822, %v127
    %vm847 = vcmp.eq.s32.totalorder %v823, %v127
    %vm848 = vcmp.eq.s32.totalorder %v824, %v127
    %vm849 = vcmp.eq.s32.totalorder %v825, %v127
    %vm850 = vcmp.eq.s32.totalorder %v826, %v127
    %vm851 = vcmp.eq.s32.totalorder %v827, %v127
    %vm852 = vcmp.eq.s32.totalorder %v828, %v127
    %vm853 = vcmp.eq.s32.totalorder %v829, %v127
    %vm854 = vcmp.eq.s32.totalorder %v822, %v128
    %vm855 = vcmp.eq.s32.totalorder %v823, %v128
    %vm856 = vcmp.eq.s32.totalorder %v824, %v128
    %vm857 = vcmp.eq.s32.totalorder %v825, %v128
    %vm858 = vcmp.eq.s32.totalorder %v826, %v128
    %vm859 = vcmp.eq.s32.totalorder %v827, %v128
    %vm860 = vcmp.eq.s32.totalorder %v828, %v128
    %vm861 = vcmp.eq.s32.totalorder %v829, %v128
    %v862 = vsel %vm830, 1, 0
    %v863 = vsel %vm831, 1, 0
    %v864 = vsel %vm832, 1, 0
    %v865 = vsel %vm833, 1, 0
    %v866 = vsel %vm834, 1, 0
    %v867 = vsel %vm835, 1, 0
    %v868 = vsel %vm836, 1, 0
    %v869 = vsel %vm837, 1, 0
    %v870 = vsel %vm838, 1, 0
    %v871 = vsel %vm839, 1, 0
    %v872 = vsel %vm840, 1, 0
    %v873 = vsel %vm841, 1, 0
    %v874 = vsel %vm842, 1, 0
    %v875 = vsel %vm843, 1, 0
    %v876 = vsel %vm844, 1, 0
    %v877 = vsel %vm845, 1, 0
    %v878 = vsel %vm846, 1, 0
    %v879 = vsel %vm847, 1, 0
    %v880 = vsel %vm848, 1, 0
    %v881 = vsel %vm849, 1, 0
    %v882 = vsel %vm850, 1, 0
    %v883 = vsel %vm851, 1, 0
    %v884 = vsel %vm852, 1, 0
    %v885 = vsel %vm853, 1, 0
    %v886 = vsel %vm854, 1, 0
    %v887 = vsel %vm855, 1, 0
    %v888 = vsel %vm856, 1, 0
    %v889 = vsel %vm857, 1, 0
    %v890 = vsel %vm858, 1, 0
    %v891 = vsel %vm859, 1, 0
    %v892 = vsel %vm860, 1, 0
    %v893 = vsel %vm861, 1, 0
    %v894 = vcvt.s32.f32 %v862
    %v895 = vcvt.s32.f32 %v863
    %v896 = vcvt.s32.f32 %v864
    %v897 = vcvt.s32.f32 %v865
    %v898 = vcvt.s32.f32 %v866
    %v899 = vcvt.s32.f32 %v867
    %v900 = vcvt.s32.f32 %v868
    %v901 = vcvt.s32.f32 %v869
    %v902 = vcvt.s32.f32 %v870
    %v903 = vcvt.s32.f32 %v871
    %v904 = vcvt.s32.f32 %v872
    %v905 = vcvt.s32.f32 %v873
    %v906 = vcvt.s32.f32 %v874
    %v907 = vcvt.s32.f32 %v875
    %v908 = vcvt.s32.f32 %v876
    %v909 = vcvt.s32.f32 %v877
    %v910 = vcvt.s32.f32 %v878
    %v911 = vcvt.s32.f32 %v879
    %v912 = vcvt.s32.f32 %v880
    %v913 = vcvt.s32.f32 %v881
    %v914 = vcvt.s32.f32 %v882
    %v915 = vcvt.s32.f32 %v883
    %v916 = vcvt.s32.f32 %v884
    %v917 = vcvt.s32.f32 %v885
    %v918 = vcvt.s32.f32 %v886
    %v919 = vcvt.s32.f32 %v887
    %v920 = vcvt.s32.f32 %v888
    %v921 = vcvt.s32.f32 %v889
    %v922 = vcvt.s32.f32 %v890
    %v923 = vcvt.s32.f32 %v891
    %v924 = vcvt.s32.f32 %v892
    %v925 = vcvt.s32.f32 %v893
    %v926 = vld [vmem:[%s1] sm:$0xff]
    %v927 = vld [vmem:[%s1 + $0x8] sm:$0xff]
    %v928 = vld [vmem:[%s1 + $0x10] sm:$0xff]
    %v929 = vld [vmem:[%s1 + $0x18] sm:$0xff]
    %v930 = vld [vmem:[%s1 + $0x20] sm:$0xff]
    %v931 = vld [vmem:[%s1 + $0x28] sm:$0xff]
    %v932 = vld [vmem:[%s1 + $0x30] sm:$0xff]
    %v933 = vld [vmem:[%s1 + $0x38] sm:$0xff]
    %v934 = vld [vmem:[%s5] sm:$0x1]
    %v935 = vld [vmem:[%s7] sm:$0x1]
    %v936 = vpack.c.bf16 %v927, %v926
    %v937 = vpack.c.bf16 %v929, %v928
    %v938 = vpack.c.bf16 %v931, %v930
    %v939 = vpack.c.bf16 %v933, %v932
    %s940 = scalar_lea.vmem %s3, 384
    %v941 = vld [vmem:[%s940] sm:$0xff]
    %v942 = vld [vmem:[%s940 + $0x8] sm:$0xff]
    %v943 = vld [vmem:[%s940 + $0x10] sm:$0xff]
    %v944 = vld [vmem:[%s940 + $0x18] sm:$0xff]
    %v945 = vld [vmem:[%s940 + $0x20] sm:$0xff]
    %v946 = vld [vmem:[%s940 + $0x28] sm:$0xff]
    %v947 = vld [vmem:[%s940 + $0x30] sm:$0xff]
    %v948 = vld [vmem:[%s940 + $0x38] sm:$0xff]
    %v949 = vld [vmem:[%s940 + $0x40] sm:$0xff]
    %v950 = vld [vmem:[%s940 + $0x48] sm:$0xff]
    %v951 = vld [vmem:[%s940 + $0x50] sm:$0xff]
    %v952 = vld [vmem:[%s940 + $0x58] sm:$0xff]
    %v953 = vld [vmem:[%s940 + $0x60] sm:$0xff]
    %v954 = vld [vmem:[%s940 + $0x68] sm:$0xff]
    %v955 = vld [vmem:[%s940 + $0x70] sm:$0xff]
    %v956 = vld [vmem:[%s940 + $0x78] sm:$0xff]
    %v957 = vld [vmem:[%s940 + $0x80] sm:$0xff]
    %v958 = vld [vmem:[%s940 + $0x88] sm:$0xff]
    %v959 = vld [vmem:[%s940 + $0x90] sm:$0xff]
    %v960 = vld [vmem:[%s940 + $0x98] sm:$0xff]
    %v961 = vld [vmem:[%s940 + $0xa0] sm:$0xff]
    %v962 = vld [vmem:[%s940 + $0xa8] sm:$0xff]
    %v963 = vld [vmem:[%s940 + $0xb0] sm:$0xff]
    %v964 = vld [vmem:[%s940 + $0xb8] sm:$0xff]
    %v965 = vld [vmem:[%s940 + $0xc0] sm:$0xff]
    %v966 = vld [vmem:[%s940 + $0xc8] sm:$0xff]
    %v967 = vld [vmem:[%s940 + $0xd0] sm:$0xff]
    %v968 = vld [vmem:[%s940 + $0xd8] sm:$0xff]
    %v969 = vld [vmem:[%s940 + $0xe0] sm:$0xff]
    %v970 = vld [vmem:[%s940 + $0xe8] sm:$0xff]
    %v971 = vld [vmem:[%s940 + $0xf0] sm:$0xff]
    %v972 = vld [vmem:[%s940 + $0xf8] sm:$0xff]
    %v973 = vld [vmem:[%s940 + $0x100] sm:$0xff]
    %v974 = vld [vmem:[%s940 + $0x108] sm:$0xff]
    %v975 = vld [vmem:[%s940 + $0x110] sm:$0xff]
    %v976 = vld [vmem:[%s940 + $0x118] sm:$0xff]
    %v977 = vld [vmem:[%s940 + $0x120] sm:$0xff]
    %v978 = vld [vmem:[%s940 + $0x128] sm:$0xff]
    %v979 = vld [vmem:[%s940 + $0x130] sm:$0xff]
    %v980 = vld [vmem:[%s940 + $0x138] sm:$0xff]
    %v981 = vld [vmem:[%s940 + $0x140] sm:$0xff]
    %v982 = vld [vmem:[%s940 + $0x148] sm:$0xff]
    %v983 = vld [vmem:[%s940 + $0x150] sm:$0xff]
    %v984 = vld [vmem:[%s940 + $0x158] sm:$0xff]
    %v985 = vld [vmem:[%s940 + $0x160] sm:$0xff]
    %v986 = vld [vmem:[%s940 + $0x168] sm:$0xff]
    %v987 = vld [vmem:[%s940 + $0x170] sm:$0xff]
    %v988 = vld [vmem:[%s940 + $0x178] sm:$0xff]
    %vm997 = vcmask 1040384
    %v998 = vrot.slane %v926, 7
    %v999 = vrot.slane %v927, 7
    %v1000 = vsel %vm997, %v998, %v999
    %v1001 = vrot.slane %v928, 7
    %v1002 = vsel %vm997, %v999, %v1001
    %v1003 = vrot.slane %v929, 7
    %v1004 = vsel %vm997, %v1001, %v1003
    %v1005 = vrot.slane %v930, 7
    %v1006 = vsel %vm997, %v1003, %v1005
    %v1007 = vrot.slane %v931, 7
    %v1008 = vsel %vm997, %v1005, %v1007
    %v1009 = vrot.slane %v932, 7
    %v1010 = vsel %vm997, %v1007, %v1009
    %v1011 = vrot.slane %v933, 7
    %v1012 = vsel %vm997, %v1009, %v1011
    %v1021 = vsel %vm997, 0.0, %v998
    %v1022 = vmul.f32 %v1021, %v157
    %v1023 = vmul.f32 %v1000, %v158
    %v1024 = vmul.f32 %v1002, %v159
    %v1025 = vmul.f32 %v1004, %v160
    %v1026 = vmul.f32 %v1006, %v161
    %v1027 = vmul.f32 %v1008, %v162
    %v1028 = vmul.f32 %v1010, %v163
    %v1029 = vmul.f32 %v1012, %v164
    %v1030 = vpack.c.bf16 %v1023, %v1022
    %v1031 = vpack.c.bf16 %v1025, %v1024
    %v1032 = vpack.c.bf16 %v1027, %v1026
    %v1033 = vpack.c.bf16 %v1029, %v1028
    %v1034 = vld [vmem:[%s3] sm:$0xff]
    %v1035 = vld [vmem:[%s3 + $0x8] sm:$0xff]
    %v1036 = vld [vmem:[%s3 + $0x10] sm:$0xff]
    %v1037 = vld [vmem:[%s3 + $0x18] sm:$0xff]
    %v1038 = vld [vmem:[%s3 + $0x20] sm:$0xff]
    %v1039 = vld [vmem:[%s3 + $0x28] sm:$0xff]
    %v1040 = vld [vmem:[%s3 + $0x30] sm:$0xff]
    %v1041 = vld [vmem:[%s3 + $0x38] sm:$0xff]
    %v1042 = vld [vmem:[%s3 + $0x40] sm:$0xff]
    %v1043 = vld [vmem:[%s3 + $0x48] sm:$0xff]
    %v1044 = vld [vmem:[%s3 + $0x50] sm:$0xff]
    %v1045 = vld [vmem:[%s3 + $0x58] sm:$0xff]
    %v1046 = vld [vmem:[%s3 + $0x60] sm:$0xff]
    %v1047 = vld [vmem:[%s3 + $0x68] sm:$0xff]
    %v1048 = vld [vmem:[%s3 + $0x70] sm:$0xff]
    %v1049 = vld [vmem:[%s3 + $0x78] sm:$0xff]
    %v1050 = vld [vmem:[%s3 + $0x80] sm:$0xff]
    %v1051 = vld [vmem:[%s3 + $0x88] sm:$0xff]
    %v1052 = vld [vmem:[%s3 + $0x90] sm:$0xff]
    %v1053 = vld [vmem:[%s3 + $0x98] sm:$0xff]
    %v1054 = vld [vmem:[%s3 + $0xa0] sm:$0xff]
    %v1055 = vld [vmem:[%s3 + $0xa8] sm:$0xff]
    %v1056 = vld [vmem:[%s3 + $0xb0] sm:$0xff]
    %v1057 = vld [vmem:[%s3 + $0xb8] sm:$0xff]
    %v1058 = vld [vmem:[%s3 + $0xc0] sm:$0xff]
    %v1059 = vld [vmem:[%s3 + $0xc8] sm:$0xff]
    %v1060 = vld [vmem:[%s3 + $0xd0] sm:$0xff]
    %v1061 = vld [vmem:[%s3 + $0xd8] sm:$0xff]
    %v1062 = vld [vmem:[%s3 + $0xe0] sm:$0xff]
    %v1063 = vld [vmem:[%s3 + $0xe8] sm:$0xff]
    %v1064 = vld [vmem:[%s3 + $0xf0] sm:$0xff]
    %v1065 = vld [vmem:[%s3 + $0xf8] sm:$0xff]
    %v1066 = vld [vmem:[%s3 + $0x100] sm:$0xff]
    %v1067 = vld [vmem:[%s3 + $0x108] sm:$0xff]
    %v1068 = vld [vmem:[%s3 + $0x110] sm:$0xff]
    %v1069 = vld [vmem:[%s3 + $0x118] sm:$0xff]
    %v1070 = vld [vmem:[%s3 + $0x120] sm:$0xff]
    %v1071 = vld [vmem:[%s3 + $0x128] sm:$0xff]
    %v1072 = vld [vmem:[%s3 + $0x130] sm:$0xff]
    %v1073 = vld [vmem:[%s3 + $0x138] sm:$0xff]
    %v1074 = vld [vmem:[%s3 + $0x140] sm:$0xff]
    %v1075 = vld [vmem:[%s3 + $0x148] sm:$0xff]
    %v1076 = vld [vmem:[%s3 + $0x150] sm:$0xff]
    %v1077 = vld [vmem:[%s3 + $0x158] sm:$0xff]
    %v1078 = vld [vmem:[%s3 + $0x160] sm:$0xff]
    %v1079 = vld [vmem:[%s3 + $0x168] sm:$0xff]
    %v1080 = vld [vmem:[%s3 + $0x170] sm:$0xff]
    %v1081 = vld [vmem:[%s3 + $0x178] sm:$0xff]
    %v1130 = vunpack.c.l.b16 %v1034
    %v1131 = vunpack.c.h.b16 %v1034
    %v1132 = vunpack.c.l.b16 %v1035
    %v1133 = vunpack.c.h.b16 %v1035
    %v1134 = vunpack.c.l.b16 %v1036
    %v1135 = vunpack.c.h.b16 %v1036
    %v1136 = vunpack.c.l.b16 %v1037
    %v1137 = vunpack.c.h.b16 %v1037
    %v1138 = vunpack.c.l.b16 %v1038
    %v1139 = vunpack.c.h.b16 %v1038
    %v1140 = vunpack.c.l.b16 %v1039
    %v1141 = vunpack.c.h.b16 %v1039
    %v1142 = vunpack.c.l.b16 %v1040
    %v1143 = vunpack.c.h.b16 %v1040
    %v1144 = vunpack.c.l.b16 %v1041
    %v1145 = vunpack.c.h.b16 %v1041
    %v1146 = vunpack.c.l.b16 %v1042
    %v1147 = vunpack.c.h.b16 %v1042
    %v1148 = vunpack.c.l.b16 %v1043
    %v1149 = vunpack.c.h.b16 %v1043
    %v1150 = vunpack.c.l.b16 %v1044
    %v1151 = vunpack.c.h.b16 %v1044
    %v1152 = vunpack.c.l.b16 %v1045
    %v1153 = vunpack.c.h.b16 %v1045
    %v1154 = vunpack.c.l.b16 %v1046
    %v1155 = vunpack.c.h.b16 %v1046
    %v1156 = vunpack.c.l.b16 %v1047
    %v1157 = vunpack.c.h.b16 %v1047
    %v1158 = vunpack.c.l.b16 %v1048
    %v1159 = vunpack.c.h.b16 %v1048
    %v1160 = vunpack.c.l.b16 %v1049
    %v1161 = vunpack.c.h.b16 %v1049
    %v1162 = vunpack.c.l.b16 %v1050
    %v1163 = vunpack.c.h.b16 %v1050
    %v1164 = vunpack.c.l.b16 %v1051
    %v1165 = vunpack.c.h.b16 %v1051
    %v1166 = vunpack.c.l.b16 %v1052
    %v1167 = vunpack.c.h.b16 %v1052
    %v1168 = vunpack.c.l.b16 %v1053
    %v1169 = vunpack.c.h.b16 %v1053
    %v1170 = vunpack.c.l.b16 %v1054
    %v1171 = vunpack.c.h.b16 %v1054
    %v1172 = vunpack.c.l.b16 %v1055
    %v1173 = vunpack.c.h.b16 %v1055
    %v1174 = vunpack.c.l.b16 %v1056
    %v1175 = vunpack.c.h.b16 %v1056
    %v1176 = vunpack.c.l.b16 %v1057
    %v1177 = vunpack.c.h.b16 %v1057
    %v1178 = vunpack.c.l.b16 %v1058
    %v1179 = vunpack.c.h.b16 %v1058
    %v1180 = vunpack.c.l.b16 %v1059
    %v1181 = vunpack.c.h.b16 %v1059
    %v1182 = vunpack.c.l.b16 %v1060
    %v1183 = vunpack.c.h.b16 %v1060
    %v1184 = vunpack.c.l.b16 %v1061
    %v1185 = vunpack.c.h.b16 %v1061
    %v1186 = vunpack.c.l.b16 %v1062
    %v1187 = vunpack.c.h.b16 %v1062
    %v1188 = vunpack.c.l.b16 %v1063
    %v1189 = vunpack.c.h.b16 %v1063
    %v1190 = vunpack.c.l.b16 %v1064
    %v1191 = vunpack.c.h.b16 %v1064
    %v1192 = vunpack.c.l.b16 %v1065
    %v1193 = vunpack.c.h.b16 %v1065
    %v1194 = vunpack.c.l.b16 %v1066
    %v1195 = vunpack.c.h.b16 %v1066
    %v1196 = vunpack.c.l.b16 %v1067
    %v1197 = vunpack.c.h.b16 %v1067
    %v1198 = vunpack.c.l.b16 %v1068
    %v1199 = vunpack.c.h.b16 %v1068
    %v1200 = vunpack.c.l.b16 %v1069
    %v1201 = vunpack.c.h.b16 %v1069
    %v1202 = vunpack.c.l.b16 %v1070
    %v1203 = vunpack.c.h.b16 %v1070
    %v1204 = vunpack.c.l.b16 %v1071
    %v1205 = vunpack.c.h.b16 %v1071
    %v1206 = vunpack.c.l.b16 %v1072
    %v1207 = vunpack.c.h.b16 %v1072
    %v1208 = vunpack.c.l.b16 %v1073
    %v1209 = vunpack.c.h.b16 %v1073
    %v1210 = vunpack.c.l.b16 %v1074
    %v1211 = vunpack.c.h.b16 %v1074
    %v1212 = vunpack.c.l.b16 %v1075
    %v1213 = vunpack.c.h.b16 %v1075
    %v1214 = vunpack.c.l.b16 %v1076
    %v1215 = vunpack.c.h.b16 %v1076
    %v1216 = vunpack.c.l.b16 %v1077
    %v1217 = vunpack.c.h.b16 %v1077
    %v1218 = vunpack.c.l.b16 %v1078
    %v1219 = vunpack.c.h.b16 %v1078
    %v1220 = vunpack.c.l.b16 %v1079
    %v1221 = vunpack.c.h.b16 %v1079
    %v1222 = vunpack.c.l.b16 %v1080
    %v1223 = vunpack.c.h.b16 %v1080
    %v1224 = vunpack.c.l.b16 %v1081
    %v1225 = vunpack.c.h.b16 %v1081
    %v1226 = vpack.c.b16 %v1138, %v1130
    %v1227 = vpack.c.b16 %v1139, %v1131
    %v1228 = vpack.c.b16 %v1140, %v1132
    %v1229 = vpack.c.b16 %v1141, %v1133
    %v1230 = vpack.c.b16 %v1142, %v1134
    %v1231 = vpack.c.b16 %v1143, %v1135
    %v1232 = vpack.c.b16 %v1144, %v1136
    %v1233 = vpack.c.b16 %v1145, %v1137
    %v1234 = vpack.c.b16 %v1154, %v1146
    %v1235 = vpack.c.b16 %v1155, %v1147
    %v1236 = vpack.c.b16 %v1156, %v1148
    %v1237 = vpack.c.b16 %v1157, %v1149
    %v1238 = vpack.c.b16 %v1158, %v1150
    %v1239 = vpack.c.b16 %v1159, %v1151
    %v1240 = vpack.c.b16 %v1160, %v1152
    %v1241 = vpack.c.b16 %v1161, %v1153
    %v1242 = vpack.c.b16 %v1170, %v1162
    %v1243 = vpack.c.b16 %v1171, %v1163
    %v1244 = vpack.c.b16 %v1172, %v1164
    %v1245 = vpack.c.b16 %v1173, %v1165
    %v1246 = vpack.c.b16 %v1174, %v1166
    %v1247 = vpack.c.b16 %v1175, %v1167
    %v1248 = vpack.c.b16 %v1176, %v1168
    %v1249 = vpack.c.b16 %v1177, %v1169
    %v1250 = vpack.c.b16 %v1186, %v1178
    %v1251 = vpack.c.b16 %v1187, %v1179
    %v1252 = vpack.c.b16 %v1188, %v1180
    %v1253 = vpack.c.b16 %v1189, %v1181
    %v1254 = vpack.c.b16 %v1190, %v1182
    %v1255 = vpack.c.b16 %v1191, %v1183
    %v1256 = vpack.c.b16 %v1192, %v1184
    %v1257 = vpack.c.b16 %v1193, %v1185
    %v1258 = vpack.c.b16 %v1202, %v1194
    %v1259 = vpack.c.b16 %v1203, %v1195
    %v1260 = vpack.c.b16 %v1204, %v1196
    %v1261 = vpack.c.b16 %v1205, %v1197
    %v1262 = vpack.c.b16 %v1206, %v1198
    %v1263 = vpack.c.b16 %v1207, %v1199
    %v1264 = vpack.c.b16 %v1208, %v1200
    %v1265 = vpack.c.b16 %v1209, %v1201
    %v1266 = vpack.c.b16 %v1218, %v1210
    %v1267 = vpack.c.b16 %v1219, %v1211
    %v1268 = vpack.c.b16 %v1220, %v1212
    %v1269 = vpack.c.b16 %v1221, %v1213
    %v1270 = vpack.c.b16 %v1222, %v1214
    %v1271 = vpack.c.b16 %v1223, %v1215
    %v1272 = vpack.c.b16 %v1224, %v1216
    %v1273 = vpack.c.b16 %v1225, %v1217
    %vm1322 = vcmask 785408
    %v1324 = vsel %vm1322, %v1030, 0
    %v1327 = vsel %vm1322, %v1031, 0
    %v1330 = vsel %vm1322, %v1032, 0
    %v1333 = vsel %vm1322, %v1033, 0
    %1335 = vmatpush.bf16.msra.mxu0 0
    %1336 = vmatpush.bf16.msra.mxu0 0
    %1337 = vmatpush.bf16.msra.mxu0 %v1266
    %1338 = vmatpush.bf16.msra.mxu0 %v1258
    %1339 = vmatpush.bf16.msra.mxu0 %v1250
    %1340 = vmatpush.bf16.msra.mxu0 %v1242
    %1341 = vmatpush.bf16.msra.mxu0 %v1234
    %1342 = vmatpush.bf16.msra.mxu0 %v1226
    %1343 = vmatmul.bf16.gmra.mxu0 %v1324
    %v1344 = vpop.f32.mrf.mxu0
    %v1345 = vadd.f32 0.0, %v1344
    %v1346 = vpop.f32.mrf.mxu0
    %v1347 = vadd.f32 0.0, %v1346
    %1348 = vmatmul.bf16.gmra.mxu0 %v1327
    %v1349 = vpop.f32.mrf.mxu0
    %v1350 = vadd.f32 0.0, %v1349
    %v1351 = vpop.f32.mrf.mxu0
    %v1352 = vadd.f32 0.0, %v1351
    %1353 = vmatmul.bf16.gmra.mxu0 %v1330
    %v1354 = vpop.f32.mrf.mxu0
    %v1355 = vadd.f32 0.0, %v1354
    %v1356 = vpop.f32.mrf.mxu0
    %v1357 = vadd.f32 0.0, %v1356
    %1358 = vmatmul.bf16.gmra.mxu0 %v1333
    %v1359 = vpop.f32.mrf.mxu0
    %v1360 = vadd.f32 0.0, %v1359
    %v1361 = vpop.f32.mrf.mxu0
    %v1362 = vadd.f32 0.0, %v1361
    %1363 = vdwg.mxu0
    %1364 = vmatpush.bf16.msra.mxu0 0
    %1365 = vmatpush.bf16.msra.mxu0 0
    %1366 = vmatpush.bf16.msra.mxu0 %v1267
    %1367 = vmatpush.bf16.msra.mxu0 %v1259
    %1368 = vmatpush.bf16.msra.mxu0 %v1251
    %1369 = vmatpush.bf16.msra.mxu0 %v1243
    %1370 = vmatpush.bf16.msra.mxu0 %v1235
    %1371 = vmatpush.bf16.msra.mxu0 %v1227
    %1372 = vmatmul.bf16.gmra.mxu0 %v1324
    %v1373 = vpop.f32.mrf.mxu0
    %v1374 = vadd.f32 0.0, %v1373
    %v1375 = vpop.f32.mrf.mxu0
    %v1376 = vadd.f32 0.0, %v1375
    %1377 = vmatmul.bf16.gmra.mxu0 %v1327
    %v1378 = vpop.f32.mrf.mxu0
    %v1379 = vadd.f32 0.0, %v1378
    %v1380 = vpop.f32.mrf.mxu0
    %v1381 = vadd.f32 0.0, %v1380
    %1382 = vmatmul.bf16.gmra.mxu0 %v1330
    %v1383 = vpop.f32.mrf.mxu0
    %v1384 = vadd.f32 0.0, %v1383
    %v1385 = vpop.f32.mrf.mxu0
    %v1386 = vadd.f32 0.0, %v1385
    %1387 = vmatmul.bf16.gmra.mxu0 %v1333
    %v1388 = vpop.f32.mrf.mxu0
    %v1389 = vadd.f32 0.0, %v1388
    %v1390 = vpop.f32.mrf.mxu0
    %v1391 = vadd.f32 0.0, %v1390
    %1392 = vdwg.mxu0
    %1393 = vmatpush.bf16.msra.mxu0 0
    %1394 = vmatpush.bf16.msra.mxu0 0
    %1395 = vmatpush.bf16.msra.mxu0 %v1268
    %1396 = vmatpush.bf16.msra.mxu0 %v1260
    %1397 = vmatpush.bf16.msra.mxu0 %v1252
    %1398 = vmatpush.bf16.msra.mxu0 %v1244
    %1399 = vmatpush.bf16.msra.mxu0 %v1236
    %1400 = vmatpush.bf16.msra.mxu0 %v1228
    %1401 = vmatmul.bf16.gmra.mxu0 %v1324
    %v1402 = vpop.f32.mrf.mxu0
    %v1403 = vadd.f32 0.0, %v1402
    %v1404 = vpop.f32.mrf.mxu0
    %v1405 = vadd.f32 0.0, %v1404
    %1406 = vmatmul.bf16.gmra.mxu0 %v1327
    %v1407 = vpop.f32.mrf.mxu0
    %v1408 = vadd.f32 0.0, %v1407
    %v1409 = vpop.f32.mrf.mxu0
    %v1410 = vadd.f32 0.0, %v1409
    %1411 = vmatmul.bf16.gmra.mxu0 %v1330
    %v1412 = vpop.f32.mrf.mxu0
    %v1413 = vadd.f32 0.0, %v1412
    %v1414 = vpop.f32.mrf.mxu0
    %v1415 = vadd.f32 0.0, %v1414
    %1416 = vmatmul.bf16.gmra.mxu0 %v1333
    %v1417 = vpop.f32.mrf.mxu0
    %v1418 = vadd.f32 0.0, %v1417
    %v1419 = vpop.f32.mrf.mxu0
    %v1420 = vadd.f32 0.0, %v1419
    %1421 = vdwg.mxu0
    %1422 = vmatpush.bf16.msra.mxu0 0
    %1423 = vmatpush.bf16.msra.mxu0 0
    %1424 = vmatpush.bf16.msra.mxu0 %v1269
    %1425 = vmatpush.bf16.msra.mxu0 %v1261
    %1426 = vmatpush.bf16.msra.mxu0 %v1253
    %1427 = vmatpush.bf16.msra.mxu0 %v1245
    %1428 = vmatpush.bf16.msra.mxu0 %v1237
    %1429 = vmatpush.bf16.msra.mxu0 %v1229
    %1430 = vmatmul.bf16.gmra.mxu0 %v1324
    %v1431 = vpop.f32.mrf.mxu0
    %v1432 = vadd.f32 0.0, %v1431
    %v1433 = vpop.f32.mrf.mxu0
    %v1434 = vadd.f32 0.0, %v1433
    %1435 = vmatmul.bf16.gmra.mxu0 %v1327
    %v1436 = vpop.f32.mrf.mxu0
    %v1437 = vadd.f32 0.0, %v1436
    %v1438 = vpop.f32.mrf.mxu0
    %v1439 = vadd.f32 0.0, %v1438
    %1440 = vmatmul.bf16.gmra.mxu0 %v1330
    %v1441 = vpop.f32.mrf.mxu0
    %v1442 = vadd.f32 0.0, %v1441
    %v1443 = vpop.f32.mrf.mxu0
    %v1444 = vadd.f32 0.0, %v1443
    %1445 = vmatmul.bf16.gmra.mxu0 %v1333
    %v1446 = vpop.f32.mrf.mxu0
    %v1447 = vadd.f32 0.0, %v1446
    %v1448 = vpop.f32.mrf.mxu0
    %v1449 = vadd.f32 0.0, %v1448
    %1450 = vdwg.mxu0
    %1451 = vmatpush.bf16.msra.mxu0 0
    %1452 = vmatpush.bf16.msra.mxu0 0
    %1453 = vmatpush.bf16.msra.mxu0 %v1270
    %1454 = vmatpush.bf16.msra.mxu0 %v1262
    %1455 = vmatpush.bf16.msra.mxu0 %v1254
    %1456 = vmatpush.bf16.msra.mxu0 %v1246
    %1457 = vmatpush.bf16.msra.mxu0 %v1238
    %1458 = vmatpush.bf16.msra.mxu0 %v1230
    %1459 = vmatmul.bf16.gmra.mxu0 %v1324
    %v1460 = vpop.f32.mrf.mxu0
    %v1461 = vadd.f32 0.0, %v1460
    %v1462 = vpop.f32.mrf.mxu0
    %v1463 = vadd.f32 0.0, %v1462
    %1464 = vmatmul.bf16.gmra.mxu0 %v1327
    %v1465 = vpop.f32.mrf.mxu0
    %v1466 = vadd.f32 0.0, %v1465
    %v1467 = vpop.f32.mrf.mxu0
    %v1468 = vadd.f32 0.0, %v1467
    %1469 = vmatmul.bf16.gmra.mxu0 %v1330
    %v1470 = vpop.f32.mrf.mxu0
    %v1471 = vadd.f32 0.0, %v1470
    %v1472 = vpop.f32.mrf.mxu0
    %v1473 = vadd.f32 0.0, %v1472
    %1474 = vmatmul.bf16.gmra.mxu0 %v1333
    %v1475 = vpop.f32.mrf.mxu0
    %v1476 = vadd.f32 0.0, %v1475
    %v1477 = vpop.f32.mrf.mxu0
    %v1478 = vadd.f32 0.0, %v1477
    %1479 = vdwg.mxu0
    %1480 = vmatpush.bf16.msra.mxu0 0
    %1481 = vmatpush.bf16.msra.mxu0 0
    %1482 = vmatpush.bf16.msra.mxu0 %v1271
    %1483 = vmatpush.bf16.msra.mxu0 %v1263
    %1484 = vmatpush.bf16.msra.mxu0 %v1255
    %1485 = vmatpush.bf16.msra.mxu0 %v1247
    %1486 = vmatpush.bf16.msra.mxu0 %v1239
    %1487 = vmatpush.bf16.msra.mxu0 %v1231
    %1488 = vmatmul.bf16.gmra.mxu0 %v1324
    %v1489 = vpop.f32.mrf.mxu0
    %v1490 = vadd.f32 0.0, %v1489
    %v1491 = vpop.f32.mrf.mxu0
    %v1492 = vadd.f32 0.0, %v1491
    %1493 = vmatmul.bf16.gmra.mxu0 %v1327
    %v1494 = vpop.f32.mrf.mxu0
    %v1495 = vadd.f32 0.0, %v1494
    %v1496 = vpop.f32.mrf.mxu0
    %v1497 = vadd.f32 0.0, %v1496
    %1498 = vmatmul.bf16.gmra.mxu0 %v1330
    %v1499 = vpop.f32.mrf.mxu0
    %v1500 = vadd.f32 0.0, %v1499
    %v1501 = vpop.f32.mrf.mxu0
    %v1502 = vadd.f32 0.0, %v1501
    %1503 = vmatmul.bf16.gmra.mxu0 %v1333
    %v1504 = vpop.f32.mrf.mxu0
    %v1505 = vadd.f32 0.0, %v1504
    %v1506 = vpop.f32.mrf.mxu0
    %v1507 = vadd.f32 0.0, %v1506
    %1508 = vdwg.mxu0
    %1509 = vmatpush.bf16.msra.mxu0 0
    %1510 = vmatpush.bf16.msra.mxu0 0
    %1511 = vmatpush.bf16.msra.mxu0 %v1272
    %1512 = vmatpush.bf16.msra.mxu0 %v1264
    %1513 = vmatpush.bf16.msra.mxu0 %v1256
    %1514 = vmatpush.bf16.msra.mxu0 %v1248
    %1515 = vmatpush.bf16.msra.mxu0 %v1240
    %1516 = vmatpush.bf16.msra.mxu0 %v1232
    %1517 = vmatmul.bf16.gmra.mxu0 %v1324
    %v1518 = vpop.f32.mrf.mxu0
    %v1519 = vadd.f32 0.0, %v1518
    %v1520 = vpop.f32.mrf.mxu0
    %v1521 = vadd.f32 0.0, %v1520
    %1522 = vmatmul.bf16.gmra.mxu0 %v1327
    %v1523 = vpop.f32.mrf.mxu0
    %v1524 = vadd.f32 0.0, %v1523
    %v1525 = vpop.f32.mrf.mxu0
    %v1526 = vadd.f32 0.0, %v1525
    %1527 = vmatmul.bf16.gmra.mxu0 %v1330
    %v1528 = vpop.f32.mrf.mxu0
    %v1529 = vadd.f32 0.0, %v1528
    %v1530 = vpop.f32.mrf.mxu0
    %v1531 = vadd.f32 0.0, %v1530
    %1532 = vmatmul.bf16.gmra.mxu0 %v1333
    %v1533 = vpop.f32.mrf.mxu0
    %v1534 = vadd.f32 0.0, %v1533
    %v1535 = vpop.f32.mrf.mxu0
    %v1536 = vadd.f32 0.0, %v1535
    %1537 = vdwg.mxu0
    %1538 = vmatpush.bf16.msra.mxu0 0
    %1539 = vmatpush.bf16.msra.mxu0 0
    %1540 = vmatpush.bf16.msra.mxu0 %v1273
    %1541 = vmatpush.bf16.msra.mxu0 %v1265
    %1542 = vmatpush.bf16.msra.mxu0 %v1257
    %1543 = vmatpush.bf16.msra.mxu0 %v1249
    %1544 = vmatpush.bf16.msra.mxu0 %v1241
    %1545 = vmatpush.bf16.msra.mxu0 %v1233
    %1546 = vmatmul.bf16.gmra.mxu0 %v1324
    %v1547 = vpop.f32.mrf.mxu0
    %v1548 = vadd.f32 0.0, %v1547
    %v1549 = vpop.f32.mrf.mxu0
    %v1550 = vadd.f32 0.0, %v1549
    %1551 = vmatmul.bf16.gmra.mxu0 %v1327
    %v1552 = vpop.f32.mrf.mxu0
    %v1553 = vadd.f32 0.0, %v1552
    %v1554 = vpop.f32.mrf.mxu0
    %v1555 = vadd.f32 0.0, %v1554
    %1556 = vmatmul.bf16.gmra.mxu0 %v1330
    %v1557 = vpop.f32.mrf.mxu0
    %v1558 = vadd.f32 0.0, %v1557
    %v1559 = vpop.f32.mrf.mxu0
    %v1560 = vadd.f32 0.0, %v1559
    %1561 = vmatmul.bf16.gmra.mxu0 %v1333
    %v1562 = vpop.f32.mrf.mxu0
    %v1563 = vadd.f32 0.0, %v1562
    %v1564 = vpop.f32.mrf.mxu0
    %v1565 = vadd.f32 0.0, %v1564
    %1566 = vdwg.mxu0
    %v1615 = vunpack.c.l.b16 %v941
    %v1616 = vunpack.c.h.b16 %v941
    %v1617 = vunpack.c.l.b16 %v942
    %v1618 = vunpack.c.h.b16 %v942
    %v1619 = vunpack.c.l.b16 %v943
    %v1620 = vunpack.c.h.b16 %v943
    %v1621 = vunpack.c.l.b16 %v944
    %v1622 = vunpack.c.h.b16 %v944
    %v1623 = vunpack.c.l.b16 %v945
    %v1624 = vunpack.c.h.b16 %v945
    %v1625 = vunpack.c.l.b16 %v946
    %v1626 = vunpack.c.h.b16 %v946
    %v1627 = vunpack.c.l.b16 %v947
    %v1628 = vunpack.c.h.b16 %v947
    %v1629 = vunpack.c.l.b16 %v948
    %v1630 = vunpack.c.h.b16 %v948
    %v1631 = vunpack.c.l.b16 %v949
    %v1632 = vunpack.c.h.b16 %v949
    %v1633 = vunpack.c.l.b16 %v950
    %v1634 = vunpack.c.h.b16 %v950
    %v1635 = vunpack.c.l.b16 %v951
    %v1636 = vunpack.c.h.b16 %v951
    %v1637 = vunpack.c.l.b16 %v952
    %v1638 = vunpack.c.h.b16 %v952
    %v1639 = vunpack.c.l.b16 %v953
    %v1640 = vunpack.c.h.b16 %v953
    %v1641 = vunpack.c.l.b16 %v954
    %v1642 = vunpack.c.h.b16 %v954
    %v1643 = vunpack.c.l.b16 %v955
    %v1644 = vunpack.c.h.b16 %v955
    %v1645 = vunpack.c.l.b16 %v956
    %v1646 = vunpack.c.h.b16 %v956
    %v1647 = vunpack.c.l.b16 %v957
    %v1648 = vunpack.c.h.b16 %v957
    %v1649 = vunpack.c.l.b16 %v958
    %v1650 = vunpack.c.h.b16 %v958
    %v1651 = vunpack.c.l.b16 %v959
    %v1652 = vunpack.c.h.b16 %v959
    %v1653 = vunpack.c.l.b16 %v960
    %v1654 = vunpack.c.h.b16 %v960
    %v1655 = vunpack.c.l.b16 %v961
    %v1656 = vunpack.c.h.b16 %v961
    %v1657 = vunpack.c.l.b16 %v962
    %v1658 = vunpack.c.h.b16 %v962
    %v1659 = vunpack.c.l.b16 %v963
    %v1660 = vunpack.c.h.b16 %v963
    %v1661 = vunpack.c.l.b16 %v964
    %v1662 = vunpack.c.h.b16 %v964
    %v1663 = vunpack.c.l.b16 %v965
    %v1664 = vunpack.c.h.b16 %v965
    %v1665 = vunpack.c.l.b16 %v966
    %v1666 = vunpack.c.h.b16 %v966
    %v1667 = vunpack.c.l.b16 %v967
    %v1668 = vunpack.c.h.b16 %v967
    %v1669 = vunpack.c.l.b16 %v968
    %v1670 = vunpack.c.h.b16 %v968
    %v1671 = vunpack.c.l.b16 %v969
    %v1672 = vunpack.c.h.b16 %v969
    %v1673 = vunpack.c.l.b16 %v970
    %v1674 = vunpack.c.h.b16 %v970
    %v1675 = vunpack.c.l.b16 %v971
    %v1676 = vunpack.c.h.b16 %v971
    %v1677 = vunpack.c.l.b16 %v972
    %v1678 = vunpack.c.h.b16 %v972
    %v1679 = vunpack.c.l.b16 %v973
    %v1680 = vunpack.c.h.b16 %v973
    %v1681 = vunpack.c.l.b16 %v974
    %v1682 = vunpack.c.h.b16 %v974
    %v1683 = vunpack.c.l.b16 %v975
    %v1684 = vunpack.c.h.b16 %v975
    %v1685 = vunpack.c.l.b16 %v976
    %v1686 = vunpack.c.h.b16 %v976
    %v1687 = vunpack.c.l.b16 %v977
    %v1688 = vunpack.c.h.b16 %v977
    %v1689 = vunpack.c.l.b16 %v978
    %v1690 = vunpack.c.h.b16 %v978
    %v1691 = vunpack.c.l.b16 %v979
    %v1692 = vunpack.c.h.b16 %v979
    %v1693 = vunpack.c.l.b16 %v980
    %v1694 = vunpack.c.h.b16 %v980
    %v1695 = vunpack.c.l.b16 %v981
    %v1696 = vunpack.c.h.b16 %v981
    %v1697 = vunpack.c.l.b16 %v982
    %v1698 = vunpack.c.h.b16 %v982
    %v1699 = vunpack.c.l.b16 %v983
    %v1700 = vunpack.c.h.b16 %v983
    %v1701 = vunpack.c.l.b16 %v984
    %v1702 = vunpack.c.h.b16 %v984
    %v1703 = vunpack.c.l.b16 %v985
    %v1704 = vunpack.c.h.b16 %v985
    %v1705 = vunpack.c.l.b16 %v986
    %v1706 = vunpack.c.h.b16 %v986
    %v1707 = vunpack.c.l.b16 %v987
    %v1708 = vunpack.c.h.b16 %v987
    %v1709 = vunpack.c.l.b16 %v988
    %v1710 = vunpack.c.h.b16 %v988
    %v1711 = vpack.c.b16 %v1623, %v1615
    %v1712 = vpack.c.b16 %v1624, %v1616
    %v1713 = vpack.c.b16 %v1625, %v1617
    %v1714 = vpack.c.b16 %v1626, %v1618
    %v1715 = vpack.c.b16 %v1627, %v1619
    %v1716 = vpack.c.b16 %v1628, %v1620
    %v1717 = vpack.c.b16 %v1629, %v1621
    %v1718 = vpack.c.b16 %v1630, %v1622
    %v1719 = vpack.c.b16 %v1639, %v1631
    %v1720 = vpack.c.b16 %v1640, %v1632
    %v1721 = vpack.c.b16 %v1641, %v1633
    %v1722 = vpack.c.b16 %v1642, %v1634
    %v1723 = vpack.c.b16 %v1643, %v1635
    %v1724 = vpack.c.b16 %v1644, %v1636
    %v1725 = vpack.c.b16 %v1645, %v1637
    %v1726 = vpack.c.b16 %v1646, %v1638
    %v1727 = vpack.c.b16 %v1655, %v1647
    %v1728 = vpack.c.b16 %v1656, %v1648
    %v1729 = vpack.c.b16 %v1657, %v1649
    %v1730 = vpack.c.b16 %v1658, %v1650
    %v1731 = vpack.c.b16 %v1659, %v1651
    %v1732 = vpack.c.b16 %v1660, %v1652
    %v1733 = vpack.c.b16 %v1661, %v1653
    %v1734 = vpack.c.b16 %v1662, %v1654
    %v1735 = vpack.c.b16 %v1671, %v1663
    %v1736 = vpack.c.b16 %v1672, %v1664
    %v1737 = vpack.c.b16 %v1673, %v1665
    %v1738 = vpack.c.b16 %v1674, %v1666
    %v1739 = vpack.c.b16 %v1675, %v1667
    %v1740 = vpack.c.b16 %v1676, %v1668
    %v1741 = vpack.c.b16 %v1677, %v1669
    %v1742 = vpack.c.b16 %v1678, %v1670
    %v1743 = vpack.c.b16 %v1687, %v1679
    %v1744 = vpack.c.b16 %v1688, %v1680
    %v1745 = vpack.c.b16 %v1689, %v1681
    %v1746 = vpack.c.b16 %v1690, %v1682
    %v1747 = vpack.c.b16 %v1691, %v1683
    %v1748 = vpack.c.b16 %v1692, %v1684
    %v1749 = vpack.c.b16 %v1693, %v1685
    %v1750 = vpack.c.b16 %v1694, %v1686
    %v1751 = vpack.c.b16 %v1703, %v1695
    %v1752 = vpack.c.b16 %v1704, %v1696
    %v1753 = vpack.c.b16 %v1705, %v1697
    %v1754 = vpack.c.b16 %v1706, %v1698
    %v1755 = vpack.c.b16 %v1707, %v1699
    %v1756 = vpack.c.b16 %v1708, %v1700
    %v1757 = vpack.c.b16 %v1709, %v1701
    %v1758 = vpack.c.b16 %v1710, %v1702
    %v1808 = vsel %vm1322, %v936, 0
    %v1811 = vsel %vm1322, %v937, 0
    %v1814 = vsel %vm1322, %v938, 0
    %v1817 = vsel %vm1322, %v939, 0
    %1819 = vmatpush.bf16.msra.mxu0 0
    %1820 = vmatpush.bf16.msra.mxu0 0
    %1821 = vmatpush.bf16.msra.mxu0 %v1751
    %1822 = vmatpush.bf16.msra.mxu0 %v1743
    %1823 = vmatpush.bf16.msra.mxu0 %v1735
    %1824 = vmatpush.bf16.msra.mxu0 %v1727
    %1825 = vmatpush.bf16.msra.mxu0 %v1719
    %1826 = vmatpush.bf16.msra.mxu0 %v1711
    %1827 = vmatmul.bf16.gmra.mxu0 %v1808
    %v1828 = vpop.f32.mrf.mxu0
    %v1829 = vadd.f32 %v1345, %v1828
    %v1830 = vpop.f32.mrf.mxu0
    %v1831 = vadd.f32 %v1347, %v1830
    %1832 = vmatmul.bf16.gmra.mxu0 %v1811
    %v1833 = vpop.f32.mrf.mxu0
    %v1834 = vadd.f32 %v1350, %v1833
    %v1835 = vpop.f32.mrf.mxu0
    %v1836 = vadd.f32 %v1352, %v1835
    %1837 = vmatmul.bf16.gmra.mxu0 %v1814
    %v1838 = vpop.f32.mrf.mxu0
    %v1839 = vadd.f32 %v1355, %v1838
    %v1840 = vpop.f32.mrf.mxu0
    %v1841 = vadd.f32 %v1357, %v1840
    %1842 = vmatmul.bf16.gmra.mxu0 %v1817
    %v1843 = vpop.f32.mrf.mxu0
    %v1844 = vadd.f32 %v1360, %v1843
    %v1845 = vpop.f32.mrf.mxu0
    %v1846 = vadd.f32 %v1362, %v1845
    %1847 = vdwg.mxu0
    %1848 = vmatpush.bf16.msra.mxu0 0
    %1849 = vmatpush.bf16.msra.mxu0 0
    %1850 = vmatpush.bf16.msra.mxu0 %v1752
    %1851 = vmatpush.bf16.msra.mxu0 %v1744
    %1852 = vmatpush.bf16.msra.mxu0 %v1736
    %1853 = vmatpush.bf16.msra.mxu0 %v1728
    %1854 = vmatpush.bf16.msra.mxu0 %v1720
    %1855 = vmatpush.bf16.msra.mxu0 %v1712
    %1856 = vmatmul.bf16.gmra.mxu0 %v1808
    %v1857 = vpop.f32.mrf.mxu0
    %v1858 = vadd.f32 %v1374, %v1857
    %v1859 = vpop.f32.mrf.mxu0
    %v1860 = vadd.f32 %v1376, %v1859
    %1861 = vmatmul.bf16.gmra.mxu0 %v1811
    %v1862 = vpop.f32.mrf.mxu0
    %v1863 = vadd.f32 %v1379, %v1862
    %v1864 = vpop.f32.mrf.mxu0
    %v1865 = vadd.f32 %v1381, %v1864
    %1866 = vmatmul.bf16.gmra.mxu0 %v1814
    %v1867 = vpop.f32.mrf.mxu0
    %v1868 = vadd.f32 %v1384, %v1867
    %v1869 = vpop.f32.mrf.mxu0
    %v1870 = vadd.f32 %v1386, %v1869
    %1871 = vmatmul.bf16.gmra.mxu0 %v1817
    %v1872 = vpop.f32.mrf.mxu0
    %v1873 = vadd.f32 %v1389, %v1872
    %v1874 = vpop.f32.mrf.mxu0
    %v1875 = vadd.f32 %v1391, %v1874
    %1876 = vdwg.mxu0
    %1877 = vmatpush.bf16.msra.mxu0 0
    %1878 = vmatpush.bf16.msra.mxu0 0
    %1879 = vmatpush.bf16.msra.mxu0 %v1753
    %1880 = vmatpush.bf16.msra.mxu0 %v1745
    %1881 = vmatpush.bf16.msra.mxu0 %v1737
    %1882 = vmatpush.bf16.msra.mxu0 %v1729
    %1883 = vmatpush.bf16.msra.mxu0 %v1721
    %1884 = vmatpush.bf16.msra.mxu0 %v1713
    %1885 = vmatmul.bf16.gmra.mxu0 %v1808
    %v1886 = vpop.f32.mrf.mxu0
    %v1887 = vadd.f32 %v1403, %v1886
    %v1888 = vpop.f32.mrf.mxu0
    %v1889 = vadd.f32 %v1405, %v1888
    %1890 = vmatmul.bf16.gmra.mxu0 %v1811
    %v1891 = vpop.f32.mrf.mxu0
    %v1892 = vadd.f32 %v1408, %v1891
    %v1893 = vpop.f32.mrf.mxu0
    %v1894 = vadd.f32 %v1410, %v1893
    %1895 = vmatmul.bf16.gmra.mxu0 %v1814
    %v1896 = vpop.f32.mrf.mxu0
    %v1897 = vadd.f32 %v1413, %v1896
    %v1898 = vpop.f32.mrf.mxu0
    %v1899 = vadd.f32 %v1415, %v1898
    %1900 = vmatmul.bf16.gmra.mxu0 %v1817
    %v1901 = vpop.f32.mrf.mxu0
    %v1902 = vadd.f32 %v1418, %v1901
    %v1903 = vpop.f32.mrf.mxu0
    %v1904 = vadd.f32 %v1420, %v1903
    %1905 = vdwg.mxu0
    %1906 = vmatpush.bf16.msra.mxu0 0
    %1907 = vmatpush.bf16.msra.mxu0 0
    %1908 = vmatpush.bf16.msra.mxu0 %v1754
    %1909 = vmatpush.bf16.msra.mxu0 %v1746
    %1910 = vmatpush.bf16.msra.mxu0 %v1738
    %1911 = vmatpush.bf16.msra.mxu0 %v1730
    %1912 = vmatpush.bf16.msra.mxu0 %v1722
    %1913 = vmatpush.bf16.msra.mxu0 %v1714
    %1914 = vmatmul.bf16.gmra.mxu0 %v1808
    %v1915 = vpop.f32.mrf.mxu0
    %v1916 = vadd.f32 %v1432, %v1915
    %v1917 = vpop.f32.mrf.mxu0
    %v1918 = vadd.f32 %v1434, %v1917
    %1919 = vmatmul.bf16.gmra.mxu0 %v1811
    %v1920 = vpop.f32.mrf.mxu0
    %v1921 = vadd.f32 %v1437, %v1920
    %v1922 = vpop.f32.mrf.mxu0
    %v1923 = vadd.f32 %v1439, %v1922
    %1924 = vmatmul.bf16.gmra.mxu0 %v1814
    %v1925 = vpop.f32.mrf.mxu0
    %v1926 = vadd.f32 %v1442, %v1925
    %v1927 = vpop.f32.mrf.mxu0
    %v1928 = vadd.f32 %v1444, %v1927
    %1929 = vmatmul.bf16.gmra.mxu0 %v1817
    %v1930 = vpop.f32.mrf.mxu0
    %v1931 = vadd.f32 %v1447, %v1930
    %v1932 = vpop.f32.mrf.mxu0
    %v1933 = vadd.f32 %v1449, %v1932
    %1934 = vdwg.mxu0
    %1935 = vmatpush.bf16.msra.mxu0 0
    %1936 = vmatpush.bf16.msra.mxu0 0
    %1937 = vmatpush.bf16.msra.mxu0 %v1755
    %1938 = vmatpush.bf16.msra.mxu0 %v1747
    %1939 = vmatpush.bf16.msra.mxu0 %v1739
    %1940 = vmatpush.bf16.msra.mxu0 %v1731
    %1941 = vmatpush.bf16.msra.mxu0 %v1723
    %1942 = vmatpush.bf16.msra.mxu0 %v1715
    %1943 = vmatmul.bf16.gmra.mxu0 %v1808
    %v1944 = vpop.f32.mrf.mxu0
    %v1945 = vadd.f32 %v1461, %v1944
    %v1946 = vpop.f32.mrf.mxu0
    %v1947 = vadd.f32 %v1463, %v1946
    %1948 = vmatmul.bf16.gmra.mxu0 %v1811
    %v1949 = vpop.f32.mrf.mxu0
    %v1950 = vadd.f32 %v1466, %v1949
    %v1951 = vpop.f32.mrf.mxu0
    %v1952 = vadd.f32 %v1468, %v1951
    %1953 = vmatmul.bf16.gmra.mxu0 %v1814
    %v1954 = vpop.f32.mrf.mxu0
    %v1955 = vadd.f32 %v1471, %v1954
    %v1956 = vpop.f32.mrf.mxu0
    %v1957 = vadd.f32 %v1473, %v1956
    %1958 = vmatmul.bf16.gmra.mxu0 %v1817
    %v1959 = vpop.f32.mrf.mxu0
    %v1960 = vadd.f32 %v1476, %v1959
    %v1961 = vpop.f32.mrf.mxu0
    %v1962 = vadd.f32 %v1478, %v1961
    %1963 = vdwg.mxu0
    %1964 = vmatpush.bf16.msra.mxu0 0
    %1965 = vmatpush.bf16.msra.mxu0 0
    %1966 = vmatpush.bf16.msra.mxu0 %v1756
    %1967 = vmatpush.bf16.msra.mxu0 %v1748
    %1968 = vmatpush.bf16.msra.mxu0 %v1740
    %1969 = vmatpush.bf16.msra.mxu0 %v1732
    %1970 = vmatpush.bf16.msra.mxu0 %v1724
    %1971 = vmatpush.bf16.msra.mxu0 %v1716
    %1972 = vmatmul.bf16.gmra.mxu0 %v1808
    %v1973 = vpop.f32.mrf.mxu0
    %v1974 = vadd.f32 %v1490, %v1973
    %v1975 = vpop.f32.mrf.mxu0
    %v1976 = vadd.f32 %v1492, %v1975
    %1977 = vmatmul.bf16.gmra.mxu0 %v1811
    %v1978 = vpop.f32.mrf.mxu0
    %v1979 = vadd.f32 %v1495, %v1978
    %v1980 = vpop.f32.mrf.mxu0
    %v1981 = vadd.f32 %v1497, %v1980
    %1982 = vmatmul.bf16.gmra.mxu0 %v1814
    %v1983 = vpop.f32.mrf.mxu0
    %v1984 = vadd.f32 %v1500, %v1983
    %v1985 = vpop.f32.mrf.mxu0
    %v1986 = vadd.f32 %v1502, %v1985
    %1987 = vmatmul.bf16.gmra.mxu0 %v1817
    %v1988 = vpop.f32.mrf.mxu0
    %v1989 = vadd.f32 %v1505, %v1988
    %v1990 = vpop.f32.mrf.mxu0
    %v1991 = vadd.f32 %v1507, %v1990
    %1992 = vdwg.mxu0
    %1993 = vmatpush.bf16.msra.mxu0 0
    %1994 = vmatpush.bf16.msra.mxu0 0
    %1995 = vmatpush.bf16.msra.mxu0 %v1757
    %1996 = vmatpush.bf16.msra.mxu0 %v1749
    %1997 = vmatpush.bf16.msra.mxu0 %v1741
    %1998 = vmatpush.bf16.msra.mxu0 %v1733
    %1999 = vmatpush.bf16.msra.mxu0 %v1725
    %2000 = vmatpush.bf16.msra.mxu0 %v1717
    %2001 = vmatmul.bf16.gmra.mxu0 %v1808
    %v2002 = vpop.f32.mrf.mxu0
    %v2003 = vadd.f32 %v1519, %v2002
    %v2004 = vpop.f32.mrf.mxu0
    %v2005 = vadd.f32 %v1521, %v2004
    %2006 = vmatmul.bf16.gmra.mxu0 %v1811
    %v2007 = vpop.f32.mrf.mxu0
    %v2008 = vadd.f32 %v1524, %v2007
    %v2009 = vpop.f32.mrf.mxu0
    %v2010 = vadd.f32 %v1526, %v2009
    %2011 = vmatmul.bf16.gmra.mxu0 %v1814
    %v2012 = vpop.f32.mrf.mxu0
    %v2013 = vadd.f32 %v1529, %v2012
    %v2014 = vpop.f32.mrf.mxu0
    %v2015 = vadd.f32 %v1531, %v2014
    %2016 = vmatmul.bf16.gmra.mxu0 %v1817
    %v2017 = vpop.f32.mrf.mxu0
    %v2018 = vadd.f32 %v1534, %v2017
    %v2019 = vpop.f32.mrf.mxu0
    %v2020 = vadd.f32 %v1536, %v2019
    %2021 = vdwg.mxu0
    %2022 = vmatpush.bf16.msra.mxu0 0
    %2023 = vmatpush.bf16.msra.mxu0 0
    %2024 = vmatpush.bf16.msra.mxu0 %v1758
    %2025 = vmatpush.bf16.msra.mxu0 %v1750
    %2026 = vmatpush.bf16.msra.mxu0 %v1742
    %2027 = vmatpush.bf16.msra.mxu0 %v1734
    %2028 = vmatpush.bf16.msra.mxu0 %v1726
    %2029 = vmatpush.bf16.msra.mxu0 %v1718
    %2030 = vmatmul.bf16.gmra.mxu0 %v1808
    %v2031 = vpop.f32.mrf.mxu0
    %v2032 = vadd.f32 %v1548, %v2031
    %v2033 = vpop.f32.mrf.mxu0
    %v2034 = vadd.f32 %v1550, %v2033
    %2035 = vmatmul.bf16.gmra.mxu0 %v1811
    %v2036 = vpop.f32.mrf.mxu0
    %v2037 = vadd.f32 %v1553, %v2036
    %v2038 = vpop.f32.mrf.mxu0
    %v2039 = vadd.f32 %v1555, %v2038
    %2040 = vmatmul.bf16.gmra.mxu0 %v1814
    %v2041 = vpop.f32.mrf.mxu0
    %v2042 = vadd.f32 %v1558, %v2041
    %v2043 = vpop.f32.mrf.mxu0
    %v2044 = vadd.f32 %v1560, %v2043
    %2045 = vmatmul.bf16.gmra.mxu0 %v1817
    %v2046 = vpop.f32.mrf.mxu0
    %v2047 = vadd.f32 %v1563, %v2046
    %v2048 = vpop.f32.mrf.mxu0
    %v2049 = vadd.f32 %v1565, %v2048
    %2050 = vdwg.mxu0
    %vm2051 = vcmask 1046528
    %v2052 = vrot.slane %v926, 1
    %v2053 = vrot.slane %v927, 1
    %v2054 = vsel %vm2051, %v2052, %v2053
    %v2055 = vrot.slane %v928, 1
    %v2056 = vsel %vm2051, %v2053, %v2055
    %v2057 = vrot.slane %v929, 1
    %v2058 = vsel %vm2051, %v2055, %v2057
    %v2059 = vrot.slane %v930, 1
    %v2060 = vsel %vm2051, %v2057, %v2059
    %v2061 = vrot.slane %v931, 1
    %v2062 = vsel %vm2051, %v2059, %v2061
    %v2063 = vrot.slane %v932, 1
    %v2064 = vsel %vm2051, %v2061, %v2063
    %v2065 = vrot.slane %v933, 1
    %v2066 = vsel %vm2051, %v2063, %v2065
    %v2075 = vsel %vm2051, %v2065, 0.0
    %v2076 = vmul.f32 %v2054, %v181
    %v2077 = vmul.f32 %v2056, %v182
    %v2078 = vmul.f32 %v2058, %v183
    %v2079 = vmul.f32 %v2060, %v184
    %v2080 = vmul.f32 %v2062, %v185
    %v2081 = vmul.f32 %v2064, %v186
    %v2082 = vmul.f32 %v2066, %v187
    %v2083 = vmul.f32 %v2075, %v188
    %v2084 = vpack.c.bf16 %v2077, %v2076
    %v2085 = vpack.c.bf16 %v2079, %v2078
    %v2086 = vpack.c.bf16 %v2081, %v2080
    %v2087 = vpack.c.bf16 %v2083, %v2082
    %s2088 = scalar_lea.vmem %s3, 768
    %v2089 = vld [vmem:[%s2088] sm:$0xff]
    %v2090 = vld [vmem:[%s2088 + $0x8] sm:$0xff]
    %v2091 = vld [vmem:[%s2088 + $0x10] sm:$0xff]
    %v2092 = vld [vmem:[%s2088 + $0x18] sm:$0xff]
    %v2093 = vld [vmem:[%s2088 + $0x20] sm:$0xff]
    %v2094 = vld [vmem:[%s2088 + $0x28] sm:$0xff]
    %v2095 = vld [vmem:[%s2088 + $0x30] sm:$0xff]
    %v2096 = vld [vmem:[%s2088 + $0x38] sm:$0xff]
    %v2097 = vld [vmem:[%s2088 + $0x40] sm:$0xff]
    %v2098 = vld [vmem:[%s2088 + $0x48] sm:$0xff]
    %v2099 = vld [vmem:[%s2088 + $0x50] sm:$0xff]
    %v2100 = vld [vmem:[%s2088 + $0x58] sm:$0xff]
    %v2101 = vld [vmem:[%s2088 + $0x60] sm:$0xff]
    %v2102 = vld [vmem:[%s2088 + $0x68] sm:$0xff]
    %v2103 = vld [vmem:[%s2088 + $0x70] sm:$0xff]
    %v2104 = vld [vmem:[%s2088 + $0x78] sm:$0xff]
    %v2105 = vld [vmem:[%s2088 + $0x80] sm:$0xff]
    %v2106 = vld [vmem:[%s2088 + $0x88] sm:$0xff]
    %v2107 = vld [vmem:[%s2088 + $0x90] sm:$0xff]
    %v2108 = vld [vmem:[%s2088 + $0x98] sm:$0xff]
    %v2109 = vld [vmem:[%s2088 + $0xa0] sm:$0xff]
    %v2110 = vld [vmem:[%s2088 + $0xa8] sm:$0xff]
    %v2111 = vld [vmem:[%s2088 + $0xb0] sm:$0xff]
    %v2112 = vld [vmem:[%s2088 + $0xb8] sm:$0xff]
    %v2113 = vld [vmem:[%s2088 + $0xc0] sm:$0xff]
    %v2114 = vld [vmem:[%s2088 + $0xc8] sm:$0xff]
    %v2115 = vld [vmem:[%s2088 + $0xd0] sm:$0xff]
    %v2116 = vld [vmem:[%s2088 + $0xd8] sm:$0xff]
    %v2117 = vld [vmem:[%s2088 + $0xe0] sm:$0xff]
    %v2118 = vld [vmem:[%s2088 + $0xe8] sm:$0xff]
    %v2119 = vld [vmem:[%s2088 + $0xf0] sm:$0xff]
    %v2120 = vld [vmem:[%s2088 + $0xf8] sm:$0xff]
    %v2121 = vld [vmem:[%s2088 + $0x100] sm:$0xff]
    %v2122 = vld [vmem:[%s2088 + $0x108] sm:$0xff]
    %v2123 = vld [vmem:[%s2088 + $0x110] sm:$0xff]
    %v2124 = vld [vmem:[%s2088 + $0x118] sm:$0xff]
    %v2125 = vld [vmem:[%s2088 + $0x120] sm:$0xff]
    %v2126 = vld [vmem:[%s2088 + $0x128] sm:$0xff]
    %v2127 = vld [vmem:[%s2088 + $0x130] sm:$0xff]
    %v2128 = vld [vmem:[%s2088 + $0x138] sm:$0xff]
    %v2129 = vld [vmem:[%s2088 + $0x140] sm:$0xff]
    %v2130 = vld [vmem:[%s2088 + $0x148] sm:$0xff]
    %v2131 = vld [vmem:[%s2088 + $0x150] sm:$0xff]
    %v2132 = vld [vmem:[%s2088 + $0x158] sm:$0xff]
    %v2133 = vld [vmem:[%s2088 + $0x160] sm:$0xff]
    %v2134 = vld [vmem:[%s2088 + $0x168] sm:$0xff]
    %v2135 = vld [vmem:[%s2088 + $0x170] sm:$0xff]
    %v2136 = vld [vmem:[%s2088 + $0x178] sm:$0xff]
    %v2185 = vunpack.c.l.b16 %v2089
    %v2186 = vunpack.c.h.b16 %v2089
    %v2187 = vunpack.c.l.b16 %v2090
    %v2188 = vunpack.c.h.b16 %v2090
    %v2189 = vunpack.c.l.b16 %v2091
    %v2190 = vunpack.c.h.b16 %v2091
    %v2191 = vunpack.c.l.b16 %v2092
    %v2192 = vunpack.c.h.b16 %v2092
    %v2193 = vunpack.c.l.b16 %v2093
    %v2194 = vunpack.c.h.b16 %v2093
    %v2195 = vunpack.c.l.b16 %v2094
    %v2196 = vunpack.c.h.b16 %v2094
    %v2197 = vunpack.c.l.b16 %v2095
    %v2198 = vunpack.c.h.b16 %v2095
    %v2199 = vunpack.c.l.b16 %v2096
    %v2200 = vunpack.c.h.b16 %v2096
    %v2201 = vunpack.c.l.b16 %v2097
    %v2202 = vunpack.c.h.b16 %v2097
    %v2203 = vunpack.c.l.b16 %v2098
    %v2204 = vunpack.c.h.b16 %v2098
    %v2205 = vunpack.c.l.b16 %v2099
    %v2206 = vunpack.c.h.b16 %v2099
    %v2207 = vunpack.c.l.b16 %v2100
    %v2208 = vunpack.c.h.b16 %v2100
    %v2209 = vunpack.c.l.b16 %v2101
    %v2210 = vunpack.c.h.b16 %v2101
    %v2211 = vunpack.c.l.b16 %v2102
    %v2212 = vunpack.c.h.b16 %v2102
    %v2213 = vunpack.c.l.b16 %v2103
    %v2214 = vunpack.c.h.b16 %v2103
    %v2215 = vunpack.c.l.b16 %v2104
    %v2216 = vunpack.c.h.b16 %v2104
    %v2217 = vunpack.c.l.b16 %v2105
    %v2218 = vunpack.c.h.b16 %v2105
    %v2219 = vunpack.c.l.b16 %v2106
    %v2220 = vunpack.c.h.b16 %v2106
    %v2221 = vunpack.c.l.b16 %v2107
    %v2222 = vunpack.c.h.b16 %v2107
    %v2223 = vunpack.c.l.b16 %v2108
    %v2224 = vunpack.c.h.b16 %v2108
    %v2225 = vunpack.c.l.b16 %v2109
    %v2226 = vunpack.c.h.b16 %v2109
    %v2227 = vunpack.c.l.b16 %v2110
    %v2228 = vunpack.c.h.b16 %v2110
    %v2229 = vunpack.c.l.b16 %v2111
    %v2230 = vunpack.c.h.b16 %v2111
    %v2231 = vunpack.c.l.b16 %v2112
    %v2232 = vunpack.c.h.b16 %v2112
    %v2233 = vunpack.c.l.b16 %v2113
    %v2234 = vunpack.c.h.b16 %v2113
    %v2235 = vunpack.c.l.b16 %v2114
    %v2236 = vunpack.c.h.b16 %v2114
    %v2237 = vunpack.c.l.b16 %v2115
    %v2238 = vunpack.c.h.b16 %v2115
    %v2239 = vunpack.c.l.b16 %v2116
    %v2240 = vunpack.c.h.b16 %v2116
    %v2241 = vunpack.c.l.b16 %v2117
    %v2242 = vunpack.c.h.b16 %v2117
    %v2243 = vunpack.c.l.b16 %v2118
    %v2244 = vunpack.c.h.b16 %v2118
    %v2245 = vunpack.c.l.b16 %v2119
    %v2246 = vunpack.c.h.b16 %v2119
    %v2247 = vunpack.c.l.b16 %v2120
    %v2248 = vunpack.c.h.b16 %v2120
    %v2249 = vunpack.c.l.b16 %v2121
    %v2250 = vunpack.c.h.b16 %v2121
    %v2251 = vunpack.c.l.b16 %v2122
    %v2252 = vunpack.c.h.b16 %v2122
    %v2253 = vunpack.c.l.b16 %v2123
    %v2254 = vunpack.c.h.b16 %v2123
    %v2255 = vunpack.c.l.b16 %v2124
    %v2256 = vunpack.c.h.b16 %v2124
    %v2257 = vunpack.c.l.b16 %v2125
    %v2258 = vunpack.c.h.b16 %v2125
    %v2259 = vunpack.c.l.b16 %v2126
    %v2260 = vunpack.c.h.b16 %v2126
    %v2261 = vunpack.c.l.b16 %v2127
    %v2262 = vunpack.c.h.b16 %v2127
    %v2263 = vunpack.c.l.b16 %v2128
    %v2264 = vunpack.c.h.b16 %v2128
    %v2265 = vunpack.c.l.b16 %v2129
    %v2266 = vunpack.c.h.b16 %v2129
    %v2267 = vunpack.c.l.b16 %v2130
    %v2268 = vunpack.c.h.b16 %v2130
    %v2269 = vunpack.c.l.b16 %v2131
    %v2270 = vunpack.c.h.b16 %v2131
    %v2271 = vunpack.c.l.b16 %v2132
    %v2272 = vunpack.c.h.b16 %v2132
    %v2273 = vunpack.c.l.b16 %v2133
    %v2274 = vunpack.c.h.b16 %v2133
    %v2275 = vunpack.c.l.b16 %v2134
    %v2276 = vunpack.c.h.b16 %v2134
    %v2277 = vunpack.c.l.b16 %v2135
    %v2278 = vunpack.c.h.b16 %v2135
    %v2279 = vunpack.c.l.b16 %v2136
    %v2280 = vunpack.c.h.b16 %v2136
    %v2281 = vpack.c.b16 %v2193, %v2185
    %v2282 = vpack.c.b16 %v2194, %v2186
    %v2283 = vpack.c.b16 %v2195, %v2187
    %v2284 = vpack.c.b16 %v2196, %v2188
    %v2285 = vpack.c.b16 %v2197, %v2189
    %v2286 = vpack.c.b16 %v2198, %v2190
    %v2287 = vpack.c.b16 %v2199, %v2191
    %v2288 = vpack.c.b16 %v2200, %v2192
    %v2289 = vpack.c.b16 %v2209, %v2201
    %v2290 = vpack.c.b16 %v2210, %v2202
    %v2291 = vpack.c.b16 %v2211, %v2203
    %v2292 = vpack.c.b16 %v2212, %v2204
    %v2293 = vpack.c.b16 %v2213, %v2205
    %v2294 = vpack.c.b16 %v2214, %v2206
    %v2295 = vpack.c.b16 %v2215, %v2207
    %v2296 = vpack.c.b16 %v2216, %v2208
    %v2297 = vpack.c.b16 %v2225, %v2217
    %v2298 = vpack.c.b16 %v2226, %v2218
    %v2299 = vpack.c.b16 %v2227, %v2219
    %v2300 = vpack.c.b16 %v2228, %v2220
    %v2301 = vpack.c.b16 %v2229, %v2221
    %v2302 = vpack.c.b16 %v2230, %v2222
    %v2303 = vpack.c.b16 %v2231, %v2223
    %v2304 = vpack.c.b16 %v2232, %v2224
    %v2305 = vpack.c.b16 %v2241, %v2233
    %v2306 = vpack.c.b16 %v2242, %v2234
    %v2307 = vpack.c.b16 %v2243, %v2235
    %v2308 = vpack.c.b16 %v2244, %v2236
    %v2309 = vpack.c.b16 %v2245, %v2237
    %v2310 = vpack.c.b16 %v2246, %v2238
    %v2311 = vpack.c.b16 %v2247, %v2239
    %v2312 = vpack.c.b16 %v2248, %v2240
    %v2313 = vpack.c.b16 %v2257, %v2249
    %v2314 = vpack.c.b16 %v2258, %v2250
    %v2315 = vpack.c.b16 %v2259, %v2251
    %v2316 = vpack.c.b16 %v2260, %v2252
    %v2317 = vpack.c.b16 %v2261, %v2253
    %v2318 = vpack.c.b16 %v2262, %v2254
    %v2319 = vpack.c.b16 %v2263, %v2255
    %v2320 = vpack.c.b16 %v2264, %v2256
    %v2321 = vpack.c.b16 %v2273, %v2265
    %v2322 = vpack.c.b16 %v2274, %v2266
    %v2323 = vpack.c.b16 %v2275, %v2267
    %v2324 = vpack.c.b16 %v2276, %v2268
    %v2325 = vpack.c.b16 %v2277, %v2269
    %v2326 = vpack.c.b16 %v2278, %v2270
    %v2327 = vpack.c.b16 %v2279, %v2271
    %v2328 = vpack.c.b16 %v2280, %v2272
    %v2378 = vsel %vm1322, %v2084, 0
    %v2381 = vsel %vm1322, %v2085, 0
    %v2384 = vsel %vm1322, %v2086, 0
    %v2387 = vsel %vm1322, %v2087, 0
    %2389 = vmatpush.bf16.msra.mxu0 0
    %2390 = vmatpush.bf16.msra.mxu0 0
    %2391 = vmatpush.bf16.msra.mxu0 %v2321
    %2392 = vmatpush.bf16.msra.mxu0 %v2313
    %2393 = vmatpush.bf16.msra.mxu0 %v2305
    %2394 = vmatpush.bf16.msra.mxu0 %v2297
    %2395 = vmatpush.bf16.msra.mxu0 %v2289
    %2396 = vmatpush.bf16.msra.mxu0 %v2281
    %2397 = vmatmul.bf16.gmra.mxu0 %v2378
    %v2398 = vpop.f32.mrf.mxu0
    %v2399 = vadd.f32 0.0, %v2398
    %v2400 = vpop.f32.mrf.mxu0
    %v2401 = vadd.f32 0.0, %v2400
    %2402 = vmatmul.bf16.gmra.mxu0 %v2381
    %v2403 = vpop.f32.mrf.mxu0
    %v2404 = vadd.f32 0.0, %v2403
    %v2405 = vpop.f32.mrf.mxu0
    %v2406 = vadd.f32 0.0, %v2405
    %2407 = vmatmul.bf16.gmra.mxu0 %v2384
    %v2408 = vpop.f32.mrf.mxu0
    %v2409 = vadd.f32 0.0, %v2408
    %v2410 = vpop.f32.mrf.mxu0
    %v2411 = vadd.f32 0.0, %v2410
    %2412 = vmatmul.bf16.gmra.mxu0 %v2387
    %v2413 = vpop.f32.mrf.mxu0
    %v2414 = vadd.f32 0.0, %v2413
    %v2415 = vpop.f32.mrf.mxu0
    %v2416 = vadd.f32 0.0, %v2415
    %2417 = vdwg.mxu0
    %2418 = vmatpush.bf16.msra.mxu0 0
    %2419 = vmatpush.bf16.msra.mxu0 0
    %2420 = vmatpush.bf16.msra.mxu0 %v2322
    %2421 = vmatpush.bf16.msra.mxu0 %v2314
    %2422 = vmatpush.bf16.msra.mxu0 %v2306
    %2423 = vmatpush.bf16.msra.mxu0 %v2298
    %2424 = vmatpush.bf16.msra.mxu0 %v2290
    %2425 = vmatpush.bf16.msra.mxu0 %v2282
    %2426 = vmatmul.bf16.gmra.mxu0 %v2378
    %v2427 = vpop.f32.mrf.mxu0
    %v2428 = vadd.f32 0.0, %v2427
    %v2429 = vpop.f32.mrf.mxu0
    %v2430 = vadd.f32 0.0, %v2429
    %2431 = vmatmul.bf16.gmra.mxu0 %v2381
    %v2432 = vpop.f32.mrf.mxu0
    %v2433 = vadd.f32 0.0, %v2432
    %v2434 = vpop.f32.mrf.mxu0
    %v2435 = vadd.f32 0.0, %v2434
    %2436 = vmatmul.bf16.gmra.mxu0 %v2384
    %v2437 = vpop.f32.mrf.mxu0
    %v2438 = vadd.f32 0.0, %v2437
    %v2439 = vpop.f32.mrf.mxu0
    %v2440 = vadd.f32 0.0, %v2439
    %2441 = vmatmul.bf16.gmra.mxu0 %v2387
    %v2442 = vpop.f32.mrf.mxu0
    %v2443 = vadd.f32 0.0, %v2442
    %v2444 = vpop.f32.mrf.mxu0
    %v2445 = vadd.f32 0.0, %v2444
    %2446 = vdwg.mxu0
    %2447 = vmatpush.bf16.msra.mxu0 0
    %2448 = vmatpush.bf16.msra.mxu0 0
    %2449 = vmatpush.bf16.msra.mxu0 %v2323
    %2450 = vmatpush.bf16.msra.mxu0 %v2315
    %2451 = vmatpush.bf16.msra.mxu0 %v2307
    %2452 = vmatpush.bf16.msra.mxu0 %v2299
    %2453 = vmatpush.bf16.msra.mxu0 %v2291
    %2454 = vmatpush.bf16.msra.mxu0 %v2283
    %2455 = vmatmul.bf16.gmra.mxu0 %v2378
    %v2456 = vpop.f32.mrf.mxu0
    %v2457 = vadd.f32 0.0, %v2456
    %v2458 = vpop.f32.mrf.mxu0
    %v2459 = vadd.f32 0.0, %v2458
    %2460 = vmatmul.bf16.gmra.mxu0 %v2381
    %v2461 = vpop.f32.mrf.mxu0
    %v2462 = vadd.f32 0.0, %v2461
    %v2463 = vpop.f32.mrf.mxu0
    %v2464 = vadd.f32 0.0, %v2463
    %2465 = vmatmul.bf16.gmra.mxu0 %v2384
    %v2466 = vpop.f32.mrf.mxu0
    %v2467 = vadd.f32 0.0, %v2466
    %v2468 = vpop.f32.mrf.mxu0
    %v2469 = vadd.f32 0.0, %v2468
    %2470 = vmatmul.bf16.gmra.mxu0 %v2387
    %v2471 = vpop.f32.mrf.mxu0
    %v2472 = vadd.f32 0.0, %v2471
    %v2473 = vpop.f32.mrf.mxu0
    %v2474 = vadd.f32 0.0, %v2473
    %2475 = vdwg.mxu0
    %2476 = vmatpush.bf16.msra.mxu0 0
    %2477 = vmatpush.bf16.msra.mxu0 0
    %2478 = vmatpush.bf16.msra.mxu0 %v2324
    %2479 = vmatpush.bf16.msra.mxu0 %v2316
    %2480 = vmatpush.bf16.msra.mxu0 %v2308
    %2481 = vmatpush.bf16.msra.mxu0 %v2300
    %2482 = vmatpush.bf16.msra.mxu0 %v2292
    %2483 = vmatpush.bf16.msra.mxu0 %v2284
    %2484 = vmatmul.bf16.gmra.mxu0 %v2378
    %v2485 = vpop.f32.mrf.mxu0
    %v2486 = vadd.f32 0.0, %v2485
    %v2487 = vpop.f32.mrf.mxu0
    %v2488 = vadd.f32 0.0, %v2487
    %2489 = vmatmul.bf16.gmra.mxu0 %v2381
    %v2490 = vpop.f32.mrf.mxu0
    %v2491 = vadd.f32 0.0, %v2490
    %v2492 = vpop.f32.mrf.mxu0
    %v2493 = vadd.f32 0.0, %v2492
    %2494 = vmatmul.bf16.gmra.mxu0 %v2384
    %v2495 = vpop.f32.mrf.mxu0
    %v2496 = vadd.f32 0.0, %v2495
    %v2497 = vpop.f32.mrf.mxu0
    %v2498 = vadd.f32 0.0, %v2497
    %2499 = vmatmul.bf16.gmra.mxu0 %v2387
    %v2500 = vpop.f32.mrf.mxu0
    %v2501 = vadd.f32 0.0, %v2500
    %v2502 = vpop.f32.mrf.mxu0
    %v2503 = vadd.f32 0.0, %v2502
    %2504 = vdwg.mxu0
    %2505 = vmatpush.bf16.msra.mxu0 0
    %2506 = vmatpush.bf16.msra.mxu0 0
    %2507 = vmatpush.bf16.msra.mxu0 %v2325
    %2508 = vmatpush.bf16.msra.mxu0 %v2317
    %2509 = vmatpush.bf16.msra.mxu0 %v2309
    %2510 = vmatpush.bf16.msra.mxu0 %v2301
    %2511 = vmatpush.bf16.msra.mxu0 %v2293
    %2512 = vmatpush.bf16.msra.mxu0 %v2285
    %2513 = vmatmul.bf16.gmra.mxu0 %v2378
    %v2514 = vpop.f32.mrf.mxu0
    %v2515 = vadd.f32 0.0, %v2514
    %v2516 = vpop.f32.mrf.mxu0
    %v2517 = vadd.f32 0.0, %v2516
    %2518 = vmatmul.bf16.gmra.mxu0 %v2381
    %v2519 = vpop.f32.mrf.mxu0
    %v2520 = vadd.f32 0.0, %v2519
    %v2521 = vpop.f32.mrf.mxu0
    %v2522 = vadd.f32 0.0, %v2521
    %2523 = vmatmul.bf16.gmra.mxu0 %v2384
    %v2524 = vpop.f32.mrf.mxu0
    %v2525 = vadd.f32 0.0, %v2524
    %v2526 = vpop.f32.mrf.mxu0
    %v2527 = vadd.f32 0.0, %v2526
    %2528 = vmatmul.bf16.gmra.mxu0 %v2387
    %v2529 = vpop.f32.mrf.mxu0
    %v2530 = vadd.f32 0.0, %v2529
    %v2531 = vpop.f32.mrf.mxu0
    %v2532 = vadd.f32 0.0, %v2531
    %2533 = vdwg.mxu0
    %2534 = vmatpush.bf16.msra.mxu0 0
    %2535 = vmatpush.bf16.msra.mxu0 0
    %2536 = vmatpush.bf16.msra.mxu0 %v2326
    %2537 = vmatpush.bf16.msra.mxu0 %v2318
    %2538 = vmatpush.bf16.msra.mxu0 %v2310
    %2539 = vmatpush.bf16.msra.mxu0 %v2302
    %2540 = vmatpush.bf16.msra.mxu0 %v2294
    %2541 = vmatpush.bf16.msra.mxu0 %v2286
    %2542 = vmatmul.bf16.gmra.mxu0 %v2378
    %v2543 = vpop.f32.mrf.mxu0
    %v2544 = vadd.f32 0.0, %v2543
    %v2545 = vpop.f32.mrf.mxu0
    %v2546 = vadd.f32 0.0, %v2545
    %2547 = vmatmul.bf16.gmra.mxu0 %v2381
    %v2548 = vpop.f32.mrf.mxu0
    %v2549 = vadd.f32 0.0, %v2548
    %v2550 = vpop.f32.mrf.mxu0
    %v2551 = vadd.f32 0.0, %v2550
    %2552 = vmatmul.bf16.gmra.mxu0 %v2384
    %v2553 = vpop.f32.mrf.mxu0
    %v2554 = vadd.f32 0.0, %v2553
    %v2555 = vpop.f32.mrf.mxu0
    %v2556 = vadd.f32 0.0, %v2555
    %2557 = vmatmul.bf16.gmra.mxu0 %v2387
    %v2558 = vpop.f32.mrf.mxu0
    %v2559 = vadd.f32 0.0, %v2558
    %v2560 = vpop.f32.mrf.mxu0
    %v2561 = vadd.f32 0.0, %v2560
    %2562 = vdwg.mxu0
    %2563 = vmatpush.bf16.msra.mxu0 0
    %2564 = vmatpush.bf16.msra.mxu0 0
    %2565 = vmatpush.bf16.msra.mxu0 %v2327
    %2566 = vmatpush.bf16.msra.mxu0 %v2319
    %2567 = vmatpush.bf16.msra.mxu0 %v2311
    %2568 = vmatpush.bf16.msra.mxu0 %v2303
    %2569 = vmatpush.bf16.msra.mxu0 %v2295
    %2570 = vmatpush.bf16.msra.mxu0 %v2287
    %2571 = vmatmul.bf16.gmra.mxu0 %v2378
    %v2572 = vpop.f32.mrf.mxu0
    %v2573 = vadd.f32 0.0, %v2572
    %v2574 = vpop.f32.mrf.mxu0
    %v2575 = vadd.f32 0.0, %v2574
    %2576 = vmatmul.bf16.gmra.mxu0 %v2381
    %v2577 = vpop.f32.mrf.mxu0
    %v2578 = vadd.f32 0.0, %v2577
    %v2579 = vpop.f32.mrf.mxu0
    %v2580 = vadd.f32 0.0, %v2579
    %2581 = vmatmul.bf16.gmra.mxu0 %v2384
    %v2582 = vpop.f32.mrf.mxu0
    %v2583 = vadd.f32 0.0, %v2582
    %v2584 = vpop.f32.mrf.mxu0
    %v2585 = vadd.f32 0.0, %v2584
    %2586 = vmatmul.bf16.gmra.mxu0 %v2387
    %v2587 = vpop.f32.mrf.mxu0
    %v2588 = vadd.f32 0.0, %v2587
    %v2589 = vpop.f32.mrf.mxu0
    %v2590 = vadd.f32 0.0, %v2589
    %2591 = vdwg.mxu0
    %2592 = vmatpush.bf16.msra.mxu0 0
    %2593 = vmatpush.bf16.msra.mxu0 0
    %2594 = vmatpush.bf16.msra.mxu0 %v2328
    %2595 = vmatpush.bf16.msra.mxu0 %v2320
    %2596 = vmatpush.bf16.msra.mxu0 %v2312
    %2597 = vmatpush.bf16.msra.mxu0 %v2304
    %2598 = vmatpush.bf16.msra.mxu0 %v2296
    %2599 = vmatpush.bf16.msra.mxu0 %v2288
    %2600 = vmatmul.bf16.gmra.mxu0 %v2378
    %v2601 = vpop.f32.mrf.mxu0
    %v2602 = vadd.f32 0.0, %v2601
    %v2603 = vpop.f32.mrf.mxu0
    %v2604 = vadd.f32 0.0, %v2603
    %2605 = vmatmul.bf16.gmra.mxu0 %v2381
    %v2606 = vpop.f32.mrf.mxu0
    %v2607 = vadd.f32 0.0, %v2606
    %v2608 = vpop.f32.mrf.mxu0
    %v2609 = vadd.f32 0.0, %v2608
    %2610 = vmatmul.bf16.gmra.mxu0 %v2384
    %v2611 = vpop.f32.mrf.mxu0
    %v2612 = vadd.f32 0.0, %v2611
    %v2613 = vpop.f32.mrf.mxu0
    %v2614 = vadd.f32 0.0, %v2613
    %2615 = vmatmul.bf16.gmra.mxu0 %v2387
    %v2616 = vpop.f32.mrf.mxu0
    %v2617 = vadd.f32 0.0, %v2616
    %v2618 = vpop.f32.mrf.mxu0
    %v2619 = vadd.f32 0.0, %v2618
    %2620 = vdwg.mxu0
    %v2621 = vadd.f32 %v1829, %v2399
    %v2622 = vadd.f32 %v1858, %v2428
    %v2623 = vadd.f32 %v1887, %v2457
    %v2624 = vadd.f32 %v1916, %v2486
    %v2625 = vadd.f32 %v1945, %v2515
    %v2626 = vadd.f32 %v1974, %v2544
    %v2627 = vadd.f32 %v2003, %v2573
    %v2628 = vadd.f32 %v2032, %v2602
    %v2629 = vadd.f32 %v1831, %v2401
    %v2630 = vadd.f32 %v1860, %v2430
    %v2631 = vadd.f32 %v1889, %v2459
    %v2632 = vadd.f32 %v1918, %v2488
    %v2633 = vadd.f32 %v1947, %v2517
    %v2634 = vadd.f32 %v1976, %v2546
    %v2635 = vadd.f32 %v2005, %v2575
    %v2636 = vadd.f32 %v2034, %v2604
    %v2637 = vadd.f32 %v1834, %v2404
    %v2638 = vadd.f32 %v1863, %v2433
    %v2639 = vadd.f32 %v1892, %v2462
    %v2640 = vadd.f32 %v1921, %v2491
    %v2641 = vadd.f32 %v1950, %v2520
    %v2642 = vadd.f32 %v1979, %v2549
    %v2643 = vadd.f32 %v2008, %v2578
    %v2644 = vadd.f32 %v2037, %v2607
    %v2645 = vadd.f32 %v1836, %v2406
    %v2646 = vadd.f32 %v1865, %v2435
    %v2647 = vadd.f32 %v1894, %v2464
    %v2648 = vadd.f32 %v1923, %v2493
    %v2649 = vadd.f32 %v1952, %v2522
    %v2650 = vadd.f32 %v1981, %v2551
    %v2651 = vadd.f32 %v2010, %v2580
    %v2652 = vadd.f32 %v2039, %v2609
    %v2653 = vadd.f32 %v1839, %v2409
    %v2654 = vadd.f32 %v1868, %v2438
    %v2655 = vadd.f32 %v1897, %v2467
    %v2656 = vadd.f32 %v1926, %v2496
    %v2657 = vadd.f32 %v1955, %v2525
    %v2658 = vadd.f32 %v1984, %v2554
    %v2659 = vadd.f32 %v2013, %v2583
    %v2660 = vadd.f32 %v2042, %v2612
    %v2661 = vadd.f32 %v1841, %v2411
    %v2662 = vadd.f32 %v1870, %v2440
    %v2663 = vadd.f32 %v1899, %v2469
    %v2664 = vadd.f32 %v1928, %v2498
    %v2665 = vadd.f32 %v1957, %v2527
    %v2666 = vadd.f32 %v1986, %v2556
    %v2667 = vadd.f32 %v2015, %v2585
    %v2668 = vadd.f32 %v2044, %v2614
    %v2669 = vadd.f32 %v1844, %v2414
    %v2670 = vadd.f32 %v1873, %v2443
    %v2671 = vadd.f32 %v1902, %v2472
    %v2672 = vadd.f32 %v1931, %v2501
    %v2673 = vadd.f32 %v1960, %v2530
    %v2674 = vadd.f32 %v1989, %v2559
    %v2675 = vadd.f32 %v2018, %v2588
    %v2676 = vadd.f32 %v2047, %v2617
    %v2677 = vadd.f32 %v1846, %v2416
    %v2678 = vadd.f32 %v1875, %v2445
    %v2679 = vadd.f32 %v1904, %v2474
    %v2680 = vadd.f32 %v1933, %v2503
    %v2681 = vadd.f32 %v1962, %v2532
    %v2682 = vadd.f32 %v1991, %v2561
    %v2683 = vadd.f32 %v2020, %v2590
    %v2684 = vadd.f32 %v2049, %v2619
    %v2685 = vadd.f32 %v2621, %v2629
    %v2686 = vadd.f32 %v2685, %v2637
    %v2687 = vadd.f32 %v2686, %v2645
    %v2688 = vadd.f32 %v2687, %v2653
    %v2689 = vadd.f32 %v2688, %v2661
    %v2690 = vadd.f32 %v2689, %v2669
    %v2691 = vadd.f32 %v2690, %v2677
    %v2692 = vrot.slane %v2691, 4
    %v2693 = vadd.f32 %v2691, %v2692
    %v2694 = vrot.slane %v2693, 2
    %v2695 = vadd.f32 %v2693, %v2694
    %v2696 = vrot.slane %v2695, 1
    %v2697 = vadd.f32 %v2695, %v2696
    %v2698 = vadd.f32 %v2622, %v2630
    %v2699 = vadd.f32 %v2698, %v2638
    %v2700 = vadd.f32 %v2699, %v2646
    %v2701 = vadd.f32 %v2700, %v2654
    %v2702 = vadd.f32 %v2701, %v2662
    %v2703 = vadd.f32 %v2702, %v2670
    %v2704 = vadd.f32 %v2703, %v2678
    %v2705 = vrot.slane %v2704, 4
    %v2706 = vadd.f32 %v2704, %v2705
    %v2707 = vrot.slane %v2706, 2
    %v2708 = vadd.f32 %v2706, %v2707
    %v2709 = vrot.slane %v2708, 1
    %v2710 = vadd.f32 %v2708, %v2709
    %v2711 = vadd.f32 %v2623, %v2631
    %v2712 = vadd.f32 %v2711, %v2639
    %v2713 = vadd.f32 %v2712, %v2647
    %v2714 = vadd.f32 %v2713, %v2655
    %v2715 = vadd.f32 %v2714, %v2663
    %v2716 = vadd.f32 %v2715, %v2671
    %v2717 = vadd.f32 %v2716, %v2679
    %v2718 = vrot.slane %v2717, 4
    %v2719 = vadd.f32 %v2717, %v2718
    %v2720 = vrot.slane %v2719, 2
    %v2721 = vadd.f32 %v2719, %v2720
    %v2722 = vrot.slane %v2721, 1
    %v2723 = vadd.f32 %v2721, %v2722
    %v2724 = vadd.f32 %v2624, %v2632
    %v2725 = vadd.f32 %v2724, %v2640
    %v2726 = vadd.f32 %v2725, %v2648
    %v2727 = vadd.f32 %v2726, %v2656
    %v2728 = vadd.f32 %v2727, %v2664
    %v2729 = vadd.f32 %v2728, %v2672
    %v2730 = vadd.f32 %v2729, %v2680
    %v2731 = vrot.slane %v2730, 4
    %v2732 = vadd.f32 %v2730, %v2731
    %v2733 = vrot.slane %v2732, 2
    %v2734 = vadd.f32 %v2732, %v2733
    %v2735 = vrot.slane %v2734, 1
    %v2736 = vadd.f32 %v2734, %v2735
    %v2737 = vadd.f32 %v2625, %v2633
    %v2738 = vadd.f32 %v2737, %v2641
    %v2739 = vadd.f32 %v2738, %v2649
    %v2740 = vadd.f32 %v2739, %v2657
    %v2741 = vadd.f32 %v2740, %v2665
    %v2742 = vadd.f32 %v2741, %v2673
    %v2743 = vadd.f32 %v2742, %v2681
    %v2744 = vrot.slane %v2743, 4
    %v2745 = vadd.f32 %v2743, %v2744
    %v2746 = vrot.slane %v2745, 2
    %v2747 = vadd.f32 %v2745, %v2746
    %v2748 = vrot.slane %v2747, 1
    %v2749 = vadd.f32 %v2747, %v2748
    %v2750 = vadd.f32 %v2626, %v2634
    %v2751 = vadd.f32 %v2750, %v2642
    %v2752 = vadd.f32 %v2751, %v2650
    %v2753 = vadd.f32 %v2752, %v2658
    %v2754 = vadd.f32 %v2753, %v2666
    %v2755 = vadd.f32 %v2754, %v2674
    %v2756 = vadd.f32 %v2755, %v2682
    %v2757 = vrot.slane %v2756, 4
    %v2758 = vadd.f32 %v2756, %v2757
    %v2759 = vrot.slane %v2758, 2
    %v2760 = vadd.f32 %v2758, %v2759
    %v2761 = vrot.slane %v2760, 1
    %v2762 = vadd.f32 %v2760, %v2761
    %v2763 = vadd.f32 %v2627, %v2635
    %v2764 = vadd.f32 %v2763, %v2643
    %v2765 = vadd.f32 %v2764, %v2651
    %v2766 = vadd.f32 %v2765, %v2659
    %v2767 = vadd.f32 %v2766, %v2667
    %v2768 = vadd.f32 %v2767, %v2675
    %v2769 = vadd.f32 %v2768, %v2683
    %v2770 = vrot.slane %v2769, 4
    %v2771 = vadd.f32 %v2769, %v2770
    %v2772 = vrot.slane %v2771, 2
    %v2773 = vadd.f32 %v2771, %v2772
    %v2774 = vrot.slane %v2773, 1
    %v2775 = vadd.f32 %v2773, %v2774
    %v2776 = vadd.f32 %v2628, %v2636
    %v2777 = vadd.f32 %v2776, %v2644
    %v2778 = vadd.f32 %v2777, %v2652
    %v2779 = vadd.f32 %v2778, %v2660
    %v2780 = vadd.f32 %v2779, %v2668
    %v2781 = vadd.f32 %v2780, %v2676
    %v2782 = vadd.f32 %v2781, %v2684
    %v2783 = vrot.slane %v2782, 4
    %v2784 = vadd.f32 %v2782, %v2783
    %v2785 = vrot.slane %v2784, 2
    %v2786 = vadd.f32 %v2784, %v2785
    %v2787 = vrot.slane %v2786, 1
    %v2788 = vadd.f32 %v2786, %v2787
    %v2789 = vmul.f32 %v2621, %v2621
    %v2790 = vmul.f32 %v2622, %v2622
    %v2791 = vmul.f32 %v2623, %v2623
    %v2792 = vmul.f32 %v2624, %v2624
    %v2793 = vmul.f32 %v2625, %v2625
    %v2794 = vmul.f32 %v2626, %v2626
    %v2795 = vmul.f32 %v2627, %v2627
    %v2796 = vmul.f32 %v2628, %v2628
    %v2797 = vmul.f32 %v2629, %v2629
    %v2798 = vmul.f32 %v2630, %v2630
    %v2799 = vmul.f32 %v2631, %v2631
    %v2800 = vmul.f32 %v2632, %v2632
    %v2801 = vmul.f32 %v2633, %v2633
    %v2802 = vmul.f32 %v2634, %v2634
    %v2803 = vmul.f32 %v2635, %v2635
    %v2804 = vmul.f32 %v2636, %v2636
    %v2805 = vmul.f32 %v2637, %v2637
    %v2806 = vmul.f32 %v2638, %v2638
    %v2807 = vmul.f32 %v2639, %v2639
    %v2808 = vmul.f32 %v2640, %v2640
    %v2809 = vmul.f32 %v2641, %v2641
    %v2810 = vmul.f32 %v2642, %v2642
    %v2811 = vmul.f32 %v2643, %v2643
    %v2812 = vmul.f32 %v2644, %v2644
    %v2813 = vmul.f32 %v2645, %v2645
    %v2814 = vmul.f32 %v2646, %v2646
    %v2815 = vmul.f32 %v2647, %v2647
    %v2816 = vmul.f32 %v2648, %v2648
    %v2817 = vmul.f32 %v2649, %v2649
    %v2818 = vmul.f32 %v2650, %v2650
    %v2819 = vmul.f32 %v2651, %v2651
    %v2820 = vmul.f32 %v2652, %v2652
    %v2821 = vmul.f32 %v2653, %v2653
    %v2822 = vmul.f32 %v2654, %v2654
    %v2823 = vmul.f32 %v2655, %v2655
    %v2824 = vmul.f32 %v2656, %v2656
    %v2825 = vmul.f32 %v2657, %v2657
    %v2826 = vmul.f32 %v2658, %v2658
    %v2827 = vmul.f32 %v2659, %v2659
    %v2828 = vmul.f32 %v2660, %v2660
    %v2829 = vmul.f32 %v2661, %v2661
    %v2830 = vmul.f32 %v2662, %v2662
    %v2831 = vmul.f32 %v2663, %v2663
    %v2832 = vmul.f32 %v2664, %v2664
    %v2833 = vmul.f32 %v2665, %v2665
    %v2834 = vmul.f32 %v2666, %v2666
    %v2835 = vmul.f32 %v2667, %v2667
    %v2836 = vmul.f32 %v2668, %v2668
    %v2837 = vmul.f32 %v2669, %v2669
    %v2838 = vmul.f32 %v2670, %v2670
    %v2839 = vmul.f32 %v2671, %v2671
    %v2840 = vmul.f32 %v2672, %v2672
    %v2841 = vmul.f32 %v2673, %v2673
    %v2842 = vmul.f32 %v2674, %v2674
    %v2843 = vmul.f32 %v2675, %v2675
    %v2844 = vmul.f32 %v2676, %v2676
    %v2845 = vmul.f32 %v2677, %v2677
    %v2846 = vmul.f32 %v2678, %v2678
    %v2847 = vmul.f32 %v2679, %v2679
    %v2848 = vmul.f32 %v2680, %v2680
    %v2849 = vmul.f32 %v2681, %v2681
    %v2850 = vmul.f32 %v2682, %v2682
    %v2851 = vmul.f32 %v2683, %v2683
    %v2852 = vmul.f32 %v2684, %v2684
    %v2853 = vadd.f32 %v2789, %v2797
    %v2854 = vadd.f32 %v2853, %v2805
    %v2855 = vadd.f32 %v2854, %v2813
    %v2856 = vadd.f32 %v2855, %v2821
    %v2857 = vadd.f32 %v2856, %v2829
    %v2858 = vadd.f32 %v2857, %v2837
    %v2859 = vadd.f32 %v2858, %v2845
    %v2860 = vrot.slane %v2859, 4
    %v2861 = vadd.f32 %v2859, %v2860
    %v2862 = vrot.slane %v2861, 2
    %v2863 = vadd.f32 %v2861, %v2862
    %v2864 = vrot.slane %v2863, 1
    %v2865 = vadd.f32 %v2863, %v2864
    %v2866 = vadd.f32 %v2790, %v2798
    %v2867 = vadd.f32 %v2866, %v2806
    %v2868 = vadd.f32 %v2867, %v2814
    %v2869 = vadd.f32 %v2868, %v2822
    %v2870 = vadd.f32 %v2869, %v2830
    %v2871 = vadd.f32 %v2870, %v2838
    %v2872 = vadd.f32 %v2871, %v2846
    %v2873 = vrot.slane %v2872, 4
    %v2874 = vadd.f32 %v2872, %v2873
    %v2875 = vrot.slane %v2874, 2
    %v2876 = vadd.f32 %v2874, %v2875
    %v2877 = vrot.slane %v2876, 1
    %v2878 = vadd.f32 %v2876, %v2877
    %v2879 = vadd.f32 %v2791, %v2799
    %v2880 = vadd.f32 %v2879, %v2807
    %v2881 = vadd.f32 %v2880, %v2815
    %v2882 = vadd.f32 %v2881, %v2823
    %v2883 = vadd.f32 %v2882, %v2831
    %v2884 = vadd.f32 %v2883, %v2839
    %v2885 = vadd.f32 %v2884, %v2847
    %v2886 = vrot.slane %v2885, 4
    %v2887 = vadd.f32 %v2885, %v2886
    %v2888 = vrot.slane %v2887, 2
    %v2889 = vadd.f32 %v2887, %v2888
    %v2890 = vrot.slane %v2889, 1
    %v2891 = vadd.f32 %v2889, %v2890
    %v2892 = vadd.f32 %v2792, %v2800
    %v2893 = vadd.f32 %v2892, %v2808
    %v2894 = vadd.f32 %v2893, %v2816
    %v2895 = vadd.f32 %v2894, %v2824
    %v2896 = vadd.f32 %v2895, %v2832
    %v2897 = vadd.f32 %v2896, %v2840
    %v2898 = vadd.f32 %v2897, %v2848
    %v2899 = vrot.slane %v2898, 4
    %v2900 = vadd.f32 %v2898, %v2899
    %v2901 = vrot.slane %v2900, 2
    %v2902 = vadd.f32 %v2900, %v2901
    %v2903 = vrot.slane %v2902, 1
    %v2904 = vadd.f32 %v2902, %v2903
    %v2905 = vadd.f32 %v2793, %v2801
    %v2906 = vadd.f32 %v2905, %v2809
    %v2907 = vadd.f32 %v2906, %v2817
    %v2908 = vadd.f32 %v2907, %v2825
    %v2909 = vadd.f32 %v2908, %v2833
    %v2910 = vadd.f32 %v2909, %v2841
    %v2911 = vadd.f32 %v2910, %v2849
    %v2912 = vrot.slane %v2911, 4
    %v2913 = vadd.f32 %v2911, %v2912
    %v2914 = vrot.slane %v2913, 2
    %v2915 = vadd.f32 %v2913, %v2914
    %v2916 = vrot.slane %v2915, 1
    %v2917 = vadd.f32 %v2915, %v2916
    %v2918 = vadd.f32 %v2794, %v2802
    %v2919 = vadd.f32 %v2918, %v2810
    %v2920 = vadd.f32 %v2919, %v2818
    %v2921 = vadd.f32 %v2920, %v2826
    %v2922 = vadd.f32 %v2921, %v2834
    %v2923 = vadd.f32 %v2922, %v2842
    %v2924 = vadd.f32 %v2923, %v2850
    %v2925 = vrot.slane %v2924, 4
    %v2926 = vadd.f32 %v2924, %v2925
    %v2927 = vrot.slane %v2926, 2
    %v2928 = vadd.f32 %v2926, %v2927
    %v2929 = vrot.slane %v2928, 1
    %v2930 = vadd.f32 %v2928, %v2929
    %v2931 = vadd.f32 %v2795, %v2803
    %v2932 = vadd.f32 %v2931, %v2811
    %v2933 = vadd.f32 %v2932, %v2819
    %v2934 = vadd.f32 %v2933, %v2827
    %v2935 = vadd.f32 %v2934, %v2835
    %v2936 = vadd.f32 %v2935, %v2843
    %v2937 = vadd.f32 %v2936, %v2851
    %v2938 = vrot.slane %v2937, 4
    %v2939 = vadd.f32 %v2937, %v2938
    %v2940 = vrot.slane %v2939, 2
    %v2941 = vadd.f32 %v2939, %v2940
    %v2942 = vrot.slane %v2941, 1
    %v2943 = vadd.f32 %v2941, %v2942
    %v2944 = vadd.f32 %v2796, %v2804
    %v2945 = vadd.f32 %v2944, %v2812
    %v2946 = vadd.f32 %v2945, %v2820
    %v2947 = vadd.f32 %v2946, %v2828
    %v2948 = vadd.f32 %v2947, %v2836
    %v2949 = vadd.f32 %v2948, %v2844
    %v2950 = vadd.f32 %v2949, %v2852
    %v2951 = vrot.slane %v2950, 4
    %v2952 = vadd.f32 %v2950, %v2951
    %v2953 = vrot.slane %v2952, 2
    %v2954 = vadd.f32 %v2952, %v2953
    %v2955 = vrot.slane %v2954, 1
    %v2956 = vadd.f32 %v2954, %v2955
    %v2957 = vsel %vm997, %v2697, %v2865
    %v2958 = vsel %vm997, %v2710, %v2878
    %v2959 = vsel %vm997, %v2723, %v2891
    %v2960 = vsel %vm997, %v2736, %v2904
    %v2961 = vsel %vm997, %v2749, %v2917
    %v2962 = vsel %vm997, %v2762, %v2930
    %v2963 = vsel %vm997, %v2775, %v2943
    %v2964 = vsel %vm997, %v2788, %v2956
    %2965 = vmatpush.msra.mxu0 %v702
    %2966 = vmatpush.msra.mxu0 %v701
    %2967 = vmatpush.msra.mxu0 %v700
    %2968 = vmatpush.msra.mxu0 %v699
    %2969 = vmatpush.msra.mxu0 %v698
    %2970 = vmatpush.msra.mxu0 %v697
    %2971 = vmatpush.msra.mxu0 %v696
    %2972 = vmatpush.msra.mxu0 %v695
    %2973 = vmatpush.msra.mxu0 %v694
    %2974 = vmatpush.msra.mxu0 %v693
    %2975 = vmatpush.msra.mxu0 %v692
    %2976 = vmatpush.msra.mxu0 %v691
    %2977 = vmatpush.msra.mxu0 %v690
    %2978 = vmatpush.msra.mxu0 %v689
    %2979 = vmatpush.msra.mxu0 %v688
    %2980 = vmatpush.msra.mxu0 %v687
    %2981 = vmatmul.f32.gmra.mxu0 %v2957
    %v2982 = vpop.f32.mrf.mxu0
    %v2983 = vadd.f32 0.0, %v2982
    %2984 = vdwg.mxu0
    %2985 = vmatpush.msra.mxu0 %v718
    %2986 = vmatpush.msra.mxu0 %v717
    %2987 = vmatpush.msra.mxu0 %v716
    %2988 = vmatpush.msra.mxu0 %v715
    %2989 = vmatpush.msra.mxu0 %v714
    %2990 = vmatpush.msra.mxu0 %v713
    %2991 = vmatpush.msra.mxu0 %v712
    %2992 = vmatpush.msra.mxu0 %v711
    %2993 = vmatpush.msra.mxu0 %v710
    %2994 = vmatpush.msra.mxu0 %v709
    %2995 = vmatpush.msra.mxu0 %v708
    %2996 = vmatpush.msra.mxu0 %v707
    %2997 = vmatpush.msra.mxu0 %v706
    %2998 = vmatpush.msra.mxu0 %v705
    %2999 = vmatpush.msra.mxu0 %v704
    %3000 = vmatpush.msra.mxu0 %v703
    %3001 = vmatmul.f32.gmra.mxu0 %v2958
    %v3002 = vpop.f32.mrf.mxu0
    %v3003 = vadd.f32 %v2983, %v3002
    %3004 = vdwg.mxu0
    %3005 = vmatpush.msra.mxu0 %v734
    %3006 = vmatpush.msra.mxu0 %v733
    %3007 = vmatpush.msra.mxu0 %v732
    %3008 = vmatpush.msra.mxu0 %v731
    %3009 = vmatpush.msra.mxu0 %v730
    %3010 = vmatpush.msra.mxu0 %v729
    %3011 = vmatpush.msra.mxu0 %v728
    %3012 = vmatpush.msra.mxu0 %v727
    %3013 = vmatpush.msra.mxu0 %v726
    %3014 = vmatpush.msra.mxu0 %v725
    %3015 = vmatpush.msra.mxu0 %v724
    %3016 = vmatpush.msra.mxu0 %v723
    %3017 = vmatpush.msra.mxu0 %v722
    %3018 = vmatpush.msra.mxu0 %v721
    %3019 = vmatpush.msra.mxu0 %v720
    %3020 = vmatpush.msra.mxu0 %v719
    %3021 = vmatmul.f32.gmra.mxu0 %v2959
    %v3022 = vpop.f32.mrf.mxu0
    %v3023 = vadd.f32 %v3003, %v3022
    %3024 = vdwg.mxu0
    %3025 = vmatpush.msra.mxu0 %v750
    %3026 = vmatpush.msra.mxu0 %v749
    %3027 = vmatpush.msra.mxu0 %v748
    %3028 = vmatpush.msra.mxu0 %v747
    %3029 = vmatpush.msra.mxu0 %v746
    %3030 = vmatpush.msra.mxu0 %v745
    %3031 = vmatpush.msra.mxu0 %v744
    %3032 = vmatpush.msra.mxu0 %v743
    %3033 = vmatpush.msra.mxu0 %v742
    %3034 = vmatpush.msra.mxu0 %v741
    %3035 = vmatpush.msra.mxu0 %v740
    %3036 = vmatpush.msra.mxu0 %v739
    %3037 = vmatpush.msra.mxu0 %v738
    %3038 = vmatpush.msra.mxu0 %v737
    %3039 = vmatpush.msra.mxu0 %v736
    %3040 = vmatpush.msra.mxu0 %v735
    %3041 = vmatmul.f32.gmra.mxu0 %v2960
    %v3042 = vpop.f32.mrf.mxu0
    %v3043 = vadd.f32 %v3023, %v3042
    %3044 = vdwg.mxu0
    %3045 = vmatpush.msra.mxu0 %v766
    %3046 = vmatpush.msra.mxu0 %v765
    %3047 = vmatpush.msra.mxu0 %v764
    %3048 = vmatpush.msra.mxu0 %v763
    %3049 = vmatpush.msra.mxu0 %v762
    %3050 = vmatpush.msra.mxu0 %v761
    %3051 = vmatpush.msra.mxu0 %v760
    %3052 = vmatpush.msra.mxu0 %v759
    %3053 = vmatpush.msra.mxu0 %v758
    %3054 = vmatpush.msra.mxu0 %v757
    %3055 = vmatpush.msra.mxu0 %v756
    %3056 = vmatpush.msra.mxu0 %v755
    %3057 = vmatpush.msra.mxu0 %v754
    %3058 = vmatpush.msra.mxu0 %v753
    %3059 = vmatpush.msra.mxu0 %v752
    %3060 = vmatpush.msra.mxu0 %v751
    %3061 = vmatmul.f32.gmra.mxu0 %v2961
    %v3062 = vpop.f32.mrf.mxu0
    %v3063 = vadd.f32 %v3043, %v3062
    %3064 = vdwg.mxu0
    %3065 = vmatpush.msra.mxu0 %v782
    %3066 = vmatpush.msra.mxu0 %v781
    %3067 = vmatpush.msra.mxu0 %v780
    %3068 = vmatpush.msra.mxu0 %v779
    %3069 = vmatpush.msra.mxu0 %v778
    %3070 = vmatpush.msra.mxu0 %v777
    %3071 = vmatpush.msra.mxu0 %v776
    %3072 = vmatpush.msra.mxu0 %v775
    %3073 = vmatpush.msra.mxu0 %v774
    %3074 = vmatpush.msra.mxu0 %v773
    %3075 = vmatpush.msra.mxu0 %v772
    %3076 = vmatpush.msra.mxu0 %v771
    %3077 = vmatpush.msra.mxu0 %v770
    %3078 = vmatpush.msra.mxu0 %v769
    %3079 = vmatpush.msra.mxu0 %v768
    %3080 = vmatpush.msra.mxu0 %v767
    %3081 = vmatmul.f32.gmra.mxu0 %v2962
    %v3082 = vpop.f32.mrf.mxu0
    %v3083 = vadd.f32 %v3063, %v3082
    %3084 = vdwg.mxu0
    %3085 = vmatpush.msra.mxu0 %v798
    %3086 = vmatpush.msra.mxu0 %v797
    %3087 = vmatpush.msra.mxu0 %v796
    %3088 = vmatpush.msra.mxu0 %v795
    %3089 = vmatpush.msra.mxu0 %v794
    %3090 = vmatpush.msra.mxu0 %v793
    %3091 = vmatpush.msra.mxu0 %v792
    %3092 = vmatpush.msra.mxu0 %v791
    %3093 = vmatpush.msra.mxu0 %v790
    %3094 = vmatpush.msra.mxu0 %v789
    %3095 = vmatpush.msra.mxu0 %v788
    %3096 = vmatpush.msra.mxu0 %v787
    %3097 = vmatpush.msra.mxu0 %v786
    %3098 = vmatpush.msra.mxu0 %v785
    %3099 = vmatpush.msra.mxu0 %v784
    %3100 = vmatpush.msra.mxu0 %v783
    %3101 = vmatmul.f32.gmra.mxu0 %v2963
    %v3102 = vpop.f32.mrf.mxu0
    %v3103 = vadd.f32 %v3083, %v3102
    %3104 = vdwg.mxu0
    %3105 = vmatpush.msra.mxu0 %v814
    %3106 = vmatpush.msra.mxu0 %v813
    %3107 = vmatpush.msra.mxu0 %v812
    %3108 = vmatpush.msra.mxu0 %v811
    %3109 = vmatpush.msra.mxu0 %v810
    %3110 = vmatpush.msra.mxu0 %v809
    %3111 = vmatpush.msra.mxu0 %v808
    %3112 = vmatpush.msra.mxu0 %v807
    %3113 = vmatpush.msra.mxu0 %v806
    %3114 = vmatpush.msra.mxu0 %v805
    %3115 = vmatpush.msra.mxu0 %v804
    %3116 = vmatpush.msra.mxu0 %v803
    %3117 = vmatpush.msra.mxu0 %v802
    %3118 = vmatpush.msra.mxu0 %v801
    %3119 = vmatpush.msra.mxu0 %v800
    %3120 = vmatpush.msra.mxu0 %v799
    %3121 = vmatmul.f32.gmra.mxu0 %v2964
    %v3122 = vpop.f32.mrf.mxu0
    %v3123 = vadd.f32 %v3103, %v3122
    %3124 = vdwg.mxu0
    %v3125 = vmul.f32 %v3123, 0.00048828125
    %v3126 = vmul.f32 %v3125, %v3125
    %v3128 = vrot.slane %v3126, 7
    %v3130 = vsub.f32 %v3125, %v3128
    %v3131 = vmax.f32 %v3130, 0.0
    %v3132 = vadd.f32 %v3131, 1e-05
    %v3133 = vrsqrt.pop %v3132
    %v3134 = vmul.f32 %v3133, %v3132
    %v3135 = vmul.f32 %v3134, %v3133
    %v3136 = vmul.f32 0.5, %v3135
    %v3137 = vsub.f32 1.5, %v3136
    %v3138 = vmul.f32 %v3133, %v3137
    %vm3139 = vweird.f32 %v3132
    %vm3140 = vweird.f32 %v3133
    %vm3141 = vmor %vm3139, %vm3140
    %v3142 = vsel %vm3141, %v3133, %v3138
    %3144 = vst [vmem:[#allocation1] sm:$0xff] %v3142
    %s3145 = scalar_lea.vmem [#allocation1], 1
    %v3146 = vld [vmem:[%s3145] ss:$9 sm:$0xff]
    %v3148 = vmul.f32 %v934, %v3146
    %v3149 = vmul.f32 %v3125, %v3148
    %v3150 = vsub.f32 %v935, %v3149
    %v3152 = vperm.slane %v3150, 0
    %v3154 = vsel %vm997, %v3148, %v3152
    %vm3155 = vcmask 261120
    %v3157 = vsel %vm3155, %v3154, 0
    %3159 = vmatpush.msra.mxu0 0.0
    %3160 = vmatpush.msra.mxu0 0.0
    %3161 = vmatpush.msra.mxu0 0.0
    %3162 = vmatpush.msra.mxu0 0.0
    %3163 = vmatpush.msra.mxu0 0.0
    %3164 = vmatpush.msra.mxu0 0.0
    %3165 = vmatpush.msra.mxu0 0.0
    %3166 = vmatpush.msra.mxu0 0.0
    %3167 = vmatpush.msra.mxu0 0.0
    %3168 = vmatpush.msra.mxu0 0.0
    %3169 = vmatpush.msra.mxu0 0.0
    %3170 = vmatpush.msra.mxu0 0.0
    %3171 = vmatpush.msra.mxu0 %v918
    %3172 = vmatpush.msra.mxu0 %v910
    %3173 = vmatpush.msra.mxu0 %v902
    %3174 = vmatpush.msra.mxu0 %v894
    %3175 = vmatmul.f32.gmra.mxu0 %v3157
    %v3176 = vpop.f32.mrf.mxu0
    %v3177 = vadd.f32 0.0, %v3176
    %3178 = vdwg.mxu0
    %3179 = vmatpush.msra.mxu0 0.0
    %3180 = vmatpush.msra.mxu0 0.0
    %3181 = vmatpush.msra.mxu0 0.0
    %3182 = vmatpush.msra.mxu0 0.0
    %3183 = vmatpush.msra.mxu0 0.0
    %3184 = vmatpush.msra.mxu0 0.0
    %3185 = vmatpush.msra.mxu0 0.0
    %3186 = vmatpush.msra.mxu0 0.0
    %3187 = vmatpush.msra.mxu0 0.0
    %3188 = vmatpush.msra.mxu0 0.0
    %3189 = vmatpush.msra.mxu0 0.0
    %3190 = vmatpush.msra.mxu0 0.0
    %3191 = vmatpush.msra.mxu0 %v919
    %3192 = vmatpush.msra.mxu0 %v911
    %3193 = vmatpush.msra.mxu0 %v903
    %3194 = vmatpush.msra.mxu0 %v895
    %3195 = vmatmul.f32.gmra.mxu0 %v3157
    %v3196 = vpop.f32.mrf.mxu0
    %v3197 = vadd.f32 0.0, %v3196
    %3198 = vdwg.mxu0
    %3199 = vmatpush.msra.mxu0 0.0
    %3200 = vmatpush.msra.mxu0 0.0
    %3201 = vmatpush.msra.mxu0 0.0
    %3202 = vmatpush.msra.mxu0 0.0
    %3203 = vmatpush.msra.mxu0 0.0
    %3204 = vmatpush.msra.mxu0 0.0
    %3205 = vmatpush.msra.mxu0 0.0
    %3206 = vmatpush.msra.mxu0 0.0
    %3207 = vmatpush.msra.mxu0 0.0
    %3208 = vmatpush.msra.mxu0 0.0
    %3209 = vmatpush.msra.mxu0 0.0
    %3210 = vmatpush.msra.mxu0 0.0
    %3211 = vmatpush.msra.mxu0 %v920
    %3212 = vmatpush.msra.mxu0 %v912
    %3213 = vmatpush.msra.mxu0 %v904
    %3214 = vmatpush.msra.mxu0 %v896
    %3215 = vmatmul.f32.gmra.mxu0 %v3157
    %v3216 = vpop.f32.mrf.mxu0
    %v3217 = vadd.f32 0.0, %v3216
    %3218 = vdwg.mxu0
    %3219 = vmatpush.msra.mxu0 0.0
    %3220 = vmatpush.msra.mxu0 0.0
    %3221 = vmatpush.msra.mxu0 0.0
    %3222 = vmatpush.msra.mxu0 0.0
    %3223 = vmatpush.msra.mxu0 0.0
    %3224 = vmatpush.msra.mxu0 0.0
    %3225 = vmatpush.msra.mxu0 0.0
    %3226 = vmatpush.msra.mxu0 0.0
    %3227 = vmatpush.msra.mxu0 0.0
    %3228 = vmatpush.msra.mxu0 0.0
    %3229 = vmatpush.msra.mxu0 0.0
    %3230 = vmatpush.msra.mxu0 0.0
    %3231 = vmatpush.msra.mxu0 %v921
    %3232 = vmatpush.msra.mxu0 %v913
    %3233 = vmatpush.msra.mxu0 %v905
    %3234 = vmatpush.msra.mxu0 %v897
    %3235 = vmatmul.f32.gmra.mxu0 %v3157
    %v3236 = vpop.f32.mrf.mxu0
    %v3237 = vadd.f32 0.0, %v3236
    %3238 = vdwg.mxu0
    %3239 = vmatpush.msra.mxu0 0.0
    %3240 = vmatpush.msra.mxu0 0.0
    %3241 = vmatpush.msra.mxu0 0.0
    %3242 = vmatpush.msra.mxu0 0.0
    %3243 = vmatpush.msra.mxu0 0.0
    %3244 = vmatpush.msra.mxu0 0.0
    %3245 = vmatpush.msra.mxu0 0.0
    %3246 = vmatpush.msra.mxu0 0.0
    %3247 = vmatpush.msra.mxu0 0.0
    %3248 = vmatpush.msra.mxu0 0.0
    %3249 = vmatpush.msra.mxu0 0.0
    %3250 = vmatpush.msra.mxu0 0.0
    %3251 = vmatpush.msra.mxu0 %v922
    %3252 = vmatpush.msra.mxu0 %v914
    %3253 = vmatpush.msra.mxu0 %v906
    %3254 = vmatpush.msra.mxu0 %v898
    %3255 = vmatmul.f32.gmra.mxu0 %v3157
    %v3256 = vpop.f32.mrf.mxu0
    %v3257 = vadd.f32 0.0, %v3256
    %3258 = vdwg.mxu0
    %3259 = vmatpush.msra.mxu0 0.0
    %3260 = vmatpush.msra.mxu0 0.0
    %3261 = vmatpush.msra.mxu0 0.0
    %3262 = vmatpush.msra.mxu0 0.0
    %3263 = vmatpush.msra.mxu0 0.0
    %3264 = vmatpush.msra.mxu0 0.0
    %3265 = vmatpush.msra.mxu0 0.0
    %3266 = vmatpush.msra.mxu0 0.0
    %3267 = vmatpush.msra.mxu0 0.0
    %3268 = vmatpush.msra.mxu0 0.0
    %3269 = vmatpush.msra.mxu0 0.0
    %3270 = vmatpush.msra.mxu0 0.0
    %3271 = vmatpush.msra.mxu0 %v923
    %3272 = vmatpush.msra.mxu0 %v915
    %3273 = vmatpush.msra.mxu0 %v907
    %3274 = vmatpush.msra.mxu0 %v899
    %3275 = vmatmul.f32.gmra.mxu0 %v3157
    %v3276 = vpop.f32.mrf.mxu0
    %v3277 = vadd.f32 0.0, %v3276
    %3278 = vdwg.mxu0
    %3279 = vmatpush.msra.mxu0 0.0
    %3280 = vmatpush.msra.mxu0 0.0
    %3281 = vmatpush.msra.mxu0 0.0
    %3282 = vmatpush.msra.mxu0 0.0
    %3283 = vmatpush.msra.mxu0 0.0
    %3284 = vmatpush.msra.mxu0 0.0
    %3285 = vmatpush.msra.mxu0 0.0
    %3286 = vmatpush.msra.mxu0 0.0
    %3287 = vmatpush.msra.mxu0 0.0
    %3288 = vmatpush.msra.mxu0 0.0
    %3289 = vmatpush.msra.mxu0 0.0
    %3290 = vmatpush.msra.mxu0 0.0
    %3291 = vmatpush.msra.mxu0 %v924
    %3292 = vmatpush.msra.mxu0 %v916
    %3293 = vmatpush.msra.mxu0 %v908
    %3294 = vmatpush.msra.mxu0 %v900
    %3295 = vmatmul.f32.gmra.mxu0 %v3157
    %v3296 = vpop.f32.mrf.mxu0
    %v3297 = vadd.f32 0.0, %v3296
    %3298 = vdwg.mxu0
    %3299 = vmatpush.msra.mxu0 0.0
    %3300 = vmatpush.msra.mxu0 0.0
    %3301 = vmatpush.msra.mxu0 0.0
    %3302 = vmatpush.msra.mxu0 0.0
    %3303 = vmatpush.msra.mxu0 0.0
    %3304 = vmatpush.msra.mxu0 0.0
    %3305 = vmatpush.msra.mxu0 0.0
    %3306 = vmatpush.msra.mxu0 0.0
    %3307 = vmatpush.msra.mxu0 0.0
    %3308 = vmatpush.msra.mxu0 0.0
    %3309 = vmatpush.msra.mxu0 0.0
    %3310 = vmatpush.msra.mxu0 0.0
    %3311 = vmatpush.msra.mxu0 %v925
    %3312 = vmatpush.msra.mxu0 %v917
    %3313 = vmatpush.msra.mxu0 %v909
    %3314 = vmatpush.msra.mxu0 %v901
    %3315 = vmatmul.f32.gmra.mxu0 %v3157
    %v3316 = vpop.f32.mrf.mxu0
    %v3317 = vadd.f32 0.0, %v3316
    %3318 = vdwg.mxu0
    %v3319 = vperm.slane %v3177, 0
    %v3320 = vperm.slane %v3197, 0
    %v3321 = vperm.slane %v3217, 0
    %v3322 = vperm.slane %v3237, 0
    %v3323 = vperm.slane %v3257, 0
    %v3324 = vperm.slane %v3277, 0
    %v3325 = vperm.slane %v3297, 0
    %v3326 = vperm.slane %v3317, 0
    %v3327 = vmul.f32 %v2621, %v3319
    %v3328 = vmul.f32 %v2622, %v3320
    %v3329 = vmul.f32 %v2623, %v3321
    %v3330 = vmul.f32 %v2624, %v3322
    %v3331 = vmul.f32 %v2625, %v3323
    %v3332 = vmul.f32 %v2626, %v3324
    %v3333 = vmul.f32 %v2627, %v3325
    %v3334 = vmul.f32 %v2628, %v3326
    %v3335 = vmul.f32 %v2629, %v3319
    %v3336 = vmul.f32 %v2630, %v3320
    %v3337 = vmul.f32 %v2631, %v3321
    %v3338 = vmul.f32 %v2632, %v3322
    %v3339 = vmul.f32 %v2633, %v3323
    %v3340 = vmul.f32 %v2634, %v3324
    %v3341 = vmul.f32 %v2635, %v3325
    %v3342 = vmul.f32 %v2636, %v3326
    %v3343 = vmul.f32 %v2637, %v3319
    %v3344 = vmul.f32 %v2638, %v3320
    %v3345 = vmul.f32 %v2639, %v3321
    %v3346 = vmul.f32 %v2640, %v3322
    %v3347 = vmul.f32 %v2641, %v3323
    %v3348 = vmul.f32 %v2642, %v3324
    %v3349 = vmul.f32 %v2643, %v3325
    %v3350 = vmul.f32 %v2644, %v3326
    %v3351 = vmul.f32 %v2645, %v3319
    %v3352 = vmul.f32 %v2646, %v3320
    %v3353 = vmul.f32 %v2647, %v3321
    %v3354 = vmul.f32 %v2648, %v3322
    %v3355 = vmul.f32 %v2649, %v3323
    %v3356 = vmul.f32 %v2650, %v3324
    %v3357 = vmul.f32 %v2651, %v3325
    %v3358 = vmul.f32 %v2652, %v3326
    %v3359 = vmul.f32 %v2653, %v3319
    %v3360 = vmul.f32 %v2654, %v3320
    %v3361 = vmul.f32 %v2655, %v3321
    %v3362 = vmul.f32 %v2656, %v3322
    %v3363 = vmul.f32 %v2657, %v3323
    %v3364 = vmul.f32 %v2658, %v3324
    %v3365 = vmul.f32 %v2659, %v3325
    %v3366 = vmul.f32 %v2660, %v3326
    %v3367 = vmul.f32 %v2661, %v3319
    %v3368 = vmul.f32 %v2662, %v3320
    %v3369 = vmul.f32 %v2663, %v3321
    %v3370 = vmul.f32 %v2664, %v3322
    %v3371 = vmul.f32 %v2665, %v3323
    %v3372 = vmul.f32 %v2666, %v3324
    %v3373 = vmul.f32 %v2667, %v3325
    %v3374 = vmul.f32 %v2668, %v3326
    %v3375 = vmul.f32 %v2669, %v3319
    %v3376 = vmul.f32 %v2670, %v3320
    %v3377 = vmul.f32 %v2671, %v3321
    %v3378 = vmul.f32 %v2672, %v3322
    %v3379 = vmul.f32 %v2673, %v3323
    %v3380 = vmul.f32 %v2674, %v3324
    %v3381 = vmul.f32 %v2675, %v3325
    %v3382 = vmul.f32 %v2676, %v3326
    %v3383 = vmul.f32 %v2677, %v3319
    %v3384 = vmul.f32 %v2678, %v3320
    %v3385 = vmul.f32 %v2679, %v3321
    %v3386 = vmul.f32 %v2680, %v3322
    %v3387 = vmul.f32 %v2681, %v3323
    %v3388 = vmul.f32 %v2682, %v3324
    %v3389 = vmul.f32 %v2683, %v3325
    %v3390 = vmul.f32 %v2684, %v3326
    %v3391 = vperm.slane %v3177, 1
    %v3392 = vperm.slane %v3197, 1
    %v3393 = vperm.slane %v3217, 1
    %v3394 = vperm.slane %v3237, 1
    %v3395 = vperm.slane %v3257, 1
    %v3396 = vperm.slane %v3277, 1
    %v3397 = vperm.slane %v3297, 1
    %v3398 = vperm.slane %v3317, 1
    %v3399 = vadd.f32 %v3327, %v3391
    %v3400 = vadd.f32 %v3328, %v3392
    %v3401 = vadd.f32 %v3329, %v3393
    %v3402 = vadd.f32 %v3330, %v3394
    %v3403 = vadd.f32 %v3331, %v3395
    %v3404 = vadd.f32 %v3332, %v3396
    %v3405 = vadd.f32 %v3333, %v3397
    %v3406 = vadd.f32 %v3334, %v3398
    %v3407 = vadd.f32 %v3335, %v3391
    %v3408 = vadd.f32 %v3336, %v3392
    %v3409 = vadd.f32 %v3337, %v3393
    %v3410 = vadd.f32 %v3338, %v3394
    %v3411 = vadd.f32 %v3339, %v3395
    %v3412 = vadd.f32 %v3340, %v3396
    %v3413 = vadd.f32 %v3341, %v3397
    %v3414 = vadd.f32 %v3342, %v3398
    %v3415 = vadd.f32 %v3343, %v3391
    %v3416 = vadd.f32 %v3344, %v3392
    %v3417 = vadd.f32 %v3345, %v3393
    %v3418 = vadd.f32 %v3346, %v3394
    %v3419 = vadd.f32 %v3347, %v3395
    %v3420 = vadd.f32 %v3348, %v3396
    %v3421 = vadd.f32 %v3349, %v3397
    %v3422 = vadd.f32 %v3350, %v3398
    %v3423 = vadd.f32 %v3351, %v3391
    %v3424 = vadd.f32 %v3352, %v3392
    %v3425 = vadd.f32 %v3353, %v3393
    %v3426 = vadd.f32 %v3354, %v3394
    %v3427 = vadd.f32 %v3355, %v3395
    %v3428 = vadd.f32 %v3356, %v3396
    %v3429 = vadd.f32 %v3357, %v3397
    %v3430 = vadd.f32 %v3358, %v3398
    %v3431 = vadd.f32 %v3359, %v3391
    %v3432 = vadd.f32 %v3360, %v3392
    %v3433 = vadd.f32 %v3361, %v3393
    %v3434 = vadd.f32 %v3362, %v3394
    %v3435 = vadd.f32 %v3363, %v3395
    %v3436 = vadd.f32 %v3364, %v3396
    %v3437 = vadd.f32 %v3365, %v3397
    %v3438 = vadd.f32 %v3366, %v3398
    %v3439 = vadd.f32 %v3367, %v3391
    %v3440 = vadd.f32 %v3368, %v3392
    %v3441 = vadd.f32 %v3369, %v3393
    %v3442 = vadd.f32 %v3370, %v3394
    %v3443 = vadd.f32 %v3371, %v3395
    %v3444 = vadd.f32 %v3372, %v3396
    %v3445 = vadd.f32 %v3373, %v3397
    %v3446 = vadd.f32 %v3374, %v3398
    %v3447 = vadd.f32 %v3375, %v3391
    %v3448 = vadd.f32 %v3376, %v3392
    %v3449 = vadd.f32 %v3377, %v3393
    %v3450 = vadd.f32 %v3378, %v3394
    %v3451 = vadd.f32 %v3379, %v3395
    %v3452 = vadd.f32 %v3380, %v3396
    %v3453 = vadd.f32 %v3381, %v3397
    %v3454 = vadd.f32 %v3382, %v3398
    %v3455 = vadd.f32 %v3383, %v3391
    %v3456 = vadd.f32 %v3384, %v3392
    %v3457 = vadd.f32 %v3385, %v3393
    %v3458 = vadd.f32 %v3386, %v3394
    %v3459 = vadd.f32 %v3387, %v3395
    %v3460 = vadd.f32 %v3388, %v3396
    %v3461 = vadd.f32 %v3389, %v3397
    %v3462 = vadd.f32 %v3390, %v3398
    %v3463 = vmax.f32 %v3399, 0.0
    %v3464 = vmax.f32 %v3400, 0.0
    %v3465 = vmax.f32 %v3401, 0.0
    %v3466 = vmax.f32 %v3402, 0.0
    %v3467 = vmax.f32 %v3403, 0.0
    %v3468 = vmax.f32 %v3404, 0.0
    %v3469 = vmax.f32 %v3405, 0.0
    %v3470 = vmax.f32 %v3406, 0.0
    %v3471 = vmax.f32 %v3407, 0.0
    %v3472 = vmax.f32 %v3408, 0.0
    %v3473 = vmax.f32 %v3409, 0.0
    %v3474 = vmax.f32 %v3410, 0.0
    %v3475 = vmax.f32 %v3411, 0.0
    %v3476 = vmax.f32 %v3412, 0.0
    %v3477 = vmax.f32 %v3413, 0.0
    %v3478 = vmax.f32 %v3414, 0.0
    %v3479 = vmax.f32 %v3415, 0.0
    %v3480 = vmax.f32 %v3416, 0.0
    %v3481 = vmax.f32 %v3417, 0.0
    %v3482 = vmax.f32 %v3418, 0.0
    %v3483 = vmax.f32 %v3419, 0.0
    %v3484 = vmax.f32 %v3420, 0.0
    %v3485 = vmax.f32 %v3421, 0.0
    %v3486 = vmax.f32 %v3422, 0.0
    %v3487 = vmax.f32 %v3423, 0.0
    %v3488 = vmax.f32 %v3424, 0.0
    %v3489 = vmax.f32 %v3425, 0.0
    %v3490 = vmax.f32 %v3426, 0.0
    %v3491 = vmax.f32 %v3427, 0.0
    %v3492 = vmax.f32 %v3428, 0.0
    %v3493 = vmax.f32 %v3429, 0.0
    %v3494 = vmax.f32 %v3430, 0.0
    %v3495 = vmax.f32 %v3431, 0.0
    %v3496 = vmax.f32 %v3432, 0.0
    %v3497 = vmax.f32 %v3433, 0.0
    %v3498 = vmax.f32 %v3434, 0.0
    %v3499 = vmax.f32 %v3435, 0.0
    %v3500 = vmax.f32 %v3436, 0.0
    %v3501 = vmax.f32 %v3437, 0.0
    %v3502 = vmax.f32 %v3438, 0.0
    %v3503 = vmax.f32 %v3439, 0.0
    %v3504 = vmax.f32 %v3440, 0.0
    %v3505 = vmax.f32 %v3441, 0.0
    %v3506 = vmax.f32 %v3442, 0.0
    %v3507 = vmax.f32 %v3443, 0.0
    %v3508 = vmax.f32 %v3444, 0.0
    %v3509 = vmax.f32 %v3445, 0.0
    %v3510 = vmax.f32 %v3446, 0.0
    %v3511 = vmax.f32 %v3447, 0.0
    %v3512 = vmax.f32 %v3448, 0.0
    %v3513 = vmax.f32 %v3449, 0.0
    %v3514 = vmax.f32 %v3450, 0.0
    %v3515 = vmax.f32 %v3451, 0.0
    %v3516 = vmax.f32 %v3452, 0.0
    %v3517 = vmax.f32 %v3453, 0.0
    %v3518 = vmax.f32 %v3454, 0.0
    %v3519 = vmax.f32 %v3455, 0.0
    %v3520 = vmax.f32 %v3456, 0.0
    %v3521 = vmax.f32 %v3457, 0.0
    %v3522 = vmax.f32 %v3458, 0.0
    %v3523 = vmax.f32 %v3459, 0.0
    %v3524 = vmax.f32 %v3460, 0.0
    %v3525 = vmax.f32 %v3461, 0.0
    %v3526 = vmax.f32 %v3462, 0.0
    %v3527 = vld [vmem:[%s11] sm:$0x1]
    %v3528 = vld [vmem:[%s13] sm:$0x1]
    %v3529 = vld [vmem:[%s15] sm:$0xff]
    %v3530 = vld [vmem:[%s15 + $0x8] sm:$0xff]
    %v3531 = vld [vmem:[%s15 + $0x10] sm:$0xff]
    %v3532 = vld [vmem:[%s15 + $0x18] sm:$0xff]
    %v3533 = vld [vmem:[%s15 + $0x20] sm:$0xff]
    %v3534 = vld [vmem:[%s15 + $0x28] sm:$0xff]
    %v3535 = vld [vmem:[%s15 + $0x30] sm:$0xff]
    %v3536 = vld [vmem:[%s15 + $0x38] sm:$0xff]
    %v3537 = vld [vmem:[%s15 + $0x40] sm:$0xff]
    %v3538 = vld [vmem:[%s15 + $0x48] sm:$0xff]
    %v3539 = vld [vmem:[%s15 + $0x50] sm:$0xff]
    %v3540 = vld [vmem:[%s15 + $0x58] sm:$0xff]
    %v3541 = vld [vmem:[%s17] sm:$0x7]
    %v3542 = vpack.c.bf16 %v3471, %v3463
    %v3543 = vpack.c.bf16 %v3472, %v3464
    %v3544 = vpack.c.bf16 %v3473, %v3465
    %v3545 = vpack.c.bf16 %v3474, %v3466
    %v3546 = vpack.c.bf16 %v3475, %v3467
    %v3547 = vpack.c.bf16 %v3476, %v3468
    %v3548 = vpack.c.bf16 %v3477, %v3469
    %v3549 = vpack.c.bf16 %v3478, %v3470
    %v3550 = vpack.c.bf16 %v3487, %v3479
    %v3551 = vpack.c.bf16 %v3488, %v3480
    %v3552 = vpack.c.bf16 %v3489, %v3481
    %v3553 = vpack.c.bf16 %v3490, %v3482
    %v3554 = vpack.c.bf16 %v3491, %v3483
    %v3555 = vpack.c.bf16 %v3492, %v3484
    %v3556 = vpack.c.bf16 %v3493, %v3485
    %v3557 = vpack.c.bf16 %v3494, %v3486
    %v3558 = vpack.c.bf16 %v3503, %v3495
    %v3559 = vpack.c.bf16 %v3504, %v3496
    %v3560 = vpack.c.bf16 %v3505, %v3497
    %v3561 = vpack.c.bf16 %v3506, %v3498
    %v3562 = vpack.c.bf16 %v3507, %v3499
    %v3563 = vpack.c.bf16 %v3508, %v3500
    %v3564 = vpack.c.bf16 %v3509, %v3501
    %v3565 = vpack.c.bf16 %v3510, %v3502
    %v3566 = vpack.c.bf16 %v3519, %v3511
    %v3567 = vpack.c.bf16 %v3520, %v3512
    %v3568 = vpack.c.bf16 %v3521, %v3513
    %v3569 = vpack.c.bf16 %v3522, %v3514
    %v3570 = vpack.c.bf16 %v3523, %v3515
    %v3571 = vpack.c.bf16 %v3524, %v3516
    %v3572 = vpack.c.bf16 %v3525, %v3517
    %v3573 = vpack.c.bf16 %v3526, %v3518
    %s3574 = scalar_lea.vmem %s9, 512
    %v3575 = vld [vmem:[%s3574] sm:$0xf]
    %v3576 = vld [vmem:[%s3574 + $0x4] sm:$0xf]
    %v3577 = vld [vmem:[%s3574 + $0x8] sm:$0xf]
    %v3578 = vld [vmem:[%s3574 + $0xc] sm:$0xf]
    %v3579 = vld [vmem:[%s3574 + $0x10] sm:$0xf]
    %v3580 = vld [vmem:[%s3574 + $0x14] sm:$0xf]
    %v3581 = vld [vmem:[%s3574 + $0x18] sm:$0xf]
    %v3582 = vld [vmem:[%s3574 + $0x1c] sm:$0xf]
    %v3583 = vld [vmem:[%s3574 + $0x20] sm:$0xf]
    %v3584 = vld [vmem:[%s3574 + $0x24] sm:$0xf]
    %v3585 = vld [vmem:[%s3574 + $0x28] sm:$0xf]
    %v3586 = vld [vmem:[%s3574 + $0x2c] sm:$0xf]
    %v3587 = vld [vmem:[%s3574 + $0x30] sm:$0xf]
    %v3588 = vld [vmem:[%s3574 + $0x34] sm:$0xf]
    %v3589 = vld [vmem:[%s3574 + $0x38] sm:$0xf]
    %v3590 = vld [vmem:[%s3574 + $0x3c] sm:$0xf]
    %v3591 = vld [vmem:[%s3574 + $0x40] sm:$0xf]
    %v3592 = vld [vmem:[%s3574 + $0x44] sm:$0xf]
    %v3593 = vld [vmem:[%s3574 + $0x48] sm:$0xf]
    %v3594 = vld [vmem:[%s3574 + $0x4c] sm:$0xf]
    %v3595 = vld [vmem:[%s3574 + $0x50] sm:$0xf]
    %v3596 = vld [vmem:[%s3574 + $0x54] sm:$0xf]
    %v3597 = vld [vmem:[%s3574 + $0x58] sm:$0xf]
    %v3598 = vld [vmem:[%s3574 + $0x5c] sm:$0xf]
    %v3599 = vld [vmem:[%s3574 + $0x60] sm:$0xf]
    %v3600 = vld [vmem:[%s3574 + $0x64] sm:$0xf]
    %v3601 = vld [vmem:[%s3574 + $0x68] sm:$0xf]
    %v3602 = vld [vmem:[%s3574 + $0x6c] sm:$0xf]
    %v3603 = vld [vmem:[%s3574 + $0x70] sm:$0xf]
    %v3604 = vld [vmem:[%s3574 + $0x74] sm:$0xf]
    %v3605 = vld [vmem:[%s3574 + $0x78] sm:$0xf]
    %v3606 = vld [vmem:[%s3574 + $0x7c] sm:$0xf]
    %v3607 = vld [vmem:[%s3574 + $0x80] sm:$0xf]
    %v3608 = vld [vmem:[%s3574 + $0x84] sm:$0xf]
    %v3609 = vld [vmem:[%s3574 + $0x88] sm:$0xf]
    %v3610 = vld [vmem:[%s3574 + $0x8c] sm:$0xf]
    %v3611 = vld [vmem:[%s3574 + $0x90] sm:$0xf]
    %v3612 = vld [vmem:[%s3574 + $0x94] sm:$0xf]
    %v3613 = vld [vmem:[%s3574 + $0x98] sm:$0xf]
    %v3614 = vld [vmem:[%s3574 + $0x9c] sm:$0xf]
    %v3615 = vld [vmem:[%s3574 + $0xa0] sm:$0xf]
    %v3616 = vld [vmem:[%s3574 + $0xa4] sm:$0xf]
    %v3617 = vld [vmem:[%s3574 + $0xa8] sm:$0xf]
    %v3618 = vld [vmem:[%s3574 + $0xac] sm:$0xf]
    %v3619 = vld [vmem:[%s3574 + $0xb0] sm:$0xf]
    %v3620 = vld [vmem:[%s3574 + $0xb4] sm:$0xf]
    %v3621 = vld [vmem:[%s3574 + $0xb8] sm:$0xf]
    %v3622 = vld [vmem:[%s3574 + $0xbc] sm:$0xf]
    %v3623 = vld [vmem:[%s3574 + $0xc0] sm:$0xf]
    %v3624 = vld [vmem:[%s3574 + $0xc4] sm:$0xf]
    %v3625 = vld [vmem:[%s3574 + $0xc8] sm:$0xf]
    %v3626 = vld [vmem:[%s3574 + $0xcc] sm:$0xf]
    %v3627 = vld [vmem:[%s3574 + $0xd0] sm:$0xf]
    %v3628 = vld [vmem:[%s3574 + $0xd4] sm:$0xf]
    %v3629 = vld [vmem:[%s3574 + $0xd8] sm:$0xf]
    %v3630 = vld [vmem:[%s3574 + $0xdc] sm:$0xf]
    %v3631 = vld [vmem:[%s3574 + $0xe0] sm:$0xf]
    %v3632 = vld [vmem:[%s3574 + $0xe4] sm:$0xf]
    %v3633 = vld [vmem:[%s3574 + $0xe8] sm:$0xf]
    %v3634 = vld [vmem:[%s3574 + $0xec] sm:$0xf]
    %v3635 = vld [vmem:[%s3574 + $0xf0] sm:$0xf]
    %v3636 = vld [vmem:[%s3574 + $0xf4] sm:$0xf]
    %v3637 = vld [vmem:[%s3574 + $0xf8] sm:$0xf]
    %v3638 = vld [vmem:[%s3574 + $0xfc] sm:$0xf]
    %v3639 = vld [vmem:[%s3574 + $0x100] sm:$0xf]
    %v3640 = vld [vmem:[%s3574 + $0x104] sm:$0xf]
    %v3641 = vld [vmem:[%s3574 + $0x108] sm:$0xf]
    %v3642 = vld [vmem:[%s3574 + $0x10c] sm:$0xf]
    %v3643 = vld [vmem:[%s3574 + $0x110] sm:$0xf]
    %v3644 = vld [vmem:[%s3574 + $0x114] sm:$0xf]
    %v3645 = vld [vmem:[%s3574 + $0x118] sm:$0xf]
    %v3646 = vld [vmem:[%s3574 + $0x11c] sm:$0xf]
    %v3647 = vld [vmem:[%s3574 + $0x120] sm:$0xf]
    %v3648 = vld [vmem:[%s3574 + $0x124] sm:$0xf]
    %v3649 = vld [vmem:[%s3574 + $0x128] sm:$0xf]
    %v3650 = vld [vmem:[%s3574 + $0x12c] sm:$0xf]
    %v3651 = vld [vmem:[%s3574 + $0x130] sm:$0xf]
    %v3652 = vld [vmem:[%s3574 + $0x134] sm:$0xf]
    %v3653 = vld [vmem:[%s3574 + $0x138] sm:$0xf]
    %v3654 = vld [vmem:[%s3574 + $0x13c] sm:$0xf]
    %v3655 = vld [vmem:[%s3574 + $0x140] sm:$0xf]
    %v3656 = vld [vmem:[%s3574 + $0x144] sm:$0xf]
    %v3657 = vld [vmem:[%s3574 + $0x148] sm:$0xf]
    %v3658 = vld [vmem:[%s3574 + $0x14c] sm:$0xf]
    %v3659 = vld [vmem:[%s3574 + $0x150] sm:$0xf]
    %v3660 = vld [vmem:[%s3574 + $0x154] sm:$0xf]
    %v3661 = vld [vmem:[%s3574 + $0x158] sm:$0xf]
    %v3662 = vld [vmem:[%s3574 + $0x15c] sm:$0xf]
    %v3663 = vld [vmem:[%s3574 + $0x160] sm:$0xf]
    %v3664 = vld [vmem:[%s3574 + $0x164] sm:$0xf]
    %v3665 = vld [vmem:[%s3574 + $0x168] sm:$0xf]
    %v3666 = vld [vmem:[%s3574 + $0x16c] sm:$0xf]
    %v3667 = vld [vmem:[%s3574 + $0x170] sm:$0xf]
    %v3668 = vld [vmem:[%s3574 + $0x174] sm:$0xf]
    %v3669 = vld [vmem:[%s3574 + $0x178] sm:$0xf]
    %v3670 = vld [vmem:[%s3574 + $0x17c] sm:$0xf]
    %v3671 = vld [vmem:[%s3574 + $0x180] sm:$0xf]
    %v3672 = vld [vmem:[%s3574 + $0x184] sm:$0xf]
    %v3673 = vld [vmem:[%s3574 + $0x188] sm:$0xf]
    %v3674 = vld [vmem:[%s3574 + $0x18c] sm:$0xf]
    %v3675 = vld [vmem:[%s3574 + $0x190] sm:$0xf]
    %v3676 = vld [vmem:[%s3574 + $0x194] sm:$0xf]
    %v3677 = vld [vmem:[%s3574 + $0x198] sm:$0xf]
    %v3678 = vld [vmem:[%s3574 + $0x19c] sm:$0xf]
    %v3679 = vld [vmem:[%s3574 + $0x1a0] sm:$0xf]
    %v3680 = vld [vmem:[%s3574 + $0x1a4] sm:$0xf]
    %v3681 = vld [vmem:[%s3574 + $0x1a8] sm:$0xf]
    %v3682 = vld [vmem:[%s3574 + $0x1ac] sm:$0xf]
    %v3683 = vld [vmem:[%s3574 + $0x1b0] sm:$0xf]
    %v3684 = vld [vmem:[%s3574 + $0x1b4] sm:$0xf]
    %v3685 = vld [vmem:[%s3574 + $0x1b8] sm:$0xf]
    %v3686 = vld [vmem:[%s3574 + $0x1bc] sm:$0xf]
    %v3687 = vld [vmem:[%s3574 + $0x1c0] sm:$0xf]
    %v3688 = vld [vmem:[%s3574 + $0x1c4] sm:$0xf]
    %v3689 = vld [vmem:[%s3574 + $0x1c8] sm:$0xf]
    %v3690 = vld [vmem:[%s3574 + $0x1cc] sm:$0xf]
    %v3691 = vld [vmem:[%s3574 + $0x1d0] sm:$0xf]
    %v3692 = vld [vmem:[%s3574 + $0x1d4] sm:$0xf]
    %v3693 = vld [vmem:[%s3574 + $0x1d8] sm:$0xf]
    %v3694 = vld [vmem:[%s3574 + $0x1dc] sm:$0xf]
    %v3695 = vld [vmem:[%s3574 + $0x1e0] sm:$0xf]
    %v3696 = vld [vmem:[%s3574 + $0x1e4] sm:$0xf]
    %v3697 = vld [vmem:[%s3574 + $0x1e8] sm:$0xf]
    %v3698 = vld [vmem:[%s3574 + $0x1ec] sm:$0xf]
    %v3699 = vld [vmem:[%s3574 + $0x1f0] sm:$0xf]
    %v3700 = vld [vmem:[%s3574 + $0x1f4] sm:$0xf]
    %v3701 = vld [vmem:[%s3574 + $0x1f8] sm:$0xf]
    %v3702 = vld [vmem:[%s3574 + $0x1fc] sm:$0xf]
    %v3767 = vrot.slane %v3463, 7
    %v3768 = vrot.slane %v3464, 7
    %v3769 = vrot.slane %v3465, 7
    %v3770 = vrot.slane %v3466, 7
    %v3771 = vrot.slane %v3467, 7
    %v3772 = vrot.slane %v3468, 7
    %v3773 = vrot.slane %v3469, 7
    %v3774 = vrot.slane %v3470, 7
    %v3775 = vrot.slane %v3471, 7
    %v3776 = vsel %vm997, %v3767, %v3775
    %v3777 = vrot.slane %v3472, 7
    %v3778 = vsel %vm997, %v3768, %v3777
    %v3779 = vrot.slane %v3473, 7
    %v3780 = vsel %vm997, %v3769, %v3779
    %v3781 = vrot.slane %v3474, 7
    %v3782 = vsel %vm997, %v3770, %v3781
    %v3783 = vrot.slane %v3475, 7
    %v3784 = vsel %vm997, %v3771, %v3783
    %v3785 = vrot.slane %v3476, 7
    %v3786 = vsel %vm997, %v3772, %v3785
    %v3787 = vrot.slane %v3477, 7
    %v3788 = vsel %vm997, %v3773, %v3787
    %v3789 = vrot.slane %v3478, 7
    %v3790 = vsel %vm997, %v3774, %v3789
    %v3791 = vrot.slane %v3479, 7
    %v3792 = vsel %vm997, %v3775, %v3791
    %v3793 = vrot.slane %v3480, 7
    %v3794 = vsel %vm997, %v3777, %v3793
    %v3795 = vrot.slane %v3481, 7
    %v3796 = vsel %vm997, %v3779, %v3795
    %v3797 = vrot.slane %v3482, 7
    %v3798 = vsel %vm997, %v3781, %v3797
    %v3799 = vrot.slane %v3483, 7
    %v3800 = vsel %vm997, %v3783, %v3799
    %v3801 = vrot.slane %v3484, 7
    %v3802 = vsel %vm997, %v3785, %v3801
    %v3803 = vrot.slane %v3485, 7
    %v3804 = vsel %vm997, %v3787, %v3803
    %v3805 = vrot.slane %v3486, 7
    %v3806 = vsel %vm997, %v3789, %v3805
    %v3807 = vrot.slane %v3487, 7
    %v3808 = vsel %vm997, %v3791, %v3807
    %v3809 = vrot.slane %v3488, 7
    %v3810 = vsel %vm997, %v3793, %v3809
    %v3811 = vrot.slane %v3489, 7
    %v3812 = vsel %vm997, %v3795, %v3811
    %v3813 = vrot.slane %v3490, 7
    %v3814 = vsel %vm997, %v3797, %v3813
    %v3815 = vrot.slane %v3491, 7
    %v3816 = vsel %vm997, %v3799, %v3815
    %v3817 = vrot.slane %v3492, 7
    %v3818 = vsel %vm997, %v3801, %v3817
    %v3819 = vrot.slane %v3493, 7
    %v3820 = vsel %vm997, %v3803, %v3819
    %v3821 = vrot.slane %v3494, 7
    %v3822 = vsel %vm997, %v3805, %v3821
    %v3823 = vrot.slane %v3495, 7
    %v3824 = vsel %vm997, %v3807, %v3823
    %v3825 = vrot.slane %v3496, 7
    %v3826 = vsel %vm997, %v3809, %v3825
    %v3827 = vrot.slane %v3497, 7
    %v3828 = vsel %vm997, %v3811, %v3827
    %v3829 = vrot.slane %v3498, 7
    %v3830 = vsel %vm997, %v3813, %v3829
    %v3831 = vrot.slane %v3499, 7
    %v3832 = vsel %vm997, %v3815, %v3831
    %v3833 = vrot.slane %v3500, 7
    %v3834 = vsel %vm997, %v3817, %v3833
    %v3835 = vrot.slane %v3501, 7
    %v3836 = vsel %vm997, %v3819, %v3835
    %v3837 = vrot.slane %v3502, 7
    %v3838 = vsel %vm997, %v3821, %v3837
    %v3839 = vrot.slane %v3503, 7
    %v3840 = vsel %vm997, %v3823, %v3839
    %v3841 = vrot.slane %v3504, 7
    %v3842 = vsel %vm997, %v3825, %v3841
    %v3843 = vrot.slane %v3505, 7
    %v3844 = vsel %vm997, %v3827, %v3843
    %v3845 = vrot.slane %v3506, 7
    %v3846 = vsel %vm997, %v3829, %v3845
    %v3847 = vrot.slane %v3507, 7
    %v3848 = vsel %vm997, %v3831, %v3847
    %v3849 = vrot.slane %v3508, 7
    %v3850 = vsel %vm997, %v3833, %v3849
    %v3851 = vrot.slane %v3509, 7
    %v3852 = vsel %vm997, %v3835, %v3851
    %v3853 = vrot.slane %v3510, 7
    %v3854 = vsel %vm997, %v3837, %v3853
    %v3855 = vrot.slane %v3511, 7
    %v3856 = vsel %vm997, %v3839, %v3855
    %v3857 = vrot.slane %v3512, 7
    %v3858 = vsel %vm997, %v3841, %v3857
    %v3859 = vrot.slane %v3513, 7
    %v3860 = vsel %vm997, %v3843, %v3859
    %v3861 = vrot.slane %v3514, 7
    %v3862 = vsel %vm997, %v3845, %v3861
    %v3863 = vrot.slane %v3515, 7
    %v3864 = vsel %vm997, %v3847, %v3863
    %v3865 = vrot.slane %v3516, 7
    %v3866 = vsel %vm997, %v3849, %v3865
    %v3867 = vrot.slane %v3517, 7
    %v3868 = vsel %vm997, %v3851, %v3867
    %v3869 = vrot.slane %v3518, 7
    %v3870 = vsel %vm997, %v3853, %v3869
    %v3871 = vrot.slane %v3519, 7
    %v3872 = vsel %vm997, %v3855, %v3871
    %v3873 = vrot.slane %v3520, 7
    %v3874 = vsel %vm997, %v3857, %v3873
    %v3875 = vrot.slane %v3521, 7
    %v3876 = vsel %vm997, %v3859, %v3875
    %v3877 = vrot.slane %v3522, 7
    %v3878 = vsel %vm997, %v3861, %v3877
    %v3879 = vrot.slane %v3523, 7
    %v3880 = vsel %vm997, %v3863, %v3879
    %v3881 = vrot.slane %v3524, 7
    %v3882 = vsel %vm997, %v3865, %v3881
    %v3883 = vrot.slane %v3525, 7
    %v3884 = vsel %vm997, %v3867, %v3883
    %v3885 = vrot.slane %v3526, 7
    %v3886 = vsel %vm997, %v3869, %v3885
    %v3951 = vsel %vm997, 0.0, %v3767
    %v3952 = vsel %vm997, 0.0, %v3768
    %v3953 = vsel %vm997, 0.0, %v3769
    %v3954 = vsel %vm997, 0.0, %v3770
    %v3955 = vsel %vm997, 0.0, %v3771
    %v3956 = vsel %vm997, 0.0, %v3772
    %v3957 = vsel %vm997, 0.0, %v3773
    %v3958 = vsel %vm997, 0.0, %v3774
    %v3959 = vmul.f32 %v3951, %v157
    %v3960 = vmul.f32 %v3952, %v157
    %v3961 = vmul.f32 %v3953, %v157
    %v3962 = vmul.f32 %v3954, %v157
    %v3963 = vmul.f32 %v3955, %v157
    %v3964 = vmul.f32 %v3956, %v157
    %v3965 = vmul.f32 %v3957, %v157
    %v3966 = vmul.f32 %v3958, %v157
    %v3967 = vmul.f32 %v3776, %v158
    %v3968 = vmul.f32 %v3778, %v158
    %v3969 = vmul.f32 %v3780, %v158
    %v3970 = vmul.f32 %v3782, %v158
    %v3971 = vmul.f32 %v3784, %v158
    %v3972 = vmul.f32 %v3786, %v158
    %v3973 = vmul.f32 %v3788, %v158
    %v3974 = vmul.f32 %v3790, %v158
    %v3975 = vmul.f32 %v3792, %v159
    %v3976 = vmul.f32 %v3794, %v159
    %v3977 = vmul.f32 %v3796, %v159
    %v3978 = vmul.f32 %v3798, %v159
    %v3979 = vmul.f32 %v3800, %v159
    %v3980 = vmul.f32 %v3802, %v159
    %v3981 = vmul.f32 %v3804, %v159
    %v3982 = vmul.f32 %v3806, %v159
    %v3983 = vmul.f32 %v3808, %v160
    %v3984 = vmul.f32 %v3810, %v160
    %v3985 = vmul.f32 %v3812, %v160
    %v3986 = vmul.f32 %v3814, %v160
    %v3987 = vmul.f32 %v3816, %v160
    %v3988 = vmul.f32 %v3818, %v160
    %v3989 = vmul.f32 %v3820, %v160
    %v3990 = vmul.f32 %v3822, %v160
    %v3991 = vmul.f32 %v3824, %v161
    %v3992 = vmul.f32 %v3826, %v161
    %v3993 = vmul.f32 %v3828, %v161
    %v3994 = vmul.f32 %v3830, %v161
    %v3995 = vmul.f32 %v3832, %v161
    %v3996 = vmul.f32 %v3834, %v161
    %v3997 = vmul.f32 %v3836, %v161
    %v3998 = vmul.f32 %v3838, %v161
    %v3999 = vmul.f32 %v3840, %v162
    %v4000 = vmul.f32 %v3842, %v162
    %v4001 = vmul.f32 %v3844, %v162
    %v4002 = vmul.f32 %v3846, %v162
    %v4003 = vmul.f32 %v3848, %v162
    %v4004 = vmul.f32 %v3850, %v162
    %v4005 = vmul.f32 %v3852, %v162
    %v4006 = vmul.f32 %v3854, %v162
    %v4007 = vmul.f32 %v3856, %v163
    %v4008 = vmul.f32 %v3858, %v163
    %v4009 = vmul.f32 %v3860, %v163
    %v4010 = vmul.f32 %v3862, %v163
    %v4011 = vmul.f32 %v3864, %v163
    %v4012 = vmul.f32 %v3866, %v163
    %v4013 = vmul.f32 %v3868, %v163
    %v4014 = vmul.f32 %v3870, %v163
    %v4015 = vmul.f32 %v3872, %v164
    %v4016 = vmul.f32 %v3874, %v164
    %v4017 = vmul.f32 %v3876, %v164
    %v4018 = vmul.f32 %v3878, %v164
    %v4019 = vmul.f32 %v3880, %v164
    %v4020 = vmul.f32 %v3882, %v164
    %v4021 = vmul.f32 %v3884, %v164
    %v4022 = vmul.f32 %v3886, %v164
    %v4023 = vpack.c.bf16 %v3967, %v3959
    %v4024 = vpack.c.bf16 %v3968, %v3960
    %v4025 = vpack.c.bf16 %v3969, %v3961
    %v4026 = vpack.c.bf16 %v3970, %v3962
    %v4027 = vpack.c.bf16 %v3971, %v3963
    %v4028 = vpack.c.bf16 %v3972, %v3964
    %v4029 = vpack.c.bf16 %v3973, %v3965
    %v4030 = vpack.c.bf16 %v3974, %v3966
    %v4031 = vpack.c.bf16 %v3983, %v3975
    %v4032 = vpack.c.bf16 %v3984, %v3976
    %v4033 = vpack.c.bf16 %v3985, %v3977
    %v4034 = vpack.c.bf16 %v3986, %v3978
    %v4035 = vpack.c.bf16 %v3987, %v3979
    %v4036 = vpack.c.bf16 %v3988, %v3980
    %v4037 = vpack.c.bf16 %v3989, %v3981
    %v4038 = vpack.c.bf16 %v3990, %v3982
    %v4039 = vpack.c.bf16 %v3999, %v3991
    %v4040 = vpack.c.bf16 %v4000, %v3992
    %v4041 = vpack.c.bf16 %v4001, %v3993
    %v4042 = vpack.c.bf16 %v4002, %v3994
    %v4043 = vpack.c.bf16 %v4003, %v3995
    %v4044 = vpack.c.bf16 %v4004, %v3996
    %v4045 = vpack.c.bf16 %v4005, %v3997
    %v4046 = vpack.c.bf16 %v4006, %v3998
    %v4047 = vpack.c.bf16 %v4015, %v4007
    %v4048 = vpack.c.bf16 %v4016, %v4008
    %v4049 = vpack.c.bf16 %v4017, %v4009
    %v4050 = vpack.c.bf16 %v4018, %v4010
    %v4051 = vpack.c.bf16 %v4019, %v4011
    %v4052 = vpack.c.bf16 %v4020, %v4012
    %v4053 = vpack.c.bf16 %v4021, %v4013
    %v4054 = vpack.c.bf16 %v4022, %v4014
    %v4055 = vld [vmem:[%s9] sm:$0xf]
    %v4056 = vld [vmem:[%s9 + $0x4] sm:$0xf]
    %v4057 = vld [vmem:[%s9 + $0x8] sm:$0xf]
    %v4058 = vld [vmem:[%s9 + $0xc] sm:$0xf]
    %v4059 = vld [vmem:[%s9 + $0x10] sm:$0xf]
    %v4060 = vld [vmem:[%s9 + $0x14] sm:$0xf]
    %v4061 = vld [vmem:[%s9 + $0x18] sm:$0xf]
    %v4062 = vld [vmem:[%s9 + $0x1c] sm:$0xf]
    %v4063 = vld [vmem:[%s9 + $0x20] sm:$0xf]
    %v4064 = vld [vmem:[%s9 + $0x24] sm:$0xf]
    %v4065 = vld [vmem:[%s9 + $0x28] sm:$0xf]
    %v4066 = vld [vmem:[%s9 + $0x2c] sm:$0xf]
    %v4067 = vld [vmem:[%s9 + $0x30] sm:$0xf]
    %v4068 = vld [vmem:[%s9 + $0x34] sm:$0xf]
    %v4069 = vld [vmem:[%s9 + $0x38] sm:$0xf]
    %v4070 = vld [vmem:[%s9 + $0x3c] sm:$0xf]
    %v4071 = vld [vmem:[%s9 + $0x40] sm:$0xf]
    %v4072 = vld [vmem:[%s9 + $0x44] sm:$0xf]
    %v4073 = vld [vmem:[%s9 + $0x48] sm:$0xf]
    %v4074 = vld [vmem:[%s9 + $0x4c] sm:$0xf]
    %v4075 = vld [vmem:[%s9 + $0x50] sm:$0xf]
    %v4076 = vld [vmem:[%s9 + $0x54] sm:$0xf]
    %v4077 = vld [vmem:[%s9 + $0x58] sm:$0xf]
    %v4078 = vld [vmem:[%s9 + $0x5c] sm:$0xf]
    %v4079 = vld [vmem:[%s9 + $0x60] sm:$0xf]
    %v4080 = vld [vmem:[%s9 + $0x64] sm:$0xf]
    %v4081 = vld [vmem:[%s9 + $0x68] sm:$0xf]
    %v4082 = vld [vmem:[%s9 + $0x6c] sm:$0xf]
    %v4083 = vld [vmem:[%s9 + $0x70] sm:$0xf]
    %v4084 = vld [vmem:[%s9 + $0x74] sm:$0xf]
    %v4085 = vld [vmem:[%s9 + $0x78] sm:$0xf]
    %v4086 = vld [vmem:[%s9 + $0x7c] sm:$0xf]
    %v4087 = vld [vmem:[%s9 + $0x80] sm:$0xf]
    %v4088 = vld [vmem:[%s9 + $0x84] sm:$0xf]
    %v4089 = vld [vmem:[%s9 + $0x88] sm:$0xf]
    %v4090 = vld [vmem:[%s9 + $0x8c] sm:$0xf]
    %v4091 = vld [vmem:[%s9 + $0x90] sm:$0xf]
    %v4092 = vld [vmem:[%s9 + $0x94] sm:$0xf]
    %v4093 = vld [vmem:[%s9 + $0x98] sm:$0xf]
    %v4094 = vld [vmem:[%s9 + $0x9c] sm:$0xf]
    %v4095 = vld [vmem:[%s9 + $0xa0] sm:$0xf]
    %v4096 = vld [vmem:[%s9 + $0xa4] sm:$0xf]
    %v4097 = vld [vmem:[%s9 + $0xa8] sm:$0xf]
    %v4098 = vld [vmem:[%s9 + $0xac] sm:$0xf]
    %v4099 = vld [vmem:[%s9 + $0xb0] sm:$0xf]
    %v4100 = vld [vmem:[%s9 + $0xb4] sm:$0xf]
    %v4101 = vld [vmem:[%s9 + $0xb8] sm:$0xf]
    %v4102 = vld [vmem:[%s9 + $0xbc] sm:$0xf]
    %v4103 = vld [vmem:[%s9 + $0xc0] sm:$0xf]
    %v4104 = vld [vmem:[%s9 + $0xc4] sm:$0xf]
    %v4105 = vld [vmem:[%s9 + $0xc8] sm:$0xf]
    %v4106 = vld [vmem:[%s9 + $0xcc] sm:$0xf]
    %v4107 = vld [vmem:[%s9 + $0xd0] sm:$0xf]
    %v4108 = vld [vmem:[%s9 + $0xd4] sm:$0xf]
    %v4109 = vld [vmem:[%s9 + $0xd8] sm:$0xf]
    %v4110 = vld [vmem:[%s9 + $0xdc] sm:$0xf]
    %v4111 = vld [vmem:[%s9 + $0xe0] sm:$0xf]
    %v4112 = vld [vmem:[%s9 + $0xe4] sm:$0xf]
    %v4113 = vld [vmem:[%s9 + $0xe8] sm:$0xf]
    %v4114 = vld [vmem:[%s9 + $0xec] sm:$0xf]
    %v4115 = vld [vmem:[%s9 + $0xf0] sm:$0xf]
    %v4116 = vld [vmem:[%s9 + $0xf4] sm:$0xf]
    %v4117 = vld [vmem:[%s9 + $0xf8] sm:$0xf]
    %v4118 = vld [vmem:[%s9 + $0xfc] sm:$0xf]
    %v4119 = vld [vmem:[%s9 + $0x100] sm:$0xf]
    %v4120 = vld [vmem:[%s9 + $0x104] sm:$0xf]
    %v4121 = vld [vmem:[%s9 + $0x108] sm:$0xf]
    %v4122 = vld [vmem:[%s9 + $0x10c] sm:$0xf]
    %v4123 = vld [vmem:[%s9 + $0x110] sm:$0xf]
    %v4124 = vld [vmem:[%s9 + $0x114] sm:$0xf]
    %v4125 = vld [vmem:[%s9 + $0x118] sm:$0xf]
    %v4126 = vld [vmem:[%s9 + $0x11c] sm:$0xf]
    %v4127 = vld [vmem:[%s9 + $0x120] sm:$0xf]
    %v4128 = vld [vmem:[%s9 + $0x124] sm:$0xf]
    %v4129 = vld [vmem:[%s9 + $0x128] sm:$0xf]
    %v4130 = vld [vmem:[%s9 + $0x12c] sm:$0xf]
    %v4131 = vld [vmem:[%s9 + $0x130] sm:$0xf]
    %v4132 = vld [vmem:[%s9 + $0x134] sm:$0xf]
    %v4133 = vld [vmem:[%s9 + $0x138] sm:$0xf]
    %v4134 = vld [vmem:[%s9 + $0x13c] sm:$0xf]
    %v4135 = vld [vmem:[%s9 + $0x140] sm:$0xf]
    %v4136 = vld [vmem:[%s9 + $0x144] sm:$0xf]
    %v4137 = vld [vmem:[%s9 + $0x148] sm:$0xf]
    %v4138 = vld [vmem:[%s9 + $0x14c] sm:$0xf]
    %v4139 = vld [vmem:[%s9 + $0x150] sm:$0xf]
    %v4140 = vld [vmem:[%s9 + $0x154] sm:$0xf]
    %v4141 = vld [vmem:[%s9 + $0x158] sm:$0xf]
    %v4142 = vld [vmem:[%s9 + $0x15c] sm:$0xf]
    %v4143 = vld [vmem:[%s9 + $0x160] sm:$0xf]
    %v4144 = vld [vmem:[%s9 + $0x164] sm:$0xf]
    %v4145 = vld [vmem:[%s9 + $0x168] sm:$0xf]
    %v4146 = vld [vmem:[%s9 + $0x16c] sm:$0xf]
    %v4147 = vld [vmem:[%s9 + $0x170] sm:$0xf]
    %v4148 = vld [vmem:[%s9 + $0x174] sm:$0xf]
    %v4149 = vld [vmem:[%s9 + $0x178] sm:$0xf]
    %v4150 = vld [vmem:[%s9 + $0x17c] sm:$0xf]
    %v4151 = vld [vmem:[%s9 + $0x180] sm:$0xf]
    %v4152 = vld [vmem:[%s9 + $0x184] sm:$0xf]
    %v4153 = vld [vmem:[%s9 + $0x188] sm:$0xf]
    %v4154 = vld [vmem:[%s9 + $0x18c] sm:$0xf]
    %v4155 = vld [vmem:[%s9 + $0x190] sm:$0xf]
    %v4156 = vld [vmem:[%s9 + $0x194] sm:$0xf]
    %v4157 = vld [vmem:[%s9 + $0x198] sm:$0xf]
    %v4158 = vld [vmem:[%s9 + $0x19c] sm:$0xf]
    %v4159 = vld [vmem:[%s9 + $0x1a0] sm:$0xf]
    %v4160 = vld [vmem:[%s9 + $0x1a4] sm:$0xf]
    %v4161 = vld [vmem:[%s9 + $0x1a8] sm:$0xf]
    %v4162 = vld [vmem:[%s9 + $0x1ac] sm:$0xf]
    %v4163 = vld [vmem:[%s9 + $0x1b0] sm:$0xf]
    %v4164 = vld [vmem:[%s9 + $0x1b4] sm:$0xf]
    %v4165 = vld [vmem:[%s9 + $0x1b8] sm:$0xf]
    %v4166 = vld [vmem:[%s9 + $0x1bc] sm:$0xf]
    %v4167 = vld [vmem:[%s9 + $0x1c0] sm:$0xf]
    %v4168 = vld [vmem:[%s9 + $0x1c4] sm:$0xf]
    %v4169 = vld [vmem:[%s9 + $0x1c8] sm:$0xf]
    %v4170 = vld [vmem:[%s9 + $0x1cc] sm:$0xf]
    %v4171 = vld [vmem:[%s9 + $0x1d0] sm:$0xf]
    %v4172 = vld [vmem:[%s9 + $0x1d4] sm:$0xf]
    %v4173 = vld [vmem:[%s9 + $0x1d8] sm:$0xf]
    %v4174 = vld [vmem:[%s9 + $0x1dc] sm:$0xf]
    %v4175 = vld [vmem:[%s9 + $0x1e0] sm:$0xf]
    %v4176 = vld [vmem:[%s9 + $0x1e4] sm:$0xf]
    %v4177 = vld [vmem:[%s9 + $0x1e8] sm:$0xf]
    %v4178 = vld [vmem:[%s9 + $0x1ec] sm:$0xf]
    %v4179 = vld [vmem:[%s9 + $0x1f0] sm:$0xf]
    %v4180 = vld [vmem:[%s9 + $0x1f4] sm:$0xf]
    %v4181 = vld [vmem:[%s9 + $0x1f8] sm:$0xf]
    %v4182 = vld [vmem:[%s9 + $0x1fc] sm:$0xf]
    %v4311 = vunpack.c.l.b16 %v4055
    %v4312 = vunpack.c.l.b16 %v4056
    %v4313 = vunpack.c.l.b16 %v4057
    %v4314 = vunpack.c.l.b16 %v4058
    %v4315 = vunpack.c.l.b16 %v4059
    %v4316 = vunpack.c.l.b16 %v4060
    %v4317 = vunpack.c.l.b16 %v4061
    %v4318 = vunpack.c.l.b16 %v4062
    %v4319 = vunpack.c.l.b16 %v4063
    %v4320 = vunpack.c.l.b16 %v4064
    %v4321 = vunpack.c.l.b16 %v4065
    %v4322 = vunpack.c.l.b16 %v4066
    %v4323 = vunpack.c.l.b16 %v4067
    %v4324 = vunpack.c.l.b16 %v4068
    %v4325 = vunpack.c.l.b16 %v4069
    %v4326 = vunpack.c.l.b16 %v4070
    %v4327 = vunpack.c.l.b16 %v4071
    %v4328 = vunpack.c.l.b16 %v4072
    %v4329 = vunpack.c.l.b16 %v4073
    %v4330 = vunpack.c.l.b16 %v4074
    %v4331 = vunpack.c.l.b16 %v4075
    %v4332 = vunpack.c.l.b16 %v4076
    %v4333 = vunpack.c.l.b16 %v4077
    %v4334 = vunpack.c.l.b16 %v4078
    %v4335 = vunpack.c.l.b16 %v4079
    %v4336 = vunpack.c.l.b16 %v4080
    %v4337 = vunpack.c.l.b16 %v4081
    %v4338 = vunpack.c.l.b16 %v4082
    %v4339 = vunpack.c.l.b16 %v4083
    %v4340 = vunpack.c.l.b16 %v4084
    %v4341 = vunpack.c.l.b16 %v4085
    %v4342 = vunpack.c.l.b16 %v4086
    %v4343 = vunpack.c.l.b16 %v4087
    %v4344 = vunpack.c.l.b16 %v4088
    %v4345 = vunpack.c.l.b16 %v4089
    %v4346 = vunpack.c.l.b16 %v4090
    %v4347 = vunpack.c.l.b16 %v4091
    %v4348 = vunpack.c.l.b16 %v4092
    %v4349 = vunpack.c.l.b16 %v4093
    %v4350 = vunpack.c.l.b16 %v4094
    %v4351 = vunpack.c.l.b16 %v4095
    %v4352 = vunpack.c.l.b16 %v4096
    %v4353 = vunpack.c.l.b16 %v4097
    %v4354 = vunpack.c.l.b16 %v4098
    %v4355 = vunpack.c.l.b16 %v4099
    %v4356 = vunpack.c.l.b16 %v4100
    %v4357 = vunpack.c.l.b16 %v4101
    %v4358 = vunpack.c.l.b16 %v4102
    %v4359 = vunpack.c.l.b16 %v4103
    %v4360 = vunpack.c.l.b16 %v4104
    %v4361 = vunpack.c.l.b16 %v4105
    %v4362 = vunpack.c.l.b16 %v4106
    %v4363 = vunpack.c.l.b16 %v4107
    %v4364 = vunpack.c.l.b16 %v4108
    %v4365 = vunpack.c.l.b16 %v4109
    %v4366 = vunpack.c.l.b16 %v4110
    %v4367 = vunpack.c.l.b16 %v4111
    %v4368 = vunpack.c.l.b16 %v4112
    %v4369 = vunpack.c.l.b16 %v4113
    %v4370 = vunpack.c.l.b16 %v4114
    %v4371 = vunpack.c.l.b16 %v4115
    %v4372 = vunpack.c.l.b16 %v4116
    %v4373 = vunpack.c.l.b16 %v4117
    %v4374 = vunpack.c.l.b16 %v4118
    %v4375 = vunpack.c.l.b16 %v4119
    %v4376 = vunpack.c.l.b16 %v4120
    %v4377 = vunpack.c.l.b16 %v4121
    %v4378 = vunpack.c.l.b16 %v4122
    %v4379 = vunpack.c.l.b16 %v4123
    %v4380 = vunpack.c.l.b16 %v4124
    %v4381 = vunpack.c.l.b16 %v4125
    %v4382 = vunpack.c.l.b16 %v4126
    %v4383 = vunpack.c.l.b16 %v4127
    %v4384 = vunpack.c.l.b16 %v4128
    %v4385 = vunpack.c.l.b16 %v4129
    %v4386 = vunpack.c.l.b16 %v4130
    %v4387 = vunpack.c.l.b16 %v4131
    %v4388 = vunpack.c.l.b16 %v4132
    %v4389 = vunpack.c.l.b16 %v4133
    %v4390 = vunpack.c.l.b16 %v4134
    %v4391 = vunpack.c.l.b16 %v4135
    %v4392 = vunpack.c.l.b16 %v4136
    %v4393 = vunpack.c.l.b16 %v4137
    %v4394 = vunpack.c.l.b16 %v4138
    %v4395 = vunpack.c.l.b16 %v4139
    %v4396 = vunpack.c.l.b16 %v4140
    %v4397 = vunpack.c.l.b16 %v4141
    %v4398 = vunpack.c.l.b16 %v4142
    %v4399 = vunpack.c.l.b16 %v4143
    %v4400 = vunpack.c.l.b16 %v4144
    %v4401 = vunpack.c.l.b16 %v4145
    %v4402 = vunpack.c.l.b16 %v4146
    %v4403 = vunpack.c.l.b16 %v4147
    %v4404 = vunpack.c.l.b16 %v4148
    %v4405 = vunpack.c.l.b16 %v4149
    %v4406 = vunpack.c.l.b16 %v4150
    %v4407 = vunpack.c.l.b16 %v4151
    %v4408 = vunpack.c.l.b16 %v4152
    %v4409 = vunpack.c.l.b16 %v4153
    %v4410 = vunpack.c.l.b16 %v4154
    %v4411 = vunpack.c.l.b16 %v4155
    %v4412 = vunpack.c.l.b16 %v4156
    %v4413 = vunpack.c.l.b16 %v4157
    %v4414 = vunpack.c.l.b16 %v4158
    %v4415 = vunpack.c.l.b16 %v4159
    %v4416 = vunpack.c.l.b16 %v4160
    %v4417 = vunpack.c.l.b16 %v4161
    %v4418 = vunpack.c.l.b16 %v4162
    %v4419 = vunpack.c.l.b16 %v4163
    %v4420 = vunpack.c.l.b16 %v4164
    %v4421 = vunpack.c.l.b16 %v4165
    %v4422 = vunpack.c.l.b16 %v4166
    %v4423 = vunpack.c.l.b16 %v4167
    %v4424 = vunpack.c.l.b16 %v4168
    %v4425 = vunpack.c.l.b16 %v4169
    %v4426 = vunpack.c.l.b16 %v4170
    %v4427 = vunpack.c.l.b16 %v4171
    %v4428 = vunpack.c.l.b16 %v4172
    %v4429 = vunpack.c.l.b16 %v4173
    %v4430 = vunpack.c.l.b16 %v4174
    %v4431 = vunpack.c.l.b16 %v4175
    %v4432 = vunpack.c.l.b16 %v4176
    %v4433 = vunpack.c.l.b16 %v4177
    %v4434 = vunpack.c.l.b16 %v4178
    %v4435 = vunpack.c.l.b16 %v4179
    %v4436 = vunpack.c.l.b16 %v4180
    %v4437 = vunpack.c.l.b16 %v4181
    %v4438 = vunpack.c.l.b16 %v4182
    %v4439 = vpack.c.b16 %v4312, %v4311
    %v4440 = vpack.c.b16 %v4314, %v4313
    %v4441 = vpack.c.b16 %v4316, %v4315
    %v4442 = vpack.c.b16 %v4318, %v4317
    %v4443 = vpack.c.b16 %v4320, %v4319
    %v4444 = vpack.c.b16 %v4322, %v4321
    %v4445 = vpack.c.b16 %v4324, %v4323
    %v4446 = vpack.c.b16 %v4326, %v4325
    %v4447 = vpack.c.b16 %v4328, %v4327
    %v4448 = vpack.c.b16 %v4330, %v4329
    %v4449 = vpack.c.b16 %v4332, %v4331
    %v4450 = vpack.c.b16 %v4334, %v4333
    %v4451 = vpack.c.b16 %v4336, %v4335
    %v4452 = vpack.c.b16 %v4338, %v4337
    %v4453 = vpack.c.b16 %v4340, %v4339
    %v4454 = vpack.c.b16 %v4342, %v4341
    %v4455 = vpack.c.b16 %v4344, %v4343
    %v4456 = vpack.c.b16 %v4346, %v4345
    %v4457 = vpack.c.b16 %v4348, %v4347
    %v4458 = vpack.c.b16 %v4350, %v4349
    %v4459 = vpack.c.b16 %v4352, %v4351
    %v4460 = vpack.c.b16 %v4354, %v4353
    %v4461 = vpack.c.b16 %v4356, %v4355
    %v4462 = vpack.c.b16 %v4358, %v4357
    %v4463 = vpack.c.b16 %v4360, %v4359
    %v4464 = vpack.c.b16 %v4362, %v4361
    %v4465 = vpack.c.b16 %v4364, %v4363
    %v4466 = vpack.c.b16 %v4366, %v4365
    %v4467 = vpack.c.b16 %v4368, %v4367
    %v4468 = vpack.c.b16 %v4370, %v4369
    %v4469 = vpack.c.b16 %v4372, %v4371
    %v4470 = vpack.c.b16 %v4374, %v4373
    %v4471 = vpack.c.b16 %v4376, %v4375
    %v4472 = vpack.c.b16 %v4378, %v4377
    %v4473 = vpack.c.b16 %v4380, %v4379
    %v4474 = vpack.c.b16 %v4382, %v4381
    %v4475 = vpack.c.b16 %v4384, %v4383
    %v4476 = vpack.c.b16 %v4386, %v4385
    %v4477 = vpack.c.b16 %v4388, %v4387
    %v4478 = vpack.c.b16 %v4390, %v4389
    %v4479 = vpack.c.b16 %v4392, %v4391
    %v4480 = vpack.c.b16 %v4394, %v4393
    %v4481 = vpack.c.b16 %v4396, %v4395
    %v4482 = vpack.c.b16 %v4398, %v4397
    %v4483 = vpack.c.b16 %v4400, %v4399
    %v4484 = vpack.c.b16 %v4402, %v4401
    %v4485 = vpack.c.b16 %v4404, %v4403
    %v4486 = vpack.c.b16 %v4406, %v4405
    %v4487 = vpack.c.b16 %v4408, %v4407
    %v4488 = vpack.c.b16 %v4410, %v4409
    %v4489 = vpack.c.b16 %v4412, %v4411
    %v4490 = vpack.c.b16 %v4414, %v4413
    %v4491 = vpack.c.b16 %v4416, %v4415
    %v4492 = vpack.c.b16 %v4418, %v4417
    %v4493 = vpack.c.b16 %v4420, %v4419
    %v4494 = vpack.c.b16 %v4422, %v4421
    %v4495 = vpack.c.b16 %v4424, %v4423
    %v4496 = vpack.c.b16 %v4426, %v4425
    %v4497 = vpack.c.b16 %v4428, %v4427
    %v4498 = vpack.c.b16 %v4430, %v4429
    %v4499 = vpack.c.b16 %v4432, %v4431
    %v4500 = vpack.c.b16 %v4434, %v4433
    %v4501 = vpack.c.b16 %v4436, %v4435
    %v4502 = vpack.c.b16 %v4438, %v4437
    %4567 = vmatpush.bf16.msra.mxu0 %v4446
    %4568 = vmatpush.bf16.msra.mxu0 %v4445
    %4569 = vmatpush.bf16.msra.mxu0 %v4444
    %4570 = vmatpush.bf16.msra.mxu0 %v4443
    %4571 = vmatpush.bf16.msra.mxu0 %v4442
    %4572 = vmatpush.bf16.msra.mxu0 %v4441
    %4573 = vmatpush.bf16.msra.mxu0 %v4440
    %4574 = vmatpush.bf16.msra.mxu0 %v4439
    %4575 = vmatmul.bf16.gmra.mxu0 %v4023
    %v4576 = vpop.f32.mrf.mxu0
    %v4577 = vadd.f32 0.0, %v4576
    %v4578 = vpop.f32.mrf.mxu0
    %v4579 = vadd.f32 0.0, %v4578
    %4580 = vmatmul.bf16.gmra.mxu0 %v4031
    %v4581 = vpop.f32.mrf.mxu0
    %v4582 = vadd.f32 0.0, %v4581
    %v4583 = vpop.f32.mrf.mxu0
    %v4584 = vadd.f32 0.0, %v4583
    %4585 = vmatmul.bf16.gmra.mxu0 %v4039
    %v4586 = vpop.f32.mrf.mxu0
    %v4587 = vadd.f32 0.0, %v4586
    %v4588 = vpop.f32.mrf.mxu0
    %v4589 = vadd.f32 0.0, %v4588
    %4590 = vmatmul.bf16.gmra.mxu0 %v4047
    %v4591 = vpop.f32.mrf.mxu0
    %v4592 = vadd.f32 0.0, %v4591
    %v4593 = vpop.f32.mrf.mxu0
    %v4594 = vadd.f32 0.0, %v4593
    %4595 = vdwg.mxu0
    %4596 = vmatpush.bf16.msra.mxu0 %v4454
    %4597 = vmatpush.bf16.msra.mxu0 %v4453
    %4598 = vmatpush.bf16.msra.mxu0 %v4452
    %4599 = vmatpush.bf16.msra.mxu0 %v4451
    %4600 = vmatpush.bf16.msra.mxu0 %v4450
    %4601 = vmatpush.bf16.msra.mxu0 %v4449
    %4602 = vmatpush.bf16.msra.mxu0 %v4448
    %4603 = vmatpush.bf16.msra.mxu0 %v4447
    %4604 = vmatmul.bf16.gmra.mxu0 %v4024
    %v4605 = vpop.f32.mrf.mxu0
    %v4606 = vadd.f32 %v4577, %v4605
    %v4607 = vpop.f32.mrf.mxu0
    %v4608 = vadd.f32 %v4579, %v4607
    %4609 = vmatmul.bf16.gmra.mxu0 %v4032
    %v4610 = vpop.f32.mrf.mxu0
    %v4611 = vadd.f32 %v4582, %v4610
    %v4612 = vpop.f32.mrf.mxu0
    %v4613 = vadd.f32 %v4584, %v4612
    %4614 = vmatmul.bf16.gmra.mxu0 %v4040
    %v4615 = vpop.f32.mrf.mxu0
    %v4616 = vadd.f32 %v4587, %v4615
    %v4617 = vpop.f32.mrf.mxu0
    %v4618 = vadd.f32 %v4589, %v4617
    %4619 = vmatmul.bf16.gmra.mxu0 %v4048
    %v4620 = vpop.f32.mrf.mxu0
    %v4621 = vadd.f32 %v4592, %v4620
    %v4622 = vpop.f32.mrf.mxu0
    %v4623 = vadd.f32 %v4594, %v4622
    %4624 = vdwg.mxu0
    %4625 = vmatpush.bf16.msra.mxu0 %v4462
    %4626 = vmatpush.bf16.msra.mxu0 %v4461
    %4627 = vmatpush.bf16.msra.mxu0 %v4460
    %4628 = vmatpush.bf16.msra.mxu0 %v4459
    %4629 = vmatpush.bf16.msra.mxu0 %v4458
    %4630 = vmatpush.bf16.msra.mxu0 %v4457
    %4631 = vmatpush.bf16.msra.mxu0 %v4456
    %4632 = vmatpush.bf16.msra.mxu0 %v4455
    %4633 = vmatmul.bf16.gmra.mxu0 %v4025
    %v4634 = vpop.f32.mrf.mxu0
    %v4635 = vadd.f32 %v4606, %v4634
    %v4636 = vpop.f32.mrf.mxu0
    %v4637 = vadd.f32 %v4608, %v4636
    %4638 = vmatmul.bf16.gmra.mxu0 %v4033
    %v4639 = vpop.f32.mrf.mxu0
    %v4640 = vadd.f32 %v4611, %v4639
    %v4641 = vpop.f32.mrf.mxu0
    %v4642 = vadd.f32 %v4613, %v4641
    %4643 = vmatmul.bf16.gmra.mxu0 %v4041
    %v4644 = vpop.f32.mrf.mxu0
    %v4645 = vadd.f32 %v4616, %v4644
    %v4646 = vpop.f32.mrf.mxu0
    %v4647 = vadd.f32 %v4618, %v4646
    %4648 = vmatmul.bf16.gmra.mxu0 %v4049
    %v4649 = vpop.f32.mrf.mxu0
    %v4650 = vadd.f32 %v4621, %v4649
    %v4651 = vpop.f32.mrf.mxu0
    %v4652 = vadd.f32 %v4623, %v4651
    %4653 = vdwg.mxu0
    %4654 = vmatpush.bf16.msra.mxu0 %v4470
    %4655 = vmatpush.bf16.msra.mxu0 %v4469
    %4656 = vmatpush.bf16.msra.mxu0 %v4468
    %4657 = vmatpush.bf16.msra.mxu0 %v4467
    %4658 = vmatpush.bf16.msra.mxu0 %v4466
    %4659 = vmatpush.bf16.msra.mxu0 %v4465
    %4660 = vmatpush.bf16.msra.mxu0 %v4464
    %4661 = vmatpush.bf16.msra.mxu0 %v4463
    %4662 = vmatmul.bf16.gmra.mxu0 %v4026
    %v4663 = vpop.f32.mrf.mxu0
    %v4664 = vadd.f32 %v4635, %v4663
    %v4665 = vpop.f32.mrf.mxu0
    %v4666 = vadd.f32 %v4637, %v4665
    %4667 = vmatmul.bf16.gmra.mxu0 %v4034
    %v4668 = vpop.f32.mrf.mxu0
    %v4669 = vadd.f32 %v4640, %v4668
    %v4670 = vpop.f32.mrf.mxu0
    %v4671 = vadd.f32 %v4642, %v4670
    %4672 = vmatmul.bf16.gmra.mxu0 %v4042
    %v4673 = vpop.f32.mrf.mxu0
    %v4674 = vadd.f32 %v4645, %v4673
    %v4675 = vpop.f32.mrf.mxu0
    %v4676 = vadd.f32 %v4647, %v4675
    %4677 = vmatmul.bf16.gmra.mxu0 %v4050
    %v4678 = vpop.f32.mrf.mxu0
    %v4679 = vadd.f32 %v4650, %v4678
    %v4680 = vpop.f32.mrf.mxu0
    %v4681 = vadd.f32 %v4652, %v4680
    %4682 = vdwg.mxu0
    %4683 = vmatpush.bf16.msra.mxu0 %v4478
    %4684 = vmatpush.bf16.msra.mxu0 %v4477
    %4685 = vmatpush.bf16.msra.mxu0 %v4476
    %4686 = vmatpush.bf16.msra.mxu0 %v4475
    %4687 = vmatpush.bf16.msra.mxu0 %v4474
    %4688 = vmatpush.bf16.msra.mxu0 %v4473
    %4689 = vmatpush.bf16.msra.mxu0 %v4472
    %4690 = vmatpush.bf16.msra.mxu0 %v4471
    %4691 = vmatmul.bf16.gmra.mxu0 %v4027
    %v4692 = vpop.f32.mrf.mxu0
    %v4693 = vadd.f32 %v4664, %v4692
    %v4694 = vpop.f32.mrf.mxu0
    %v4695 = vadd.f32 %v4666, %v4694
    %4696 = vmatmul.bf16.gmra.mxu0 %v4035
    %v4697 = vpop.f32.mrf.mxu0
    %v4698 = vadd.f32 %v4669, %v4697
    %v4699 = vpop.f32.mrf.mxu0
    %v4700 = vadd.f32 %v4671, %v4699
    %4701 = vmatmul.bf16.gmra.mxu0 %v4043
    %v4702 = vpop.f32.mrf.mxu0
    %v4703 = vadd.f32 %v4674, %v4702
    %v4704 = vpop.f32.mrf.mxu0
    %v4705 = vadd.f32 %v4676, %v4704
    %4706 = vmatmul.bf16.gmra.mxu0 %v4051
    %v4707 = vpop.f32.mrf.mxu0
    %v4708 = vadd.f32 %v4679, %v4707
    %v4709 = vpop.f32.mrf.mxu0
    %v4710 = vadd.f32 %v4681, %v4709
    %4711 = vdwg.mxu0
    %4712 = vmatpush.bf16.msra.mxu0 %v4486
    %4713 = vmatpush.bf16.msra.mxu0 %v4485
    %4714 = vmatpush.bf16.msra.mxu0 %v4484
    %4715 = vmatpush.bf16.msra.mxu0 %v4483
    %4716 = vmatpush.bf16.msra.mxu0 %v4482
    %4717 = vmatpush.bf16.msra.mxu0 %v4481
    %4718 = vmatpush.bf16.msra.mxu0 %v4480
    %4719 = vmatpush.bf16.msra.mxu0 %v4479
    %4720 = vmatmul.bf16.gmra.mxu0 %v4028
    %v4721 = vpop.f32.mrf.mxu0
    %v4722 = vadd.f32 %v4693, %v4721
    %v4723 = vpop.f32.mrf.mxu0
    %v4724 = vadd.f32 %v4695, %v4723
    %4725 = vmatmul.bf16.gmra.mxu0 %v4036
    %v4726 = vpop.f32.mrf.mxu0
    %v4727 = vadd.f32 %v4698, %v4726
    %v4728 = vpop.f32.mrf.mxu0
    %v4729 = vadd.f32 %v4700, %v4728
    %4730 = vmatmul.bf16.gmra.mxu0 %v4044
    %v4731 = vpop.f32.mrf.mxu0
    %v4732 = vadd.f32 %v4703, %v4731
    %v4733 = vpop.f32.mrf.mxu0
    %v4734 = vadd.f32 %v4705, %v4733
    %4735 = vmatmul.bf16.gmra.mxu0 %v4052
    %v4736 = vpop.f32.mrf.mxu0
    %v4737 = vadd.f32 %v4708, %v4736
    %v4738 = vpop.f32.mrf.mxu0
    %v4739 = vadd.f32 %v4710, %v4738
    %4740 = vdwg.mxu0
    %4741 = vmatpush.bf16.msra.mxu0 %v4494
    %4742 = vmatpush.bf16.msra.mxu0 %v4493
    %4743 = vmatpush.bf16.msra.mxu0 %v4492
    %4744 = vmatpush.bf16.msra.mxu0 %v4491
    %4745 = vmatpush.bf16.msra.mxu0 %v4490
    %4746 = vmatpush.bf16.msra.mxu0 %v4489
    %4747 = vmatpush.bf16.msra.mxu0 %v4488
    %4748 = vmatpush.bf16.msra.mxu0 %v4487
    %4749 = vmatmul.bf16.gmra.mxu0 %v4029
    %v4750 = vpop.f32.mrf.mxu0
    %v4751 = vadd.f32 %v4722, %v4750
    %v4752 = vpop.f32.mrf.mxu0
    %v4753 = vadd.f32 %v4724, %v4752
    %4754 = vmatmul.bf16.gmra.mxu0 %v4037
    %v4755 = vpop.f32.mrf.mxu0
    %v4756 = vadd.f32 %v4727, %v4755
    %v4757 = vpop.f32.mrf.mxu0
    %v4758 = vadd.f32 %v4729, %v4757
    %4759 = vmatmul.bf16.gmra.mxu0 %v4045
    %v4760 = vpop.f32.mrf.mxu0
    %v4761 = vadd.f32 %v4732, %v4760
    %v4762 = vpop.f32.mrf.mxu0
    %v4763 = vadd.f32 %v4734, %v4762
    %4764 = vmatmul.bf16.gmra.mxu0 %v4053
    %v4765 = vpop.f32.mrf.mxu0
    %v4766 = vadd.f32 %v4737, %v4765
    %v4767 = vpop.f32.mrf.mxu0
    %v4768 = vadd.f32 %v4739, %v4767
    %4769 = vdwg.mxu0
    %4770 = vmatpush.bf16.msra.mxu0 %v4502
    %4771 = vmatpush.bf16.msra.mxu0 %v4501
    %4772 = vmatpush.bf16.msra.mxu0 %v4500
    %4773 = vmatpush.bf16.msra.mxu0 %v4499
    %4774 = vmatpush.bf16.msra.mxu0 %v4498
    %4775 = vmatpush.bf16.msra.mxu0 %v4497
    %4776 = vmatpush.bf16.msra.mxu0 %v4496
    %4777 = vmatpush.bf16.msra.mxu0 %v4495
    %4778 = vmatmul.bf16.gmra.mxu0 %v4030
    %v4779 = vpop.f32.mrf.mxu0
    %v4780 = vadd.f32 %v4751, %v4779
    %v4781 = vpop.f32.mrf.mxu0
    %v4782 = vadd.f32 %v4753, %v4781
    %4783 = vmatmul.bf16.gmra.mxu0 %v4038
    %v4784 = vpop.f32.mrf.mxu0
    %v4785 = vadd.f32 %v4756, %v4784
    %v4786 = vpop.f32.mrf.mxu0
    %v4787 = vadd.f32 %v4758, %v4786
    %4788 = vmatmul.bf16.gmra.mxu0 %v4046
    %v4789 = vpop.f32.mrf.mxu0
    %v4790 = vadd.f32 %v4761, %v4789
    %v4791 = vpop.f32.mrf.mxu0
    %v4792 = vadd.f32 %v4763, %v4791
    %4793 = vmatmul.bf16.gmra.mxu0 %v4054
    %v4794 = vpop.f32.mrf.mxu0
    %v4795 = vadd.f32 %v4766, %v4794
    %v4796 = vpop.f32.mrf.mxu0
    %v4797 = vadd.f32 %v4768, %v4796
    %4798 = vdwg.mxu0
    %v4927 = vunpack.c.l.b16 %v3575
    %v4928 = vunpack.c.l.b16 %v3576
    %v4929 = vunpack.c.l.b16 %v3577
    %v4930 = vunpack.c.l.b16 %v3578
    %v4931 = vunpack.c.l.b16 %v3579
    %v4932 = vunpack.c.l.b16 %v3580
    %v4933 = vunpack.c.l.b16 %v3581
    %v4934 = vunpack.c.l.b16 %v3582
    %v4935 = vunpack.c.l.b16 %v3583
    %v4936 = vunpack.c.l.b16 %v3584
    %v4937 = vunpack.c.l.b16 %v3585
    %v4938 = vunpack.c.l.b16 %v3586
    %v4939 = vunpack.c.l.b16 %v3587
    %v4940 = vunpack.c.l.b16 %v3588
    %v4941 = vunpack.c.l.b16 %v3589
    %v4942 = vunpack.c.l.b16 %v3590
    %v4943 = vunpack.c.l.b16 %v3591
    %v4944 = vunpack.c.l.b16 %v3592
    %v4945 = vunpack.c.l.b16 %v3593
    %v4946 = vunpack.c.l.b16 %v3594
    %v4947 = vunpack.c.l.b16 %v3595
    %v4948 = vunpack.c.l.b16 %v3596
    %v4949 = vunpack.c.l.b16 %v3597
    %v4950 = vunpack.c.l.b16 %v3598
    %v4951 = vunpack.c.l.b16 %v3599
    %v4952 = vunpack.c.l.b16 %v3600
    %v4953 = vunpack.c.l.b16 %v3601
    %v4954 = vunpack.c.l.b16 %v3602
    %v4955 = vunpack.c.l.b16 %v3603
    %v4956 = vunpack.c.l.b16 %v3604
    %v4957 = vunpack.c.l.b16 %v3605
    %v4958 = vunpack.c.l.b16 %v3606
    %v4959 = vunpack.c.l.b16 %v3607
    %v4960 = vunpack.c.l.b16 %v3608
    %v4961 = vunpack.c.l.b16 %v3609
    %v4962 = vunpack.c.l.b16 %v3610
    %v4963 = vunpack.c.l.b16 %v3611
    %v4964 = vunpack.c.l.b16 %v3612
    %v4965 = vunpack.c.l.b16 %v3613
    %v4966 = vunpack.c.l.b16 %v3614
    %v4967 = vunpack.c.l.b16 %v3615
    %v4968 = vunpack.c.l.b16 %v3616
    %v4969 = vunpack.c.l.b16 %v3617
    %v4970 = vunpack.c.l.b16 %v3618
    %v4971 = vunpack.c.l.b16 %v3619
    %v4972 = vunpack.c.l.b16 %v3620
    %v4973 = vunpack.c.l.b16 %v3621
    %v4974 = vunpack.c.l.b16 %v3622
    %v4975 = vunpack.c.l.b16 %v3623
    %v4976 = vunpack.c.l.b16 %v3624
    %v4977 = vunpack.c.l.b16 %v3625
    %v4978 = vunpack.c.l.b16 %v3626
    %v4979 = vunpack.c.l.b16 %v3627
    %v4980 = vunpack.c.l.b16 %v3628
    %v4981 = vunpack.c.l.b16 %v3629
    %v4982 = vunpack.c.l.b16 %v3630
    %v4983 = vunpack.c.l.b16 %v3631
    %v4984 = vunpack.c.l.b16 %v3632
    %v4985 = vunpack.c.l.b16 %v3633
    %v4986 = vunpack.c.l.b16 %v3634
    %v4987 = vunpack.c.l.b16 %v3635
    %v4988 = vunpack.c.l.b16 %v3636
    %v4989 = vunpack.c.l.b16 %v3637
    %v4990 = vunpack.c.l.b16 %v3638
    %v4991 = vunpack.c.l.b16 %v3639
    %v4992 = vunpack.c.l.b16 %v3640
    %v4993 = vunpack.c.l.b16 %v3641
    %v4994 = vunpack.c.l.b16 %v3642
    %v4995 = vunpack.c.l.b16 %v3643
    %v4996 = vunpack.c.l.b16 %v3644
    %v4997 = vunpack.c.l.b16 %v3645
    %v4998 = vunpack.c.l.b16 %v3646
    %v4999 = vunpack.c.l.b16 %v3647
    %v5000 = vunpack.c.l.b16 %v3648
    %v5001 = vunpack.c.l.b16 %v3649
    %v5002 = vunpack.c.l.b16 %v3650
    %v5003 = vunpack.c.l.b16 %v3651
    %v5004 = vunpack.c.l.b16 %v3652
    %v5005 = vunpack.c.l.b16 %v3653
    %v5006 = vunpack.c.l.b16 %v3654
    %v5007 = vunpack.c.l.b16 %v3655
    %v5008 = vunpack.c.l.b16 %v3656
    %v5009 = vunpack.c.l.b16 %v3657
    %v5010 = vunpack.c.l.b16 %v3658
    %v5011 = vunpack.c.l.b16 %v3659
    %v5012 = vunpack.c.l.b16 %v3660
    %v5013 = vunpack.c.l.b16 %v3661
    %v5014 = vunpack.c.l.b16 %v3662
    %v5015 = vunpack.c.l.b16 %v3663
    %v5016 = vunpack.c.l.b16 %v3664
    %v5017 = vunpack.c.l.b16 %v3665
    %v5018 = vunpack.c.l.b16 %v3666
    %v5019 = vunpack.c.l.b16 %v3667
    %v5020 = vunpack.c.l.b16 %v3668
    %v5021 = vunpack.c.l.b16 %v3669
    %v5022 = vunpack.c.l.b16 %v3670
    %v5023 = vunpack.c.l.b16 %v3671
    %v5024 = vunpack.c.l.b16 %v3672
    %v5025 = vunpack.c.l.b16 %v3673
    %v5026 = vunpack.c.l.b16 %v3674
    %v5027 = vunpack.c.l.b16 %v3675
    %v5028 = vunpack.c.l.b16 %v3676
    %v5029 = vunpack.c.l.b16 %v3677
    %v5030 = vunpack.c.l.b16 %v3678
    %v5031 = vunpack.c.l.b16 %v3679
    %v5032 = vunpack.c.l.b16 %v3680
    %v5033 = vunpack.c.l.b16 %v3681
    %v5034 = vunpack.c.l.b16 %v3682
    %v5035 = vunpack.c.l.b16 %v3683
    %v5036 = vunpack.c.l.b16 %v3684
    %v5037 = vunpack.c.l.b16 %v3685
    %v5038 = vunpack.c.l.b16 %v3686
    %v5039 = vunpack.c.l.b16 %v3687
    %v5040 = vunpack.c.l.b16 %v3688
    %v5041 = vunpack.c.l.b16 %v3689
    %v5042 = vunpack.c.l.b16 %v3690
    %v5043 = vunpack.c.l.b16 %v3691
    %v5044 = vunpack.c.l.b16 %v3692
    %v5045 = vunpack.c.l.b16 %v3693
    %v5046 = vunpack.c.l.b16 %v3694
    %v5047 = vunpack.c.l.b16 %v3695
    %v5048 = vunpack.c.l.b16 %v3696
    %v5049 = vunpack.c.l.b16 %v3697
    %v5050 = vunpack.c.l.b16 %v3698
    %v5051 = vunpack.c.l.b16 %v3699
    %v5052 = vunpack.c.l.b16 %v3700
    %v5053 = vunpack.c.l.b16 %v3701
    %v5054 = vunpack.c.l.b16 %v3702
    %v5055 = vpack.c.b16 %v4928, %v4927
    %v5056 = vpack.c.b16 %v4930, %v4929
    %v5057 = vpack.c.b16 %v4932, %v4931
    %v5058 = vpack.c.b16 %v4934, %v4933
    %v5059 = vpack.c.b16 %v4936, %v4935
    %v5060 = vpack.c.b16 %v4938, %v4937
    %v5061 = vpack.c.b16 %v4940, %v4939
    %v5062 = vpack.c.b16 %v4942, %v4941
    %v5063 = vpack.c.b16 %v4944, %v4943
    %v5064 = vpack.c.b16 %v4946, %v4945
    %v5065 = vpack.c.b16 %v4948, %v4947
    %v5066 = vpack.c.b16 %v4950, %v4949
    %v5067 = vpack.c.b16 %v4952, %v4951
    %v5068 = vpack.c.b16 %v4954, %v4953
    %v5069 = vpack.c.b16 %v4956, %v4955
    %v5070 = vpack.c.b16 %v4958, %v4957
    %v5071 = vpack.c.b16 %v4960, %v4959
    %v5072 = vpack.c.b16 %v4962, %v4961
    %v5073 = vpack.c.b16 %v4964, %v4963
    %v5074 = vpack.c.b16 %v4966, %v4965
    %v5075 = vpack.c.b16 %v4968, %v4967
    %v5076 = vpack.c.b16 %v4970, %v4969
    %v5077 = vpack.c.b16 %v4972, %v4971
    %v5078 = vpack.c.b16 %v4974, %v4973
    %v5079 = vpack.c.b16 %v4976, %v4975
    %v5080 = vpack.c.b16 %v4978, %v4977
    %v5081 = vpack.c.b16 %v4980, %v4979
    %v5082 = vpack.c.b16 %v4982, %v4981
    %v5083 = vpack.c.b16 %v4984, %v4983
    %v5084 = vpack.c.b16 %v4986, %v4985
    %v5085 = vpack.c.b16 %v4988, %v4987
    %v5086 = vpack.c.b16 %v4990, %v4989
    %v5087 = vpack.c.b16 %v4992, %v4991
    %v5088 = vpack.c.b16 %v4994, %v4993
    %v5089 = vpack.c.b16 %v4996, %v4995
    %v5090 = vpack.c.b16 %v4998, %v4997
    %v5091 = vpack.c.b16 %v5000, %v4999
    %v5092 = vpack.c.b16 %v5002, %v5001
    %v5093 = vpack.c.b16 %v5004, %v5003
    %v5094 = vpack.c.b16 %v5006, %v5005
    %v5095 = vpack.c.b16 %v5008, %v5007
    %v5096 = vpack.c.b16 %v5010, %v5009
    %v5097 = vpack.c.b16 %v5012, %v5011
    %v5098 = vpack.c.b16 %v5014, %v5013
    %v5099 = vpack.c.b16 %v5016, %v5015
    %v5100 = vpack.c.b16 %v5018, %v5017
    %v5101 = vpack.c.b16 %v5020, %v5019
    %v5102 = vpack.c.b16 %v5022, %v5021
    %v5103 = vpack.c.b16 %v5024, %v5023
    %v5104 = vpack.c.b16 %v5026, %v5025
    %v5105 = vpack.c.b16 %v5028, %v5027
    %v5106 = vpack.c.b16 %v5030, %v5029
    %v5107 = vpack.c.b16 %v5032, %v5031
    %v5108 = vpack.c.b16 %v5034, %v5033
    %v5109 = vpack.c.b16 %v5036, %v5035
    %v5110 = vpack.c.b16 %v5038, %v5037
    %v5111 = vpack.c.b16 %v5040, %v5039
    %v5112 = vpack.c.b16 %v5042, %v5041
    %v5113 = vpack.c.b16 %v5044, %v5043
    %v5114 = vpack.c.b16 %v5046, %v5045
    %v5115 = vpack.c.b16 %v5048, %v5047
    %v5116 = vpack.c.b16 %v5050, %v5049
    %v5117 = vpack.c.b16 %v5052, %v5051
    %v5118 = vpack.c.b16 %v5054, %v5053
    %5183 = vmatpush.bf16.msra.mxu0 %v5062
    %5184 = vmatpush.bf16.msra.mxu0 %v5061
    %5185 = vmatpush.bf16.msra.mxu0 %v5060
    %5186 = vmatpush.bf16.msra.mxu0 %v5059
    %5187 = vmatpush.bf16.msra.mxu0 %v5058
    %5188 = vmatpush.bf16.msra.mxu0 %v5057
    %5189 = vmatpush.bf16.msra.mxu0 %v5056
    %5190 = vmatpush.bf16.msra.mxu0 %v5055
    %5191 = vmatmul.bf16.gmra.mxu0 %v3542
    %v5192 = vpop.f32.mrf.mxu0
    %v5193 = vadd.f32 %v4780, %v5192
    %v5194 = vpop.f32.mrf.mxu0
    %v5195 = vadd.f32 %v4782, %v5194
    %5196 = vmatmul.bf16.gmra.mxu0 %v3550
    %v5197 = vpop.f32.mrf.mxu0
    %v5198 = vadd.f32 %v4785, %v5197
    %v5199 = vpop.f32.mrf.mxu0
    %v5200 = vadd.f32 %v4787, %v5199
    %5201 = vmatmul.bf16.gmra.mxu0 %v3558
    %v5202 = vpop.f32.mrf.mxu0
    %v5203 = vadd.f32 %v4790, %v5202
    %v5204 = vpop.f32.mrf.mxu0
    %v5205 = vadd.f32 %v4792, %v5204
    %5206 = vmatmul.bf16.gmra.mxu0 %v3566
    %v5207 = vpop.f32.mrf.mxu0
    %v5208 = vadd.f32 %v4795, %v5207
    %v5209 = vpop.f32.mrf.mxu0
    %v5210 = vadd.f32 %v4797, %v5209
    %5211 = vdwg.mxu0
    %5212 = vmatpush.bf16.msra.mxu0 %v5070
    %5213 = vmatpush.bf16.msra.mxu0 %v5069
    %5214 = vmatpush.bf16.msra.mxu0 %v5068
    %5215 = vmatpush.bf16.msra.mxu0 %v5067
    %5216 = vmatpush.bf16.msra.mxu0 %v5066
    %5217 = vmatpush.bf16.msra.mxu0 %v5065
    %5218 = vmatpush.bf16.msra.mxu0 %v5064
    %5219 = vmatpush.bf16.msra.mxu0 %v5063
    %5220 = vmatmul.bf16.gmra.mxu0 %v3543
    %v5221 = vpop.f32.mrf.mxu0
    %v5222 = vadd.f32 %v5193, %v5221
    %v5223 = vpop.f32.mrf.mxu0
    %v5224 = vadd.f32 %v5195, %v5223
    %5225 = vmatmul.bf16.gmra.mxu0 %v3551
    %v5226 = vpop.f32.mrf.mxu0
    %v5227 = vadd.f32 %v5198, %v5226
    %v5228 = vpop.f32.mrf.mxu0
    %v5229 = vadd.f32 %v5200, %v5228
    %5230 = vmatmul.bf16.gmra.mxu0 %v3559
    %v5231 = vpop.f32.mrf.mxu0
    %v5232 = vadd.f32 %v5203, %v5231
    %v5233 = vpop.f32.mrf.mxu0
    %v5234 = vadd.f32 %v5205, %v5233
    %5235 = vmatmul.bf16.gmra.mxu0 %v3567
    %v5236 = vpop.f32.mrf.mxu0
    %v5237 = vadd.f32 %v5208, %v5236
    %v5238 = vpop.f32.mrf.mxu0
    %v5239 = vadd.f32 %v5210, %v5238
    %5240 = vdwg.mxu0
    %5241 = vmatpush.bf16.msra.mxu0 %v5078
    %5242 = vmatpush.bf16.msra.mxu0 %v5077
    %5243 = vmatpush.bf16.msra.mxu0 %v5076
    %5244 = vmatpush.bf16.msra.mxu0 %v5075
    %5245 = vmatpush.bf16.msra.mxu0 %v5074
    %5246 = vmatpush.bf16.msra.mxu0 %v5073
    %5247 = vmatpush.bf16.msra.mxu0 %v5072
    %5248 = vmatpush.bf16.msra.mxu0 %v5071
    %5249 = vmatmul.bf16.gmra.mxu0 %v3544
    %v5250 = vpop.f32.mrf.mxu0
    %v5251 = vadd.f32 %v5222, %v5250
    %v5252 = vpop.f32.mrf.mxu0
    %v5253 = vadd.f32 %v5224, %v5252
    %5254 = vmatmul.bf16.gmra.mxu0 %v3552
    %v5255 = vpop.f32.mrf.mxu0
    %v5256 = vadd.f32 %v5227, %v5255
    %v5257 = vpop.f32.mrf.mxu0
    %v5258 = vadd.f32 %v5229, %v5257
    %5259 = vmatmul.bf16.gmra.mxu0 %v3560
    %v5260 = vpop.f32.mrf.mxu0
    %v5261 = vadd.f32 %v5232, %v5260
    %v5262 = vpop.f32.mrf.mxu0
    %v5263 = vadd.f32 %v5234, %v5262
    %5264 = vmatmul.bf16.gmra.mxu0 %v3568
    %v5265 = vpop.f32.mrf.mxu0
    %v5266 = vadd.f32 %v5237, %v5265
    %v5267 = vpop.f32.mrf.mxu0
    %v5268 = vadd.f32 %v5239, %v5267
    %5269 = vdwg.mxu0
    %5270 = vmatpush.bf16.msra.mxu0 %v5086
    %5271 = vmatpush.bf16.msra.mxu0 %v5085
    %5272 = vmatpush.bf16.msra.mxu0 %v5084
    %5273 = vmatpush.bf16.msra.mxu0 %v5083
    %5274 = vmatpush.bf16.msra.mxu0 %v5082
    %5275 = vmatpush.bf16.msra.mxu0 %v5081
    %5276 = vmatpush.bf16.msra.mxu0 %v5080
    %5277 = vmatpush.bf16.msra.mxu0 %v5079
    %5278 = vmatmul.bf16.gmra.mxu0 %v3545
    %v5279 = vpop.f32.mrf.mxu0
    %v5280 = vadd.f32 %v5251, %v5279
    %v5281 = vpop.f32.mrf.mxu0
    %v5282 = vadd.f32 %v5253, %v5281
    %5283 = vmatmul.bf16.gmra.mxu0 %v3553
    %v5284 = vpop.f32.mrf.mxu0
    %v5285 = vadd.f32 %v5256, %v5284
    %v5286 = vpop.f32.mrf.mxu0
    %v5287 = vadd.f32 %v5258, %v5286
    %5288 = vmatmul.bf16.gmra.mxu0 %v3561
    %v5289 = vpop.f32.mrf.mxu0
    %v5290 = vadd.f32 %v5261, %v5289
    %v5291 = vpop.f32.mrf.mxu0
    %v5292 = vadd.f32 %v5263, %v5291
    %5293 = vmatmul.bf16.gmra.mxu0 %v3569
    %v5294 = vpop.f32.mrf.mxu0
    %v5295 = vadd.f32 %v5266, %v5294
    %v5296 = vpop.f32.mrf.mxu0
    %v5297 = vadd.f32 %v5268, %v5296
    %5298 = vdwg.mxu0
    %5299 = vmatpush.bf16.msra.mxu0 %v5094
    %5300 = vmatpush.bf16.msra.mxu0 %v5093
    %5301 = vmatpush.bf16.msra.mxu0 %v5092
    %5302 = vmatpush.bf16.msra.mxu0 %v5091
    %5303 = vmatpush.bf16.msra.mxu0 %v5090
    %5304 = vmatpush.bf16.msra.mxu0 %v5089
    %5305 = vmatpush.bf16.msra.mxu0 %v5088
    %5306 = vmatpush.bf16.msra.mxu0 %v5087
    %5307 = vmatmul.bf16.gmra.mxu0 %v3546
    %v5308 = vpop.f32.mrf.mxu0
    %v5309 = vadd.f32 %v5280, %v5308
    %v5310 = vpop.f32.mrf.mxu0
    %v5311 = vadd.f32 %v5282, %v5310
    %5312 = vmatmul.bf16.gmra.mxu0 %v3554
    %v5313 = vpop.f32.mrf.mxu0
    %v5314 = vadd.f32 %v5285, %v5313
    %v5315 = vpop.f32.mrf.mxu0
    %v5316 = vadd.f32 %v5287, %v5315
    %5317 = vmatmul.bf16.gmra.mxu0 %v3562
    %v5318 = vpop.f32.mrf.mxu0
    %v5319 = vadd.f32 %v5290, %v5318
    %v5320 = vpop.f32.mrf.mxu0
    %v5321 = vadd.f32 %v5292, %v5320
    %5322 = vmatmul.bf16.gmra.mxu0 %v3570
    %v5323 = vpop.f32.mrf.mxu0
    %v5324 = vadd.f32 %v5295, %v5323
    %v5325 = vpop.f32.mrf.mxu0
    %v5326 = vadd.f32 %v5297, %v5325
    %5327 = vdwg.mxu0
    %5328 = vmatpush.bf16.msra.mxu0 %v5102
    %5329 = vmatpush.bf16.msra.mxu0 %v5101
    %5330 = vmatpush.bf16.msra.mxu0 %v5100
    %5331 = vmatpush.bf16.msra.mxu0 %v5099
    %5332 = vmatpush.bf16.msra.mxu0 %v5098
    %5333 = vmatpush.bf16.msra.mxu0 %v5097
    %5334 = vmatpush.bf16.msra.mxu0 %v5096
    %5335 = vmatpush.bf16.msra.mxu0 %v5095
    %5336 = vmatmul.bf16.gmra.mxu0 %v3547
    %v5337 = vpop.f32.mrf.mxu0
    %v5338 = vadd.f32 %v5309, %v5337
    %v5339 = vpop.f32.mrf.mxu0
    %v5340 = vadd.f32 %v5311, %v5339
    %5341 = vmatmul.bf16.gmra.mxu0 %v3555
    %v5342 = vpop.f32.mrf.mxu0
    %v5343 = vadd.f32 %v5314, %v5342
    %v5344 = vpop.f32.mrf.mxu0
    %v5345 = vadd.f32 %v5316, %v5344
    %5346 = vmatmul.bf16.gmra.mxu0 %v3563
    %v5347 = vpop.f32.mrf.mxu0
    %v5348 = vadd.f32 %v5319, %v5347
    %v5349 = vpop.f32.mrf.mxu0
    %v5350 = vadd.f32 %v5321, %v5349
    %5351 = vmatmul.bf16.gmra.mxu0 %v3571
    %v5352 = vpop.f32.mrf.mxu0
    %v5353 = vadd.f32 %v5324, %v5352
    %v5354 = vpop.f32.mrf.mxu0
    %v5355 = vadd.f32 %v5326, %v5354
    %5356 = vdwg.mxu0
    %5357 = vmatpush.bf16.msra.mxu0 %v5110
    %5358 = vmatpush.bf16.msra.mxu0 %v5109
    %5359 = vmatpush.bf16.msra.mxu0 %v5108
    %5360 = vmatpush.bf16.msra.mxu0 %v5107
    %5361 = vmatpush.bf16.msra.mxu0 %v5106
    %5362 = vmatpush.bf16.msra.mxu0 %v5105
    %5363 = vmatpush.bf16.msra.mxu0 %v5104
    %5364 = vmatpush.bf16.msra.mxu0 %v5103
    %5365 = vmatmul.bf16.gmra.mxu0 %v3548
    %v5366 = vpop.f32.mrf.mxu0
    %v5367 = vadd.f32 %v5338, %v5366
    %v5368 = vpop.f32.mrf.mxu0
    %v5369 = vadd.f32 %v5340, %v5368
    %5370 = vmatmul.bf16.gmra.mxu0 %v3556
    %v5371 = vpop.f32.mrf.mxu0
    %v5372 = vadd.f32 %v5343, %v5371
    %v5373 = vpop.f32.mrf.mxu0
    %v5374 = vadd.f32 %v5345, %v5373
    %5375 = vmatmul.bf16.gmra.mxu0 %v3564
    %v5376 = vpop.f32.mrf.mxu0
    %v5377 = vadd.f32 %v5348, %v5376
    %v5378 = vpop.f32.mrf.mxu0
    %v5379 = vadd.f32 %v5350, %v5378
    %5380 = vmatmul.bf16.gmra.mxu0 %v3572
    %v5381 = vpop.f32.mrf.mxu0
    %v5382 = vadd.f32 %v5353, %v5381
    %v5383 = vpop.f32.mrf.mxu0
    %v5384 = vadd.f32 %v5355, %v5383
    %5385 = vdwg.mxu0
    %5386 = vmatpush.bf16.msra.mxu0 %v5118
    %5387 = vmatpush.bf16.msra.mxu0 %v5117
    %5388 = vmatpush.bf16.msra.mxu0 %v5116
    %5389 = vmatpush.bf16.msra.mxu0 %v5115
    %5390 = vmatpush.bf16.msra.mxu0 %v5114
    %5391 = vmatpush.bf16.msra.mxu0 %v5113
    %5392 = vmatpush.bf16.msra.mxu0 %v5112
    %5393 = vmatpush.bf16.msra.mxu0 %v5111
    %5394 = vmatmul.bf16.gmra.mxu0 %v3549
    %v5395 = vpop.f32.mrf.mxu0
    %v5396 = vadd.f32 %v5367, %v5395
    %v5397 = vpop.f32.mrf.mxu0
    %v5398 = vadd.f32 %v5369, %v5397
    %5399 = vmatmul.bf16.gmra.mxu0 %v3557
    %v5400 = vpop.f32.mrf.mxu0
    %v5401 = vadd.f32 %v5372, %v5400
    %v5402 = vpop.f32.mrf.mxu0
    %v5403 = vadd.f32 %v5374, %v5402
    %5404 = vmatmul.bf16.gmra.mxu0 %v3565
    %v5405 = vpop.f32.mrf.mxu0
    %v5406 = vadd.f32 %v5377, %v5405
    %v5407 = vpop.f32.mrf.mxu0
    %v5408 = vadd.f32 %v5379, %v5407
    %5409 = vmatmul.bf16.gmra.mxu0 %v3573
    %v5410 = vpop.f32.mrf.mxu0
    %v5411 = vadd.f32 %v5382, %v5410
    %v5412 = vpop.f32.mrf.mxu0
    %v5413 = vadd.f32 %v5384, %v5412
    %5414 = vdwg.mxu0
    %v5415 = vrot.slane %v3463, 1
    %v5416 = vrot.slane %v3471, 1
    %v5417 = vsel %vm2051, %v5415, %v5416
    %v5418 = vrot.slane %v3464, 1
    %v5419 = vrot.slane %v3472, 1
    %v5420 = vsel %vm2051, %v5418, %v5419
    %v5421 = vrot.slane %v3465, 1
    %v5422 = vrot.slane %v3473, 1
    %v5423 = vsel %vm2051, %v5421, %v5422
    %v5424 = vrot.slane %v3466, 1
    %v5425 = vrot.slane %v3474, 1
    %v5426 = vsel %vm2051, %v5424, %v5425
    %v5427 = vrot.slane %v3467, 1
    %v5428 = vrot.slane %v3475, 1
    %v5429 = vsel %vm2051, %v5427, %v5428
    %v5430 = vrot.slane %v3468, 1
    %v5431 = vrot.slane %v3476, 1
    %v5432 = vsel %vm2051, %v5430, %v5431
    %v5433 = vrot.slane %v3469, 1
    %v5434 = vrot.slane %v3477, 1
    %v5435 = vsel %vm2051, %v5433, %v5434
    %v5436 = vrot.slane %v3470, 1
    %v5437 = vrot.slane %v3478, 1
    %v5438 = vsel %vm2051, %v5436, %v5437
    %v5439 = vrot.slane %v3479, 1
    %v5440 = vsel %vm2051, %v5416, %v5439
    %v5441 = vrot.slane %v3480, 1
    %v5442 = vsel %vm2051, %v5419, %v5441
    %v5443 = vrot.slane %v3481, 1
    %v5444 = vsel %vm2051, %v5422, %v5443
    %v5445 = vrot.slane %v3482, 1
    %v5446 = vsel %vm2051, %v5425, %v5445
    %v5447 = vrot.slane %v3483, 1
    %v5448 = vsel %vm2051, %v5428, %v5447
    %v5449 = vrot.slane %v3484, 1
    %v5450 = vsel %vm2051, %v5431, %v5449
    %v5451 = vrot.slane %v3485, 1
    %v5452 = vsel %vm2051, %v5434, %v5451
    %v5453 = vrot.slane %v3486, 1
    %v5454 = vsel %vm2051, %v5437, %v5453
    %v5455 = vrot.slane %v3487, 1
    %v5456 = vsel %vm2051, %v5439, %v5455
    %v5457 = vrot.slane %v3488, 1
    %v5458 = vsel %vm2051, %v5441, %v5457
    %v5459 = vrot.slane %v3489, 1
    %v5460 = vsel %vm2051, %v5443, %v5459
    %v5461 = vrot.slane %v3490, 1
    %v5462 = vsel %vm2051, %v5445, %v5461
    %v5463 = vrot.slane %v3491, 1
    %v5464 = vsel %vm2051, %v5447, %v5463
    %v5465 = vrot.slane %v3492, 1
    %v5466 = vsel %vm2051, %v5449, %v5465
    %v5467 = vrot.slane %v3493, 1
    %v5468 = vsel %vm2051, %v5451, %v5467
    %v5469 = vrot.slane %v3494, 1
    %v5470 = vsel %vm2051, %v5453, %v5469
    %v5471 = vrot.slane %v3495, 1
    %v5472 = vsel %vm2051, %v5455, %v5471
    %v5473 = vrot.slane %v3496, 1
    %v5474 = vsel %vm2051, %v5457, %v5473
    %v5475 = vrot.slane %v3497, 1
    %v5476 = vsel %vm2051, %v5459, %v5475
    %v5477 = vrot.slane %v3498, 1
    %v5478 = vsel %vm2051, %v5461, %v5477
    %v5479 = vrot.slane %v3499, 1
    %v5480 = vsel %vm2051, %v5463, %v5479
    %v5481 = vrot.slane %v3500, 1
    %v5482 = vsel %vm2051, %v5465, %v5481
    %v5483 = vrot.slane %v3501, 1
    %v5484 = vsel %vm2051, %v5467, %v5483
    %v5485 = vrot.slane %v3502, 1
    %v5486 = vsel %vm2051, %v5469, %v5485
    %v5487 = vrot.slane %v3503, 1
    %v5488 = vsel %vm2051, %v5471, %v5487
    %v5489 = vrot.slane %v3504, 1
    %v5490 = vsel %vm2051, %v5473, %v5489
    %v5491 = vrot.slane %v3505, 1
    %v5492 = vsel %vm2051, %v5475, %v5491
    %v5493 = vrot.slane %v3506, 1
    %v5494 = vsel %vm2051, %v5477, %v5493
    %v5495 = vrot.slane %v3507, 1
    %v5496 = vsel %vm2051, %v5479, %v5495
    %v5497 = vrot.slane %v3508, 1
    %v5498 = vsel %vm2051, %v5481, %v5497
    %v5499 = vrot.slane %v3509, 1
    %v5500 = vsel %vm2051, %v5483, %v5499
    %v5501 = vrot.slane %v3510, 1
    %v5502 = vsel %vm2051, %v5485, %v5501
    %v5503 = vrot.slane %v3511, 1
    %v5504 = vsel %vm2051, %v5487, %v5503
    %v5505 = vrot.slane %v3512, 1
    %v5506 = vsel %vm2051, %v5489, %v5505
    %v5507 = vrot.slane %v3513, 1
    %v5508 = vsel %vm2051, %v5491, %v5507
    %v5509 = vrot.slane %v3514, 1
    %v5510 = vsel %vm2051, %v5493, %v5509
    %v5511 = vrot.slane %v3515, 1
    %v5512 = vsel %vm2051, %v5495, %v5511
    %v5513 = vrot.slane %v3516, 1
    %v5514 = vsel %vm2051, %v5497, %v5513
    %v5515 = vrot.slane %v3517, 1
    %v5516 = vsel %vm2051, %v5499, %v5515
    %v5517 = vrot.slane %v3518, 1
    %v5518 = vsel %vm2051, %v5501, %v5517
    %v5519 = vrot.slane %v3519, 1
    %v5520 = vsel %vm2051, %v5503, %v5519
    %v5521 = vrot.slane %v3520, 1
    %v5522 = vsel %vm2051, %v5505, %v5521
    %v5523 = vrot.slane %v3521, 1
    %v5524 = vsel %vm2051, %v5507, %v5523
    %v5525 = vrot.slane %v3522, 1
    %v5526 = vsel %vm2051, %v5509, %v5525
    %v5527 = vrot.slane %v3523, 1
    %v5528 = vsel %vm2051, %v5511, %v5527
    %v5529 = vrot.slane %v3524, 1
    %v5530 = vsel %vm2051, %v5513, %v5529
    %v5531 = vrot.slane %v3525, 1
    %v5532 = vsel %vm2051, %v5515, %v5531
    %v5533 = vrot.slane %v3526, 1
    %v5534 = vsel %vm2051, %v5517, %v5533
    %v5599 = vsel %vm2051, %v5519, 0.0
    %v5600 = vsel %vm2051, %v5521, 0.0
    %v5601 = vsel %vm2051, %v5523, 0.0
    %v5602 = vsel %vm2051, %v5525, 0.0
    %v5603 = vsel %vm2051, %v5527, 0.0
    %v5604 = vsel %vm2051, %v5529, 0.0
    %v5605 = vsel %vm2051, %v5531, 0.0
    %v5606 = vsel %vm2051, %v5533, 0.0
    %v5607 = vmul.f32 %v5417, %v181
    %v5608 = vmul.f32 %v5420, %v181
    %v5609 = vmul.f32 %v5423, %v181
    %v5610 = vmul.f32 %v5426, %v181
    %v5611 = vmul.f32 %v5429, %v181
    %v5612 = vmul.f32 %v5432, %v181
    %v5613 = vmul.f32 %v5435, %v181
    %v5614 = vmul.f32 %v5438, %v181
    %v5615 = vmul.f32 %v5440, %v182
    %v5616 = vmul.f32 %v5442, %v182
    %v5617 = vmul.f32 %v5444, %v182
    %v5618 = vmul.f32 %v5446, %v182
    %v5619 = vmul.f32 %v5448, %v182
    %v5620 = vmul.f32 %v5450, %v182
    %v5621 = vmul.f32 %v5452, %v182
    %v5622 = vmul.f32 %v5454, %v182
    %v5623 = vmul.f32 %v5456, %v183
    %v5624 = vmul.f32 %v5458, %v183
    %v5625 = vmul.f32 %v5460, %v183
    %v5626 = vmul.f32 %v5462, %v183
    %v5627 = vmul.f32 %v5464, %v183
    %v5628 = vmul.f32 %v5466, %v183
    %v5629 = vmul.f32 %v5468, %v183
    %v5630 = vmul.f32 %v5470, %v183
    %v5631 = vmul.f32 %v5472, %v184
    %v5632 = vmul.f32 %v5474, %v184
    %v5633 = vmul.f32 %v5476, %v184
    %v5634 = vmul.f32 %v5478, %v184
    %v5635 = vmul.f32 %v5480, %v184
    %v5636 = vmul.f32 %v5482, %v184
    %v5637 = vmul.f32 %v5484, %v184
    %v5638 = vmul.f32 %v5486, %v184
    %v5639 = vmul.f32 %v5488, %v185
    %v5640 = vmul.f32 %v5490, %v185
    %v5641 = vmul.f32 %v5492, %v185
    %v5642 = vmul.f32 %v5494, %v185
    %v5643 = vmul.f32 %v5496, %v185
    %v5644 = vmul.f32 %v5498, %v185
    %v5645 = vmul.f32 %v5500, %v185
    %v5646 = vmul.f32 %v5502, %v185
    %v5647 = vmul.f32 %v5504, %v186
    %v5648 = vmul.f32 %v5506, %v186
    %v5649 = vmul.f32 %v5508, %v186
    %v5650 = vmul.f32 %v5510, %v186
    %v5651 = vmul.f32 %v5512, %v186
    %v5652 = vmul.f32 %v5514, %v186
    %v5653 = vmul.f32 %v5516, %v186
    %v5654 = vmul.f32 %v5518, %v186
    %v5655 = vmul.f32 %v5520, %v187
    %v5656 = vmul.f32 %v5522, %v187
    %v5657 = vmul.f32 %v5524, %v187
    %v5658 = vmul.f32 %v5526, %v187
    %v5659 = vmul.f32 %v5528, %v187
    %v5660 = vmul.f32 %v5530, %v187
    %v5661 = vmul.f32 %v5532, %v187
    %v5662 = vmul.f32 %v5534, %v187
    %v5663 = vmul.f32 %v5599, %v188
    %v5664 = vmul.f32 %v5600, %v188
    %v5665 = vmul.f32 %v5601, %v188
    %v5666 = vmul.f32 %v5602, %v188
    %v5667 = vmul.f32 %v5603, %v188
    %v5668 = vmul.f32 %v5604, %v188
    %v5669 = vmul.f32 %v5605, %v188
    %v5670 = vmul.f32 %v5606, %v188
    %v5671 = vpack.c.bf16 %v5615, %v5607
    %v5672 = vpack.c.bf16 %v5616, %v5608
    %v5673 = vpack.c.bf16 %v5617, %v5609
    %v5674 = vpack.c.bf16 %v5618, %v5610
    %v5675 = vpack.c.bf16 %v5619, %v5611
    %v5676 = vpack.c.bf16 %v5620, %v5612
    %v5677 = vpack.c.bf16 %v5621, %v5613
    %v5678 = vpack.c.bf16 %v5622, %v5614
    %v5679 = vpack.c.bf16 %v5631, %v5623
    %v5680 = vpack.c.bf16 %v5632, %v5624
    %v5681 = vpack.c.bf16 %v5633, %v5625
    %v5682 = vpack.c.bf16 %v5634, %v5626
    %v5683 = vpack.c.bf16 %v5635, %v5627
    %v5684 = vpack.c.bf16 %v5636, %v5628
    %v5685 = vpack.c.bf16 %v5637, %v5629
    %v5686 = vpack.c.bf16 %v5638, %v5630
    %v5687 = vpack.c.bf16 %v5647, %v5639
    %v5688 = vpack.c.bf16 %v5648, %v5640
    %v5689 = vpack.c.bf16 %v5649, %v5641
    %v5690 = vpack.c.bf16 %v5650, %v5642
    %v5691 = vpack.c.bf16 %v5651, %v5643
    %v5692 = vpack.c.bf16 %v5652, %v5644
    %v5693 = vpack.c.bf16 %v5653, %v5645
    %v5694 = vpack.c.bf16 %v5654, %v5646
    %v5695 = vpack.c.bf16 %v5663, %v5655
    %v5696 = vpack.c.bf16 %v5664, %v5656
    %v5697 = vpack.c.bf16 %v5665, %v5657
    %v5698 = vpack.c.bf16 %v5666, %v5658
    %v5699 = vpack.c.bf16 %v5667, %v5659
    %v5700 = vpack.c.bf16 %v5668, %v5660
    %v5701 = vpack.c.bf16 %v5669, %v5661
    %v5702 = vpack.c.bf16 %v5670, %v5662
    %s5703 = scalar_lea.vmem %s9, 1024
    %v5704 = vld [vmem:[%s5703] sm:$0xf]
    %v5705 = vld [vmem:[%s5703 + $0x4] sm:$0xf]
    %v5706 = vld [vmem:[%s5703 + $0x8] sm:$0xf]
    %v5707 = vld [vmem:[%s5703 + $0xc] sm:$0xf]
    %v5708 = vld [vmem:[%s5703 + $0x10] sm:$0xf]
    %v5709 = vld [vmem:[%s5703 + $0x14] sm:$0xf]
    %v5710 = vld [vmem:[%s5703 + $0x18] sm:$0xf]
    %v5711 = vld [vmem:[%s5703 + $0x1c] sm:$0xf]
    %v5712 = vld [vmem:[%s5703 + $0x20] sm:$0xf]
    %v5713 = vld [vmem:[%s5703 + $0x24] sm:$0xf]
    %v5714 = vld [vmem:[%s5703 + $0x28] sm:$0xf]
    %v5715 = vld [vmem:[%s5703 + $0x2c] sm:$0xf]
    %v5716 = vld [vmem:[%s5703 + $0x30] sm:$0xf]
    %v5717 = vld [vmem:[%s5703 + $0x34] sm:$0xf]
    %v5718 = vld [vmem:[%s5703 + $0x38] sm:$0xf]
    %v5719 = vld [vmem:[%s5703 + $0x3c] sm:$0xf]
    %v5720 = vld [vmem:[%s5703 + $0x40] sm:$0xf]
    %v5721 = vld [vmem:[%s5703 + $0x44] sm:$0xf]
    %v5722 = vld [vmem:[%s5703 + $0x48] sm:$0xf]
    %v5723 = vld [vmem:[%s5703 + $0x4c] sm:$0xf]
    %v5724 = vld [vmem:[%s5703 + $0x50] sm:$0xf]
    %v5725 = vld [vmem:[%s5703 + $0x54] sm:$0xf]
    %v5726 = vld [vmem:[%s5703 + $0x58] sm:$0xf]
    %v5727 = vld [vmem:[%s5703 + $0x5c] sm:$0xf]
    %v5728 = vld [vmem:[%s5703 + $0x60] sm:$0xf]
    %v5729 = vld [vmem:[%s5703 + $0x64] sm:$0xf]
    %v5730 = vld [vmem:[%s5703 + $0x68] sm:$0xf]
    %v5731 = vld [vmem:[%s5703 + $0x6c] sm:$0xf]
    %v5732 = vld [vmem:[%s5703 + $0x70] sm:$0xf]
    %v5733 = vld [vmem:[%s5703 + $0x74] sm:$0xf]
    %v5734 = vld [vmem:[%s5703 + $0x78] sm:$0xf]
    %v5735 = vld [vmem:[%s5703 + $0x7c] sm:$0xf]
    %v5736 = vld [vmem:[%s5703 + $0x80] sm:$0xf]
    %v5737 = vld [vmem:[%s5703 + $0x84] sm:$0xf]
    %v5738 = vld [vmem:[%s5703 + $0x88] sm:$0xf]
    %v5739 = vld [vmem:[%s5703 + $0x8c] sm:$0xf]
    %v5740 = vld [vmem:[%s5703 + $0x90] sm:$0xf]
    %v5741 = vld [vmem:[%s5703 + $0x94] sm:$0xf]
    %v5742 = vld [vmem:[%s5703 + $0x98] sm:$0xf]
    %v5743 = vld [vmem:[%s5703 + $0x9c] sm:$0xf]
    %v5744 = vld [vmem:[%s5703 + $0xa0] sm:$0xf]
    %v5745 = vld [vmem:[%s5703 + $0xa4] sm:$0xf]
    %v5746 = vld [vmem:[%s5703 + $0xa8] sm:$0xf]
    %v5747 = vld [vmem:[%s5703 + $0xac] sm:$0xf]
    %v5748 = vld [vmem:[%s5703 + $0xb0] sm:$0xf]
    %v5749 = vld [vmem:[%s5703 + $0xb4] sm:$0xf]
    %v5750 = vld [vmem:[%s5703 + $0xb8] sm:$0xf]
    %v5751 = vld [vmem:[%s5703 + $0xbc] sm:$0xf]
    %v5752 = vld [vmem:[%s5703 + $0xc0] sm:$0xf]
    %v5753 = vld [vmem:[%s5703 + $0xc4] sm:$0xf]
    %v5754 = vld [vmem:[%s5703 + $0xc8] sm:$0xf]
    %v5755 = vld [vmem:[%s5703 + $0xcc] sm:$0xf]
    %v5756 = vld [vmem:[%s5703 + $0xd0] sm:$0xf]
    %v5757 = vld [vmem:[%s5703 + $0xd4] sm:$0xf]
    %v5758 = vld [vmem:[%s5703 + $0xd8] sm:$0xf]
    %v5759 = vld [vmem:[%s5703 + $0xdc] sm:$0xf]
    %v5760 = vld [vmem:[%s5703 + $0xe0] sm:$0xf]
    %v5761 = vld [vmem:[%s5703 + $0xe4] sm:$0xf]
    %v5762 = vld [vmem:[%s5703 + $0xe8] sm:$0xf]
    %v5763 = vld [vmem:[%s5703 + $0xec] sm:$0xf]
    %v5764 = vld [vmem:[%s5703 + $0xf0] sm:$0xf]
    %v5765 = vld [vmem:[%s5703 + $0xf4] sm:$0xf]
    %v5766 = vld [vmem:[%s5703 + $0xf8] sm:$0xf]
    %v5767 = vld [vmem:[%s5703 + $0xfc] sm:$0xf]
    %v5768 = vld [vmem:[%s5703 + $0x100] sm:$0xf]
    %v5769 = vld [vmem:[%s5703 + $0x104] sm:$0xf]
    %v5770 = vld [vmem:[%s5703 + $0x108] sm:$0xf]
    %v5771 = vld [vmem:[%s5703 + $0x10c] sm:$0xf]
    %v5772 = vld [vmem:[%s5703 + $0x110] sm:$0xf]
    %v5773 = vld [vmem:[%s5703 + $0x114] sm:$0xf]
    %v5774 = vld [vmem:[%s5703 + $0x118] sm:$0xf]
    %v5775 = vld [vmem:[%s5703 + $0x11c] sm:$0xf]
    %v5776 = vld [vmem:[%s5703 + $0x120] sm:$0xf]
    %v5777 = vld [vmem:[%s5703 + $0x124] sm:$0xf]
    %v5778 = vld [vmem:[%s5703 + $0x128] sm:$0xf]
    %v5779 = vld [vmem:[%s5703 + $0x12c] sm:$0xf]
    %v5780 = vld [vmem:[%s5703 + $0x130] sm:$0xf]
    %v5781 = vld [vmem:[%s5703 + $0x134] sm:$0xf]
    %v5782 = vld [vmem:[%s5703 + $0x138] sm:$0xf]
    %v5783 = vld [vmem:[%s5703 + $0x13c] sm:$0xf]
    %v5784 = vld [vmem:[%s5703 + $0x140] sm:$0xf]
    %v5785 = vld [vmem:[%s5703 + $0x144] sm:$0xf]
    %v5786 = vld [vmem:[%s5703 + $0x148] sm:$0xf]
    %v5787 = vld [vmem:[%s5703 + $0x14c] sm:$0xf]
    %v5788 = vld [vmem:[%s5703 + $0x150] sm:$0xf]
    %v5789 = vld [vmem:[%s5703 + $0x154] sm:$0xf]
    %v5790 = vld [vmem:[%s5703 + $0x158] sm:$0xf]
    %v5791 = vld [vmem:[%s5703 + $0x15c] sm:$0xf]
    %v5792 = vld [vmem:[%s5703 + $0x160] sm:$0xf]
    %v5793 = vld [vmem:[%s5703 + $0x164] sm:$0xf]
    %v5794 = vld [vmem:[%s5703 + $0x168] sm:$0xf]
    %v5795 = vld [vmem:[%s5703 + $0x16c] sm:$0xf]
    %v5796 = vld [vmem:[%s5703 + $0x170] sm:$0xf]
    %v5797 = vld [vmem:[%s5703 + $0x174] sm:$0xf]
    %v5798 = vld [vmem:[%s5703 + $0x178] sm:$0xf]
    %v5799 = vld [vmem:[%s5703 + $0x17c] sm:$0xf]
    %v5800 = vld [vmem:[%s5703 + $0x180] sm:$0xf]
    %v5801 = vld [vmem:[%s5703 + $0x184] sm:$0xf]
    %v5802 = vld [vmem:[%s5703 + $0x188] sm:$0xf]
    %v5803 = vld [vmem:[%s5703 + $0x18c] sm:$0xf]
    %v5804 = vld [vmem:[%s5703 + $0x190] sm:$0xf]
    %v5805 = vld [vmem:[%s5703 + $0x194] sm:$0xf]
    %v5806 = vld [vmem:[%s5703 + $0x198] sm:$0xf]
    %v5807 = vld [vmem:[%s5703 + $0x19c] sm:$0xf]
    %v5808 = vld [vmem:[%s5703 + $0x1a0] sm:$0xf]
    %v5809 = vld [vmem:[%s5703 + $0x1a4] sm:$0xf]
    %v5810 = vld [vmem:[%s5703 + $0x1a8] sm:$0xf]
    %v5811 = vld [vmem:[%s5703 + $0x1ac] sm:$0xf]
    %v5812 = vld [vmem:[%s5703 + $0x1b0] sm:$0xf]
    %v5813 = vld [vmem:[%s5703 + $0x1b4] sm:$0xf]
    %v5814 = vld [vmem:[%s5703 + $0x1b8] sm:$0xf]
    %v5815 = vld [vmem:[%s5703 + $0x1bc] sm:$0xf]
    %v5816 = vld [vmem:[%s5703 + $0x1c0] sm:$0xf]
    %v5817 = vld [vmem:[%s5703 + $0x1c4] sm:$0xf]
    %v5818 = vld [vmem:[%s5703 + $0x1c8] sm:$0xf]
    %v5819 = vld [vmem:[%s5703 + $0x1cc] sm:$0xf]
    %v5820 = vld [vmem:[%s5703 + $0x1d0] sm:$0xf]
    %v5821 = vld [vmem:[%s5703 + $0x1d4] sm:$0xf]
    %v5822 = vld [vmem:[%s5703 + $0x1d8] sm:$0xf]
    %v5823 = vld [vmem:[%s5703 + $0x1dc] sm:$0xf]
    %v5824 = vld [vmem:[%s5703 + $0x1e0] sm:$0xf]
    %v5825 = vld [vmem:[%s5703 + $0x1e4] sm:$0xf]
    %v5826 = vld [vmem:[%s5703 + $0x1e8] sm:$0xf]
    %v5827 = vld [vmem:[%s5703 + $0x1ec] sm:$0xf]
    %v5828 = vld [vmem:[%s5703 + $0x1f0] sm:$0xf]
    %v5829 = vld [vmem:[%s5703 + $0x1f4] sm:$0xf]
    %v5830 = vld [vmem:[%s5703 + $0x1f8] sm:$0xf]
    %v5831 = vld [vmem:[%s5703 + $0x1fc] sm:$0xf]
    %v5960 = vunpack.c.l.b16 %v5704
    %v5961 = vunpack.c.l.b16 %v5705
    %v5962 = vunpack.c.l.b16 %v5706
    %v5963 = vunpack.c.l.b16 %v5707
    %v5964 = vunpack.c.l.b16 %v5708
    %v5965 = vunpack.c.l.b16 %v5709
    %v5966 = vunpack.c.l.b16 %v5710
    %v5967 = vunpack.c.l.b16 %v5711
    %v5968 = vunpack.c.l.b16 %v5712
    %v5969 = vunpack.c.l.b16 %v5713
    %v5970 = vunpack.c.l.b16 %v5714
    %v5971 = vunpack.c.l.b16 %v5715
    %v5972 = vunpack.c.l.b16 %v5716
    %v5973 = vunpack.c.l.b16 %v5717
    %v5974 = vunpack.c.l.b16 %v5718
    %v5975 = vunpack.c.l.b16 %v5719
    %v5976 = vunpack.c.l.b16 %v5720
    %v5977 = vunpack.c.l.b16 %v5721
    %v5978 = vunpack.c.l.b16 %v5722
    %v5979 = vunpack.c.l.b16 %v5723
    %v5980 = vunpack.c.l.b16 %v5724
    %v5981 = vunpack.c.l.b16 %v5725
    %v5982 = vunpack.c.l.b16 %v5726
    %v5983 = vunpack.c.l.b16 %v5727
    %v5984 = vunpack.c.l.b16 %v5728
    %v5985 = vunpack.c.l.b16 %v5729
    %v5986 = vunpack.c.l.b16 %v5730
    %v5987 = vunpack.c.l.b16 %v5731
    %v5988 = vunpack.c.l.b16 %v5732
    %v5989 = vunpack.c.l.b16 %v5733
    %v5990 = vunpack.c.l.b16 %v5734
    %v5991 = vunpack.c.l.b16 %v5735
    %v5992 = vunpack.c.l.b16 %v5736
    %v5993 = vunpack.c.l.b16 %v5737
    %v5994 = vunpack.c.l.b16 %v5738
    %v5995 = vunpack.c.l.b16 %v5739
    %v5996 = vunpack.c.l.b16 %v5740
    %v5997 = vunpack.c.l.b16 %v5741
    %v5998 = vunpack.c.l.b16 %v5742
    %v5999 = vunpack.c.l.b16 %v5743
    %v6000 = vunpack.c.l.b16 %v5744
    %v6001 = vunpack.c.l.b16 %v5745
    %v6002 = vunpack.c.l.b16 %v5746
    %v6003 = vunpack.c.l.b16 %v5747
    %v6004 = vunpack.c.l.b16 %v5748
    %v6005 = vunpack.c.l.b16 %v5749
    %v6006 = vunpack.c.l.b16 %v5750
    %v6007 = vunpack.c.l.b16 %v5751
    %v6008 = vunpack.c.l.b16 %v5752
    %v6009 = vunpack.c.l.b16 %v5753
    %v6010 = vunpack.c.l.b16 %v5754
    %v6011 = vunpack.c.l.b16 %v5755
    %v6012 = vunpack.c.l.b16 %v5756
    %v6013 = vunpack.c.l.b16 %v5757
    %v6014 = vunpack.c.l.b16 %v5758
    %v6015 = vunpack.c.l.b16 %v5759
    %v6016 = vunpack.c.l.b16 %v5760
    %v6017 = vunpack.c.l.b16 %v5761
    %v6018 = vunpack.c.l.b16 %v5762
    %v6019 = vunpack.c.l.b16 %v5763
    %v6020 = vunpack.c.l.b16 %v5764
    %v6021 = vunpack.c.l.b16 %v5765
    %v6022 = vunpack.c.l.b16 %v5766
    %v6023 = vunpack.c.l.b16 %v5767
    %v6024 = vunpack.c.l.b16 %v5768
    %v6025 = vunpack.c.l.b16 %v5769
    %v6026 = vunpack.c.l.b16 %v5770
    %v6027 = vunpack.c.l.b16 %v5771
    %v6028 = vunpack.c.l.b16 %v5772
    %v6029 = vunpack.c.l.b16 %v5773
    %v6030 = vunpack.c.l.b16 %v5774
    %v6031 = vunpack.c.l.b16 %v5775
    %v6032 = vunpack.c.l.b16 %v5776
    %v6033 = vunpack.c.l.b16 %v5777
    %v6034 = vunpack.c.l.b16 %v5778
    %v6035 = vunpack.c.l.b16 %v5779
    %v6036 = vunpack.c.l.b16 %v5780
    %v6037 = vunpack.c.l.b16 %v5781
    %v6038 = vunpack.c.l.b16 %v5782
    %v6039 = vunpack.c.l.b16 %v5783
    %v6040 = vunpack.c.l.b16 %v5784
    %v6041 = vunpack.c.l.b16 %v5785
    %v6042 = vunpack.c.l.b16 %v5786
    %v6043 = vunpack.c.l.b16 %v5787
    %v6044 = vunpack.c.l.b16 %v5788
    %v6045 = vunpack.c.l.b16 %v5789
    %v6046 = vunpack.c.l.b16 %v5790
    %v6047 = vunpack.c.l.b16 %v5791
    %v6048 = vunpack.c.l.b16 %v5792
    %v6049 = vunpack.c.l.b16 %v5793
    %v6050 = vunpack.c.l.b16 %v5794
    %v6051 = vunpack.c.l.b16 %v5795
    %v6052 = vunpack.c.l.b16 %v5796
    %v6053 = vunpack.c.l.b16 %v5797
    %v6054 = vunpack.c.l.b16 %v5798
    %v6055 = vunpack.c.l.b16 %v5799
    %v6056 = vunpack.c.l.b16 %v5800
    %v6057 = vunpack.c.l.b16 %v5801
    %v6058 = vunpack.c.l.b16 %v5802
    %v6059 = vunpack.c.l.b16 %v5803
    %v6060 = vunpack.c.l.b16 %v5804
    %v6061 = vunpack.c.l.b16 %v5805
    %v6062 = vunpack.c.l.b16 %v5806
    %v6063 = vunpack.c.l.b16 %v5807
    %v6064 = vunpack.c.l.b16 %v5808
    %v6065 = vunpack.c.l.b16 %v5809
    %v6066 = vunpack.c.l.b16 %v5810
    %v6067 = vunpack.c.l.b16 %v5811
    %v6068 = vunpack.c.l.b16 %v5812
    %v6069 = vunpack.c.l.b16 %v5813
    %v6070 = vunpack.c.l.b16 %v5814
    %v6071 = vunpack.c.l.b16 %v5815
    %v6072 = vunpack.c.l.b16 %v5816
    %v6073 = vunpack.c.l.b16 %v5817
    %v6074 = vunpack.c.l.b16 %v5818
    %v6075 = vunpack.c.l.b16 %v5819
    %v6076 = vunpack.c.l.b16 %v5820
    %v6077 = vunpack.c.l.b16 %v5821
    %v6078 = vunpack.c.l.b16 %v5822
    %v6079 = vunpack.c.l.b16 %v5823
    %v6080 = vunpack.c.l.b16 %v5824
    %v6081 = vunpack.c.l.b16 %v5825
    %v6082 = vunpack.c.l.b16 %v5826
    %v6083 = vunpack.c.l.b16 %v5827
    %v6084 = vunpack.c.l.b16 %v5828
    %v6085 = vunpack.c.l.b16 %v5829
    %v6086 = vunpack.c.l.b16 %v5830
    %v6087 = vunpack.c.l.b16 %v5831
    %v6088 = vpack.c.b16 %v5961, %v5960
    %v6089 = vpack.c.b16 %v5963, %v5962
    %v6090 = vpack.c.b16 %v5965, %v5964
    %v6091 = vpack.c.b16 %v5967, %v5966
    %v6092 = vpack.c.b16 %v5969, %v5968
    %v6093 = vpack.c.b16 %v5971, %v5970
    %v6094 = vpack.c.b16 %v5973, %v5972
    %v6095 = vpack.c.b16 %v5975, %v5974
    %v6096 = vpack.c.b16 %v5977, %v5976
    %v6097 = vpack.c.b16 %v5979, %v5978
    %v6098 = vpack.c.b16 %v5981, %v5980
    %v6099 = vpack.c.b16 %v5983, %v5982
    %v6100 = vpack.c.b16 %v5985, %v5984
    %v6101 = vpack.c.b16 %v5987, %v5986
    %v6102 = vpack.c.b16 %v5989, %v5988
    %v6103 = vpack.c.b16 %v5991, %v5990
    %v6104 = vpack.c.b16 %v5993, %v5992
    %v6105 = vpack.c.b16 %v5995, %v5994
    %v6106 = vpack.c.b16 %v5997, %v5996
    %v6107 = vpack.c.b16 %v5999, %v5998
    %v6108 = vpack.c.b16 %v6001, %v6000
    %v6109 = vpack.c.b16 %v6003, %v6002
    %v6110 = vpack.c.b16 %v6005, %v6004
    %v6111 = vpack.c.b16 %v6007, %v6006
    %v6112 = vpack.c.b16 %v6009, %v6008
    %v6113 = vpack.c.b16 %v6011, %v6010
    %v6114 = vpack.c.b16 %v6013, %v6012
    %v6115 = vpack.c.b16 %v6015, %v6014
    %v6116 = vpack.c.b16 %v6017, %v6016
    %v6117 = vpack.c.b16 %v6019, %v6018
    %v6118 = vpack.c.b16 %v6021, %v6020
    %v6119 = vpack.c.b16 %v6023, %v6022
    %v6120 = vpack.c.b16 %v6025, %v6024
    %v6121 = vpack.c.b16 %v6027, %v6026
    %v6122 = vpack.c.b16 %v6029, %v6028
    %v6123 = vpack.c.b16 %v6031, %v6030
    %v6124 = vpack.c.b16 %v6033, %v6032
    %v6125 = vpack.c.b16 %v6035, %v6034
    %v6126 = vpack.c.b16 %v6037, %v6036
    %v6127 = vpack.c.b16 %v6039, %v6038
    %v6128 = vpack.c.b16 %v6041, %v6040
    %v6129 = vpack.c.b16 %v6043, %v6042
    %v6130 = vpack.c.b16 %v6045, %v6044
    %v6131 = vpack.c.b16 %v6047, %v6046
    %v6132 = vpack.c.b16 %v6049, %v6048
    %v6133 = vpack.c.b16 %v6051, %v6050
    %v6134 = vpack.c.b16 %v6053, %v6052
    %v6135 = vpack.c.b16 %v6055, %v6054
    %v6136 = vpack.c.b16 %v6057, %v6056
    %v6137 = vpack.c.b16 %v6059, %v6058
    %v6138 = vpack.c.b16 %v6061, %v6060
    %v6139 = vpack.c.b16 %v6063, %v6062
    %v6140 = vpack.c.b16 %v6065, %v6064
    %v6141 = vpack.c.b16 %v6067, %v6066
    %v6142 = vpack.c.b16 %v6069, %v6068
    %v6143 = vpack.c.b16 %v6071, %v6070
    %v6144 = vpack.c.b16 %v6073, %v6072
    %v6145 = vpack.c.b16 %v6075, %v6074
    %v6146 = vpack.c.b16 %v6077, %v6076
    %v6147 = vpack.c.b16 %v6079, %v6078
    %v6148 = vpack.c.b16 %v6081, %v6080
    %v6149 = vpack.c.b16 %v6083, %v6082
    %v6150 = vpack.c.b16 %v6085, %v6084
    %v6151 = vpack.c.b16 %v6087, %v6086
    %6216 = vmatpush.bf16.msra.mxu0 %v6095
    %6217 = vmatpush.bf16.msra.mxu0 %v6094
    %6218 = vmatpush.bf16.msra.mxu0 %v6093
    %6219 = vmatpush.bf16.msra.mxu0 %v6092
    %6220 = vmatpush.bf16.msra.mxu0 %v6091
    %6221 = vmatpush.bf16.msra.mxu0 %v6090
    %6222 = vmatpush.bf16.msra.mxu0 %v6089
    %6223 = vmatpush.bf16.msra.mxu0 %v6088
    %6224 = vmatmul.bf16.gmra.mxu0 %v5671
    %v6225 = vpop.f32.mrf.mxu0
    %v6226 = vadd.f32 0.0, %v6225
    %v6227 = vpop.f32.mrf.mxu0
    %v6228 = vadd.f32 0.0, %v6227
    %6229 = vmatmul.bf16.gmra.mxu0 %v5679
    %v6230 = vpop.f32.mrf.mxu0
    %v6231 = vadd.f32 0.0, %v6230
    %v6232 = vpop.f32.mrf.mxu0
    %v6233 = vadd.f32 0.0, %v6232
    %6234 = vmatmul.bf16.gmra.mxu0 %v5687
    %v6235 = vpop.f32.mrf.mxu0
    %v6236 = vadd.f32 0.0, %v6235
    %v6237 = vpop.f32.mrf.mxu0
    %v6238 = vadd.f32 0.0, %v6237
    %6239 = vmatmul.bf16.gmra.mxu0 %v5695
    %v6240 = vpop.f32.mrf.mxu0
    %v6241 = vadd.f32 0.0, %v6240
    %v6242 = vpop.f32.mrf.mxu0
    %v6243 = vadd.f32 0.0, %v6242
    %6244 = vdwg.mxu0
    %6245 = vmatpush.bf16.msra.mxu0 %v6103
    %6246 = vmatpush.bf16.msra.mxu0 %v6102
    %6247 = vmatpush.bf16.msra.mxu0 %v6101
    %6248 = vmatpush.bf16.msra.mxu0 %v6100
    %6249 = vmatpush.bf16.msra.mxu0 %v6099
    %6250 = vmatpush.bf16.msra.mxu0 %v6098
    %6251 = vmatpush.bf16.msra.mxu0 %v6097
    %6252 = vmatpush.bf16.msra.mxu0 %v6096
    %6253 = vmatmul.bf16.gmra.mxu0 %v5672
    %v6254 = vpop.f32.mrf.mxu0
    %v6255 = vadd.f32 %v6226, %v6254
    %v6256 = vpop.f32.mrf.mxu0
    %v6257 = vadd.f32 %v6228, %v6256
    %6258 = vmatmul.bf16.gmra.mxu0 %v5680
    %v6259 = vpop.f32.mrf.mxu0
    %v6260 = vadd.f32 %v6231, %v6259
    %v6261 = vpop.f32.mrf.mxu0
    %v6262 = vadd.f32 %v6233, %v6261
    %6263 = vmatmul.bf16.gmra.mxu0 %v5688
    %v6264 = vpop.f32.mrf.mxu0
    %v6265 = vadd.f32 %v6236, %v6264
    %v6266 = vpop.f32.mrf.mxu0
    %v6267 = vadd.f32 %v6238, %v6266
    %6268 = vmatmul.bf16.gmra.mxu0 %v5696
    %v6269 = vpop.f32.mrf.mxu0
    %v6270 = vadd.f32 %v6241, %v6269
    %v6271 = vpop.f32.mrf.mxu0
    %v6272 = vadd.f32 %v6243, %v6271
    %6273 = vdwg.mxu0
    %6274 = vmatpush.bf16.msra.mxu0 %v6111
    %6275 = vmatpush.bf16.msra.mxu0 %v6110
    %6276 = vmatpush.bf16.msra.mxu0 %v6109
    %6277 = vmatpush.bf16.msra.mxu0 %v6108
    %6278 = vmatpush.bf16.msra.mxu0 %v6107
    %6279 = vmatpush.bf16.msra.mxu0 %v6106
    %6280 = vmatpush.bf16.msra.mxu0 %v6105
    %6281 = vmatpush.bf16.msra.mxu0 %v6104
    %6282 = vmatmul.bf16.gmra.mxu0 %v5673
    %v6283 = vpop.f32.mrf.mxu0
    %v6284 = vadd.f32 %v6255, %v6283
    %v6285 = vpop.f32.mrf.mxu0
    %v6286 = vadd.f32 %v6257, %v6285
    %6287 = vmatmul.bf16.gmra.mxu0 %v5681
    %v6288 = vpop.f32.mrf.mxu0
    %v6289 = vadd.f32 %v6260, %v6288
    %v6290 = vpop.f32.mrf.mxu0
    %v6291 = vadd.f32 %v6262, %v6290
    %6292 = vmatmul.bf16.gmra.mxu0 %v5689
    %v6293 = vpop.f32.mrf.mxu0
    %v6294 = vadd.f32 %v6265, %v6293
    %v6295 = vpop.f32.mrf.mxu0
    %v6296 = vadd.f32 %v6267, %v6295
    %6297 = vmatmul.bf16.gmra.mxu0 %v5697
    %v6298 = vpop.f32.mrf.mxu0
    %v6299 = vadd.f32 %v6270, %v6298
    %v6300 = vpop.f32.mrf.mxu0
    %v6301 = vadd.f32 %v6272, %v6300
    %6302 = vdwg.mxu0
    %6303 = vmatpush.bf16.msra.mxu0 %v6119
    %6304 = vmatpush.bf16.msra.mxu0 %v6118
    %6305 = vmatpush.bf16.msra.mxu0 %v6117
    %6306 = vmatpush.bf16.msra.mxu0 %v6116
    %6307 = vmatpush.bf16.msra.mxu0 %v6115
    %6308 = vmatpush.bf16.msra.mxu0 %v6114
    %6309 = vmatpush.bf16.msra.mxu0 %v6113
    %6310 = vmatpush.bf16.msra.mxu0 %v6112
    %6311 = vmatmul.bf16.gmra.mxu0 %v5674
    %v6312 = vpop.f32.mrf.mxu0
    %v6313 = vadd.f32 %v6284, %v6312
    %v6314 = vpop.f32.mrf.mxu0
    %v6315 = vadd.f32 %v6286, %v6314
    %6316 = vmatmul.bf16.gmra.mxu0 %v5682
    %v6317 = vpop.f32.mrf.mxu0
    %v6318 = vadd.f32 %v6289, %v6317
    %v6319 = vpop.f32.mrf.mxu0
    %v6320 = vadd.f32 %v6291, %v6319
    %6321 = vmatmul.bf16.gmra.mxu0 %v5690
    %v6322 = vpop.f32.mrf.mxu0
    %v6323 = vadd.f32 %v6294, %v6322
    %v6324 = vpop.f32.mrf.mxu0
    %v6325 = vadd.f32 %v6296, %v6324
    %6326 = vmatmul.bf16.gmra.mxu0 %v5698
    %v6327 = vpop.f32.mrf.mxu0
    %v6328 = vadd.f32 %v6299, %v6327
    %v6329 = vpop.f32.mrf.mxu0
    %v6330 = vadd.f32 %v6301, %v6329
    %6331 = vdwg.mxu0
    %6332 = vmatpush.bf16.msra.mxu0 %v6127
    %6333 = vmatpush.bf16.msra.mxu0 %v6126
    %6334 = vmatpush.bf16.msra.mxu0 %v6125
    %6335 = vmatpush.bf16.msra.mxu0 %v6124
    %6336 = vmatpush.bf16.msra.mxu0 %v6123
    %6337 = vmatpush.bf16.msra.mxu0 %v6122
    %6338 = vmatpush.bf16.msra.mxu0 %v6121
    %6339 = vmatpush.bf16.msra.mxu0 %v6120
    %6340 = vmatmul.bf16.gmra.mxu0 %v5675
    %v6341 = vpop.f32.mrf.mxu0
    %v6342 = vadd.f32 %v6313, %v6341
    %v6343 = vpop.f32.mrf.mxu0
    %v6344 = vadd.f32 %v6315, %v6343
    %6345 = vmatmul.bf16.gmra.mxu0 %v5683
    %v6346 = vpop.f32.mrf.mxu0
    %v6347 = vadd.f32 %v6318, %v6346
    %v6348 = vpop.f32.mrf.mxu0
    %v6349 = vadd.f32 %v6320, %v6348
    %6350 = vmatmul.bf16.gmra.mxu0 %v5691
    %v6351 = vpop.f32.mrf.mxu0
    %v6352 = vadd.f32 %v6323, %v6351
    %v6353 = vpop.f32.mrf.mxu0
    %v6354 = vadd.f32 %v6325, %v6353
    %6355 = vmatmul.bf16.gmra.mxu0 %v5699
    %v6356 = vpop.f32.mrf.mxu0
    %v6357 = vadd.f32 %v6328, %v6356
    %v6358 = vpop.f32.mrf.mxu0
    %v6359 = vadd.f32 %v6330, %v6358
    %6360 = vdwg.mxu0
    %6361 = vmatpush.bf16.msra.mxu0 %v6135
    %6362 = vmatpush.bf16.msra.mxu0 %v6134
    %6363 = vmatpush.bf16.msra.mxu0 %v6133
    %6364 = vmatpush.bf16.msra.mxu0 %v6132
    %6365 = vmatpush.bf16.msra.mxu0 %v6131
    %6366 = vmatpush.bf16.msra.mxu0 %v6130
    %6367 = vmatpush.bf16.msra.mxu0 %v6129
    %6368 = vmatpush.bf16.msra.mxu0 %v6128
    %6369 = vmatmul.bf16.gmra.mxu0 %v5676
    %v6370 = vpop.f32.mrf.mxu0
    %v6371 = vadd.f32 %v6342, %v6370
    %v6372 = vpop.f32.mrf.mxu0
    %v6373 = vadd.f32 %v6344, %v6372
    %6374 = vmatmul.bf16.gmra.mxu0 %v5684
    %v6375 = vpop.f32.mrf.mxu0
    %v6376 = vadd.f32 %v6347, %v6375
    %v6377 = vpop.f32.mrf.mxu0
    %v6378 = vadd.f32 %v6349, %v6377
    %6379 = vmatmul.bf16.gmra.mxu0 %v5692
    %v6380 = vpop.f32.mrf.mxu0
    %v6381 = vadd.f32 %v6352, %v6380
    %v6382 = vpop.f32.mrf.mxu0
    %v6383 = vadd.f32 %v6354, %v6382
    %6384 = vmatmul.bf16.gmra.mxu0 %v5700
    %v6385 = vpop.f32.mrf.mxu0
    %v6386 = vadd.f32 %v6357, %v6385
    %v6387 = vpop.f32.mrf.mxu0
    %v6388 = vadd.f32 %v6359, %v6387
    %6389 = vdwg.mxu0
    %6390 = vmatpush.bf16.msra.mxu0 %v6143
    %6391 = vmatpush.bf16.msra.mxu0 %v6142
    %6392 = vmatpush.bf16.msra.mxu0 %v6141
    %6393 = vmatpush.bf16.msra.mxu0 %v6140
    %6394 = vmatpush.bf16.msra.mxu0 %v6139
    %6395 = vmatpush.bf16.msra.mxu0 %v6138
    %6396 = vmatpush.bf16.msra.mxu0 %v6137
    %6397 = vmatpush.bf16.msra.mxu0 %v6136
    %6398 = vmatmul.bf16.gmra.mxu0 %v5677
    %v6399 = vpop.f32.mrf.mxu0
    %v6400 = vadd.f32 %v6371, %v6399
    %v6401 = vpop.f32.mrf.mxu0
    %v6402 = vadd.f32 %v6373, %v6401
    %6403 = vmatmul.bf16.gmra.mxu0 %v5685
    %v6404 = vpop.f32.mrf.mxu0
    %v6405 = vadd.f32 %v6376, %v6404
    %v6406 = vpop.f32.mrf.mxu0
    %v6407 = vadd.f32 %v6378, %v6406
    %6408 = vmatmul.bf16.gmra.mxu0 %v5693
    %v6409 = vpop.f32.mrf.mxu0
    %v6410 = vadd.f32 %v6381, %v6409
    %v6411 = vpop.f32.mrf.mxu0
    %v6412 = vadd.f32 %v6383, %v6411
    %6413 = vmatmul.bf16.gmra.mxu0 %v5701
    %v6414 = vpop.f32.mrf.mxu0
    %v6415 = vadd.f32 %v6386, %v6414
    %v6416 = vpop.f32.mrf.mxu0
    %v6417 = vadd.f32 %v6388, %v6416
    %6418 = vdwg.mxu0
    %6419 = vmatpush.bf16.msra.mxu0 %v6151
    %6420 = vmatpush.bf16.msra.mxu0 %v6150
    %6421 = vmatpush.bf16.msra.mxu0 %v6149
    %6422 = vmatpush.bf16.msra.mxu0 %v6148
    %6423 = vmatpush.bf16.msra.mxu0 %v6147
    %6424 = vmatpush.bf16.msra.mxu0 %v6146
    %6425 = vmatpush.bf16.msra.mxu0 %v6145
    %6426 = vmatpush.bf16.msra.mxu0 %v6144
    %6427 = vmatmul.bf16.gmra.mxu0 %v5678
    %v6428 = vpop.f32.mrf.mxu0
    %v6429 = vadd.f32 %v6400, %v6428
    %v6430 = vpop.f32.mrf.mxu0
    %v6431 = vadd.f32 %v6402, %v6430
    %6432 = vmatmul.bf16.gmra.mxu0 %v5686
    %v6433 = vpop.f32.mrf.mxu0
    %v6434 = vadd.f32 %v6405, %v6433
    %v6435 = vpop.f32.mrf.mxu0
    %v6436 = vadd.f32 %v6407, %v6435
    %6437 = vmatmul.bf16.gmra.mxu0 %v5694
    %v6438 = vpop.f32.mrf.mxu0
    %v6439 = vadd.f32 %v6410, %v6438
    %v6440 = vpop.f32.mrf.mxu0
    %v6441 = vadd.f32 %v6412, %v6440
    %6442 = vmatmul.bf16.gmra.mxu0 %v5702
    %v6443 = vpop.f32.mrf.mxu0
    %v6444 = vadd.f32 %v6415, %v6443
    %v6445 = vpop.f32.mrf.mxu0
    %v6446 = vadd.f32 %v6417, %v6445
    %6447 = vdwg.mxu0
    %v6448 = vadd.f32 %v5396, %v6429
    %v6449 = vadd.f32 %v5398, %v6431
    %v6450 = vadd.f32 %v5401, %v6434
    %v6451 = vadd.f32 %v5403, %v6436
    %v6452 = vadd.f32 %v5406, %v6439
    %v6453 = vadd.f32 %v5408, %v6441
    %v6454 = vadd.f32 %v5411, %v6444
    %v6455 = vadd.f32 %v5413, %v6446
    %v6456 = vsel %vm1322, %v6448, 0.0
    %v6457 = vsel %vm1322, %v6449, 0.0
    %v6458 = vadd.f32 %v6456, %v6457
    %v6459 = vsel %vm1322, %v6450, 0.0
    %v6460 = vadd.f32 %v6458, %v6459
    %v6461 = vsel %vm1322, %v6451, 0.0
    %v6462 = vadd.f32 %v6460, %v6461
    %v6463 = vsel %vm1322, %v6452, 0.0
    %v6464 = vadd.f32 %v6462, %v6463
    %v6465 = vsel %vm1322, %v6453, 0.0
    %v6466 = vadd.f32 %v6464, %v6465
    %v6467 = vsel %vm1322, %v6454, 0.0
    %v6468 = vadd.f32 %v6466, %v6467
    %v6469 = vsel %vm1322, %v6455, 0.0
    %v6470 = vadd.f32 %v6468, %v6469
    %v6471 = vrot.slane %v6470, 4
    %v6472 = vadd.f32 %v6470, %v6471
    %v6473 = vrot.slane %v6472, 2
    %v6474 = vadd.f32 %v6472, %v6473
    %v6475 = vrot.slane %v6474, 1
    %v6476 = vadd.f32 %v6474, %v6475
    %v6477 = vmul.f32 %v6448, %v6448
    %v6478 = vmul.f32 %v6449, %v6449
    %v6479 = vmul.f32 %v6450, %v6450
    %v6480 = vmul.f32 %v6451, %v6451
    %v6481 = vmul.f32 %v6452, %v6452
    %v6482 = vmul.f32 %v6453, %v6453
    %v6483 = vmul.f32 %v6454, %v6454
    %v6484 = vmul.f32 %v6455, %v6455
    %v6485 = vsel %vm1322, %v6477, 0.0
    %v6486 = vsel %vm1322, %v6478, 0.0
    %v6487 = vadd.f32 %v6485, %v6486
    %v6488 = vsel %vm1322, %v6479, 0.0
    %v6489 = vadd.f32 %v6487, %v6488
    %v6490 = vsel %vm1322, %v6480, 0.0
    %v6491 = vadd.f32 %v6489, %v6490
    %v6492 = vsel %vm1322, %v6481, 0.0
    %v6493 = vadd.f32 %v6491, %v6492
    %v6494 = vsel %vm1322, %v6482, 0.0
    %v6495 = vadd.f32 %v6493, %v6494
    %v6496 = vsel %vm1322, %v6483, 0.0
    %v6497 = vadd.f32 %v6495, %v6496
    %v6498 = vsel %vm1322, %v6484, 0.0
    %v6499 = vadd.f32 %v6497, %v6498
    %v6500 = vrot.slane %v6499, 4
    %v6501 = vadd.f32 %v6499, %v6500
    %v6502 = vrot.slane %v6501, 2
    %v6503 = vadd.f32 %v6501, %v6502
    %v6504 = vrot.slane %v6503, 1
    %v6505 = vadd.f32 %v6503, %v6504
    %v6506 = vsel %vm997, %v6476, %v6505
    %v6508 = vsel %vm1322, %v6506, 0
    %6510 = vmatpush.msra.mxu0 0.0
    %6511 = vmatpush.msra.mxu0 0.0
    %6512 = vmatpush.msra.mxu0 0.0
    %6513 = vmatpush.msra.mxu0 0.0
    %6514 = vmatpush.msra.mxu0 %v3540
    %6515 = vmatpush.msra.mxu0 %v3539
    %6516 = vmatpush.msra.mxu0 %v3538
    %6517 = vmatpush.msra.mxu0 %v3537
    %6518 = vmatpush.msra.mxu0 %v3536
    %6519 = vmatpush.msra.mxu0 %v3535
    %6520 = vmatpush.msra.mxu0 %v3534
    %6521 = vmatpush.msra.mxu0 %v3533
    %6522 = vmatpush.msra.mxu0 %v3532
    %6523 = vmatpush.msra.mxu0 %v3531
    %6524 = vmatpush.msra.mxu0 %v3530
    %6525 = vmatpush.msra.mxu0 %v3529
    %6526 = vmatmul.f32.gmra.mxu0 %v6508
    %v6527 = vpop.f32.mrf.mxu0
    %v6528 = vadd.f32 0.0, %v6527
    %6529 = vdwg.mxu0
    %v6530 = vmul.f32 %v6528, 0.00048828125
    %v6531 = vmul.f32 %v6530, %v6530
    %v6533 = vrot.slane %v6531, 7
    %v6535 = vsub.f32 %v6530, %v6533
    %v6536 = vmax.f32 %v6535, 0.0
    %v6537 = vadd.f32 %v6536, 1e-05
    %v6538 = vrsqrt.pop %v6537
    %v6539 = vmul.f32 %v6538, %v6537
    %v6540 = vmul.f32 %v6539, %v6538
    %v6541 = vmul.f32 0.5, %v6540
    %v6542 = vsub.f32 1.5, %v6541
    %v6543 = vmul.f32 %v6538, %v6542
    %vm6544 = vweird.f32 %v6537
    %vm6545 = vweird.f32 %v6538
    %vm6546 = vmor %vm6544, %vm6545
    %v6547 = vsel %vm6546, %v6538, %v6543
    %6549 = vst [vmem:[#allocation1] sm:$0xff] %v6547
    %s6550 = scalar_lea.vmem [#allocation1], 1
    %v6551 = vld [vmem:[%s6550] ss:$9 sm:$0xff]
    %v6553 = vmul.f32 %v3527, %v6551
    %v6554 = vmul.f32 %v6530, %v6553
    %v6555 = vsub.f32 %v3528, %v6554
    %v6557 = vperm.slane %v6555, 0
    %v6559 = vsel %vm997, %v6553, %v6557
    %vm6560 = vcmask 23552
    %v6562 = vsel %vm6560, %v6559, 0
    %vm6564 = vcmask 1042432
    %v6566 = vsel %vm6564, %v3541, 0
    %6568 = vmatpush.msra.mxu0 0.0
    %6569 = vmatpush.msra.mxu0 0.0
    %6570 = vmatpush.msra.mxu0 0.0
    %6571 = vmatpush.msra.mxu0 0.0
    %6572 = vmatpush.msra.mxu0 0.0
    %6573 = vmatpush.msra.mxu0 0.0
    %6574 = vmatpush.msra.mxu0 0.0
    %6575 = vmatpush.msra.mxu0 0.0
    %6576 = vmatpush.msra.mxu0 0.0
    %6577 = vmatpush.msra.mxu0 0.0
    %6578 = vmatpush.msra.mxu0 0.0
    %6579 = vmatpush.msra.mxu0 0.0
    %6580 = vmatpush.msra.mxu0 0.0
    %6581 = vmatpush.msra.mxu0 0.0
    %6582 = vmatpush.msra.mxu0 0.0
    %6583 = vmatpush.msra.mxu0 %v6566
    %6584 = vmatmul.f32.gmra.mxu0 %v6562
    %v6585 = vpop.f32.mrf.mxu0
    %v6586 = vadd.f32 0.0, %v6585
    %6587 = vdwg.mxu0
    %v6588 = vperm.slane %v6586, 0
    %v6589 = vmul.f32 %v6448, %v6588
    %v6590 = vmul.f32 %v6449, %v6588
    %v6591 = vmul.f32 %v6450, %v6588
    %v6592 = vmul.f32 %v6451, %v6588
    %v6593 = vmul.f32 %v6452, %v6588
    %v6594 = vmul.f32 %v6453, %v6588
    %v6595 = vmul.f32 %v6454, %v6588
    %v6596 = vmul.f32 %v6455, %v6588
    %v6597 = vperm.slane %v6586, 1
    %v6598 = vadd.f32 %v6589, %v6597
    %v6599 = vadd.f32 %v6590, %v6597
    %v6600 = vadd.f32 %v6591, %v6597
    %v6601 = vadd.f32 %v6592, %v6597
    %v6602 = vadd.f32 %v6593, %v6597
    %v6603 = vadd.f32 %v6594, %v6597
    %v6604 = vadd.f32 %v6595, %v6597
    %v6605 = vadd.f32 %v6596, %v6597
    %v6606 = vmax.f32 %v6598, 0.0
    %v6607 = vmax.f32 %v6599, 0.0
    %v6608 = vmax.f32 %v6600, 0.0
    %v6609 = vmax.f32 %v6601, 0.0
    %v6610 = vmax.f32 %v6602, 0.0
    %v6611 = vmax.f32 %v6603, 0.0
    %v6612 = vmax.f32 %v6604, 0.0
    %v6613 = vmax.f32 %v6605, 0.0
    %6614 = vst.msk [vmem:[#allocation2] sm:$0xff] %vm1322, %v6606
    %6615 = vst.msk [vmem:[#allocation2 + $0x8] sm:$0xff] %vm1322, %v6607
    %6616 = vst.msk [vmem:[#allocation2 + $0x10] sm:$0xff] %vm1322, %v6608
    %6617 = vst.msk [vmem:[#allocation2 + $0x18] sm:$0xff] %vm1322, %v6609
    %6618 = vst.msk [vmem:[#allocation2 + $0x20] sm:$0xff] %vm1322, %v6610
    %6619 = vst.msk [vmem:[#allocation2 + $0x28] sm:$0xff] %vm1322, %v6611
    %6620 = vst.msk [vmem:[#allocation2 + $0x30] sm:$0xff] %vm1322, %v6612
    %6621 = vst.msk [vmem:[#allocation2 + $0x38] sm:$0xff] %vm1322, %v6613
    %v6622 = vld [vmem:[#allocation2] sm:$0x1]
    %vm6623 = vcmask 385024
    %6624 = vst.msk [vmem:[#allocation3] sm:$0x1] %vm6623, %v6622
    %v6625 = vld [vmem:[#allocation2 + $0x1] sm:$0x1]
    %6627 = vrot.lane.b32.xlu0 %v6625, 48
    %v6628 = vpop.permute.xlu0 %6627
    %vm6630 = vcmask 778624
    %6631 = vst.msk [vmem:[#allocation3] sm:$0x1] %vm6630, %v6628
    %v6632 = vld [vmem:[#allocation2 + $0x2] sm:$0x1]
    %6634 = vrot.lane.b32.xlu0 %v6632, 96
    %v6635 = vpop.permute.xlu0 %6634
    %vm6637 = vcmask 1041152
    %6638 = vst.msk [vmem:[#allocation3] sm:$0x1] %vm6637, %v6635
    %vm6639 = vcmask 122880
    %6640 = vst.msk [vmem:[#allocation3 + $0x8] sm:$0x1] %vm6639, %v6635
    %v6641 = vld [vmem:[#allocation2 + $0x3] sm:$0x1]
    %6643 = vrot.lane.b32.xlu0 %v6641, 16
    %v6644 = vpop.permute.xlu0 %6643
    %vm6646 = vcmask 516224
    %6647 = vst.msk [vmem:[#allocation3 + $0x8] sm:$0x1] %vm6646, %v6644
    %v6648 = vld [vmem:[#allocation2 + $0x4] sm:$0x1]
    %6650 = vrot.lane.b32.xlu0 %v6648, 64
    %v6651 = vpop.permute.xlu0 %6650
    %vm6653 = vcmask 909824
    %6654 = vst.msk [vmem:[#allocation3 + $0x8] sm:$0x1] %vm6653, %v6651
    %v6655 = vld [vmem:[#allocation2 + $0x5] sm:$0x1]
    %6657 = vrot.lane.b32.xlu0 %v6655, 112
    %v6658 = vpop.permute.xlu0 %6657
    %vm6660 = vcmask 1041280
    %6661 = vst.msk [vmem:[#allocation3 + $0x8] sm:$0x1] %vm6660, %v6658
    %vm6662 = vcmask 253952
    %6663 = vst.msk [vmem:[#allocation3 + $0x10] sm:$0x1] %vm6662, %v6658
    %v6664 = vld [vmem:[#allocation2 + $0x6] sm:$0x1]
    %6666 = vrot.lane.b32.xlu0 %v6664, 32
    %v6667 = vpop.permute.xlu0 %6666
    %vm6669 = vcmask 647424
    %6670 = vst.msk [vmem:[#allocation3 + $0x10] sm:$0x1] %vm6669, %v6667
    %v6671 = vld [vmem:[#allocation2 + $0x7] sm:$0x1]
    %6673 = vrot.lane.b32.xlu0 %v6671, 80
    %v6674 = vpop.permute.xlu0 %6673
    %vm6676 = vcmask 1041024
    %6677 = vst.msk [vmem:[#allocation3 + $0x10] sm:$0x1] %vm6676, %v6674
    %v6678 = vld [vmem:[#allocation2 + $0x8] sm:$0x1]
    %6679 = vst.msk [vmem:[#allocation3 + $0x18] sm:$0x1] %vm6623, %v6678
    %v6680 = vld [vmem:[#allocation2 + $0x9] sm:$0x1]
    %6682 = vrot.lane.b32.xlu0 %v6680, 48
    %v6683 = vpop.permute.xlu0 %6682
    %6685 = vst.msk [vmem:[#allocation3 + $0x18] sm:$0x1] %vm6630, %v6683
    %v6686 = vld [vmem:[#allocation2 + $0xa] sm:$0x1]
    %6688 = vrot.lane.b32.xlu0 %v6686, 96
    %v6689 = vpop.permute.xlu0 %6688
    %6691 = vst.msk [vmem:[#allocation3 + $0x18] sm:$0x1] %vm6637, %v6689
    %6692 = vst.msk [vmem:[#allocation3 + $0x20] sm:$0x1] %vm6639, %v6689
    %v6693 = vld [vmem:[#allocation2 + $0xb] sm:$0x1]
    %6695 = vrot.lane.b32.xlu0 %v6693, 16
    %v6696 = vpop.permute.xlu0 %6695
    %6698 = vst.msk [vmem:[#allocation3 + $0x20] sm:$0x1] %vm6646, %v6696
    %v6699 = vld [vmem:[#allocation2 + $0xc] sm:$0x1]
    %6701 = vrot.lane.b32.xlu0 %v6699, 64
    %v6702 = vpop.permute.xlu0 %6701
    %6704 = vst.msk [vmem:[#allocation3 + $0x20] sm:$0x1] %vm6653, %v6702
    %v6705 = vld [vmem:[#allocation2 + $0xd] sm:$0x1]
    %6707 = vrot.lane.b32.xlu0 %v6705, 112
    %v6708 = vpop.permute.xlu0 %6707
    %6710 = vst.msk [vmem:[#allocation3 + $0x20] sm:$0x1] %vm6660, %v6708
    %6711 = vst.msk [vmem:[#allocation3 + $0x28] sm:$0x1] %vm6662, %v6708
    %v6712 = vld [vmem:[#allocation2 + $0xe] sm:$0x1]
    %6714 = vrot.lane.b32.xlu0 %v6712, 32
    %v6715 = vpop.permute.xlu0 %6714
    %6717 = vst.msk [vmem:[#allocation3 + $0x28] sm:$0x1] %vm6669, %v6715
    %v6718 = vld [vmem:[#allocation2 + $0xf] sm:$0x1]
    %6720 = vrot.lane.b32.xlu0 %v6718, 80
    %v6721 = vpop.permute.xlu0 %6720
    %6723 = vst.msk [vmem:[#allocation3 + $0x28] sm:$0x1] %vm6676, %v6721
    %v6724 = vld [vmem:[#allocation2] sm:$0x1]
    %6726 = vrot.lane.b32.xlu0 %v6724, 80
    %v6727 = vpop.permute.xlu0 %6726
    %6729 = vst.msk [vmem:[#allocation3 + $0x1] sm:$0x1] %vm6623, %v6727
    %v6730 = vld [vmem:[#allocation2 + $0x1] sm:$0x1]
    %6731 = vst.msk [vmem:[#allocation3 + $0x1] sm:$0x1] %vm6630, %v6730
    %v6732 = vld [vmem:[#allocation2 + $0x2] sm:$0x1]
    %6734 = vrot.lane.b32.xlu0 %v6732, 48
    %v6735 = vpop.permute.xlu0 %6734
    %6737 = vst.msk [vmem:[#allocation3 + $0x1] sm:$0x1] %vm6637, %v6735
    %6738 = vst.msk [vmem:[#allocation3 + $0x9] sm:$0x1] %vm6639, %v6735
    %v6739 = vld [vmem:[#allocation2 + $0x3] sm:$0x1]
    %6741 = vrot.lane.b32.xlu0 %v6739, 96
    %v6742 = vpop.permute.xlu0 %6741
    %6744 = vst.msk [vmem:[#allocation3 + $0x9] sm:$0x1] %vm6646, %v6742
    %v6745 = vld [vmem:[#allocation2 + $0x4] sm:$0x1]
    %6747 = vrot.lane.b32.xlu0 %v6745, 16
    %v6748 = vpop.permute.xlu0 %6747
    %6750 = vst.msk [vmem:[#allocation3 + $0x9] sm:$0x1] %vm6653, %v6748
    %v6751 = vld [vmem:[#allocation2 + $0x5] sm:$0x1]
    %6753 = vrot.lane.b32.xlu0 %v6751, 64
    %v6754 = vpop.permute.xlu0 %6753
    %6756 = vst.msk [vmem:[#allocation3 + $0x9] sm:$0x1] %vm6660, %v6754
    %6757 = vst.msk [vmem:[#allocation3 + $0x11] sm:$0x1] %vm6662, %v6754
    %v6758 = vld [vmem:[#allocation2 + $0x6] sm:$0x1]
    %6760 = vrot.lane.b32.xlu0 %v6758, 112
    %v6761 = vpop.permute.xlu0 %6760
    %6763 = vst.msk [vmem:[#allocation3 + $0x11] sm:$0x1] %vm6669, %v6761
    %v6764 = vld [vmem:[#allocation2 + $0x7] sm:$0x1]
    %6766 = vrot.lane.b32.xlu0 %v6764, 32
    %v6767 = vpop.permute.xlu0 %6766
    %6769 = vst.msk [vmem:[#allocation3 + $0x11] sm:$0x1] %vm6676, %v6767
    %v6770 = vld [vmem:[#allocation2 + $0x8] sm:$0x1]
    %6772 = vrot.lane.b32.xlu0 %v6770, 80
    %v6773 = vpop.permute.xlu0 %6772
    %6775 = vst.msk [vmem:[#allocation3 + $0x19] sm:$0x1] %vm6623, %v6773
    %v6776 = vld [vmem:[#allocation2 + $0x9] sm:$0x1]
    %6777 = vst.msk [vmem:[#allocation3 + $0x19] sm:$0x1] %vm6630, %v6776
    %v6778 = vld [vmem:[#allocation2 + $0xa] sm:$0x1]
    %6780 = vrot.lane.b32.xlu0 %v6778, 48
    %v6781 = vpop.permute.xlu0 %6780
    %6783 = vst.msk [vmem:[#allocation3 + $0x19] sm:$0x1] %vm6637, %v6781
    %6784 = vst.msk [vmem:[#allocation3 + $0x21] sm:$0x1] %vm6639, %v6781
    %v6785 = vld [vmem:[#allocation2 + $0xb] sm:$0x1]
    %6787 = vrot.lane.b32.xlu0 %v6785, 96
    %v6788 = vpop.permute.xlu0 %6787
    %6790 = vst.msk [vmem:[#allocation3 + $0x21] sm:$0x1] %vm6646, %v6788
    %v6791 = vld [vmem:[#allocation2 + $0xc] sm:$0x1]
    %6793 = vrot.lane.b32.xlu0 %v6791, 16
    %v6794 = vpop.permute.xlu0 %6793
    %6796 = vst.msk [vmem:[#allocation3 + $0x21] sm:$0x1] %vm6653, %v6794
    %v6797 = vld [vmem:[#allocation2 + $0xd] sm:$0x1]
    %6799 = vrot.lane.b32.xlu0 %v6797, 64
    %v6800 = vpop.permute.xlu0 %6799
    %6802 = vst.msk [vmem:[#allocation3 + $0x21] sm:$0x1] %vm6660, %v6800
    %6803 = vst.msk [vmem:[#allocation3 + $0x29] sm:$0x1] %vm6662, %v6800
    %v6804 = vld [vmem:[#allocation2 + $0xe] sm:$0x1]
    %6806 = vrot.lane.b32.xlu0 %v6804, 112
    %v6807 = vpop.permute.xlu0 %6806
    %6809 = vst.msk [vmem:[#allocation3 + $0x29] sm:$0x1] %vm6669, %v6807
    %v6810 = vld [vmem:[#allocation2 + $0xf] sm:$0x1]
    %6812 = vrot.lane.b32.xlu0 %v6810, 32
    %v6813 = vpop.permute.xlu0 %6812
    %6815 = vst.msk [vmem:[#allocation3 + $0x29] sm:$0x1] %vm6676, %v6813
    %v6816 = vld [vmem:[#allocation2 + $0x10] sm:$0x1]
    %6817 = vst.msk [vmem:[#allocation3 + $0x2] sm:$0x1] %vm6623, %v6816
    %v6818 = vld [vmem:[#allocation2 + $0x11] sm:$0x1]
    %6820 = vrot.lane.b32.xlu0 %v6818, 48
    %v6821 = vpop.permute.xlu0 %6820
    %6823 = vst.msk [vmem:[#allocation3 + $0x2] sm:$0x1] %vm6630, %v6821
    %v6824 = vld [vmem:[#allocation2 + $0x12] sm:$0x1]
    %6826 = vrot.lane.b32.xlu0 %v6824, 96
    %v6827 = vpop.permute.xlu0 %6826
    %6829 = vst.msk [vmem:[#allocation3 + $0x2] sm:$0x1] %vm6637, %v6827
    %6830 = vst.msk [vmem:[#allocation3 + $0xa] sm:$0x1] %vm6639, %v6827
    %v6831 = vld [vmem:[#allocation2 + $0x13] sm:$0x1]
    %6833 = vrot.lane.b32.xlu0 %v6831, 16
    %v6834 = vpop.permute.xlu0 %6833
    %6836 = vst.msk [vmem:[#allocation3 + $0xa] sm:$0x1] %vm6646, %v6834
    %v6837 = vld [vmem:[#allocation2 + $0x14] sm:$0x1]
    %6839 = vrot.lane.b32.xlu0 %v6837, 64
    %v6840 = vpop.permute.xlu0 %6839
    %6842 = vst.msk [vmem:[#allocation3 + $0xa] sm:$0x1] %vm6653, %v6840
    %v6843 = vld [vmem:[#allocation2 + $0x15] sm:$0x1]
    %6845 = vrot.lane.b32.xlu0 %v6843, 112
    %v6846 = vpop.permute.xlu0 %6845
    %6848 = vst.msk [vmem:[#allocation3 + $0xa] sm:$0x1] %vm6660, %v6846
    %6849 = vst.msk [vmem:[#allocation3 + $0x12] sm:$0x1] %vm6662, %v6846
    %v6850 = vld [vmem:[#allocation2 + $0x16] sm:$0x1]
    %6852 = vrot.lane.b32.xlu0 %v6850, 32
    %v6853 = vpop.permute.xlu0 %6852
    %6855 = vst.msk [vmem:[#allocation3 + $0x12] sm:$0x1] %vm6669, %v6853
    %v6856 = vld [vmem:[#allocation2 + $0x17] sm:$0x1]
    %6858 = vrot.lane.b32.xlu0 %v6856, 80
    %v6859 = vpop.permute.xlu0 %6858
    %6861 = vst.msk [vmem:[#allocation3 + $0x12] sm:$0x1] %vm6676, %v6859
    %v6862 = vld [vmem:[#allocation2 + $0x18] sm:$0x1]
    %6863 = vst.msk [vmem:[#allocation3 + $0x1a] sm:$0x1] %vm6623, %v6862
    %v6864 = vld [vmem:[#allocation2 + $0x19] sm:$0x1]
    %6866 = vrot.lane.b32.xlu0 %v6864, 48
    %v6867 = vpop.permute.xlu0 %6866
    %6869 = vst.msk [vmem:[#allocation3 + $0x1a] sm:$0x1] %vm6630, %v6867
    %v6870 = vld [vmem:[#allocation2 + $0x1a] sm:$0x1]
    %6872 = vrot.lane.b32.xlu0 %v6870, 96
    %v6873 = vpop.permute.xlu0 %6872
    %6875 = vst.msk [vmem:[#allocation3 + $0x1a] sm:$0x1] %vm6637, %v6873
    %6876 = vst.msk [vmem:[#allocation3 + $0x22] sm:$0x1] %vm6639, %v6873
    %v6877 = vld [vmem:[#allocation2 + $0x1b] sm:$0x1]
    %6879 = vrot.lane.b32.xlu0 %v6877, 16
    %v6880 = vpop.permute.xlu0 %6879
    %6882 = vst.msk [vmem:[#allocation3 + $0x22] sm:$0x1] %vm6646, %v6880
    %v6883 = vld [vmem:[#allocation2 + $0x1c] sm:$0x1]
    %6885 = vrot.lane.b32.xlu0 %v6883, 64
    %v6886 = vpop.permute.xlu0 %6885
    %6888 = vst.msk [vmem:[#allocation3 + $0x22] sm:$0x1] %vm6653, %v6886
    %v6889 = vld [vmem:[#allocation2 + $0x1d] sm:$0x1]
    %6891 = vrot.lane.b32.xlu0 %v6889, 112
    %v6892 = vpop.permute.xlu0 %6891
    %6894 = vst.msk [vmem:[#allocation3 + $0x22] sm:$0x1] %vm6660, %v6892
    %6895 = vst.msk [vmem:[#allocation3 + $0x2a] sm:$0x1] %vm6662, %v6892
    %v6896 = vld [vmem:[#allocation2 + $0x1e] sm:$0x1]
    %6898 = vrot.lane.b32.xlu0 %v6896, 32
    %v6899 = vpop.permute.xlu0 %6898
    %6901 = vst.msk [vmem:[#allocation3 + $0x2a] sm:$0x1] %vm6669, %v6899
    %v6902 = vld [vmem:[#allocation2 + $0x1f] sm:$0x1]
    %6904 = vrot.lane.b32.xlu0 %v6902, 80
    %v6905 = vpop.permute.xlu0 %6904
    %6907 = vst.msk [vmem:[#allocation3 + $0x2a] sm:$0x1] %vm6676, %v6905
    %v6908 = vld [vmem:[#allocation2 + $0x10] sm:$0x1]
    %6910 = vrot.lane.b32.xlu0 %v6908, 80
    %v6911 = vpop.permute.xlu0 %6910
    %6913 = vst.msk [vmem:[#allocation3 + $0x3] sm:$0x1] %vm6623, %v6911
    %v6914 = vld [vmem:[#allocation2 + $0x11] sm:$0x1]
    %6915 = vst.msk [vmem:[#allocation3 + $0x3] sm:$0x1] %vm6630, %v6914
    %v6916 = vld [vmem:[#allocation2 + $0x12] sm:$0x1]
    %6918 = vrot.lane.b32.xlu0 %v6916, 48
    %v6919 = vpop.permute.xlu0 %6918
    %6921 = vst.msk [vmem:[#allocation3 + $0x3] sm:$0x1] %vm6637, %v6919
    %6922 = vst.msk [vmem:[#allocation3 + $0xb] sm:$0x1] %vm6639, %v6919
    %v6923 = vld [vmem:[#allocation2 + $0x13] sm:$0x1]
    %6925 = vrot.lane.b32.xlu0 %v6923, 96
    %v6926 = vpop.permute.xlu0 %6925
    %6928 = vst.msk [vmem:[#allocation3 + $0xb] sm:$0x1] %vm6646, %v6926
    %v6929 = vld [vmem:[#allocation2 + $0x14] sm:$0x1]
    %6931 = vrot.lane.b32.xlu0 %v6929, 16
    %v6932 = vpop.permute.xlu0 %6931
    %6934 = vst.msk [vmem:[#allocation3 + $0xb] sm:$0x1] %vm6653, %v6932
    %v6935 = vld [vmem:[#allocation2 + $0x15] sm:$0x1]
    %6937 = vrot.lane.b32.xlu0 %v6935, 64
    %v6938 = vpop.permute.xlu0 %6937
    %6940 = vst.msk [vmem:[#allocation3 + $0xb] sm:$0x1] %vm6660, %v6938
    %6941 = vst.msk [vmem:[#allocation3 + $0x13] sm:$0x1] %vm6662, %v6938
    %v6942 = vld [vmem:[#allocation2 + $0x16] sm:$0x1]
    %6944 = vrot.lane.b32.xlu0 %v6942, 112
    %v6945 = vpop.permute.xlu0 %6944
    %6947 = vst.msk [vmem:[#allocation3 + $0x13] sm:$0x1] %vm6669, %v6945
    %v6948 = vld [vmem:[#allocation2 + $0x17] sm:$0x1]
    %6950 = vrot.lane.b32.xlu0 %v6948, 32
    %v6951 = vpop.permute.xlu0 %6950
    %6953 = vst.msk [vmem:[#allocation3 + $0x13] sm:$0x1] %vm6676, %v6951
    %v6954 = vld [vmem:[#allocation2 + $0x18] sm:$0x1]
    %6956 = vrot.lane.b32.xlu0 %v6954, 80
    %v6957 = vpop.permute.xlu0 %6956
    %6959 = vst.msk [vmem:[#allocation3 + $0x1b] sm:$0x1] %vm6623, %v6957
    %v6960 = vld [vmem:[#allocation2 + $0x19] sm:$0x1]
    %6961 = vst.msk [vmem:[#allocation3 + $0x1b] sm:$0x1] %vm6630, %v6960
    %v6962 = vld [vmem:[#allocation2 + $0x1a] sm:$0x1]
    %6964 = vrot.lane.b32.xlu0 %v6962, 48
    %v6965 = vpop.permute.xlu0 %6964
    %6967 = vst.msk [vmem:[#allocation3 + $0x1b] sm:$0x1] %vm6637, %v6965
    %6968 = vst.msk [vmem:[#allocation3 + $0x23] sm:$0x1] %vm6639, %v6965
    %v6969 = vld [vmem:[#allocation2 + $0x1b] sm:$0x1]
    %6971 = vrot.lane.b32.xlu0 %v6969, 96
    %v6972 = vpop.permute.xlu0 %6971
    %6974 = vst.msk [vmem:[#allocation3 + $0x23] sm:$0x1] %vm6646, %v6972
    %v6975 = vld [vmem:[#allocation2 + $0x1c] sm:$0x1]
    %6977 = vrot.lane.b32.xlu0 %v6975, 16
    %v6978 = vpop.permute.xlu0 %6977
    %6980 = vst.msk [vmem:[#allocation3 + $0x23] sm:$0x1] %vm6653, %v6978
    %v6981 = vld [vmem:[#allocation2 + $0x1d] sm:$0x1]
    %6983 = vrot.lane.b32.xlu0 %v6981, 64
    %v6984 = vpop.permute.xlu0 %6983
    %6986 = vst.msk [vmem:[#allocation3 + $0x23] sm:$0x1] %vm6660, %v6984
    %6987 = vst.msk [vmem:[#allocation3 + $0x2b] sm:$0x1] %vm6662, %v6984
    %v6988 = vld [vmem:[#allocation2 + $0x1e] sm:$0x1]
    %6990 = vrot.lane.b32.xlu0 %v6988, 112
    %v6991 = vpop.permute.xlu0 %6990
    %6993 = vst.msk [vmem:[#allocation3 + $0x2b] sm:$0x1] %vm6669, %v6991
    %v6994 = vld [vmem:[#allocation2 + $0x1f] sm:$0x1]
    %6996 = vrot.lane.b32.xlu0 %v6994, 32
    %v6997 = vpop.permute.xlu0 %6996
    %6999 = vst.msk [vmem:[#allocation3 + $0x2b] sm:$0x1] %vm6676, %v6997
    %v7000 = vld [vmem:[#allocation2 + $0x20] sm:$0x1]
    %7001 = vst.msk [vmem:[#allocation3 + $0x4] sm:$0x1] %vm6623, %v7000
    %v7002 = vld [vmem:[#allocation2 + $0x21] sm:$0x1]
    %7004 = vrot.lane.b32.xlu0 %v7002, 48
    %v7005 = vpop.permute.xlu0 %7004
    %7007 = vst.msk [vmem:[#allocation3 + $0x4] sm:$0x1] %vm6630, %v7005
    %v7008 = vld [vmem:[#allocation2 + $0x22] sm:$0x1]
    %7010 = vrot.lane.b32.xlu0 %v7008, 96
    %v7011 = vpop.permute.xlu0 %7010
    %7013 = vst.msk [vmem:[#allocation3 + $0x4] sm:$0x1] %vm6637, %v7011
    %7014 = vst.msk [vmem:[#allocation3 + $0xc] sm:$0x1] %vm6639, %v7011
    %v7015 = vld [vmem:[#allocation2 + $0x23] sm:$0x1]
    %7017 = vrot.lane.b32.xlu0 %v7015, 16
    %v7018 = vpop.permute.xlu0 %7017
    %7020 = vst.msk [vmem:[#allocation3 + $0xc] sm:$0x1] %vm6646, %v7018
    %v7021 = vld [vmem:[#allocation2 + $0x24] sm:$0x1]
    %7023 = vrot.lane.b32.xlu0 %v7021, 64
    %v7024 = vpop.permute.xlu0 %7023
    %7026 = vst.msk [vmem:[#allocation3 + $0xc] sm:$0x1] %vm6653, %v7024
    %v7027 = vld [vmem:[#allocation2 + $0x25] sm:$0x1]
    %7029 = vrot.lane.b32.xlu0 %v7027, 112
    %v7030 = vpop.permute.xlu0 %7029
    %7032 = vst.msk [vmem:[#allocation3 + $0xc] sm:$0x1] %vm6660, %v7030
    %7033 = vst.msk [vmem:[#allocation3 + $0x14] sm:$0x1] %vm6662, %v7030
    %v7034 = vld [vmem:[#allocation2 + $0x26] sm:$0x1]
    %7036 = vrot.lane.b32.xlu0 %v7034, 32
    %v7037 = vpop.permute.xlu0 %7036
    %7039 = vst.msk [vmem:[#allocation3 + $0x14] sm:$0x1] %vm6669, %v7037
    %v7040 = vld [vmem:[#allocation2 + $0x27] sm:$0x1]
    %7042 = vrot.lane.b32.xlu0 %v7040, 80
    %v7043 = vpop.permute.xlu0 %7042
    %7045 = vst.msk [vmem:[#allocation3 + $0x14] sm:$0x1] %vm6676, %v7043
    %v7046 = vld [vmem:[#allocation2 + $0x28] sm:$0x1]
    %7047 = vst.msk [vmem:[#allocation3 + $0x1c] sm:$0x1] %vm6623, %v7046
    %v7048 = vld [vmem:[#allocation2 + $0x29] sm:$0x1]
    %7050 = vrot.lane.b32.xlu0 %v7048, 48
    %v7051 = vpop.permute.xlu0 %7050
    %7053 = vst.msk [vmem:[#allocation3 + $0x1c] sm:$0x1] %vm6630, %v7051
    %v7054 = vld [vmem:[#allocation2 + $0x2a] sm:$0x1]
    %7056 = vrot.lane.b32.xlu0 %v7054, 96
    %v7057 = vpop.permute.xlu0 %7056
    %7059 = vst.msk [vmem:[#allocation3 + $0x1c] sm:$0x1] %vm6637, %v7057
    %7060 = vst.msk [vmem:[#allocation3 + $0x24] sm:$0x1] %vm6639, %v7057
    %v7061 = vld [vmem:[#allocation2 + $0x2b] sm:$0x1]
    %7063 = vrot.lane.b32.xlu0 %v7061, 16
    %v7064 = vpop.permute.xlu0 %7063
    %7066 = vst.msk [vmem:[#allocation3 + $0x24] sm:$0x1] %vm6646, %v7064
    %v7067 = vld [vmem:[#allocation2 + $0x2c] sm:$0x1]
    %7069 = vrot.lane.b32.xlu0 %v7067, 64
    %v7070 = vpop.permute.xlu0 %7069
    %7072 = vst.msk [vmem:[#allocation3 + $0x24] sm:$0x1] %vm6653, %v7070
    %v7073 = vld [vmem:[#allocation2 + $0x2d] sm:$0x1]
    %7075 = vrot.lane.b32.xlu0 %v7073, 112
    %v7076 = vpop.permute.xlu0 %7075
    %7078 = vst.msk [vmem:[#allocation3 + $0x24] sm:$0x1] %vm6660, %v7076
    %7079 = vst.msk [vmem:[#allocation3 + $0x2c] sm:$0x1] %vm6662, %v7076
    %v7080 = vld [vmem:[#allocation2 + $0x2e] sm:$0x1]
    %7082 = vrot.lane.b32.xlu0 %v7080, 32
    %v7083 = vpop.permute.xlu0 %7082
    %7085 = vst.msk [vmem:[#allocation3 + $0x2c] sm:$0x1] %vm6669, %v7083
    %v7086 = vld [vmem:[#allocation2 + $0x2f] sm:$0x1]
    %7088 = vrot.lane.b32.xlu0 %v7086, 80
    %v7089 = vpop.permute.xlu0 %7088
    %7091 = vst.msk [vmem:[#allocation3 + $0x2c] sm:$0x1] %vm6676, %v7089
    %v7092 = vld [vmem:[#allocation2 + $0x20] sm:$0x1]
    %7094 = vrot.lane.b32.xlu0 %v7092, 80
    %v7095 = vpop.permute.xlu0 %7094
    %7097 = vst.msk [vmem:[#allocation3 + $0x5] sm:$0x1] %vm6623, %v7095
    %v7098 = vld [vmem:[#allocation2 + $0x21] sm:$0x1]
    %7099 = vst.msk [vmem:[#allocation3 + $0x5] sm:$0x1] %vm6630, %v7098
    %v7100 = vld [vmem:[#allocation2 + $0x22] sm:$0x1]
    %7102 = vrot.lane.b32.xlu0 %v7100, 48
    %v7103 = vpop.permute.xlu0 %7102
    %7105 = vst.msk [vmem:[#allocation3 + $0x5] sm:$0x1] %vm6637, %v7103
    %7106 = vst.msk [vmem:[#allocation3 + $0xd] sm:$0x1] %vm6639, %v7103
    %v7107 = vld [vmem:[#allocation2 + $0x23] sm:$0x1]
    %7109 = vrot.lane.b32.xlu0 %v7107, 96
    %v7110 = vpop.permute.xlu0 %7109
    %7112 = vst.msk [vmem:[#allocation3 + $0xd] sm:$0x1] %vm6646, %v7110
    %v7113 = vld [vmem:[#allocation2 + $0x24] sm:$0x1]
    %7115 = vrot.lane.b32.xlu0 %v7113, 16
    %v7116 = vpop.permute.xlu0 %7115
    %7118 = vst.msk [vmem:[#allocation3 + $0xd] sm:$0x1] %vm6653, %v7116
    %v7119 = vld [vmem:[#allocation2 + $0x25] sm:$0x1]
    %7121 = vrot.lane.b32.xlu0 %v7119, 64
    %v7122 = vpop.permute.xlu0 %7121
    %7124 = vst.msk [vmem:[#allocation3 + $0xd] sm:$0x1] %vm6660, %v7122
    %7125 = vst.msk [vmem:[#allocation3 + $0x15] sm:$0x1] %vm6662, %v7122
    %v7126 = vld [vmem:[#allocation2 + $0x26] sm:$0x1]
    %7128 = vrot.lane.b32.xlu0 %v7126, 112
    %v7129 = vpop.permute.xlu0 %7128
    %7131 = vst.msk [vmem:[#allocation3 + $0x15] sm:$0x1] %vm6669, %v7129
    %v7132 = vld [vmem:[#allocation2 + $0x27] sm:$0x1]
    %7134 = vrot.lane.b32.xlu0 %v7132, 32
    %v7135 = vpop.permute.xlu0 %7134
    %7137 = vst.msk [vmem:[#allocation3 + $0x15] sm:$0x1] %vm6676, %v7135
    %v7138 = vld [vmem:[#allocation2 + $0x28] sm:$0x1]
    %7140 = vrot.lane.b32.xlu0 %v7138, 80
    %v7141 = vpop.permute.xlu0 %7140
    %7143 = vst.msk [vmem:[#allocation3 + $0x1d] sm:$0x1] %vm6623, %v7141
    %v7144 = vld [vmem:[#allocation2 + $0x29] sm:$0x1]
    %7145 = vst.msk [vmem:[#allocation3 + $0x1d] sm:$0x1] %vm6630, %v7144
    %v7146 = vld [vmem:[#allocation2 + $0x2a] sm:$0x1]
    %7148 = vrot.lane.b32.xlu0 %v7146, 48
    %v7149 = vpop.permute.xlu0 %7148
    %7151 = vst.msk [vmem:[#allocation3 + $0x1d] sm:$0x1] %vm6637, %v7149
    %7152 = vst.msk [vmem:[#allocation3 + $0x25] sm:$0x1] %vm6639, %v7149
    %v7153 = vld [vmem:[#allocation2 + $0x2b] sm:$0x1]
    %7155 = vrot.lane.b32.xlu0 %v7153, 96
    %v7156 = vpop.permute.xlu0 %7155
    %7158 = vst.msk [vmem:[#allocation3 + $0x25] sm:$0x1] %vm6646, %v7156
    %v7159 = vld [vmem:[#allocation2 + $0x2c] sm:$0x1]
    %7161 = vrot.lane.b32.xlu0 %v7159, 16
    %v7162 = vpop.permute.xlu0 %7161
    %7164 = vst.msk [vmem:[#allocation3 + $0x25] sm:$0x1] %vm6653, %v7162
    %v7165 = vld [vmem:[#allocation2 + $0x2d] sm:$0x1]
    %7167 = vrot.lane.b32.xlu0 %v7165, 64
    %v7168 = vpop.permute.xlu0 %7167
    %7170 = vst.msk [vmem:[#allocation3 + $0x25] sm:$0x1] %vm6660, %v7168
    %7171 = vst.msk [vmem:[#allocation3 + $0x2d] sm:$0x1] %vm6662, %v7168
    %v7172 = vld [vmem:[#allocation2 + $0x2e] sm:$0x1]
    %7174 = vrot.lane.b32.xlu0 %v7172, 112
    %v7175 = vpop.permute.xlu0 %7174
    %7177 = vst.msk [vmem:[#allocation3 + $0x2d] sm:$0x1] %vm6669, %v7175
    %v7178 = vld [vmem:[#allocation2 + $0x2f] sm:$0x1]
    %7180 = vrot.lane.b32.xlu0 %v7178, 32
    %v7181 = vpop.permute.xlu0 %7180
    %7183 = vst.msk [vmem:[#allocation3 + $0x2d] sm:$0x1] %vm6676, %v7181
    %v7184 = vld [vmem:[#allocation2 + $0x30] sm:$0x1]
    %7185 = vst.msk [vmem:[#allocation3 + $0x6] sm:$0x1] %vm6623, %v7184
    %v7186 = vld [vmem:[#allocation2 + $0x31] sm:$0x1]
    %7188 = vrot.lane.b32.xlu0 %v7186, 48
    %v7189 = vpop.permute.xlu0 %7188
    %7191 = vst.msk [vmem:[#allocation3 + $0x6] sm:$0x1] %vm6630, %v7189
    %v7192 = vld [vmem:[#allocation2 + $0x32] sm:$0x1]
    %7194 = vrot.lane.b32.xlu0 %v7192, 96
    %v7195 = vpop.permute.xlu0 %7194
    %7197 = vst.msk [vmem:[#allocation3 + $0x6] sm:$0x1] %vm6637, %v7195
    %7198 = vst.msk [vmem:[#allocation3 + $0xe] sm:$0x1] %vm6639, %v7195
    %v7199 = vld [vmem:[#allocation2 + $0x33] sm:$0x1]
    %7201 = vrot.lane.b32.xlu0 %v7199, 16
    %v7202 = vpop.permute.xlu0 %7201
    %7204 = vst.msk [vmem:[#allocation3 + $0xe] sm:$0x1] %vm6646, %v7202
    %v7205 = vld [vmem:[#allocation2 + $0x34] sm:$0x1]
    %7207 = vrot.lane.b32.xlu0 %v7205, 64
    %v7208 = vpop.permute.xlu0 %7207
    %7210 = vst.msk [vmem:[#allocation3 + $0xe] sm:$0x1] %vm6653, %v7208
    %v7211 = vld [vmem:[#allocation2 + $0x35] sm:$0x1]
    %7213 = vrot.lane.b32.xlu0 %v7211, 112
    %v7214 = vpop.permute.xlu0 %7213
    %7216 = vst.msk [vmem:[#allocation3 + $0xe] sm:$0x1] %vm6660, %v7214
    %7217 = vst.msk [vmem:[#allocation3 + $0x16] sm:$0x1] %vm6662, %v7214
    %v7218 = vld [vmem:[#allocation2 + $0x36] sm:$0x1]
    %7220 = vrot.lane.b32.xlu0 %v7218, 32
    %v7221 = vpop.permute.xlu0 %7220
    %7223 = vst.msk [vmem:[#allocation3 + $0x16] sm:$0x1] %vm6669, %v7221
    %v7224 = vld [vmem:[#allocation2 + $0x37] sm:$0x1]
    %7226 = vrot.lane.b32.xlu0 %v7224, 80
    %v7227 = vpop.permute.xlu0 %7226
    %7229 = vst.msk [vmem:[#allocation3 + $0x16] sm:$0x1] %vm6676, %v7227
    %v7230 = vld [vmem:[#allocation2 + $0x38] sm:$0x1]
    %7231 = vst.msk [vmem:[#allocation3 + $0x1e] sm:$0x1] %vm6623, %v7230
    %v7232 = vld [vmem:[#allocation2 + $0x39] sm:$0x1]
    %7234 = vrot.lane.b32.xlu0 %v7232, 48
    %v7235 = vpop.permute.xlu0 %7234
    %7237 = vst.msk [vmem:[#allocation3 + $0x1e] sm:$0x1] %vm6630, %v7235
    %v7238 = vld [vmem:[#allocation2 + $0x3a] sm:$0x1]
    %7240 = vrot.lane.b32.xlu0 %v7238, 96
    %v7241 = vpop.permute.xlu0 %7240
    %7243 = vst.msk [vmem:[#allocation3 + $0x1e] sm:$0x1] %vm6637, %v7241
    %7244 = vst.msk [vmem:[#allocation3 + $0x26] sm:$0x1] %vm6639, %v7241
    %v7245 = vld [vmem:[#allocation2 + $0x3b] sm:$0x1]
    %7247 = vrot.lane.b32.xlu0 %v7245, 16
    %v7248 = vpop.permute.xlu0 %7247
    %7250 = vst.msk [vmem:[#allocation3 + $0x26] sm:$0x1] %vm6646, %v7248
    %v7251 = vld [vmem:[#allocation2 + $0x3c] sm:$0x1]
    %7253 = vrot.lane.b32.xlu0 %v7251, 64
    %v7254 = vpop.permute.xlu0 %7253
    %7256 = vst.msk [vmem:[#allocation3 + $0x26] sm:$0x1] %vm6653, %v7254
    %v7257 = vld [vmem:[#allocation2 + $0x3d] sm:$0x1]
    %7259 = vrot.lane.b32.xlu0 %v7257, 112
    %v7260 = vpop.permute.xlu0 %7259
    %7262 = vst.msk [vmem:[#allocation3 + $0x26] sm:$0x1] %vm6660, %v7260
    %7263 = vst.msk [vmem:[#allocation3 + $0x2e] sm:$0x1] %vm6662, %v7260
    %v7264 = vld [vmem:[#allocation2 + $0x3e] sm:$0x1]
    %7266 = vrot.lane.b32.xlu0 %v7264, 32
    %v7267 = vpop.permute.xlu0 %7266
    %7269 = vst.msk [vmem:[#allocation3 + $0x2e] sm:$0x1] %vm6669, %v7267
    %v7270 = vld [vmem:[#allocation2 + $0x3f] sm:$0x1]
    %7272 = vrot.lane.b32.xlu0 %v7270, 80
    %v7273 = vpop.permute.xlu0 %7272
    %7275 = vst.msk [vmem:[#allocation3 + $0x2e] sm:$0x1] %vm6676, %v7273
    %v7276 = vld [vmem:[#allocation2 + $0x30] sm:$0x1]
    %7278 = vrot.lane.b32.xlu0 %v7276, 80
    %v7279 = vpop.permute.xlu0 %7278
    %7281 = vst.msk [vmem:[#allocation3 + $0x7] sm:$0x1] %vm6623, %v7279
    %v7282 = vld [vmem:[#allocation2 + $0x31] sm:$0x1]
    %7283 = vst.msk [vmem:[#allocation3 + $0x7] sm:$0x1] %vm6630, %v7282
    %v7284 = vld [vmem:[#allocation2 + $0x32] sm:$0x1]
    %7286 = vrot.lane.b32.xlu0 %v7284, 48
    %v7287 = vpop.permute.xlu0 %7286
    %7289 = vst.msk [vmem:[#allocation3 + $0x7] sm:$0x1] %vm6637, %v7287
    %7290 = vst.msk [vmem:[#allocation3 + $0xf] sm:$0x1] %vm6639, %v7287
    %v7291 = vld [vmem:[#allocation2 + $0x33] sm:$0x1]
    %7293 = vrot.lane.b32.xlu0 %v7291, 96
    %v7294 = vpop.permute.xlu0 %7293
    %7296 = vst.msk [vmem:[#allocation3 + $0xf] sm:$0x1] %vm6646, %v7294
    %v7297 = vld [vmem:[#allocation2 + $0x34] sm:$0x1]
    %7299 = vrot.lane.b32.xlu0 %v7297, 16
    %v7300 = vpop.permute.xlu0 %7299
    %7302 = vst.msk [vmem:[#allocation3 + $0xf] sm:$0x1] %vm6653, %v7300
    %v7303 = vld [vmem:[#allocation2 + $0x35] sm:$0x1]
    %7305 = vrot.lane.b32.xlu0 %v7303, 64
    %v7306 = vpop.permute.xlu0 %7305
    %7308 = vst.msk [vmem:[#allocation3 + $0xf] sm:$0x1] %vm6660, %v7306
    %7309 = vst.msk [vmem:[#allocation3 + $0x17] sm:$0x1] %vm6662, %v7306
    %v7310 = vld [vmem:[#allocation2 + $0x36] sm:$0x1]
    %7312 = vrot.lane.b32.xlu0 %v7310, 112
    %v7313 = vpop.permute.xlu0 %7312
    %7315 = vst.msk [vmem:[#allocation3 + $0x17] sm:$0x1] %vm6669, %v7313
    %v7316 = vld [vmem:[#allocation2 + $0x37] sm:$0x1]
    %7318 = vrot.lane.b32.xlu0 %v7316, 32
    %v7319 = vpop.permute.xlu0 %7318
    %7321 = vst.msk [vmem:[#allocation3 + $0x17] sm:$0x1] %vm6676, %v7319
    %v7322 = vld [vmem:[#allocation2 + $0x38] sm:$0x1]
    %7324 = vrot.lane.b32.xlu0 %v7322, 80
    %v7325 = vpop.permute.xlu0 %7324
    %7327 = vst.msk [vmem:[#allocation3 + $0x1f] sm:$0x1] %vm6623, %v7325
    %v7328 = vld [vmem:[#allocation2 + $0x39] sm:$0x1]
    %7329 = vst.msk [vmem:[#allocation3 + $0x1f] sm:$0x1] %vm6630, %v7328
    %v7330 = vld [vmem:[#allocation2 + $0x3a] sm:$0x1]
    %7332 = vrot.lane.b32.xlu0 %v7330, 48
    %v7333 = vpop.permute.xlu0 %7332
    %7335 = vst.msk [vmem:[#allocation3 + $0x1f] sm:$0x1] %vm6637, %v7333
    %7336 = vst.msk [vmem:[#allocation3 + $0x27] sm:$0x1] %vm6639, %v7333
    %v7337 = vld [vmem:[#allocation2 + $0x3b] sm:$0x1]
    %7339 = vrot.lane.b32.xlu0 %v7337, 96
    %v7340 = vpop.permute.xlu0 %7339
    %7342 = vst.msk [vmem:[#allocation3 + $0x27] sm:$0x1] %vm6646, %v7340
    %v7343 = vld [vmem:[#allocation2 + $0x3c] sm:$0x1]
    %7345 = vrot.lane.b32.xlu0 %v7343, 16
    %v7346 = vpop.permute.xlu0 %7345
    %7348 = vst.msk [vmem:[#allocation3 + $0x27] sm:$0x1] %vm6653, %v7346
    %v7349 = vld [vmem:[#allocation2 + $0x3d] sm:$0x1]
    %7351 = vrot.lane.b32.xlu0 %v7349, 64
    %v7352 = vpop.permute.xlu0 %7351
    %7354 = vst.msk [vmem:[#allocation3 + $0x27] sm:$0x1] %vm6660, %v7352
    %7355 = vst.msk [vmem:[#allocation3 + $0x2f] sm:$0x1] %vm6662, %v7352
    %v7356 = vld [vmem:[#allocation2 + $0x3e] sm:$0x1]
    %7358 = vrot.lane.b32.xlu0 %v7356, 112
    %v7359 = vpop.permute.xlu0 %7358
    %7361 = vst.msk [vmem:[#allocation3 + $0x2f] sm:$0x1] %vm6669, %v7359
    %v7362 = vld [vmem:[#allocation2 + $0x3f] sm:$0x1]
    %7364 = vrot.lane.b32.xlu0 %v7362, 32
    %v7365 = vpop.permute.xlu0 %7364
    %7367 = vst.msk [vmem:[#allocation3 + $0x2f] sm:$0x1] %vm6676, %v7365
    %v7368 = vld [vmem:[#allocation3] sm:$0xff]
    %v7369 = vld [vmem:[#allocation3 + $0x8] sm:$0xff]
    %v7370 = vld [vmem:[#allocation3 + $0x10] sm:$0xff]
    %v7371 = vld [vmem:[#allocation3 + $0x18] sm:$0xff]
    %v7372 = vld [vmem:[#allocation3 + $0x20] sm:$0xff]
    %v7373 = vld [vmem:[#allocation3 + $0x28] sm:$0xff]
    %v7374 = vpack.c.bf16 %v7368, %v7368
    %v7375 = vpack.c.bf16 %v7369, %v7369
    %v7376 = vpack.c.bf16 %v7370, %v7370
    %v7377 = vpack.c.bf16 %v7371, %v7371
    %v7378 = vpack.c.bf16 %v7372, %v7372
    %v7379 = vpack.c.bf16 %v7373, %v7373
    %v7380 = vld [vmem:[%s19] sm:$0xf]
    %v7381 = vld [vmem:[%s19 + $0x4] sm:$0xf]
    %v7382 = vld [vmem:[%s19 + $0x8] sm:$0xf]
    %v7383 = vld [vmem:[%s19 + $0xc] sm:$0xf]
    %v7384 = vld [vmem:[%s19 + $0x10] sm:$0xf]
    %v7385 = vld [vmem:[%s19 + $0x14] sm:$0xf]
    %v7386 = vld [vmem:[%s19 + $0x18] sm:$0xf]
    %v7387 = vld [vmem:[%s19 + $0x1c] sm:$0xf]
    %v7388 = vld [vmem:[%s19 + $0x20] sm:$0xf]
    %v7389 = vld [vmem:[%s19 + $0x24] sm:$0xf]
    %v7390 = vld [vmem:[%s19 + $0x28] sm:$0xf]
    %v7391 = vld [vmem:[%s19 + $0x2c] sm:$0xf]
    %v7392 = vld [vmem:[%s19 + $0x30] sm:$0xf]
    %v7393 = vld [vmem:[%s19 + $0x34] sm:$0xf]
    %v7394 = vld [vmem:[%s19 + $0x38] sm:$0xf]
    %v7395 = vld [vmem:[%s19 + $0x3c] sm:$0xf]
    %v7396 = vld [vmem:[%s19 + $0x40] sm:$0xf]
    %v7397 = vld [vmem:[%s19 + $0x44] sm:$0xf]
    %v7398 = vld [vmem:[%s19 + $0x48] sm:$0xf]
    %v7399 = vld [vmem:[%s19 + $0x4c] sm:$0xf]
    %v7400 = vld [vmem:[%s19 + $0x50] sm:$0xf]
    %v7401 = vld [vmem:[%s19 + $0x54] sm:$0xf]
    %v7402 = vld [vmem:[%s19 + $0x58] sm:$0xf]
    %v7403 = vld [vmem:[%s19 + $0x5c] sm:$0xf]
    %v7404 = vld [vmem:[%s19 + $0x60] sm:$0xf]
    %v7405 = vld [vmem:[%s19 + $0x64] sm:$0xf]
    %v7406 = vld [vmem:[%s19 + $0x68] sm:$0xf]
    %v7407 = vld [vmem:[%s19 + $0x6c] sm:$0xf]
    %v7408 = vld [vmem:[%s19 + $0x70] sm:$0xf]
    %v7409 = vld [vmem:[%s19 + $0x74] sm:$0xf]
    %v7410 = vld [vmem:[%s19 + $0x78] sm:$0xf]
    %v7411 = vld [vmem:[%s19 + $0x7c] sm:$0xf]
    %v7412 = vld [vmem:[%s19 + $0x80] sm:$0xf]
    %v7413 = vld [vmem:[%s19 + $0x84] sm:$0xf]
    %v7414 = vld [vmem:[%s19 + $0x88] sm:$0xf]
    %v7415 = vld [vmem:[%s19 + $0x8c] sm:$0xf]
    %v7416 = vld [vmem:[%s19 + $0x90] sm:$0xf]
    %v7417 = vld [vmem:[%s19 + $0x94] sm:$0xf]
    %v7418 = vld [vmem:[%s19 + $0x98] sm:$0xf]
    %v7419 = vld [vmem:[%s19 + $0x9c] sm:$0xf]
    %v7420 = vld [vmem:[%s19 + $0xa0] sm:$0xf]
    %v7421 = vld [vmem:[%s19 + $0xa4] sm:$0xf]
    %v7422 = vld [vmem:[%s19 + $0xa8] sm:$0xf]
    %v7423 = vld [vmem:[%s19 + $0xac] sm:$0xf]
    %v7424 = vld [vmem:[%s19 + $0xb0] sm:$0xf]
    %v7425 = vld [vmem:[%s19 + $0xb4] sm:$0xf]
    %v7426 = vld [vmem:[%s19 + $0xb8] sm:$0xf]
    %v7427 = vld [vmem:[%s19 + $0xbc] sm:$0xf]
    %v7428 = vld [vmem:[%s19 + $0xc0] sm:$0xf]
    %v7429 = vld [vmem:[%s19 + $0xc4] sm:$0xf]
    %v7430 = vld [vmem:[%s19 + $0xc8] sm:$0xf]
    %v7431 = vld [vmem:[%s19 + $0xcc] sm:$0xf]
    %v7432 = vld [vmem:[%s19 + $0xd0] sm:$0xf]
    %v7433 = vld [vmem:[%s19 + $0xd4] sm:$0xf]
    %v7434 = vld [vmem:[%s19 + $0xd8] sm:$0xf]
    %v7435 = vld [vmem:[%s19 + $0xdc] sm:$0xf]
    %v7436 = vld [vmem:[%s19 + $0xe0] sm:$0xf]
    %v7437 = vld [vmem:[%s19 + $0xe4] sm:$0xf]
    %v7438 = vld [vmem:[%s19 + $0xe8] sm:$0xf]
    %v7439 = vld [vmem:[%s19 + $0xec] sm:$0xf]
    %v7440 = vld [vmem:[%s19 + $0xf0] sm:$0xf]
    %v7441 = vld [vmem:[%s19 + $0xf4] sm:$0xf]
    %v7442 = vld [vmem:[%s19 + $0xf8] sm:$0xf]
    %v7443 = vld [vmem:[%s19 + $0xfc] sm:$0xf]
    %v7444 = vld [vmem:[%s19 + $0x100] sm:$0xf]
    %v7445 = vld [vmem:[%s19 + $0x104] sm:$0xf]
    %v7446 = vld [vmem:[%s19 + $0x108] sm:$0xf]
    %v7447 = vld [vmem:[%s19 + $0x10c] sm:$0xf]
    %v7448 = vld [vmem:[%s19 + $0x110] sm:$0xf]
    %v7449 = vld [vmem:[%s19 + $0x114] sm:$0xf]
    %v7450 = vld [vmem:[%s19 + $0x118] sm:$0xf]
    %v7451 = vld [vmem:[%s19 + $0x11c] sm:$0xf]
    %v7452 = vld [vmem:[%s19 + $0x120] sm:$0xf]
    %v7453 = vld [vmem:[%s19 + $0x124] sm:$0xf]
    %v7454 = vld [vmem:[%s19 + $0x128] sm:$0xf]
    %v7455 = vld [vmem:[%s19 + $0x12c] sm:$0xf]
    %v7456 = vld [vmem:[%s19 + $0x130] sm:$0xf]
    %v7457 = vld [vmem:[%s19 + $0x134] sm:$0xf]
    %v7458 = vld [vmem:[%s19 + $0x138] sm:$0xf]
    %v7459 = vld [vmem:[%s19 + $0x13c] sm:$0xf]
    %v7460 = vld [vmem:[%s19 + $0x140] sm:$0xf]
    %v7461 = vld [vmem:[%s19 + $0x144] sm:$0xf]
    %v7462 = vld [vmem:[%s19 + $0x148] sm:$0xf]
    %v7463 = vld [vmem:[%s19 + $0x14c] sm:$0xf]
    %v7464 = vld [vmem:[%s19 + $0x150] sm:$0xf]
    %v7465 = vld [vmem:[%s19 + $0x154] sm:$0xf]
    %v7466 = vld [vmem:[%s19 + $0x158] sm:$0xf]
    %v7467 = vld [vmem:[%s19 + $0x15c] sm:$0xf]
    %v7468 = vld [vmem:[%s19 + $0x160] sm:$0xf]
    %v7469 = vld [vmem:[%s19 + $0x164] sm:$0xf]
    %v7470 = vld [vmem:[%s19 + $0x168] sm:$0xf]
    %v7471 = vld [vmem:[%s19 + $0x16c] sm:$0xf]
    %v7472 = vld [vmem:[%s19 + $0x170] sm:$0xf]
    %v7473 = vld [vmem:[%s19 + $0x174] sm:$0xf]
    %v7474 = vld [vmem:[%s19 + $0x178] sm:$0xf]
    %v7475 = vld [vmem:[%s19 + $0x17c] sm:$0xf]
    %v7476 = vld [vmem:[%s21] sm:$0x1]
    %v7478 = vperm.slane %v7476, 0
    %v7576 = vunpack.c.l.b16 %v7380
    %v7577 = vunpack.c.l.b16 %v7381
    %v7578 = vunpack.c.l.b16 %v7382
    %v7579 = vunpack.c.l.b16 %v7383
    %v7580 = vunpack.c.l.b16 %v7384
    %v7581 = vunpack.c.l.b16 %v7385
    %v7582 = vunpack.c.l.b16 %v7386
    %v7583 = vunpack.c.l.b16 %v7387
    %v7584 = vunpack.c.l.b16 %v7388
    %v7585 = vunpack.c.l.b16 %v7389
    %v7586 = vunpack.c.l.b16 %v7390
    %v7587 = vunpack.c.l.b16 %v7391
    %v7588 = vunpack.c.l.b16 %v7392
    %v7589 = vunpack.c.l.b16 %v7393
    %v7590 = vunpack.c.l.b16 %v7394
    %v7591 = vunpack.c.l.b16 %v7395
    %v7592 = vunpack.c.l.b16 %v7396
    %v7593 = vunpack.c.l.b16 %v7397
    %v7594 = vunpack.c.l.b16 %v7398
    %v7595 = vunpack.c.l.b16 %v7399
    %v7596 = vunpack.c.l.b16 %v7400
    %v7597 = vunpack.c.l.b16 %v7401
    %v7598 = vunpack.c.l.b16 %v7402
    %v7599 = vunpack.c.l.b16 %v7403
    %v7600 = vunpack.c.l.b16 %v7404
    %v7601 = vunpack.c.l.b16 %v7405
    %v7602 = vunpack.c.l.b16 %v7406
    %v7603 = vunpack.c.l.b16 %v7407
    %v7604 = vunpack.c.l.b16 %v7408
    %v7605 = vunpack.c.l.b16 %v7409
    %v7606 = vunpack.c.l.b16 %v7410
    %v7607 = vunpack.c.l.b16 %v7411
    %v7608 = vunpack.c.l.b16 %v7412
    %v7609 = vunpack.c.l.b16 %v7413
    %v7610 = vunpack.c.l.b16 %v7414
    %v7611 = vunpack.c.l.b16 %v7415
    %v7612 = vunpack.c.l.b16 %v7416
    %v7613 = vunpack.c.l.b16 %v7417
    %v7614 = vunpack.c.l.b16 %v7418
    %v7615 = vunpack.c.l.b16 %v7419
    %v7616 = vunpack.c.l.b16 %v7420
    %v7617 = vunpack.c.l.b16 %v7421
    %v7618 = vunpack.c.l.b16 %v7422
    %v7619 = vunpack.c.l.b16 %v7423
    %v7620 = vunpack.c.l.b16 %v7424
    %v7621 = vunpack.c.l.b16 %v7425
    %v7622 = vunpack.c.l.b16 %v7426
    %v7623 = vunpack.c.l.b16 %v7427
    %v7624 = vunpack.c.l.b16 %v7428
    %v7625 = vunpack.c.l.b16 %v7429
    %v7626 = vunpack.c.l.b16 %v7430
    %v7627 = vunpack.c.l.b16 %v7431
    %v7628 = vunpack.c.l.b16 %v7432
    %v7629 = vunpack.c.l.b16 %v7433
    %v7630 = vunpack.c.l.b16 %v7434
    %v7631 = vunpack.c.l.b16 %v7435
    %v7632 = vunpack.c.l.b16 %v7436
    %v7633 = vunpack.c.l.b16 %v7437
    %v7634 = vunpack.c.l.b16 %v7438
    %v7635 = vunpack.c.l.b16 %v7439
    %v7636 = vunpack.c.l.b16 %v7440
    %v7637 = vunpack.c.l.b16 %v7441
    %v7638 = vunpack.c.l.b16 %v7442
    %v7639 = vunpack.c.l.b16 %v7443
    %v7640 = vunpack.c.l.b16 %v7444
    %v7641 = vunpack.c.l.b16 %v7445
    %v7642 = vunpack.c.l.b16 %v7446
    %v7643 = vunpack.c.l.b16 %v7447
    %v7644 = vunpack.c.l.b16 %v7448
    %v7645 = vunpack.c.l.b16 %v7449
    %v7646 = vunpack.c.l.b16 %v7450
    %v7647 = vunpack.c.l.b16 %v7451
    %v7648 = vunpack.c.l.b16 %v7452
    %v7649 = vunpack.c.l.b16 %v7453
    %v7650 = vunpack.c.l.b16 %v7454
    %v7651 = vunpack.c.l.b16 %v7455
    %v7652 = vunpack.c.l.b16 %v7456
    %v7653 = vunpack.c.l.b16 %v7457
    %v7654 = vunpack.c.l.b16 %v7458
    %v7655 = vunpack.c.l.b16 %v7459
    %v7656 = vunpack.c.l.b16 %v7460
    %v7657 = vunpack.c.l.b16 %v7461
    %v7658 = vunpack.c.l.b16 %v7462
    %v7659 = vunpack.c.l.b16 %v7463
    %v7660 = vunpack.c.l.b16 %v7464
    %v7661 = vunpack.c.l.b16 %v7465
    %v7662 = vunpack.c.l.b16 %v7466
    %v7663 = vunpack.c.l.b16 %v7467
    %v7664 = vunpack.c.l.b16 %v7468
    %v7665 = vunpack.c.l.b16 %v7469
    %v7666 = vunpack.c.l.b16 %v7470
    %v7667 = vunpack.c.l.b16 %v7471
    %v7668 = vunpack.c.l.b16 %v7472
    %v7669 = vunpack.c.l.b16 %v7473
    %v7670 = vunpack.c.l.b16 %v7474
    %v7671 = vunpack.c.l.b16 %v7475
    %v7672 = vpack.c.b16 %v7577, %v7576
    %v7673 = vpack.c.b16 %v7579, %v7578
    %v7674 = vpack.c.b16 %v7581, %v7580
    %v7675 = vpack.c.b16 %v7583, %v7582
    %v7676 = vpack.c.b16 %v7585, %v7584
    %v7677 = vpack.c.b16 %v7587, %v7586
    %v7678 = vpack.c.b16 %v7589, %v7588
    %v7679 = vpack.c.b16 %v7591, %v7590
    %v7680 = vpack.c.b16 %v7593, %v7592
    %v7681 = vpack.c.b16 %v7595, %v7594
    %v7682 = vpack.c.b16 %v7597, %v7596
    %v7683 = vpack.c.b16 %v7599, %v7598
    %v7684 = vpack.c.b16 %v7601, %v7600
    %v7685 = vpack.c.b16 %v7603, %v7602
    %v7686 = vpack.c.b16 %v7605, %v7604
    %v7687 = vpack.c.b16 %v7607, %v7606
    %v7688 = vpack.c.b16 %v7609, %v7608
    %v7689 = vpack.c.b16 %v7611, %v7610
    %v7690 = vpack.c.b16 %v7613, %v7612
    %v7691 = vpack.c.b16 %v7615, %v7614
    %v7692 = vpack.c.b16 %v7617, %v7616
    %v7693 = vpack.c.b16 %v7619, %v7618
    %v7694 = vpack.c.b16 %v7621, %v7620
    %v7695 = vpack.c.b16 %v7623, %v7622
    %v7696 = vpack.c.b16 %v7625, %v7624
    %v7697 = vpack.c.b16 %v7627, %v7626
    %v7698 = vpack.c.b16 %v7629, %v7628
    %v7699 = vpack.c.b16 %v7631, %v7630
    %v7700 = vpack.c.b16 %v7633, %v7632
    %v7701 = vpack.c.b16 %v7635, %v7634
    %v7702 = vpack.c.b16 %v7637, %v7636
    %v7703 = vpack.c.b16 %v7639, %v7638
    %v7704 = vpack.c.b16 %v7641, %v7640
    %v7705 = vpack.c.b16 %v7643, %v7642
    %v7706 = vpack.c.b16 %v7645, %v7644
    %v7707 = vpack.c.b16 %v7647, %v7646
    %v7708 = vpack.c.b16 %v7649, %v7648
    %v7709 = vpack.c.b16 %v7651, %v7650
    %v7710 = vpack.c.b16 %v7653, %v7652
    %v7711 = vpack.c.b16 %v7655, %v7654
    %v7712 = vpack.c.b16 %v7657, %v7656
    %v7713 = vpack.c.b16 %v7659, %v7658
    %v7714 = vpack.c.b16 %v7661, %v7660
    %v7715 = vpack.c.b16 %v7663, %v7662
    %v7716 = vpack.c.b16 %v7665, %v7664
    %v7717 = vpack.c.b16 %v7667, %v7666
    %v7718 = vpack.c.b16 %v7669, %v7668
    %v7719 = vpack.c.b16 %v7671, %v7670
    %7768 = vmatpush.bf16.msra.mxu0 %v7679
    %7769 = vmatpush.bf16.msra.mxu0 %v7678
    %7770 = vmatpush.bf16.msra.mxu0 %v7677
    %7771 = vmatpush.bf16.msra.mxu0 %v7676
    %7772 = vmatpush.bf16.msra.mxu0 %v7675
    %7773 = vmatpush.bf16.msra.mxu0 %v7674
    %7774 = vmatpush.bf16.msra.mxu0 %v7673
    %7775 = vmatpush.bf16.msra.mxu0 %v7672
    %7776 = vmatmul.bf16.gmra.mxu0 %v7374
    %v7777 = vpop.f32.mrf.mxu0
    %v7778 = vadd.f32 %v7478, %v7777
    %v7779 = vpop.f32.mrf.mxu0
    %7780 = vdwg.mxu0
    %7781 = vmatpush.bf16.msra.mxu0 %v7687
    %7782 = vmatpush.bf16.msra.mxu0 %v7686
    %7783 = vmatpush.bf16.msra.mxu0 %v7685
    %7784 = vmatpush.bf16.msra.mxu0 %v7684
    %7785 = vmatpush.bf16.msra.mxu0 %v7683
    %7786 = vmatpush.bf16.msra.mxu0 %v7682
    %7787 = vmatpush.bf16.msra.mxu0 %v7681
    %7788 = vmatpush.bf16.msra.mxu0 %v7680
    %7789 = vmatmul.bf16.gmra.mxu0 %v7375
    %v7790 = vpop.f32.mrf.mxu0
    %v7791 = vadd.f32 %v7778, %v7790
    %v7792 = vpop.f32.mrf.mxu0
    %7793 = vdwg.mxu0
    %7794 = vmatpush.bf16.msra.mxu0 %v7695
    %7795 = vmatpush.bf16.msra.mxu0 %v7694
    %7796 = vmatpush.bf16.msra.mxu0 %v7693
    %7797 = vmatpush.bf16.msra.mxu0 %v7692
    %7798 = vmatpush.bf16.msra.mxu0 %v7691
    %7799 = vmatpush.bf16.msra.mxu0 %v7690
    %7800 = vmatpush.bf16.msra.mxu0 %v7689
    %7801 = vmatpush.bf16.msra.mxu0 %v7688
    %7802 = vmatmul.bf16.gmra.mxu0 %v7376
    %v7803 = vpop.f32.mrf.mxu0
    %v7804 = vadd.f32 %v7791, %v7803
    %v7805 = vpop.f32.mrf.mxu0
    %7806 = vdwg.mxu0
    %7807 = vmatpush.bf16.msra.mxu0 %v7703
    %7808 = vmatpush.bf16.msra.mxu0 %v7702
    %7809 = vmatpush.bf16.msra.mxu0 %v7701
    %7810 = vmatpush.bf16.msra.mxu0 %v7700
    %7811 = vmatpush.bf16.msra.mxu0 %v7699
    %7812 = vmatpush.bf16.msra.mxu0 %v7698
    %7813 = vmatpush.bf16.msra.mxu0 %v7697
    %7814 = vmatpush.bf16.msra.mxu0 %v7696
    %7815 = vmatmul.bf16.gmra.mxu0 %v7377
    %v7816 = vpop.f32.mrf.mxu0
    %v7817 = vadd.f32 %v7804, %v7816
    %v7818 = vpop.f32.mrf.mxu0
    %7819 = vdwg.mxu0
    %7820 = vmatpush.bf16.msra.mxu0 %v7711
    %7821 = vmatpush.bf16.msra.mxu0 %v7710
    %7822 = vmatpush.bf16.msra.mxu0 %v7709
    %7823 = vmatpush.bf16.msra.mxu0 %v7708
    %7824 = vmatpush.bf16.msra.mxu0 %v7707
    %7825 = vmatpush.bf16.msra.mxu0 %v7706
    %7826 = vmatpush.bf16.msra.mxu0 %v7705
    %7827 = vmatpush.bf16.msra.mxu0 %v7704
    %7828 = vmatmul.bf16.gmra.mxu0 %v7378
    %v7829 = vpop.f32.mrf.mxu0
    %v7830 = vadd.f32 %v7817, %v7829
    %v7831 = vpop.f32.mrf.mxu0
    %7832 = vdwg.mxu0
    %7833 = vmatpush.bf16.msra.mxu0 %v7719
    %7834 = vmatpush.bf16.msra.mxu0 %v7718
    %7835 = vmatpush.bf16.msra.mxu0 %v7717
    %7836 = vmatpush.bf16.msra.mxu0 %v7716
    %7837 = vmatpush.bf16.msra.mxu0 %v7715
    %7838 = vmatpush.bf16.msra.mxu0 %v7714
    %7839 = vmatpush.bf16.msra.mxu0 %v7713
    %7840 = vmatpush.bf16.msra.mxu0 %v7712
    %7841 = vmatmul.bf16.gmra.mxu0 %v7379
    %v7842 = vpop.f32.mrf.mxu0
    %v7843 = vadd.f32 %v7830, %v7842
    %v7844 = vpop.f32.mrf.mxu0
    %7845 = vdwg.mxu0
    %v7846 = vld [vmem:[%s23] sm:$0x1]
    %v7847 = vld [vmem:[%s25] sm:$0x1]
    %v7848 = vadd.f32 %v7846, %v7847
    %vm7849 = vcmask 516096
    %7850 = vst.msk [vmem:[#allocation4] sm:$0x1] %vm7849, %v7848
    %v7851 = vld [vmem:[%s25 + $0x1] sm:$0xf]
    %v7852 = vadd.f32 %v7843, %v7851
    %vm7853 = vcmask 519168
    %7854 = vst.msk [vmem:[#allocation4 + $0x1] sm:$0xf] %vm7853, %v7852
    %vm7855 = vcmask 518144
    %7856 = vst.msk [vmem:[#allocation4 + $0x5] sm:$0x7] %vm7855, 0.0
    %v7857 = vld [vmem:[%s23] sm:$0x1]
    %v7858 = vld [vmem:[%s25] sm:$0x1]
    %v7859 = vadd.f32 %v7857, %v7858
    %7860 = vst.msk [vmem:[#allocation4 + $0x8] sm:$0x1] %vm7849, %v7859
    %v7861 = vld [vmem:[%s25 + $0x1] sm:$0xf]
    %v7863 = vrot.slane %v7861, 4
    %v7865 = vadd.f32 %v7843, %v7863
    %vm7866 = vcmask 523268
    %7867 = vst.msk [vmem:[#allocation4 + $0x5] sm:$0xf0] %vm7866, %v7865
    %7868 = vst.msk [vmem:[#allocation4 + $0xd] sm:$0x7] %vm7855, 0.0
    %v7869 = vld [vmem:[#allocation4] sm:$0xff]
    %v7870 = vld [vmem:[#allocation4 + $0x8] sm:$0xff]
    %v7871 = vshra.s32 %v125, 3
    %v7872 = vshra.s32 %v126, 3
    %v7873 = vshra.s32 %v310, 3
    %vm7874 = vcmp.eq.s32.totalorder %v7871, %v7873
    %vm7875 = vcmp.eq.s32.totalorder %v7872, %v7873
    %v7876 = vand.u32 %v310, 7
    %vm7877 = vcmp.lt.s32.totalorder %v7876, 5
    %vm7878 = vmand %vm7874, %vm7877
    %vm7879 = vmand %vm7875, %vm7877
    %v7880 = vsel %vm7878, 0.0, -1e+30
    %v7881 = vsel %vm7879, 0.0, -1e+30
    %v7882 = vld [vmem:[%s27] sm:$0x1]
    %v7883 = vld [vmem:[%s29] sm:$0x1]
    %vm7884 = vcmask 523264
    %v7885 = vsel %vm7884, %v7869, 0.0
    %7886 = vadd.xlane.f32.xlu0 %v7885
    %v7887 = vpop.xlane.xlu0 %7886
    %v7888 = vsel %vm7884, %v7870, 0.0
    %7889 = vadd.xlane.f32.xlu0 %v7888
    %v7890 = vpop.xlane.xlu0 %7889
    %v7891 = vrcp.pop 64.0
    %v7892 = vmul.f32 64.0, %v7891
    %v7893 = vsub.f32 1.0, %v7892
    %v7894 = vmul.f32 %v7891, %v7893
    %v7895 = vadd.f32 %v7891, %v7894
    %vm7896 = vweird.f32 %v7891
    %v7897 = vsel %vm7896, %v7891, %v7895
    %v7898 = vmul.f32 %v7887, %v7897
    %v7899 = vmul.f32 %v7890, %v7897
    %v7900 = vmul.f32 %v7869, %v7869
    %v7901 = vmul.f32 %v7870, %v7870
    %v7902 = vsel %vm7884, %v7900, 0.0
    %7903 = vadd.xlane.f32.xlu0 %v7902
    %v7904 = vpop.xlane.xlu0 %7903
    %v7905 = vsel %vm7884, %v7901, 0.0
    %7906 = vadd.xlane.f32.xlu0 %v7905
    %v7907 = vpop.xlane.xlu0 %7906
    %v7908 = vmul.f32 %v7904, %v7897
    %v7909 = vmul.f32 %v7907, %v7897
    %v7910 = vmul.f32 %v7898, %v7898
    %v7911 = vmul.f32 %v7899, %v7899
    %v7912 = vsub.f32 %v7908, %v7910
    %v7913 = vsub.f32 %v7909, %v7911
    %v7914 = vmax.f32 %v7912, 0.0
    %v7915 = vmax.f32 %v7913, 0.0
    %v7916 = vsub.f32 %v7869, %v7898
    %v7917 = vsub.f32 %v7870, %v7899
    %v7918 = vadd.f32 %v7914, 1e-06
    %v7919 = vadd.f32 %v7915, 1e-06
    %v7920 = vrsqrt.pop %v7918
    %v7921 = vmul.f32 %v7920, %v7918
    %v7922 = vmul.f32 %v7921, %v7920
    %v7923 = vmul.f32 0.5, %v7922
    %v7924 = vsub.f32 1.5, %v7923
    %v7925 = vmul.f32 %v7920, %v7924
    %vm7926 = vweird.f32 %v7918
    %vm7927 = vweird.f32 %v7920
    %vm7928 = vmor %vm7926, %vm7927
    %v7929 = vsel %vm7928, %v7920, %v7925
    %v7930 = vrsqrt.pop %v7919
    %v7931 = vmul.f32 %v7930, %v7919
    %v7932 = vmul.f32 %v7931, %v7930
    %v7933 = vmul.f32 0.5, %v7932
    %v7934 = vsub.f32 1.5, %v7933
    %v7935 = vmul.f32 %v7930, %v7934
    %vm7936 = vweird.f32 %v7919
    %vm7937 = vweird.f32 %v7930
    %vm7938 = vmor %vm7936, %vm7937
    %v7939 = vsel %vm7938, %v7930, %v7935
    %v7940 = vmul.f32 %v7916, %v7929
    %v7941 = vmul.f32 %v7917, %v7939
    %v7943 = vperm.slane %v7882, 0
    %v7945 = vmul.f32 %v7940, %v7943
    %v7946 = vmul.f32 %v7941, %v7943
    %v7948 = vperm.slane %v7883, 0
    %v7950 = vadd.f32 %v7945, %v7948
    %v7951 = vadd.f32 %v7946, %v7948
    %v7952 = vpack.c.bf16 %v7951, %v7950
    %v7953 = vld [vmem:[%s31] sm:$0xff]
    %v7954 = vld [vmem:[%s31 + $0x8] sm:$0xff]
    %v7955 = vld [vmem:[%s31 + $0x10] sm:$0xff]
    %v7956 = vld [vmem:[%s31 + $0x18] sm:$0xff]
    %v7957 = vld [vmem:[%s31 + $0x20] sm:$0xff]
    %v7958 = vld [vmem:[%s31 + $0x28] sm:$0xff]
    %v7959 = vld [vmem:[%s31 + $0x30] sm:$0xff]
    %v7960 = vld [vmem:[%s31 + $0x38] sm:$0xff]
    %v7961 = vld [vmem:[%s33] sm:$0x3]
    %v7963 = vperm.slane %v7961, 0
    %v7964 = vperm.slane %v7961, 1
    %v7975 = vunpack.c.l.b16 %v7953
    %v7976 = vunpack.c.h.b16 %v7953
    %v7977 = vunpack.c.l.b16 %v7954
    %v7978 = vunpack.c.h.b16 %v7954
    %v7979 = vunpack.c.l.b16 %v7955
    %v7980 = vunpack.c.h.b16 %v7955
    %v7981 = vunpack.c.l.b16 %v7956
    %v7982 = vunpack.c.h.b16 %v7956
    %v7983 = vunpack.c.l.b16 %v7957
    %v7984 = vunpack.c.h.b16 %v7957
    %v7985 = vunpack.c.l.b16 %v7958
    %v7986 = vunpack.c.h.b16 %v7958
    %v7987 = vunpack.c.l.b16 %v7959
    %v7988 = vunpack.c.h.b16 %v7959
    %v7989 = vunpack.c.l.b16 %v7960
    %v7990 = vunpack.c.h.b16 %v7960
    %v7991 = vpack.c.b16 %v7977, %v7975
    %v7992 = vpack.c.b16 %v7978, %v7976
    %v7993 = vpack.c.b16 %v7981, %v7979
    %v7994 = vpack.c.b16 %v7982, %v7980
    %v7995 = vpack.c.b16 %v7985, %v7983
    %v7996 = vpack.c.b16 %v7986, %v7984
    %v7997 = vpack.c.b16 %v7989, %v7987
    %v7998 = vpack.c.b16 %v7990, %v7988
    %v8008 = vsel %vm7884, %v7952, 0
    %8010 = vmatpush.bf16.msra.mxu0 0
    %8011 = vmatpush.bf16.msra.mxu0 0
    %8012 = vmatpush.bf16.msra.mxu0 0
    %8013 = vmatpush.bf16.msra.mxu0 0
    %8014 = vmatpush.bf16.msra.mxu0 %v7997
    %8015 = vmatpush.bf16.msra.mxu0 %v7995
    %8016 = vmatpush.bf16.msra.mxu0 %v7993
    %8017 = vmatpush.bf16.msra.mxu0 %v7991
    %8018 = vmatmul.bf16.gmra.mxu0 %v8008
    %v8019 = vpop.f32.mrf.mxu0
    %v8020 = vadd.f32 %v7963, %v8019
    %v8021 = vpop.f32.mrf.mxu0
    %v8022 = vadd.f32 %v7963, %v8021
    %8023 = vdwg.mxu0
    %8024 = vmatpush.bf16.msra.mxu0 0
    %8025 = vmatpush.bf16.msra.mxu0 0
    %8026 = vmatpush.bf16.msra.mxu0 0
    %8027 = vmatpush.bf16.msra.mxu0 0
    %8028 = vmatpush.bf16.msra.mxu0 %v7998
    %8029 = vmatpush.bf16.msra.mxu0 %v7996
    %8030 = vmatpush.bf16.msra.mxu0 %v7994
    %8031 = vmatpush.bf16.msra.mxu0 %v7992
    %8032 = vmatmul.bf16.gmra.mxu0 %v8008
    %v8033 = vpop.f32.mrf.mxu0
    %v8034 = vadd.f32 %v7964, %v8033
    %v8035 = vpop.f32.mrf.mxu0
    %v8036 = vadd.f32 %v7964, %v8035
    %8037 = vdwg.mxu0
    %8040 = vrot.lane.b32.xlu0 %v8020, 64
    %v8041 = vpop.permute.xlu0 %8040
    %8042 = vrot.lane.b32.xlu0 %v8022, 64
    %v8043 = vpop.permute.xlu0 %8042
    %vm8044 = vcmask 130048
    %v8045 = vsel %vm8044, %v8020, 0
    %v8047 = vsel %vm8044, %v8022, 0
    %v8049 = vsel %vm8044, %v8041, 0
    %v8051 = vsel %vm8044, %v8043, 0
    %8053 = vmatpush.xpose.msra.mxu0 0.0
    %8054 = vmatpush.xpose.msra.mxu0 0.0
    %8055 = vmatpush.xpose.msra.mxu0 0.0
    %8056 = vmatpush.xpose.msra.mxu0 0.0
    %8057 = vmatpush.xpose.msra.mxu0 0.0
    %8058 = vmatpush.xpose.msra.mxu0 0.0
    %8059 = vmatpush.xpose.msra.mxu0 0.0
    %8060 = vmatpush.xpose.msra.mxu0 0.0
    %8061 = vmatpush.xpose.msra.mxu0 0.0
    %8062 = vmatpush.xpose.msra.mxu0 0.0
    %8063 = vmatpush.xpose.msra.mxu0 0.0
    %8064 = vmatpush.xpose.msra.mxu0 0.0
    %8065 = vmatpush.xpose.msra.mxu0 0.0
    %8066 = vmatpush.xpose.msra.mxu0 0.0
    %8067 = vmatpush.xpose.msra.mxu0 %v8051
    %8068 = vmatpush.xpose.msra.mxu0 %v8049
    %8069 = vmatmul.f32.gmra.mxu0 %v8045
    %v8070 = vpop.f32.mrf.mxu0
    %v8071 = vadd.f32 0.0, %v8070
    %8072 = vmatmul.f32.gmra.mxu0 %v8047
    %v8073 = vpop.f32.mrf.mxu0
    %v8074 = vadd.f32 0.0, %v8073
    %8075 = vdwg.mxu0
    %v8076 = vmul.f32 %v8071, 0.25
    %v8077 = vmul.f32 %v8074, 0.25
    %v8078 = vadd.f32 %v8076, %v7880
    %v8079 = vadd.f32 %v8077, %v7881
    %v8080 = vsel %vm8044, %v8078, -inf
    %8081 = vmax.xlane.f32.xlu0 %v8080
    %v8082 = vpop.xlane.xlu0 %8081
    %v8083 = vsel %vm8044, %v8079, -inf
    %8084 = vmax.xlane.f32.xlu0 %v8083
    %v8085 = vpop.xlane.xlu0 %8084
    %v8086 = vsub.f32 %v8078, %v8082
    %v8087 = vsub.f32 %v8079, %v8085
    %v8088 = vmul.f32 %v8086, 1.442695
    %v8089 = vpow.pop %v8088
    %v8090 = vmul.f32 %v8087, 1.442695
    %v8091 = vpow.pop %v8090
    %v8092 = vsel %vm8044, %v8089, 0.0
    %8093 = vadd.xlane.f32.xlu0 %v8092
    %v8094 = vpop.xlane.xlu0 %8093
    %v8095 = vsel %vm8044, %v8091, 0.0
    %8096 = vadd.xlane.f32.xlu0 %v8095
    %v8097 = vpop.xlane.xlu0 %8096
    %v8098 = vrcp.pop %v8094
    %v8099 = vmul.f32 %v8094, %v8098
    %v8100 = vsub.f32 1.0, %v8099
    %v8101 = vmul.f32 %v8098, %v8100
    %v8102 = vadd.f32 %v8098, %v8101
    %vm8103 = vweird.f32 %v8094
    %vm8104 = vweird.f32 %v8098
    %vm8105 = vmor %vm8103, %vm8104
    %v8106 = vsel %vm8105, %v8098, %v8102
    %v8107 = vand.u32 2147483647, %v8094
    %vm8108 = vcmp.eq.f32.partialorder %v8107, 8.507059e+37
    %v8109 = vand.u32 %v8094, 2147483648
    %v8110 = vor.u32 1.1754944e-38, %v8109
    %v8111 = vsel %vm8108, %v8110, %v8106
    %v8112 = vmul.f32 %v8089, %v8111
    %v8113 = vrcp.pop %v8097
    %v8114 = vmul.f32 %v8097, %v8113
    %v8115 = vsub.f32 1.0, %v8114
    %v8116 = vmul.f32 %v8113, %v8115
    %v8117 = vadd.f32 %v8113, %v8116
    %vm8118 = vweird.f32 %v8097
    %vm8119 = vweird.f32 %v8113
    %vm8120 = vmor %vm8118, %vm8119
    %v8121 = vsel %vm8120, %v8113, %v8117
    %v8122 = vand.u32 2147483647, %v8097
    %vm8123 = vcmp.eq.f32.partialorder %v8122, 8.507059e+37
    %v8124 = vand.u32 %v8097, 2147483648
    %v8125 = vor.u32 1.1754944e-38, %v8124
    %v8126 = vsel %vm8123, %v8125, %v8121
    %v8127 = vmul.f32 %v8091, %v8126
    %v8129 = vsel %vm8044, %v8112, 0
    %v8132 = vsel %vm8044, %v8127, 0
    %8134 = vmatpush.msra.mxu0 0.0
    %8135 = vmatpush.msra.mxu0 0.0
    %8136 = vmatpush.msra.mxu0 0.0
    %8137 = vmatpush.msra.mxu0 0.0
    %8138 = vmatpush.msra.mxu0 0.0
    %8139 = vmatpush.msra.mxu0 0.0
    %8140 = vmatpush.msra.mxu0 0.0
    %8141 = vmatpush.msra.mxu0 0.0
    %8142 = vmatpush.msra.mxu0 0.0
    %8143 = vmatpush.msra.mxu0 0.0
    %8144 = vmatpush.msra.mxu0 0.0
    %8145 = vmatpush.msra.mxu0 0.0
    %8146 = vmatpush.msra.mxu0 0.0
    %8147 = vmatpush.msra.mxu0 0.0
    %8148 = vmatpush.msra.mxu0 %v8036
    %8149 = vmatpush.msra.mxu0 %v8034
    %8150 = vmatmul.f32.gmra.mxu0 %v8129
    %v8151 = vpop.f32.mrf.mxu0
    %v8152 = vadd.f32 0.0, %v8151
    %8153 = vmatmul.f32.gmra.mxu0 %v8132
    %v8154 = vpop.f32.mrf.mxu0
    %v8155 = vadd.f32 0.0, %v8154
    %8156 = vdwg.mxu0
    %8157 = vrot.lane.b32.xlu0 %v8020, 112
    %v8158 = vpop.permute.xlu0 %8157
    %8159 = vrot.lane.b32.xlu0 %v8022, 112
    %v8160 = vpop.permute.xlu0 %8159
    %8161 = vrot.lane.b32.xlu0 %v8020, 48
    %v8162 = vpop.permute.xlu0 %8161
    %8163 = vrot.lane.b32.xlu0 %v8022, 48
    %v8164 = vpop.permute.xlu0 %8163
    %v8165 = vsel %vm8044, %v8158, 0
    %v8167 = vsel %vm8044, %v8160, 0
    %v8169 = vsel %vm8044, %v8162, 0
    %v8171 = vsel %vm8044, %v8164, 0
    %8173 = vmatpush.xpose.msra.mxu0 0.0
    %8174 = vmatpush.xpose.msra.mxu0 0.0
    %8175 = vmatpush.xpose.msra.mxu0 0.0
    %8176 = vmatpush.xpose.msra.mxu0 0.0
    %8177 = vmatpush.xpose.msra.mxu0 0.0
    %8178 = vmatpush.xpose.msra.mxu0 0.0
    %8179 = vmatpush.xpose.msra.mxu0 0.0
    %8180 = vmatpush.xpose.msra.mxu0 0.0
    %8181 = vmatpush.xpose.msra.mxu0 0.0
    %8182 = vmatpush.xpose.msra.mxu0 0.0
    %8183 = vmatpush.xpose.msra.mxu0 0.0
    %8184 = vmatpush.xpose.msra.mxu0 0.0
    %8185 = vmatpush.xpose.msra.mxu0 0.0
    %8186 = vmatpush.xpose.msra.mxu0 0.0
    %8187 = vmatpush.xpose.msra.mxu0 %v8171
    %8188 = vmatpush.xpose.msra.mxu0 %v8169
    %8189 = vmatmul.f32.gmra.mxu0 %v8165
    %v8190 = vpop.f32.mrf.mxu0
    %v8191 = vadd.f32 0.0, %v8190
    %8192 = vmatmul.f32.gmra.mxu0 %v8167
    %v8193 = vpop.f32.mrf.mxu0
    %v8194 = vadd.f32 0.0, %v8193
    %8195 = vdwg.mxu0
    %v8196 = vmul.f32 %v8191, 0.25
    %v8197 = vmul.f32 %v8194, 0.25
    %v8198 = vadd.f32 %v8196, %v7880
    %v8199 = vadd.f32 %v8197, %v7881
    %v8200 = vsel %vm8044, %v8198, -inf
    %8201 = vmax.xlane.f32.xlu0 %v8200
    %v8202 = vpop.xlane.xlu0 %8201
    %v8203 = vsel %vm8044, %v8199, -inf
    %8204 = vmax.xlane.f32.xlu0 %v8203
    %v8205 = vpop.xlane.xlu0 %8204
    %v8206 = vsub.f32 %v8198, %v8202
    %v8207 = vsub.f32 %v8199, %v8205
    %v8208 = vmul.f32 %v8206, 1.442695
    %v8209 = vpow.pop %v8208
    %v8210 = vmul.f32 %v8207, 1.442695
    %v8211 = vpow.pop %v8210
    %v8212 = vsel %vm8044, %v8209, 0.0
    %8213 = vadd.xlane.f32.xlu0 %v8212
    %v8214 = vpop.xlane.xlu0 %8213
    %v8215 = vsel %vm8044, %v8211, 0.0
    %8216 = vadd.xlane.f32.xlu0 %v8215
    %v8217 = vpop.xlane.xlu0 %8216
    %v8218 = vrcp.pop %v8214
    %v8219 = vmul.f32 %v8214, %v8218
    %v8220 = vsub.f32 1.0, %v8219
    %v8221 = vmul.f32 %v8218, %v8220
    %v8222 = vadd.f32 %v8218, %v8221
    %vm8223 = vweird.f32 %v8214
    %vm8224 = vweird.f32 %v8218
    %vm8225 = vmor %vm8223, %vm8224
    %v8226 = vsel %vm8225, %v8218, %v8222
    %v8227 = vand.u32 2147483647, %v8214
    %vm8228 = vcmp.eq.f32.partialorder %v8227, 8.507059e+37
    %v8229 = vand.u32 %v8214, 2147483648
    %v8230 = vor.u32 1.1754944e-38, %v8229
    %v8231 = vsel %vm8228, %v8230, %v8226
    %v8232 = vmul.f32 %v8209, %v8231
    %v8233 = vrcp.pop %v8217
    %v8234 = vmul.f32 %v8217, %v8233
    %v8235 = vsub.f32 1.0, %v8234
    %v8236 = vmul.f32 %v8233, %v8235
    %v8237 = vadd.f32 %v8233, %v8236
    %vm8238 = vweird.f32 %v8217
    %vm8239 = vweird.f32 %v8233
    %vm8240 = vmor %vm8238, %vm8239
    %v8241 = vsel %vm8240, %v8233, %v8237
    %v8242 = vand.u32 2147483647, %v8217
    %vm8243 = vcmp.eq.f32.partialorder %v8242, 8.507059e+37
    %v8244 = vand.u32 %v8217, 2147483648
    %v8245 = vor.u32 1.1754944e-38, %v8244
    %v8246 = vsel %vm8243, %v8245, %v8241
    %v8247 = vmul.f32 %v8211, %v8246
    %8250 = vrot.lane.b32.xlu0 %v8034, 112
    %v8251 = vpop.permute.xlu0 %8250
    %8252 = vrot.lane.b32.xlu0 %v8036, 112
    %v8253 = vpop.permute.xlu0 %8252
    %v8257 = vsel %vm8044, %v8232, 0
    %v8260 = vsel %vm8044, %v8247, 0
    %8262 = vmatpush.msra.mxu0 0.0
    %8263 = vmatpush.msra.mxu0 0.0
    %8264 = vmatpush.msra.mxu0 0.0
    %8265 = vmatpush.msra.mxu0 0.0
    %8266 = vmatpush.msra.mxu0 0.0
    %8267 = vmatpush.msra.mxu0 0.0
    %8268 = vmatpush.msra.mxu0 0.0
    %8269 = vmatpush.msra.mxu0 0.0
    %8270 = vmatpush.msra.mxu0 0.0
    %8271 = vmatpush.msra.mxu0 0.0
    %8272 = vmatpush.msra.mxu0 0.0
    %8273 = vmatpush.msra.mxu0 0.0
    %8274 = vmatpush.msra.mxu0 0.0
    %8275 = vmatpush.msra.mxu0 0.0
    %8276 = vmatpush.msra.mxu0 %v8253
    %8277 = vmatpush.msra.mxu0 %v8251
    %8278 = vmatmul.f32.gmra.mxu0 %v8257
    %v8279 = vpop.f32.mrf.mxu0
    %v8280 = vadd.f32 0.0, %v8279
    %8281 = vmatmul.f32.gmra.mxu0 %v8260
    %v8282 = vpop.f32.mrf.mxu0
    %v8283 = vadd.f32 0.0, %v8282
    %8284 = vdwg.mxu0
    %8285 = vrot.lane.b32.xlu0 %v8020, 96
    %v8286 = vpop.permute.xlu0 %8285
    %8287 = vrot.lane.b32.xlu0 %v8022, 96
    %v8288 = vpop.permute.xlu0 %8287
    %8289 = vrot.lane.b32.xlu0 %v8020, 32
    %v8290 = vpop.permute.xlu0 %8289
    %8291 = vrot.lane.b32.xlu0 %v8022, 32
    %v8292 = vpop.permute.xlu0 %8291
    %v8293 = vsel %vm8044, %v8286, 0
    %v8295 = vsel %vm8044, %v8288, 0
    %v8297 = vsel %vm8044, %v8290, 0
    %v8299 = vsel %vm8044, %v8292, 0
    %8301 = vmatpush.xpose.msra.mxu0 0.0
    %8302 = vmatpush.xpose.msra.mxu0 0.0
    %8303 = vmatpush.xpose.msra.mxu0 0.0
    %8304 = vmatpush.xpose.msra.mxu0 0.0
    %8305 = vmatpush.xpose.msra.mxu0 0.0
    %8306 = vmatpush.xpose.msra.mxu0 0.0
    %8307 = vmatpush.xpose.msra.mxu0 0.0
    %8308 = vmatpush.xpose.msra.mxu0 0.0
    %8309 = vmatpush.xpose.msra.mxu0 0.0
    %8310 = vmatpush.xpose.msra.mxu0 0.0
    %8311 = vmatpush.xpose.msra.mxu0 0.0
    %8312 = vmatpush.xpose.msra.mxu0 0.0
    %8313 = vmatpush.xpose.msra.mxu0 0.0
    %8314 = vmatpush.xpose.msra.mxu0 0.0
    %8315 = vmatpush.xpose.msra.mxu0 %v8299
    %8316 = vmatpush.xpose.msra.mxu0 %v8297
    %8317 = vmatmul.f32.gmra.mxu0 %v8293
    %v8318 = vpop.f32.mrf.mxu0
    %v8319 = vadd.f32 0.0, %v8318
    %8320 = vmatmul.f32.gmra.mxu0 %v8295
    %v8321 = vpop.f32.mrf.mxu0
    %v8322 = vadd.f32 0.0, %v8321
    %8323 = vdwg.mxu0
    %v8324 = vmul.f32 %v8319, 0.25
    %v8325 = vmul.f32 %v8322, 0.25
    %v8326 = vadd.f32 %v8324, %v7880
    %v8327 = vadd.f32 %v8325, %v7881
    %v8328 = vsel %vm8044, %v8326, -inf
    %8329 = vmax.xlane.f32.xlu0 %v8328
    %v8330 = vpop.xlane.xlu0 %8329
    %v8331 = vsel %vm8044, %v8327, -inf
    %8332 = vmax.xlane.f32.xlu0 %v8331
    %v8333 = vpop.xlane.xlu0 %8332
    %v8334 = vsub.f32 %v8326, %v8330
    %v8335 = vsub.f32 %v8327, %v8333
    %v8336 = vmul.f32 %v8334, 1.442695
    %v8337 = vpow.pop %v8336
    %v8338 = vmul.f32 %v8335, 1.442695
    %v8339 = vpow.pop %v8338
    %v8340 = vsel %vm8044, %v8337, 0.0
    %8341 = vadd.xlane.f32.xlu0 %v8340
    %v8342 = vpop.xlane.xlu0 %8341
    %v8343 = vsel %vm8044, %v8339, 0.0
    %8344 = vadd.xlane.f32.xlu0 %v8343
    %v8345 = vpop.xlane.xlu0 %8344
    %v8346 = vrcp.pop %v8342
    %v8347 = vmul.f32 %v8342, %v8346
    %v8348 = vsub.f32 1.0, %v8347
    %v8349 = vmul.f32 %v8346, %v8348
    %v8350 = vadd.f32 %v8346, %v8349
    %vm8351 = vweird.f32 %v8342
    %vm8352 = vweird.f32 %v8346
    %vm8353 = vmor %vm8351, %vm8352
    %v8354 = vsel %vm8353, %v8346, %v8350
    %v8355 = vand.u32 2147483647, %v8342
    %vm8356 = vcmp.eq.f32.partialorder %v8355, 8.507059e+37
    %v8357 = vand.u32 %v8342, 2147483648
    %v8358 = vor.u32 1.1754944e-38, %v8357
    %v8359 = vsel %vm8356, %v8358, %v8354
    %v8360 = vmul.f32 %v8337, %v8359
    %v8361 = vrcp.pop %v8345
    %v8362 = vmul.f32 %v8345, %v8361
    %v8363 = vsub.f32 1.0, %v8362
    %v8364 = vmul.f32 %v8361, %v8363
    %v8365 = vadd.f32 %v8361, %v8364
    %vm8366 = vweird.f32 %v8345
    %vm8367 = vweird.f32 %v8361
    %vm8368 = vmor %vm8366, %vm8367
    %v8369 = vsel %vm8368, %v8361, %v8365
    %v8370 = vand.u32 2147483647, %v8345
    %vm8371 = vcmp.eq.f32.partialorder %v8370, 8.507059e+37
    %v8372 = vand.u32 %v8345, 2147483648
    %v8373 = vor.u32 1.1754944e-38, %v8372
    %v8374 = vsel %vm8371, %v8373, %v8369
    %v8375 = vmul.f32 %v8339, %v8374
    %8376 = vrot.lane.b32.xlu0 %v8034, 96
    %v8377 = vpop.permute.xlu0 %8376
    %8378 = vrot.lane.b32.xlu0 %v8036, 96
    %v8379 = vpop.permute.xlu0 %8378
    %v8383 = vsel %vm8044, %v8360, 0
    %v8386 = vsel %vm8044, %v8375, 0
    %8388 = vmatpush.msra.mxu0 0.0
    %8389 = vmatpush.msra.mxu0 0.0
    %8390 = vmatpush.msra.mxu0 0.0
    %8391 = vmatpush.msra.mxu0 0.0
    %8392 = vmatpush.msra.mxu0 0.0
    %8393 = vmatpush.msra.mxu0 0.0
    %8394 = vmatpush.msra.mxu0 0.0
    %8395 = vmatpush.msra.mxu0 0.0
    %8396 = vmatpush.msra.mxu0 0.0
    %8397 = vmatpush.msra.mxu0 0.0
    %8398 = vmatpush.msra.mxu0 0.0
    %8399 = vmatpush.msra.mxu0 0.0
    %8400 = vmatpush.msra.mxu0 0.0
    %8401 = vmatpush.msra.mxu0 0.0
    %8402 = vmatpush.msra.mxu0 %v8379
    %8403 = vmatpush.msra.mxu0 %v8377
    %8404 = vmatmul.f32.gmra.mxu0 %v8383
    %v8405 = vpop.f32.mrf.mxu0
    %v8406 = vadd.f32 0.0, %v8405
    %8407 = vmatmul.f32.gmra.mxu0 %v8386
    %v8408 = vpop.f32.mrf.mxu0
    %v8409 = vadd.f32 0.0, %v8408
    %8410 = vdwg.mxu0
    %8411 = vrot.lane.b32.xlu0 %v8020, 80
    %v8412 = vpop.permute.xlu0 %8411
    %8413 = vrot.lane.b32.xlu0 %v8022, 80
    %v8414 = vpop.permute.xlu0 %8413
    %8415 = vrot.lane.b32.xlu0 %v8020, 16
    %v8416 = vpop.permute.xlu0 %8415
    %8417 = vrot.lane.b32.xlu0 %v8022, 16
    %v8418 = vpop.permute.xlu0 %8417
    %v8419 = vsel %vm8044, %v8412, 0
    %v8421 = vsel %vm8044, %v8414, 0
    %v8423 = vsel %vm8044, %v8416, 0
    %v8425 = vsel %vm8044, %v8418, 0
    %8427 = vmatpush.xpose.msra.mxu0 0.0
    %8428 = vmatpush.xpose.msra.mxu0 0.0
    %8429 = vmatpush.xpose.msra.mxu0 0.0
    %8430 = vmatpush.xpose.msra.mxu0 0.0
    %8431 = vmatpush.xpose.msra.mxu0 0.0
    %8432 = vmatpush.xpose.msra.mxu0 0.0
    %8433 = vmatpush.xpose.msra.mxu0 0.0
    %8434 = vmatpush.xpose.msra.mxu0 0.0
    %8435 = vmatpush.xpose.msra.mxu0 0.0
    %8436 = vmatpush.xpose.msra.mxu0 0.0
    %8437 = vmatpush.xpose.msra.mxu0 0.0
    %8438 = vmatpush.xpose.msra.mxu0 0.0
    %8439 = vmatpush.xpose.msra.mxu0 0.0
    %8440 = vmatpush.xpose.msra.mxu0 0.0
    %8441 = vmatpush.xpose.msra.mxu0 %v8425
    %8442 = vmatpush.xpose.msra.mxu0 %v8423
    %8443 = vmatmul.f32.gmra.mxu0 %v8419
    %v8444 = vpop.f32.mrf.mxu0
    %v8445 = vadd.f32 0.0, %v8444
    %8446 = vmatmul.f32.gmra.mxu0 %v8421
    %v8447 = vpop.f32.mrf.mxu0
    %v8448 = vadd.f32 0.0, %v8447
    %8449 = vdwg.mxu0
    %v8450 = vmul.f32 %v8445, 0.25
    %v8451 = vmul.f32 %v8448, 0.25
    %v8452 = vadd.f32 %v8450, %v7880
    %v8453 = vadd.f32 %v8451, %v7881
    %v8454 = vsel %vm8044, %v8452, -inf
    %8455 = vmax.xlane.f32.xlu0 %v8454
    %v8456 = vpop.xlane.xlu0 %8455
    %v8457 = vsel %vm8044, %v8453, -inf
    %8458 = vmax.xlane.f32.xlu0 %v8457
    %v8459 = vpop.xlane.xlu0 %8458
    %v8460 = vsub.f32 %v8452, %v8456
    %v8461 = vsub.f32 %v8453, %v8459
    %v8462 = vmul.f32 %v8460, 1.442695
    %v8463 = vpow.pop %v8462
    %v8464 = vmul.f32 %v8461, 1.442695
    %v8465 = vpow.pop %v8464
    %v8466 = vsel %vm8044, %v8463, 0.0
    %8467 = vadd.xlane.f32.xlu0 %v8466
    %v8468 = vpop.xlane.xlu0 %8467
    %v8469 = vsel %vm8044, %v8465, 0.0
    %8470 = vadd.xlane.f32.xlu0 %v8469
    %v8471 = vpop.xlane.xlu0 %8470
    %v8472 = vrcp.pop %v8468
    %v8473 = vmul.f32 %v8468, %v8472
    %v8474 = vsub.f32 1.0, %v8473
    %v8475 = vmul.f32 %v8472, %v8474
    %v8476 = vadd.f32 %v8472, %v8475
    %vm8477 = vweird.f32 %v8468
    %vm8478 = vweird.f32 %v8472
    %vm8479 = vmor %vm8477, %vm8478
    %v8480 = vsel %vm8479, %v8472, %v8476
    %v8481 = vand.u32 2147483647, %v8468
    %vm8482 = vcmp.eq.f32.partialorder %v8481, 8.507059e+37
    %v8483 = vand.u32 %v8468, 2147483648
    %v8484 = vor.u32 1.1754944e-38, %v8483
    %v8485 = vsel %vm8482, %v8484, %v8480
    %v8486 = vmul.f32 %v8463, %v8485
    %v8487 = vrcp.pop %v8471
    %v8488 = vmul.f32 %v8471, %v8487
    %v8489 = vsub.f32 1.0, %v8488
    %v8490 = vmul.f32 %v8487, %v8489
    %v8491 = vadd.f32 %v8487, %v8490
    %vm8492 = vweird.f32 %v8471
    %vm8493 = vweird.f32 %v8487
    %vm8494 = vmor %vm8492, %vm8493
    %v8495 = vsel %vm8494, %v8487, %v8491
    %v8496 = vand.u32 2147483647, %v8471
    %vm8497 = vcmp.eq.f32.partialorder %v8496, 8.507059e+37
    %v8498 = vand.u32 %v8471, 2147483648
    %v8499 = vor.u32 1.1754944e-38, %v8498
    %v8500 = vsel %vm8497, %v8499, %v8495
    %v8501 = vmul.f32 %v8465, %v8500
    %8502 = vrot.lane.b32.xlu0 %v8034, 80
    %v8503 = vpop.permute.xlu0 %8502
    %8504 = vrot.lane.b32.xlu0 %v8036, 80
    %v8505 = vpop.permute.xlu0 %8504
    %v8509 = vsel %vm8044, %v8486, 0
    %v8512 = vsel %vm8044, %v8501, 0
    %8514 = vmatpush.msra.mxu0 0.0
    %8515 = vmatpush.msra.mxu0 0.0
    %8516 = vmatpush.msra.mxu0 0.0
    %8517 = vmatpush.msra.mxu0 0.0
    %8518 = vmatpush.msra.mxu0 0.0
    %8519 = vmatpush.msra.mxu0 0.0
    %8520 = vmatpush.msra.mxu0 0.0
    %8521 = vmatpush.msra.mxu0 0.0
    %8522 = vmatpush.msra.mxu0 0.0
    %8523 = vmatpush.msra.mxu0 0.0
    %8524 = vmatpush.msra.mxu0 0.0
    %8525 = vmatpush.msra.mxu0 0.0
    %8526 = vmatpush.msra.mxu0 0.0
    %8527 = vmatpush.msra.mxu0 0.0
    %8528 = vmatpush.msra.mxu0 %v8505
    %8529 = vmatpush.msra.mxu0 %v8503
    %8530 = vmatmul.f32.gmra.mxu0 %v8509
    %v8531 = vpop.f32.mrf.mxu0
    %v8532 = vadd.f32 0.0, %v8531
    %8533 = vmatmul.f32.gmra.mxu0 %v8512
    %v8534 = vpop.f32.mrf.mxu0
    %v8535 = vadd.f32 0.0, %v8534
    %8536 = vdwg.mxu0
    %8539 = vrot.lane.b32.xlu0 %v8280, 16
    %v8540 = vpop.permute.xlu0 %8539
    %8541 = vrot.lane.b32.xlu0 %v8283, 16
    %v8542 = vpop.permute.xlu0 %8541
    %8547 = vrot.lane.b32.xlu0 %v8406, 32
    %v8548 = vpop.permute.xlu0 %8547
    %8549 = vrot.lane.b32.xlu0 %v8409, 32
    %v8550 = vpop.permute.xlu0 %8549
    %8555 = vrot.lane.b32.xlu0 %v8532, 48
    %v8556 = vpop.permute.xlu0 %8555
    %8557 = vrot.lane.b32.xlu0 %v8535, 48
    %v8558 = vpop.permute.xlu0 %8557
    %v8561 = vsel %vm8044, %v8152, %v8540
    %v8562 = vsel %vm8044, %v8155, %v8542
    %v8563 = vsel %vm3155, %v8561, %v8548
    %v8564 = vsel %vm3155, %v8562, %v8550
    %vm8565 = vcmask 392192
    %v8566 = vsel %vm8565, %v8563, %v8556
    %v8567 = vsel %vm8565, %v8564, %v8558
    %v8568 = vpack.c.bf16 %v8567, %v8566
    %v8569 = vld [vmem:[%s35] sm:$0xf]
    %v8570 = vld [vmem:[%s35 + $0x4] sm:$0xf]
    %v8571 = vld [vmem:[%s35 + $0x8] sm:$0xf]
    %v8572 = vld [vmem:[%s35 + $0xc] sm:$0xf]
    %v8573 = vld [vmem:[%s35 + $0x10] sm:$0xf]
    %v8574 = vld [vmem:[%s35 + $0x14] sm:$0xf]
    %v8575 = vld [vmem:[%s35 + $0x18] sm:$0xf]
    %v8576 = vld [vmem:[%s35 + $0x1c] sm:$0xf]
    %v8585 = vunpack.c.l.b16 %v8569
    %v8586 = vunpack.c.l.b16 %v8570
    %v8587 = vunpack.c.l.b16 %v8571
    %v8588 = vunpack.c.l.b16 %v8572
    %v8589 = vunpack.c.l.b16 %v8573
    %v8590 = vunpack.c.l.b16 %v8574
    %v8591 = vunpack.c.l.b16 %v8575
    %v8592 = vunpack.c.l.b16 %v8576
    %v8593 = vpack.c.b16 %v8586, %v8585
    %v8594 = vpack.c.b16 %v8588, %v8587
    %v8595 = vpack.c.b16 %v8590, %v8589
    %v8596 = vpack.c.b16 %v8592, %v8591
    %v8602 = vsel %vm7884, %v8568, 0
    %8604 = vmatpush.bf16.msra.mxu0 0
    %8605 = vmatpush.bf16.msra.mxu0 0
    %8606 = vmatpush.bf16.msra.mxu0 0
    %8607 = vmatpush.bf16.msra.mxu0 0
    %8608 = vmatpush.bf16.msra.mxu0 %v8596
    %8609 = vmatpush.bf16.msra.mxu0 %v8595
    %8610 = vmatpush.bf16.msra.mxu0 %v8594
    %8611 = vmatpush.bf16.msra.mxu0 %v8593
    %8612 = vmatmul.bf16.gmra.mxu0 %v8602
    %v8613 = vpop.f32.mrf.mxu0
    %v8614 = vadd.f32 0.0, %v8613
    %v8615 = vpop.f32.mrf.mxu0
    %v8616 = vadd.f32 0.0, %v8615
    %8617 = vdwg.mxu0
    %v8618 = vadd.f32 %v7869, %v8614
    %v8619 = vadd.f32 %v7870, %v8616
    %v8620 = vld [vmem:[%s37] sm:$0x1]
    %v8622 = vperm.slane %v8620, 0
    %v8624 = vadd.f32 %v8618, %v8622
    %v8625 = vadd.f32 %v8619, %v8622
    %v8626 = vld [vmem:[%s39] sm:$0x1]
    %v8627 = vld [vmem:[%s41] sm:$0x1]
    %v8628 = vsel %vm7884, %v8624, 0.0
    %8629 = vadd.xlane.f32.xlu0 %v8628
    %v8630 = vpop.xlane.xlu0 %8629
    %v8631 = vsel %vm7884, %v8625, 0.0
    %8632 = vadd.xlane.f32.xlu0 %v8631
    %v8633 = vpop.xlane.xlu0 %8632
    %v8634 = vmul.f32 %v8630, %v7897
    %v8635 = vmul.f32 %v8633, %v7897
    %v8636 = vmul.f32 %v8624, %v8624
    %v8637 = vmul.f32 %v8625, %v8625
    %v8638 = vsel %vm7884, %v8636, 0.0
    %8639 = vadd.xlane.f32.xlu0 %v8638
    %v8640 = vpop.xlane.xlu0 %8639
    %v8641 = vsel %vm7884, %v8637, 0.0
    %8642 = vadd.xlane.f32.xlu0 %v8641
    %v8643 = vpop.xlane.xlu0 %8642
    %v8644 = vmul.f32 %v8640, %v7897
    %v8645 = vmul.f32 %v8643, %v7897
    %v8646 = vmul.f32 %v8634, %v8634
    %v8647 = vmul.f32 %v8635, %v8635
    %v8648 = vsub.f32 %v8644, %v8646
    %v8649 = vsub.f32 %v8645, %v8647
    %v8650 = vmax.f32 %v8648, 0.0
    %v8651 = vmax.f32 %v8649, 0.0
    %v8652 = vsub.f32 %v8624, %v8634
    %v8653 = vsub.f32 %v8625, %v8635
    %v8654 = vadd.f32 %v8650, 1e-06
    %v8655 = vadd.f32 %v8651, 1e-06
    %v8656 = vrsqrt.pop %v8654
    %v8657 = vmul.f32 %v8656, %v8654
    %v8658 = vmul.f32 %v8657, %v8656
    %v8659 = vmul.f32 0.5, %v8658
    %v8660 = vsub.f32 1.5, %v8659
    %v8661 = vmul.f32 %v8656, %v8660
    %vm8662 = vweird.f32 %v8654
    %vm8663 = vweird.f32 %v8656
    %vm8664 = vmor %vm8662, %vm8663
    %v8665 = vsel %vm8664, %v8656, %v8661
    %v8666 = vrsqrt.pop %v8655
    %v8667 = vmul.f32 %v8666, %v8655
    %v8668 = vmul.f32 %v8667, %v8666
    %v8669 = vmul.f32 0.5, %v8668
    %v8670 = vsub.f32 1.5, %v8669
    %v8671 = vmul.f32 %v8666, %v8670
    %vm8672 = vweird.f32 %v8655
    %vm8673 = vweird.f32 %v8666
    %vm8674 = vmor %vm8672, %vm8673
    %v8675 = vsel %vm8674, %v8666, %v8671
    %v8676 = vmul.f32 %v8652, %v8665
    %v8677 = vmul.f32 %v8653, %v8675
    %v8679 = vperm.slane %v8626, 0
    %v8681 = vmul.f32 %v8676, %v8679
    %v8682 = vmul.f32 %v8677, %v8679
    %v8684 = vperm.slane %v8627, 0
    %v8686 = vadd.f32 %v8681, %v8684
    %v8687 = vadd.f32 %v8682, %v8684
    %v8688 = vpack.c.bf16 %v8687, %v8686
    %v8689 = vld [vmem:[%s43] sm:$0xff]
    %v8690 = vld [vmem:[%s43 + $0x8] sm:$0xff]
    %v8691 = vld [vmem:[%s43 + $0x10] sm:$0xff]
    %v8692 = vld [vmem:[%s43 + $0x18] sm:$0xff]
    %v8693 = vld [vmem:[%s43 + $0x20] sm:$0xff]
    %v8694 = vld [vmem:[%s43 + $0x28] sm:$0xff]
    %v8695 = vld [vmem:[%s43 + $0x30] sm:$0xff]
    %v8696 = vld [vmem:[%s43 + $0x38] sm:$0xff]
    %v8697 = vld [vmem:[%s45] sm:$0x3]
    %v8699 = vperm.slane %v8697, 0
    %v8700 = vperm.slane %v8697, 1
    %v8711 = vunpack.c.l.b16 %v8689
    %v8712 = vunpack.c.h.b16 %v8689
    %v8713 = vunpack.c.l.b16 %v8690
    %v8714 = vunpack.c.h.b16 %v8690
    %v8715 = vunpack.c.l.b16 %v8691
    %v8716 = vunpack.c.h.b16 %v8691
    %v8717 = vunpack.c.l.b16 %v8692
    %v8718 = vunpack.c.h.b16 %v8692
    %v8719 = vunpack.c.l.b16 %v8693
    %v8720 = vunpack.c.h.b16 %v8693
    %v8721 = vunpack.c.l.b16 %v8694
    %v8722 = vunpack.c.h.b16 %v8694
    %v8723 = vunpack.c.l.b16 %v8695
    %v8724 = vunpack.c.h.b16 %v8695
    %v8725 = vunpack.c.l.b16 %v8696
    %v8726 = vunpack.c.h.b16 %v8696
    %v8727 = vpack.c.b16 %v8713, %v8711
    %v8728 = vpack.c.b16 %v8714, %v8712
    %v8729 = vpack.c.b16 %v8717, %v8715
    %v8730 = vpack.c.b16 %v8718, %v8716
    %v8731 = vpack.c.b16 %v8721, %v8719
    %v8732 = vpack.c.b16 %v8722, %v8720
    %v8733 = vpack.c.b16 %v8725, %v8723
    %v8734 = vpack.c.b16 %v8726, %v8724
    %v8744 = vsel %vm7884, %v8688, 0
    %8746 = vmatpush.bf16.msra.mxu0 0
    %8747 = vmatpush.bf16.msra.mxu0 0
    %8748 = vmatpush.bf16.msra.mxu0 0
    %8749 = vmatpush.bf16.msra.mxu0 0
    %8750 = vmatpush.bf16.msra.mxu0 %v8733
    %8751 = vmatpush.bf16.msra.mxu0 %v8731
    %8752 = vmatpush.bf16.msra.mxu0 %v8729
    %8753 = vmatpush.bf16.msra.mxu0 %v8727
    %8754 = vmatmul.bf16.gmra.mxu0 %v8744
    %v8755 = vpop.f32.mrf.mxu0
    %v8756 = vadd.f32 %v8699, %v8755
    %v8757 = vpop.f32.mrf.mxu0
    %v8758 = vadd.f32 %v8699, %v8757
    %8759 = vdwg.mxu0
    %8760 = vmatpush.bf16.msra.mxu0 0
    %8761 = vmatpush.bf16.msra.mxu0 0
    %8762 = vmatpush.bf16.msra.mxu0 0
    %8763 = vmatpush.bf16.msra.mxu0 0
    %8764 = vmatpush.bf16.msra.mxu0 %v8734
    %8765 = vmatpush.bf16.msra.mxu0 %v8732
    %8766 = vmatpush.bf16.msra.mxu0 %v8730
    %8767 = vmatpush.bf16.msra.mxu0 %v8728
    %8768 = vmatmul.bf16.gmra.mxu0 %v8744
    %v8769 = vpop.f32.mrf.mxu0
    %v8770 = vadd.f32 %v8700, %v8769
    %v8771 = vpop.f32.mrf.mxu0
    %v8772 = vadd.f32 %v8700, %v8771
    %8773 = vdwg.mxu0
    %v8774 = vmul.f32 %v8756, 0.5
    %v8775 = vmul.f32 %v8770, 0.5
    %v8776 = vmul.f32 %v8758, 0.5
    %v8777 = vmul.f32 %v8772, 0.5
    %v8778 = vmul.f32 %v8756, 0.044715
    %v8779 = vmul.f32 %v8770, 0.044715
    %v8780 = vmul.f32 %v8758, 0.044715
    %v8781 = vmul.f32 %v8772, 0.044715
    %v8782 = vmul.f32 %v8778, %v8756
    %v8783 = vmul.f32 %v8779, %v8770
    %v8784 = vmul.f32 %v8780, %v8758
    %v8785 = vmul.f32 %v8781, %v8772
    %v8786 = vmul.f32 %v8782, %v8756
    %v8787 = vmul.f32 %v8783, %v8770
    %v8788 = vmul.f32 %v8784, %v8758
    %v8789 = vmul.f32 %v8785, %v8772
    %v8790 = vadd.f32 %v8756, %v8786
    %v8791 = vadd.f32 %v8770, %v8787
    %v8792 = vadd.f32 %v8758, %v8788
    %v8793 = vadd.f32 %v8772, %v8789
    %v8794 = vmul.f32 %v8790, 0.7978845
    %v8795 = vmul.f32 %v8791, 0.7978845
    %v8796 = vmul.f32 %v8792, 0.7978845
    %v8797 = vmul.f32 %v8793, 0.7978845
    %v8798 = vtanh.pop %v8794
    %v8799 = vtanh.pop %v8795
    %v8800 = vtanh.pop %v8796
    %v8801 = vtanh.pop %v8797
    %v8802 = vadd.f32 %v8798, 1.0
    %v8803 = vadd.f32 %v8799, 1.0
    %v8804 = vadd.f32 %v8800, 1.0
    %v8805 = vadd.f32 %v8801, 1.0
    %v8806 = vmul.f32 %v8774, %v8802
    %v8807 = vmul.f32 %v8775, %v8803
    %v8808 = vmul.f32 %v8776, %v8804
    %v8809 = vmul.f32 %v8777, %v8805
    %v8810 = vpack.c.bf16 %v8808, %v8806
    %v8811 = vpack.c.bf16 %v8809, %v8807
    %v8812 = vld [vmem:[%s47] sm:$0xf]
    %v8813 = vld [vmem:[%s47 + $0x4] sm:$0xf]
    %v8814 = vld [vmem:[%s47 + $0x8] sm:$0xf]
    %v8815 = vld [vmem:[%s47 + $0xc] sm:$0xf]
    %v8816 = vld [vmem:[%s47 + $0x10] sm:$0xf]
    %v8817 = vld [vmem:[%s47 + $0x14] sm:$0xf]
    %v8818 = vld [vmem:[%s47 + $0x18] sm:$0xf]
    %v8819 = vld [vmem:[%s47 + $0x1c] sm:$0xf]
    %v8820 = vld [vmem:[%s47 + $0x20] sm:$0xf]
    %v8821 = vld [vmem:[%s47 + $0x24] sm:$0xf]
    %v8822 = vld [vmem:[%s47 + $0x28] sm:$0xf]
    %v8823 = vld [vmem:[%s47 + $0x2c] sm:$0xf]
    %v8824 = vld [vmem:[%s47 + $0x30] sm:$0xf]
    %v8825 = vld [vmem:[%s47 + $0x34] sm:$0xf]
    %v8826 = vld [vmem:[%s47 + $0x38] sm:$0xf]
    %v8827 = vld [vmem:[%s47 + $0x3c] sm:$0xf]
    %v8828 = vld [vmem:[%s47 + $0x40] sm:$0xf]
    %v8829 = vld [vmem:[%s47 + $0x44] sm:$0xf]
    %v8830 = vld [vmem:[%s47 + $0x48] sm:$0xf]
    %v8831 = vld [vmem:[%s47 + $0x4c] sm:$0xf]
    %v8832 = vld [vmem:[%s47 + $0x50] sm:$0xf]
    %v8833 = vld [vmem:[%s47 + $0x54] sm:$0xf]
    %v8834 = vld [vmem:[%s47 + $0x58] sm:$0xf]
    %v8835 = vld [vmem:[%s47 + $0x5c] sm:$0xf]
    %v8836 = vld [vmem:[%s47 + $0x60] sm:$0xf]
    %v8837 = vld [vmem:[%s47 + $0x64] sm:$0xf]
    %v8838 = vld [vmem:[%s47 + $0x68] sm:$0xf]
    %v8839 = vld [vmem:[%s47 + $0x6c] sm:$0xf]
    %v8840 = vld [vmem:[%s47 + $0x70] sm:$0xf]
    %v8841 = vld [vmem:[%s47 + $0x74] sm:$0xf]
    %v8842 = vld [vmem:[%s47 + $0x78] sm:$0xf]
    %v8843 = vld [vmem:[%s47 + $0x7c] sm:$0xf]
    %v8876 = vunpack.c.l.b16 %v8812
    %v8877 = vunpack.c.l.b16 %v8813
    %v8878 = vunpack.c.l.b16 %v8814
    %v8879 = vunpack.c.l.b16 %v8815
    %v8880 = vunpack.c.l.b16 %v8816
    %v8881 = vunpack.c.l.b16 %v8817
    %v8882 = vunpack.c.l.b16 %v8818
    %v8883 = vunpack.c.l.b16 %v8819
    %v8884 = vunpack.c.l.b16 %v8820
    %v8885 = vunpack.c.l.b16 %v8821
    %v8886 = vunpack.c.l.b16 %v8822
    %v8887 = vunpack.c.l.b16 %v8823
    %v8888 = vunpack.c.l.b16 %v8824
    %v8889 = vunpack.c.l.b16 %v8825
    %v8890 = vunpack.c.l.b16 %v8826
    %v8891 = vunpack.c.l.b16 %v8827
    %v8892 = vunpack.c.l.b16 %v8828
    %v8893 = vunpack.c.l.b16 %v8829
    %v8894 = vunpack.c.l.b16 %v8830
    %v8895 = vunpack.c.l.b16 %v8831
    %v8896 = vunpack.c.l.b16 %v8832
    %v8897 = vunpack.c.l.b16 %v8833
    %v8898 = vunpack.c.l.b16 %v8834
    %v8899 = vunpack.c.l.b16 %v8835
    %v8900 = vunpack.c.l.b16 %v8836
    %v8901 = vunpack.c.l.b16 %v8837
    %v8902 = vunpack.c.l.b16 %v8838
    %v8903 = vunpack.c.l.b16 %v8839
    %v8904 = vunpack.c.l.b16 %v8840
    %v8905 = vunpack.c.l.b16 %v8841
    %v8906 = vunpack.c.l.b16 %v8842
    %v8907 = vunpack.c.l.b16 %v8843
    %v8908 = vpack.c.b16 %v8877, %v8876
    %v8909 = vpack.c.b16 %v8879, %v8878
    %v8910 = vpack.c.b16 %v8881, %v8880
    %v8911 = vpack.c.b16 %v8883, %v8882
    %v8912 = vpack.c.b16 %v8885, %v8884
    %v8913 = vpack.c.b16 %v8887, %v8886
    %v8914 = vpack.c.b16 %v8889, %v8888
    %v8915 = vpack.c.b16 %v8891, %v8890
    %v8916 = vpack.c.b16 %v8893, %v8892
    %v8917 = vpack.c.b16 %v8895, %v8894
    %v8918 = vpack.c.b16 %v8897, %v8896
    %v8919 = vpack.c.b16 %v8899, %v8898
    %v8920 = vpack.c.b16 %v8901, %v8900
    %v8921 = vpack.c.b16 %v8903, %v8902
    %v8922 = vpack.c.b16 %v8905, %v8904
    %v8923 = vpack.c.b16 %v8907, %v8906
    %8940 = vmatpush.bf16.msra.mxu0 %v8915
    %8941 = vmatpush.bf16.msra.mxu0 %v8914
    %8942 = vmatpush.bf16.msra.mxu0 %v8913
    %8943 = vmatpush.bf16.msra.mxu0 %v8912
    %8944 = vmatpush.bf16.msra.mxu0 %v8911
    %8945 = vmatpush.bf16.msra.mxu0 %v8910
    %8946 = vmatpush.bf16.msra.mxu0 %v8909
    %8947 = vmatpush.bf16.msra.mxu0 %v8908
    %8948 = vmatmul.bf16.gmra.mxu0 %v8810
    %v8949 = vpop.f32.mrf.mxu0
    %v8950 = vadd.f32 0.0, %v8949
    %v8951 = vpop.f32.mrf.mxu0
    %v8952 = vadd.f32 0.0, %v8951
    %8953 = vdwg.mxu0
    %8954 = vmatpush.bf16.msra.mxu0 %v8923
    %8955 = vmatpush.bf16.msra.mxu0 %v8922
    %8956 = vmatpush.bf16.msra.mxu0 %v8921
    %8957 = vmatpush.bf16.msra.mxu0 %v8920
    %8958 = vmatpush.bf16.msra.mxu0 %v8919
    %8959 = vmatpush.bf16.msra.mxu0 %v8918
    %8960 = vmatpush.bf16.msra.mxu0 %v8917
    %8961 = vmatpush.bf16.msra.mxu0 %v8916
    %8962 = vmatmul.bf16.gmra.mxu0 %v8811
    %v8963 = vpop.f32.mrf.mxu0
    %v8964 = vadd.f32 %v8950, %v8963
    %v8965 = vpop.f32.mrf.mxu0
    %v8966 = vadd.f32 %v8952, %v8965
    %8967 = vdwg.mxu0
    %v8968 = vadd.f32 %v8624, %v8964
    %v8969 = vadd.f32 %v8625, %v8966
    %v8970 = vld [vmem:[%s49] sm:$0x1]
    %v8972 = vperm.slane %v8970, 0
    %v8974 = vadd.f32 %v8968, %v8972
    %v8975 = vadd.f32 %v8969, %v8972
    %s8976 = scalar_lea.vmem %s27, 1
    %v8977 = vld [vmem:[%s8976] sm:$0x1]
    %s8978 = scalar_lea.vmem %s29, 1
    %v8979 = vld [vmem:[%s8978] sm:$0x1]
    %v8980 = vsel %vm7884, %v8974, 0.0
    %8981 = vadd.xlane.f32.xlu0 %v8980
    %v8982 = vpop.xlane.xlu0 %8981
    %v8983 = vsel %vm7884, %v8975, 0.0
    %8984 = vadd.xlane.f32.xlu0 %v8983
    %v8985 = vpop.xlane.xlu0 %8984
    %v8986 = vmul.f32 %v8982, %v7897
    %v8987 = vmul.f32 %v8985, %v7897
    %v8988 = vmul.f32 %v8974, %v8974
    %v8989 = vmul.f32 %v8975, %v8975
    %v8990 = vsel %vm7884, %v8988, 0.0
    %8991 = vadd.xlane.f32.xlu0 %v8990
    %v8992 = vpop.xlane.xlu0 %8991
    %v8993 = vsel %vm7884, %v8989, 0.0
    %8994 = vadd.xlane.f32.xlu0 %v8993
    %v8995 = vpop.xlane.xlu0 %8994
    %v8996 = vmul.f32 %v8992, %v7897
    %v8997 = vmul.f32 %v8995, %v7897
    %v8998 = vmul.f32 %v8986, %v8986
    %v8999 = vmul.f32 %v8987, %v8987
    %v9000 = vsub.f32 %v8996, %v8998
    %v9001 = vsub.f32 %v8997, %v8999
    %v9002 = vmax.f32 %v9000, 0.0
    %v9003 = vmax.f32 %v9001, 0.0
    %v9004 = vsub.f32 %v8974, %v8986
    %v9005 = vsub.f32 %v8975, %v8987
    %v9006 = vadd.f32 %v9002, 1e-06
    %v9007 = vadd.f32 %v9003, 1e-06
    %v9008 = vrsqrt.pop %v9006
    %v9009 = vmul.f32 %v9008, %v9006
    %v9010 = vmul.f32 %v9009, %v9008
    %v9011 = vmul.f32 0.5, %v9010
    %v9012 = vsub.f32 1.5, %v9011
    %v9013 = vmul.f32 %v9008, %v9012
    %vm9014 = vweird.f32 %v9006
    %vm9015 = vweird.f32 %v9008
    %vm9016 = vmor %vm9014, %vm9015
    %v9017 = vsel %vm9016, %v9008, %v9013
    %v9018 = vrsqrt.pop %v9007
    %v9019 = vmul.f32 %v9018, %v9007
    %v9020 = vmul.f32 %v9019, %v9018
    %v9021 = vmul.f32 0.5, %v9020
    %v9022 = vsub.f32 1.5, %v9021
    %v9023 = vmul.f32 %v9018, %v9022
    %vm9024 = vweird.f32 %v9007
    %vm9025 = vweird.f32 %v9018
    %vm9026 = vmor %vm9024, %vm9025
    %v9027 = vsel %vm9026, %v9018, %v9023
    %v9028 = vmul.f32 %v9004, %v9017
    %v9029 = vmul.f32 %v9005, %v9027
    %v9031 = vperm.slane %v8977, 0
    %v9033 = vmul.f32 %v9028, %v9031
    %v9034 = vmul.f32 %v9029, %v9031
    %v9036 = vperm.slane %v8979, 0
    %v9038 = vadd.f32 %v9033, %v9036
    %v9039 = vadd.f32 %v9034, %v9036
    %v9040 = vpack.c.bf16 %v9039, %v9038
    %s9041 = scalar_lea.vmem %s31, 64
    %v9042 = vld [vmem:[%s9041] sm:$0xff]
    %v9043 = vld [vmem:[%s9041 + $0x8] sm:$0xff]
    %v9044 = vld [vmem:[%s9041 + $0x10] sm:$0xff]
    %v9045 = vld [vmem:[%s9041 + $0x18] sm:$0xff]
    %v9046 = vld [vmem:[%s9041 + $0x20] sm:$0xff]
    %v9047 = vld [vmem:[%s9041 + $0x28] sm:$0xff]
    %v9048 = vld [vmem:[%s9041 + $0x30] sm:$0xff]
    %v9049 = vld [vmem:[%s9041 + $0x38] sm:$0xff]
    %s9050 = scalar_lea.vmem %s33, 2
    %v9051 = vld [vmem:[%s9050] sm:$0x3]
    %v9053 = vperm.slane %v9051, 0
    %v9054 = vperm.slane %v9051, 1
    %v9065 = vunpack.c.l.b16 %v9042
    %v9066 = vunpack.c.h.b16 %v9042
    %v9067 = vunpack.c.l.b16 %v9043
    %v9068 = vunpack.c.h.b16 %v9043
    %v9069 = vunpack.c.l.b16 %v9044
    %v9070 = vunpack.c.h.b16 %v9044
    %v9071 = vunpack.c.l.b16 %v9045
    %v9072 = vunpack.c.h.b16 %v9045
    %v9073 = vunpack.c.l.b16 %v9046
    %v9074 = vunpack.c.h.b16 %v9046
    %v9075 = vunpack.c.l.b16 %v9047
    %v9076 = vunpack.c.h.b16 %v9047
    %v9077 = vunpack.c.l.b16 %v9048
    %v9078 = vunpack.c.h.b16 %v9048
    %v9079 = vunpack.c.l.b16 %v9049
    %v9080 = vunpack.c.h.b16 %v9049
    %v9081 = vpack.c.b16 %v9067, %v9065
    %v9082 = vpack.c.b16 %v9068, %v9066
    %v9083 = vpack.c.b16 %v9071, %v9069
    %v9084 = vpack.c.b16 %v9072, %v9070
    %v9085 = vpack.c.b16 %v9075, %v9073
    %v9086 = vpack.c.b16 %v9076, %v9074
    %v9087 = vpack.c.b16 %v9079, %v9077
    %v9088 = vpack.c.b16 %v9080, %v9078
    %v9098 = vsel %vm7884, %v9040, 0
    %9100 = vmatpush.bf16.msra.mxu0 0
    %9101 = vmatpush.bf16.msra.mxu0 0
    %9102 = vmatpush.bf16.msra.mxu0 0
    %9103 = vmatpush.bf16.msra.mxu0 0
    %9104 = vmatpush.bf16.msra.mxu0 %v9087
    %9105 = vmatpush.bf16.msra.mxu0 %v9085
    %9106 = vmatpush.bf16.msra.mxu0 %v9083
    %9107 = vmatpush.bf16.msra.mxu0 %v9081
    %9108 = vmatmul.bf16.gmra.mxu0 %v9098
    %v9109 = vpop.f32.mrf.mxu0
    %v9110 = vadd.f32 %v9053, %v9109
    %v9111 = vpop.f32.mrf.mxu0
    %v9112 = vadd.f32 %v9053, %v9111
    %9113 = vdwg.mxu0
    %9114 = vmatpush.bf16.msra.mxu0 0
    %9115 = vmatpush.bf16.msra.mxu0 0
    %9116 = vmatpush.bf16.msra.mxu0 0
    %9117 = vmatpush.bf16.msra.mxu0 0
    %9118 = vmatpush.bf16.msra.mxu0 %v9088
    %9119 = vmatpush.bf16.msra.mxu0 %v9086
    %9120 = vmatpush.bf16.msra.mxu0 %v9084
    %9121 = vmatpush.bf16.msra.mxu0 %v9082
    %9122 = vmatmul.bf16.gmra.mxu0 %v9098
    %v9123 = vpop.f32.mrf.mxu0
    %v9124 = vadd.f32 %v9054, %v9123
    %v9125 = vpop.f32.mrf.mxu0
    %v9126 = vadd.f32 %v9054, %v9125
    %9127 = vdwg.mxu0
    %9130 = vrot.lane.b32.xlu0 %v9110, 64
    %v9131 = vpop.permute.xlu0 %9130
    %9132 = vrot.lane.b32.xlu0 %v9112, 64
    %v9133 = vpop.permute.xlu0 %9132
    %v9134 = vsel %vm8044, %v9110, 0
    %v9136 = vsel %vm8044, %v9112, 0
    %v9138 = vsel %vm8044, %v9131, 0
    %v9140 = vsel %vm8044, %v9133, 0
    %9142 = vmatpush.xpose.msra.mxu0 0.0
    %9143 = vmatpush.xpose.msra.mxu0 0.0
    %9144 = vmatpush.xpose.msra.mxu0 0.0
    %9145 = vmatpush.xpose.msra.mxu0 0.0
    %9146 = vmatpush.xpose.msra.mxu0 0.0
    %9147 = vmatpush.xpose.msra.mxu0 0.0
    %9148 = vmatpush.xpose.msra.mxu0 0.0
    %9149 = vmatpush.xpose.msra.mxu0 0.0
    %9150 = vmatpush.xpose.msra.mxu0 0.0
    %9151 = vmatpush.xpose.msra.mxu0 0.0
    %9152 = vmatpush.xpose.msra.mxu0 0.0
    %9153 = vmatpush.xpose.msra.mxu0 0.0
    %9154 = vmatpush.xpose.msra.mxu0 0.0
    %9155 = vmatpush.xpose.msra.mxu0 0.0
    %9156 = vmatpush.xpose.msra.mxu0 %v9140
    %9157 = vmatpush.xpose.msra.mxu0 %v9138
    %9158 = vmatmul.f32.gmra.mxu0 %v9134
    %v9159 = vpop.f32.mrf.mxu0
    %v9160 = vadd.f32 0.0, %v9159
    %9161 = vmatmul.f32.gmra.mxu0 %v9136
    %v9162 = vpop.f32.mrf.mxu0
    %v9163 = vadd.f32 0.0, %v9162
    %9164 = vdwg.mxu0
    %v9165 = vmul.f32 %v9160, 0.25
    %v9166 = vmul.f32 %v9163, 0.25
    %v9167 = vadd.f32 %v9165, %v7880
    %v9168 = vadd.f32 %v9166, %v7881
    %v9169 = vsel %vm8044, %v9167, -inf
    %9170 = vmax.xlane.f32.xlu0 %v9169
    %v9171 = vpop.xlane.xlu0 %9170
    %v9172 = vsel %vm8044, %v9168, -inf
    %9173 = vmax.xlane.f32.xlu0 %v9172
    %v9174 = vpop.xlane.xlu0 %9173
    %v9175 = vsub.f32 %v9167, %v9171
    %v9176 = vsub.f32 %v9168, %v9174
    %v9177 = vmul.f32 %v9175, 1.442695
    %v9178 = vpow.pop %v9177
    %v9179 = vmul.f32 %v9176, 1.442695
    %v9180 = vpow.pop %v9179
    %v9181 = vsel %vm8044, %v9178, 0.0
    %9182 = vadd.xlane.f32.xlu0 %v9181
    %v9183 = vpop.xlane.xlu0 %9182
    %v9184 = vsel %vm8044, %v9180, 0.0
    %9185 = vadd.xlane.f32.xlu0 %v9184
    %v9186 = vpop.xlane.xlu0 %9185
    %v9187 = vrcp.pop %v9183
    %v9188 = vmul.f32 %v9183, %v9187
    %v9189 = vsub.f32 1.0, %v9188
    %v9190 = vmul.f32 %v9187, %v9189
    %v9191 = vadd.f32 %v9187, %v9190
    %vm9192 = vweird.f32 %v9183
    %vm9193 = vweird.f32 %v9187
    %vm9194 = vmor %vm9192, %vm9193
    %v9195 = vsel %vm9194, %v9187, %v9191
    %v9196 = vand.u32 2147483647, %v9183
    %vm9197 = vcmp.eq.f32.partialorder %v9196, 8.507059e+37
    %v9198 = vand.u32 %v9183, 2147483648
    %v9199 = vor.u32 1.1754944e-38, %v9198
    %v9200 = vsel %vm9197, %v9199, %v9195
    %v9201 = vmul.f32 %v9178, %v9200
    %v9202 = vrcp.pop %v9186
    %v9203 = vmul.f32 %v9186, %v9202
    %v9204 = vsub.f32 1.0, %v9203
    %v9205 = vmul.f32 %v9202, %v9204
    %v9206 = vadd.f32 %v9202, %v9205
    %vm9207 = vweird.f32 %v9186
    %vm9208 = vweird.f32 %v9202
    %vm9209 = vmor %vm9207, %vm9208
    %v9210 = vsel %vm9209, %v9202, %v9206
    %v9211 = vand.u32 2147483647, %v9186
    %vm9212 = vcmp.eq.f32.partialorder %v9211, 8.507059e+37
    %v9213 = vand.u32 %v9186, 2147483648
    %v9214 = vor.u32 1.1754944e-38, %v9213
    %v9215 = vsel %vm9212, %v9214, %v9210
    %v9216 = vmul.f32 %v9180, %v9215
    %v9218 = vsel %vm8044, %v9201, 0
    %v9221 = vsel %vm8044, %v9216, 0
    %9223 = vmatpush.msra.mxu0 0.0
    %9224 = vmatpush.msra.mxu0 0.0
    %9225 = vmatpush.msra.mxu0 0.0
    %9226 = vmatpush.msra.mxu0 0.0
    %9227 = vmatpush.msra.mxu0 0.0
    %9228 = vmatpush.msra.mxu0 0.0
    %9229 = vmatpush.msra.mxu0 0.0
    %9230 = vmatpush.msra.mxu0 0.0
    %9231 = vmatpush.msra.mxu0 0.0
    %9232 = vmatpush.msra.mxu0 0.0
    %9233 = vmatpush.msra.mxu0 0.0
    %9234 = vmatpush.msra.mxu0 0.0
    %9235 = vmatpush.msra.mxu0 0.0
    %9236 = vmatpush.msra.mxu0 0.0
    %9237 = vmatpush.msra.mxu0 %v9126
    %9238 = vmatpush.msra.mxu0 %v9124
    %9239 = vmatmul.f32.gmra.mxu0 %v9218
    %v9240 = vpop.f32.mrf.mxu0
    %v9241 = vadd.f32 0.0, %v9240
    %9242 = vmatmul.f32.gmra.mxu0 %v9221
    %v9243 = vpop.f32.mrf.mxu0
    %v9244 = vadd.f32 0.0, %v9243
    %9245 = vdwg.mxu0
    %9246 = vrot.lane.b32.xlu0 %v9110, 112
    %v9247 = vpop.permute.xlu0 %9246
    %9248 = vrot.lane.b32.xlu0 %v9112, 112
    %v9249 = vpop.permute.xlu0 %9248
    %9250 = vrot.lane.b32.xlu0 %v9110, 48
    %v9251 = vpop.permute.xlu0 %9250
    %9252 = vrot.lane.b32.xlu0 %v9112, 48
    %v9253 = vpop.permute.xlu0 %9252
    %v9254 = vsel %vm8044, %v9247, 0
    %v9256 = vsel %vm8044, %v9249, 0
    %v9258 = vsel %vm8044, %v9251, 0
    %v9260 = vsel %vm8044, %v9253, 0
    %9262 = vmatpush.xpose.msra.mxu0 0.0
    %9263 = vmatpush.xpose.msra.mxu0 0.0
    %9264 = vmatpush.xpose.msra.mxu0 0.0
    %9265 = vmatpush.xpose.msra.mxu0 0.0
    %9266 = vmatpush.xpose.msra.mxu0 0.0
    %9267 = vmatpush.xpose.msra.mxu0 0.0
    %9268 = vmatpush.xpose.msra.mxu0 0.0
    %9269 = vmatpush.xpose.msra.mxu0 0.0
    %9270 = vmatpush.xpose.msra.mxu0 0.0
    %9271 = vmatpush.xpose.msra.mxu0 0.0
    %9272 = vmatpush.xpose.msra.mxu0 0.0
    %9273 = vmatpush.xpose.msra.mxu0 0.0
    %9274 = vmatpush.xpose.msra.mxu0 0.0
    %9275 = vmatpush.xpose.msra.mxu0 0.0
    %9276 = vmatpush.xpose.msra.mxu0 %v9260
    %9277 = vmatpush.xpose.msra.mxu0 %v9258
    %9278 = vmatmul.f32.gmra.mxu0 %v9254
    %v9279 = vpop.f32.mrf.mxu0
    %v9280 = vadd.f32 0.0, %v9279
    %9281 = vmatmul.f32.gmra.mxu0 %v9256
    %v9282 = vpop.f32.mrf.mxu0
    %v9283 = vadd.f32 0.0, %v9282
    %9284 = vdwg.mxu0
    %v9285 = vmul.f32 %v9280, 0.25
    %v9286 = vmul.f32 %v9283, 0.25
    %v9287 = vadd.f32 %v9285, %v7880
    %v9288 = vadd.f32 %v9286, %v7881
    %v9289 = vsel %vm8044, %v9287, -inf
    %9290 = vmax.xlane.f32.xlu0 %v9289
    %v9291 = vpop.xlane.xlu0 %9290
    %v9292 = vsel %vm8044, %v9288, -inf
    %9293 = vmax.xlane.f32.xlu0 %v9292
    %v9294 = vpop.xlane.xlu0 %9293
    %v9295 = vsub.f32 %v9287, %v9291
    %v9296 = vsub.f32 %v9288, %v9294
    %v9297 = vmul.f32 %v9295, 1.442695
    %v9298 = vpow.pop %v9297
    %v9299 = vmul.f32 %v9296, 1.442695
    %v9300 = vpow.pop %v9299
    %v9301 = vsel %vm8044, %v9298, 0.0
    %9302 = vadd.xlane.f32.xlu0 %v9301
    %v9303 = vpop.xlane.xlu0 %9302
    %v9304 = vsel %vm8044, %v9300, 0.0
    %9305 = vadd.xlane.f32.xlu0 %v9304
    %v9306 = vpop.xlane.xlu0 %9305
    %v9307 = vrcp.pop %v9303
    %v9308 = vmul.f32 %v9303, %v9307
    %v9309 = vsub.f32 1.0, %v9308
    %v9310 = vmul.f32 %v9307, %v9309
    %v9311 = vadd.f32 %v9307, %v9310
    %vm9312 = vweird.f32 %v9303
    %vm9313 = vweird.f32 %v9307
    %vm9314 = vmor %vm9312, %vm9313
    %v9315 = vsel %vm9314, %v9307, %v9311
    %v9316 = vand.u32 2147483647, %v9303
    %vm9317 = vcmp.eq.f32.partialorder %v9316, 8.507059e+37
    %v9318 = vand.u32 %v9303, 2147483648
    %v9319 = vor.u32 1.1754944e-38, %v9318
    %v9320 = vsel %vm9317, %v9319, %v9315
    %v9321 = vmul.f32 %v9298, %v9320
    %v9322 = vrcp.pop %v9306
    %v9323 = vmul.f32 %v9306, %v9322
    %v9324 = vsub.f32 1.0, %v9323
    %v9325 = vmul.f32 %v9322, %v9324
    %v9326 = vadd.f32 %v9322, %v9325
    %vm9327 = vweird.f32 %v9306
    %vm9328 = vweird.f32 %v9322
    %vm9329 = vmor %vm9327, %vm9328
    %v9330 = vsel %vm9329, %v9322, %v9326
    %v9331 = vand.u32 2147483647, %v9306
    %vm9332 = vcmp.eq.f32.partialorder %v9331, 8.507059e+37
    %v9333 = vand.u32 %v9306, 2147483648
    %v9334 = vor.u32 1.1754944e-38, %v9333
    %v9335 = vsel %vm9332, %v9334, %v9330
    %v9336 = vmul.f32 %v9300, %v9335
    %9339 = vrot.lane.b32.xlu0 %v9124, 112
    %v9340 = vpop.permute.xlu0 %9339
    %9341 = vrot.lane.b32.xlu0 %v9126, 112
    %v9342 = vpop.permute.xlu0 %9341
    %v9346 = vsel %vm8044, %v9321, 0
    %v9349 = vsel %vm8044, %v9336, 0
    %9351 = vmatpush.msra.mxu0 0.0
    %9352 = vmatpush.msra.mxu0 0.0
    %9353 = vmatpush.msra.mxu0 0.0
    %9354 = vmatpush.msra.mxu0 0.0
    %9355 = vmatpush.msra.mxu0 0.0
    %9356 = vmatpush.msra.mxu0 0.0
    %9357 = vmatpush.msra.mxu0 0.0
    %9358 = vmatpush.msra.mxu0 0.0
    %9359 = vmatpush.msra.mxu0 0.0
    %9360 = vmatpush.msra.mxu0 0.0
    %9361 = vmatpush.msra.mxu0 0.0
    %9362 = vmatpush.msra.mxu0 0.0
    %9363 = vmatpush.msra.mxu0 0.0
    %9364 = vmatpush.msra.mxu0 0.0
    %9365 = vmatpush.msra.mxu0 %v9342
    %9366 = vmatpush.msra.mxu0 %v9340
    %9367 = vmatmul.f32.gmra.mxu0 %v9346
    %v9368 = vpop.f32.mrf.mxu0
    %v9369 = vadd.f32 0.0, %v9368
    %9370 = vmatmul.f32.gmra.mxu0 %v9349
    %v9371 = vpop.f32.mrf.mxu0
    %v9372 = vadd.f32 0.0, %v9371
    %9373 = vdwg.mxu0
    %9374 = vrot.lane.b32.xlu0 %v9110, 96
    %v9375 = vpop.permute.xlu0 %9374
    %9376 = vrot.lane.b32.xlu0 %v9112, 96
    %v9377 = vpop.permute.xlu0 %9376
    %9378 = vrot.lane.b32.xlu0 %v9110, 32
    %v9379 = vpop.permute.xlu0 %9378
    %9380 = vrot.lane.b32.xlu0 %v9112, 32
    %v9381 = vpop.permute.xlu0 %9380
    %v9382 = vsel %vm8044, %v9375, 0
    %v9384 = vsel %vm8044, %v9377, 0
    %v9386 = vsel %vm8044, %v9379, 0
    %v9388 = vsel %vm8044, %v9381, 0
    %9390 = vmatpush.xpose.msra.mxu0 0.0
    %9391 = vmatpush.xpose.msra.mxu0 0.0
    %9392 = vmatpush.xpose.msra.mxu0 0.0
    %9393 = vmatpush.xpose.msra.mxu0 0.0
    %9394 = vmatpush.xpose.msra.mxu0 0.0
    %9395 = vmatpush.xpose.msra.mxu0 0.0
    %9396 = vmatpush.xpose.msra.mxu0 0.0
    %9397 = vmatpush.xpose.msra.mxu0 0.0
    %9398 = vmatpush.xpose.msra.mxu0 0.0
    %9399 = vmatpush.xpose.msra.mxu0 0.0
    %9400 = vmatpush.xpose.msra.mxu0 0.0
    %9401 = vmatpush.xpose.msra.mxu0 0.0
    %9402 = vmatpush.xpose.msra.mxu0 0.0
    %9403 = vmatpush.xpose.msra.mxu0 0.0
    %9404 = vmatpush.xpose.msra.mxu0 %v9388
    %9405 = vmatpush.xpose.msra.mxu0 %v9386
    %9406 = vmatmul.f32.gmra.mxu0 %v9382
    %v9407 = vpop.f32.mrf.mxu0
    %v9408 = vadd.f32 0.0, %v9407
    %9409 = vmatmul.f32.gmra.mxu0 %v9384
    %v9410 = vpop.f32.mrf.mxu0
    %v9411 = vadd.f32 0.0, %v9410
    %9412 = vdwg.mxu0
    %v9413 = vmul.f32 %v9408, 0.25
    %v9414 = vmul.f32 %v9411, 0.25
    %v9415 = vadd.f32 %v9413, %v7880
    %v9416 = vadd.f32 %v9414, %v7881
    %v9417 = vsel %vm8044, %v9415, -inf
    %9418 = vmax.xlane.f32.xlu0 %v9417
    %v9419 = vpop.xlane.xlu0 %9418
    %v9420 = vsel %vm8044, %v9416, -inf
    %9421 = vmax.xlane.f32.xlu0 %v9420
    %v9422 = vpop.xlane.xlu0 %9421
    %v9423 = vsub.f32 %v9415, %v9419
    %v9424 = vsub.f32 %v9416, %v9422
    %v9425 = vmul.f32 %v9423, 1.442695
    %v9426 = vpow.pop %v9425
    %v9427 = vmul.f32 %v9424, 1.442695
    %v9428 = vpow.pop %v9427
    %v9429 = vsel %vm8044, %v9426, 0.0
    %9430 = vadd.xlane.f32.xlu0 %v9429
    %v9431 = vpop.xlane.xlu0 %9430
    %v9432 = vsel %vm8044, %v9428, 0.0
    %9433 = vadd.xlane.f32.xlu0 %v9432
    %v9434 = vpop.xlane.xlu0 %9433
    %v9435 = vrcp.pop %v9431
    %v9436 = vmul.f32 %v9431, %v9435
    %v9437 = vsub.f32 1.0, %v9436
    %v9438 = vmul.f32 %v9435, %v9437
    %v9439 = vadd.f32 %v9435, %v9438
    %vm9440 = vweird.f32 %v9431
    %vm9441 = vweird.f32 %v9435
    %vm9442 = vmor %vm9440, %vm9441
    %v9443 = vsel %vm9442, %v9435, %v9439
    %v9444 = vand.u32 2147483647, %v9431
    %vm9445 = vcmp.eq.f32.partialorder %v9444, 8.507059e+37
    %v9446 = vand.u32 %v9431, 2147483648
    %v9447 = vor.u32 1.1754944e-38, %v9446
    %v9448 = vsel %vm9445, %v9447, %v9443
    %v9449 = vmul.f32 %v9426, %v9448
    %v9450 = vrcp.pop %v9434
    %v9451 = vmul.f32 %v9434, %v9450
    %v9452 = vsub.f32 1.0, %v9451
    %v9453 = vmul.f32 %v9450, %v9452
    %v9454 = vadd.f32 %v9450, %v9453
    %vm9455 = vweird.f32 %v9434
    %vm9456 = vweird.f32 %v9450
    %vm9457 = vmor %vm9455, %vm9456
    %v9458 = vsel %vm9457, %v9450, %v9454
    %v9459 = vand.u32 2147483647, %v9434
    %vm9460 = vcmp.eq.f32.partialorder %v9459, 8.507059e+37
    %v9461 = vand.u32 %v9434, 2147483648
    %v9462 = vor.u32 1.1754944e-38, %v9461
    %v9463 = vsel %vm9460, %v9462, %v9458
    %v9464 = vmul.f32 %v9428, %v9463
    %9465 = vrot.lane.b32.xlu0 %v9124, 96
    %v9466 = vpop.permute.xlu0 %9465
    %9467 = vrot.lane.b32.xlu0 %v9126, 96
    %v9468 = vpop.permute.xlu0 %9467
    %v9472 = vsel %vm8044, %v9449, 0
    %v9475 = vsel %vm8044, %v9464, 0
    %9477 = vmatpush.msra.mxu0 0.0
    %9478 = vmatpush.msra.mxu0 0.0
    %9479 = vmatpush.msra.mxu0 0.0
    %9480 = vmatpush.msra.mxu0 0.0
    %9481 = vmatpush.msra.mxu0 0.0
    %9482 = vmatpush.msra.mxu0 0.0
    %9483 = vmatpush.msra.mxu0 0.0
    %9484 = vmatpush.msra.mxu0 0.0
    %9485 = vmatpush.msra.mxu0 0.0
    %9486 = vmatpush.msra.mxu0 0.0
    %9487 = vmatpush.msra.mxu0 0.0
    %9488 = vmatpush.msra.mxu0 0.0
    %9489 = vmatpush.msra.mxu0 0.0
    %9490 = vmatpush.msra.mxu0 0.0
    %9491 = vmatpush.msra.mxu0 %v9468
    %9492 = vmatpush.msra.mxu0 %v9466
    %9493 = vmatmul.f32.gmra.mxu0 %v9472
    %v9494 = vpop.f32.mrf.mxu0
    %v9495 = vadd.f32 0.0, %v9494
    %9496 = vmatmul.f32.gmra.mxu0 %v9475
    %v9497 = vpop.f32.mrf.mxu0
    %v9498 = vadd.f32 0.0, %v9497
    %9499 = vdwg.mxu0
    %9500 = vrot.lane.b32.xlu0 %v9110, 80
    %v9501 = vpop.permute.xlu0 %9500
    %9502 = vrot.lane.b32.xlu0 %v9112, 80
    %v9503 = vpop.permute.xlu0 %9502
    %9504 = vrot.lane.b32.xlu0 %v9110, 16
    %v9505 = vpop.permute.xlu0 %9504
    %9506 = vrot.lane.b32.xlu0 %v9112, 16
    %v9507 = vpop.permute.xlu0 %9506
    %v9508 = vsel %vm8044, %v9501, 0
    %v9510 = vsel %vm8044, %v9503, 0
    %v9512 = vsel %vm8044, %v9505, 0
    %v9514 = vsel %vm8044, %v9507, 0
    %9516 = vmatpush.xpose.msra.mxu0 0.0
    %9517 = vmatpush.xpose.msra.mxu0 0.0
    %9518 = vmatpush.xpose.msra.mxu0 0.0
    %9519 = vmatpush.xpose.msra.mxu0 0.0
    %9520 = vmatpush.xpose.msra.mxu0 0.0
    %9521 = vmatpush.xpose.msra.mxu0 0.0
    %9522 = vmatpush.xpose.msra.mxu0 0.0
    %9523 = vmatpush.xpose.msra.mxu0 0.0
    %9524 = vmatpush.xpose.msra.mxu0 0.0
    %9525 = vmatpush.xpose.msra.mxu0 0.0
    %9526 = vmatpush.xpose.msra.mxu0 0.0
    %9527 = vmatpush.xpose.msra.mxu0 0.0
    %9528 = vmatpush.xpose.msra.mxu0 0.0
    %9529 = vmatpush.xpose.msra.mxu0 0.0
    %9530 = vmatpush.xpose.msra.mxu0 %v9514
    %9531 = vmatpush.xpose.msra.mxu0 %v9512
    %9532 = vmatmul.f32.gmra.mxu0 %v9508
    %v9533 = vpop.f32.mrf.mxu0
    %v9534 = vadd.f32 0.0, %v9533
    %9535 = vmatmul.f32.gmra.mxu0 %v9510
    %v9536 = vpop.f32.mrf.mxu0
    %v9537 = vadd.f32 0.0, %v9536
    %9538 = vdwg.mxu0
    %v9539 = vmul.f32 %v9534, 0.25
    %v9540 = vmul.f32 %v9537, 0.25
    %v9541 = vadd.f32 %v9539, %v7880
    %v9542 = vadd.f32 %v9540, %v7881
    %v9543 = vsel %vm8044, %v9541, -inf
    %9544 = vmax.xlane.f32.xlu0 %v9543
    %v9545 = vpop.xlane.xlu0 %9544
    %v9546 = vsel %vm8044, %v9542, -inf
    %9547 = vmax.xlane.f32.xlu0 %v9546
    %v9548 = vpop.xlane.xlu0 %9547
    %v9549 = vsub.f32 %v9541, %v9545
    %v9550 = vsub.f32 %v9542, %v9548
    %v9551 = vmul.f32 %v9549, 1.442695
    %v9552 = vpow.pop %v9551
    %v9553 = vmul.f32 %v9550, 1.442695
    %v9554 = vpow.pop %v9553
    %v9555 = vsel %vm8044, %v9552, 0.0
    %9556 = vadd.xlane.f32.xlu0 %v9555
    %v9557 = vpop.xlane.xlu0 %9556
    %v9558 = vsel %vm8044, %v9554, 0.0
    %9559 = vadd.xlane.f32.xlu0 %v9558
    %v9560 = vpop.xlane.xlu0 %9559
    %v9561 = vrcp.pop %v9557
    %v9562 = vmul.f32 %v9557, %v9561
    %v9563 = vsub.f32 1.0, %v9562
    %v9564 = vmul.f32 %v9561, %v9563
    %v9565 = vadd.f32 %v9561, %v9564
    %vm9566 = vweird.f32 %v9557
    %vm9567 = vweird.f32 %v9561
    %vm9568 = vmor %vm9566, %vm9567
    %v9569 = vsel %vm9568, %v9561, %v9565
    %v9570 = vand.u32 2147483647, %v9557
    %vm9571 = vcmp.eq.f32.partialorder %v9570, 8.507059e+37
    %v9572 = vand.u32 %v9557, 2147483648
    %v9573 = vor.u32 1.1754944e-38, %v9572
    %v9574 = vsel %vm9571, %v9573, %v9569
    %v9575 = vmul.f32 %v9552, %v9574
    %v9576 = vrcp.pop %v9560
    %v9577 = vmul.f32 %v9560, %v9576
    %v9578 = vsub.f32 1.0, %v9577
    %v9579 = vmul.f32 %v9576, %v9578
    %v9580 = vadd.f32 %v9576, %v9579
    %vm9581 = vweird.f32 %v9560
    %vm9582 = vweird.f32 %v9576
    %vm9583 = vmor %vm9581, %vm9582
    %v9584 = vsel %vm9583, %v9576, %v9580
    %v9585 = vand.u32 2147483647, %v9560
    %vm9586 = vcmp.eq.f32.partialorder %v9585, 8.507059e+37
    %v9587 = vand.u32 %v9560, 2147483648
    %v9588 = vor.u32 1.1754944e-38, %v9587
    %v9589 = vsel %vm9586, %v9588, %v9584
    %v9590 = vmul.f32 %v9554, %v9589
    %9591 = vrot.lane.b32.xlu0 %v9124, 80
    %v9592 = vpop.permute.xlu0 %9591
    %9593 = vrot.lane.b32.xlu0 %v9126, 80
    %v9594 = vpop.permute.xlu0 %9593
    %v9598 = vsel %vm8044, %v9575, 0
    %v9601 = vsel %vm8044, %v9590, 0
    %9603 = vmatpush.msra.mxu0 0.0
    %9604 = vmatpush.msra.mxu0 0.0
    %9605 = vmatpush.msra.mxu0 0.0
    %9606 = vmatpush.msra.mxu0 0.0
    %9607 = vmatpush.msra.mxu0 0.0
    %9608 = vmatpush.msra.mxu0 0.0
    %9609 = vmatpush.msra.mxu0 0.0
    %9610 = vmatpush.msra.mxu0 0.0
    %9611 = vmatpush.msra.mxu0 0.0
    %9612 = vmatpush.msra.mxu0 0.0
    %9613 = vmatpush.msra.mxu0 0.0
    %9614 = vmatpush.msra.mxu0 0.0
    %9615 = vmatpush.msra.mxu0 0.0
    %9616 = vmatpush.msra.mxu0 0.0
    %9617 = vmatpush.msra.mxu0 %v9594
    %9618 = vmatpush.msra.mxu0 %v9592
    %9619 = vmatmul.f32.gmra.mxu0 %v9598
    %v9620 = vpop.f32.mrf.mxu0
    %v9621 = vadd.f32 0.0, %v9620
    %9622 = vmatmul.f32.gmra.mxu0 %v9601
    %v9623 = vpop.f32.mrf.mxu0
    %v9624 = vadd.f32 0.0, %v9623
    %9625 = vdwg.mxu0
    %9628 = vrot.lane.b32.xlu0 %v9369, 16
    %v9629 = vpop.permute.xlu0 %9628
    %9630 = vrot.lane.b32.xlu0 %v9372, 16
    %v9631 = vpop.permute.xlu0 %9630
    %9636 = vrot.lane.b32.xlu0 %v9495, 32
    %v9637 = vpop.permute.xlu0 %9636
    %9638 = vrot.lane.b32.xlu0 %v9498, 32
    %v9639 = vpop.permute.xlu0 %9638
    %9644 = vrot.lane.b32.xlu0 %v9621, 48
    %v9645 = vpop.permute.xlu0 %9644
    %9646 = vrot.lane.b32.xlu0 %v9624, 48
    %v9647 = vpop.permute.xlu0 %9646
    %v9650 = vsel %vm8044, %v9241, %v9629
    %v9651 = vsel %vm8044, %v9244, %v9631
    %v9652 = vsel %vm3155, %v9650, %v9637
    %v9653 = vsel %vm3155, %v9651, %v9639
    %v9654 = vsel %vm8565, %v9652, %v9645
    %v9655 = vsel %vm8565, %v9653, %v9647
    %v9656 = vpack.c.bf16 %v9655, %v9654
    %s9657 = scalar_lea.vmem %s35, 32
    %v9658 = vld [vmem:[%s9657] sm:$0xf]
    %v9659 = vld [vmem:[%s9657 + $0x4] sm:$0xf]
    %v9660 = vld [vmem:[%s9657 + $0x8] sm:$0xf]
    %v9661 = vld [vmem:[%s9657 + $0xc] sm:$0xf]
    %v9662 = vld [vmem:[%s9657 + $0x10] sm:$0xf]
    %v9663 = vld [vmem:[%s9657 + $0x14] sm:$0xf]
    %v9664 = vld [vmem:[%s9657 + $0x18] sm:$0xf]
    %v9665 = vld [vmem:[%s9657 + $0x1c] sm:$0xf]
    %v9674 = vunpack.c.l.b16 %v9658
    %v9675 = vunpack.c.l.b16 %v9659
    %v9676 = vunpack.c.l.b16 %v9660
    %v9677 = vunpack.c.l.b16 %v9661
    %v9678 = vunpack.c.l.b16 %v9662
    %v9679 = vunpack.c.l.b16 %v9663
    %v9680 = vunpack.c.l.b16 %v9664
    %v9681 = vunpack.c.l.b16 %v9665
    %v9682 = vpack.c.b16 %v9675, %v9674
    %v9683 = vpack.c.b16 %v9677, %v9676
    %v9684 = vpack.c.b16 %v9679, %v9678
    %v9685 = vpack.c.b16 %v9681, %v9680
    %v9691 = vsel %vm7884, %v9656, 0
    %9693 = vmatpush.bf16.msra.mxu0 0
    %9694 = vmatpush.bf16.msra.mxu0 0
    %9695 = vmatpush.bf16.msra.mxu0 0
    %9696 = vmatpush.bf16.msra.mxu0 0
    %9697 = vmatpush.bf16.msra.mxu0 %v9685
    %9698 = vmatpush.bf16.msra.mxu0 %v9684
    %9699 = vmatpush.bf16.msra.mxu0 %v9683
    %9700 = vmatpush.bf16.msra.mxu0 %v9682
    %9701 = vmatmul.bf16.gmra.mxu0 %v9691
    %v9702 = vpop.f32.mrf.mxu0
    %v9703 = vadd.f32 0.0, %v9702
    %v9704 = vpop.f32.mrf.mxu0
    %v9705 = vadd.f32 0.0, %v9704
    %9706 = vdwg.mxu0
    %v9707 = vadd.f32 %v8974, %v9703
    %v9708 = vadd.f32 %v8975, %v9705
    %s9709 = scalar_lea.vmem %s37, 1
    %v9710 = vld [vmem:[%s9709] sm:$0x1]
    %v9712 = vperm.slane %v9710, 0
    %v9714 = vadd.f32 %v9707, %v9712
    %v9715 = vadd.f32 %v9708, %v9712
    %s9716 = scalar_lea.vmem %s39, 1
    %v9717 = vld [vmem:[%s9716] sm:$0x1]
    %s9718 = scalar_lea.vmem %s41, 1
    %v9719 = vld [vmem:[%s9718] sm:$0x1]
    %v9720 = vsel %vm7884, %v9714, 0.0
    %9721 = vadd.xlane.f32.xlu0 %v9720
    %v9722 = vpop.xlane.xlu0 %9721
    %v9723 = vsel %vm7884, %v9715, 0.0
    %9724 = vadd.xlane.f32.xlu0 %v9723
    %v9725 = vpop.xlane.xlu0 %9724
    %v9726 = vmul.f32 %v9722, %v7897
    %v9727 = vmul.f32 %v9725, %v7897
    %v9728 = vmul.f32 %v9714, %v9714
    %v9729 = vmul.f32 %v9715, %v9715
    %v9730 = vsel %vm7884, %v9728, 0.0
    %9731 = vadd.xlane.f32.xlu0 %v9730
    %v9732 = vpop.xlane.xlu0 %9731
    %v9733 = vsel %vm7884, %v9729, 0.0
    %9734 = vadd.xlane.f32.xlu0 %v9733
    %v9735 = vpop.xlane.xlu0 %9734
    %v9736 = vmul.f32 %v9732, %v7897
    %v9737 = vmul.f32 %v9735, %v7897
    %v9738 = vmul.f32 %v9726, %v9726
    %v9739 = vmul.f32 %v9727, %v9727
    %v9740 = vsub.f32 %v9736, %v9738
    %v9741 = vsub.f32 %v9737, %v9739
    %v9742 = vmax.f32 %v9740, 0.0
    %v9743 = vmax.f32 %v9741, 0.0
    %v9744 = vsub.f32 %v9714, %v9726
    %v9745 = vsub.f32 %v9715, %v9727
    %v9746 = vadd.f32 %v9742, 1e-06
    %v9747 = vadd.f32 %v9743, 1e-06
    %v9748 = vrsqrt.pop %v9746
    %v9749 = vmul.f32 %v9748, %v9746
    %v9750 = vmul.f32 %v9749, %v9748
    %v9751 = vmul.f32 0.5, %v9750
    %v9752 = vsub.f32 1.5, %v9751
    %v9753 = vmul.f32 %v9748, %v9752
    %vm9754 = vweird.f32 %v9746
    %vm9755 = vweird.f32 %v9748
    %vm9756 = vmor %vm9754, %vm9755
    %v9757 = vsel %vm9756, %v9748, %v9753
    %v9758 = vrsqrt.pop %v9747
    %v9759 = vmul.f32 %v9758, %v9747
    %v9760 = vmul.f32 %v9759, %v9758
    %v9761 = vmul.f32 0.5, %v9760
    %v9762 = vsub.f32 1.5, %v9761
    %v9763 = vmul.f32 %v9758, %v9762
    %vm9764 = vweird.f32 %v9747
    %vm9765 = vweird.f32 %v9758
    %vm9766 = vmor %vm9764, %vm9765
    %v9767 = vsel %vm9766, %v9758, %v9763
    %v9768 = vmul.f32 %v9744, %v9757
    %v9769 = vmul.f32 %v9745, %v9767
    %v9771 = vperm.slane %v9717, 0
    %v9773 = vmul.f32 %v9768, %v9771
    %v9774 = vmul.f32 %v9769, %v9771
    %v9776 = vperm.slane %v9719, 0
    %v9778 = vadd.f32 %v9773, %v9776
    %v9779 = vadd.f32 %v9774, %v9776
    %v9780 = vpack.c.bf16 %v9779, %v9778
    %s9781 = scalar_lea.vmem %s43, 64
    %v9782 = vld [vmem:[%s9781] sm:$0xff]
    %v9783 = vld [vmem:[%s9781 + $0x8] sm:$0xff]
    %v9784 = vld [vmem:[%s9781 + $0x10] sm:$0xff]
    %v9785 = vld [vmem:[%s9781 + $0x18] sm:$0xff]
    %v9786 = vld [vmem:[%s9781 + $0x20] sm:$0xff]
    %v9787 = vld [vmem:[%s9781 + $0x28] sm:$0xff]
    %v9788 = vld [vmem:[%s9781 + $0x30] sm:$0xff]
    %v9789 = vld [vmem:[%s9781 + $0x38] sm:$0xff]
    %s9790 = scalar_lea.vmem %s45, 2
    %v9791 = vld [vmem:[%s9790] sm:$0x3]
    %v9793 = vperm.slane %v9791, 0
    %v9794 = vperm.slane %v9791, 1
    %v9805 = vunpack.c.l.b16 %v9782
    %v9806 = vunpack.c.h.b16 %v9782
    %v9807 = vunpack.c.l.b16 %v9783
    %v9808 = vunpack.c.h.b16 %v9783
    %v9809 = vunpack.c.l.b16 %v9784
    %v9810 = vunpack.c.h.b16 %v9784
    %v9811 = vunpack.c.l.b16 %v9785
    %v9812 = vunpack.c.h.b16 %v9785
    %v9813 = vunpack.c.l.b16 %v9786
    %v9814 = vunpack.c.h.b16 %v9786
    %v9815 = vunpack.c.l.b16 %v9787
    %v9816 = vunpack.c.h.b16 %v9787
    %v9817 = vunpack.c.l.b16 %v9788
    %v9818 = vunpack.c.h.b16 %v9788
    %v9819 = vunpack.c.l.b16 %v9789
    %v9820 = vunpack.c.h.b16 %v9789
    %v9821 = vpack.c.b16 %v9807, %v9805
    %v9822 = vpack.c.b16 %v9808, %v9806
    %v9823 = vpack.c.b16 %v9811, %v9809
    %v9824 = vpack.c.b16 %v9812, %v9810
    %v9825 = vpack.c.b16 %v9815, %v9813
    %v9826 = vpack.c.b16 %v9816, %v9814
    %v9827 = vpack.c.b16 %v9819, %v9817
    %v9828 = vpack.c.b16 %v9820, %v9818
    %v9838 = vsel %vm7884, %v9780, 0
    %9840 = vmatpush.bf16.msra.mxu0 0
    %9841 = vmatpush.bf16.msra.mxu0 0
    %9842 = vmatpush.bf16.msra.mxu0 0
    %9843 = vmatpush.bf16.msra.mxu0 0
    %9844 = vmatpush.bf16.msra.mxu0 %v9827
    %9845 = vmatpush.bf16.msra.mxu0 %v9825
    %9846 = vmatpush.bf16.msra.mxu0 %v9823
    %9847 = vmatpush.bf16.msra.mxu0 %v9821
    %9848 = vmatmul.bf16.gmra.mxu0 %v9838
    %v9849 = vpop.f32.mrf.mxu0
    %v9850 = vadd.f32 %v9793, %v9849
    %v9851 = vpop.f32.mrf.mxu0
    %v9852 = vadd.f32 %v9793, %v9851
    %9853 = vdwg.mxu0
    %9854 = vmatpush.bf16.msra.mxu0 0
    %9855 = vmatpush.bf16.msra.mxu0 0
    %9856 = vmatpush.bf16.msra.mxu0 0
    %9857 = vmatpush.bf16.msra.mxu0 0
    %9858 = vmatpush.bf16.msra.mxu0 %v9828
    %9859 = vmatpush.bf16.msra.mxu0 %v9826
    %9860 = vmatpush.bf16.msra.mxu0 %v9824
    %9861 = vmatpush.bf16.msra.mxu0 %v9822
    %9862 = vmatmul.bf16.gmra.mxu0 %v9838
    %v9863 = vpop.f32.mrf.mxu0
    %v9864 = vadd.f32 %v9794, %v9863
    %v9865 = vpop.f32.mrf.mxu0
    %v9866 = vadd.f32 %v9794, %v9865
    %9867 = vdwg.mxu0
    %v9868 = vmul.f32 %v9850, 0.5
    %v9869 = vmul.f32 %v9864, 0.5
    %v9870 = vmul.f32 %v9852, 0.5
    %v9871 = vmul.f32 %v9866, 0.5
    %v9872 = vmul.f32 %v9850, 0.044715
    %v9873 = vmul.f32 %v9864, 0.044715
    %v9874 = vmul.f32 %v9852, 0.044715
    %v9875 = vmul.f32 %v9866, 0.044715
    %v9876 = vmul.f32 %v9872, %v9850
    %v9877 = vmul.f32 %v9873, %v9864
    %v9878 = vmul.f32 %v9874, %v9852
    %v9879 = vmul.f32 %v9875, %v9866
    %v9880 = vmul.f32 %v9876, %v9850
    %v9881 = vmul.f32 %v9877, %v9864
    %v9882 = vmul.f32 %v9878, %v9852
    %v9883 = vmul.f32 %v9879, %v9866
    %v9884 = vadd.f32 %v9850, %v9880
    %v9885 = vadd.f32 %v9864, %v9881
    %v9886 = vadd.f32 %v9852, %v9882
    %v9887 = vadd.f32 %v9866, %v9883
    %v9888 = vmul.f32 %v9884, 0.7978845
    %v9889 = vmul.f32 %v9885, 0.7978845
    %v9890 = vmul.f32 %v9886, 0.7978845
    %v9891 = vmul.f32 %v9887, 0.7978845
    %v9892 = vtanh.pop %v9888
    %v9893 = vtanh.pop %v9889
    %v9894 = vtanh.pop %v9890
    %v9895 = vtanh.pop %v9891
    %v9896 = vadd.f32 %v9892, 1.0
    %v9897 = vadd.f32 %v9893, 1.0
    %v9898 = vadd.f32 %v9894, 1.0
    %v9899 = vadd.f32 %v9895, 1.0
    %v9900 = vmul.f32 %v9868, %v9896
    %v9901 = vmul.f32 %v9869, %v9897
    %v9902 = vmul.f32 %v9870, %v9898
    %v9903 = vmul.f32 %v9871, %v9899
    %v9904 = vpack.c.bf16 %v9902, %v9900
    %v9905 = vpack.c.bf16 %v9903, %v9901
    %s9906 = scalar_lea.vmem %s47, 128
    %v9907 = vld [vmem:[%s9906] sm:$0xf]
    %v9908 = vld [vmem:[%s9906 + $0x4] sm:$0xf]
    %v9909 = vld [vmem:[%s9906 + $0x8] sm:$0xf]
    %v9910 = vld [vmem:[%s9906 + $0xc] sm:$0xf]
    %v9911 = vld [vmem:[%s9906 + $0x10] sm:$0xf]
    %v9912 = vld [vmem:[%s9906 + $0x14] sm:$0xf]
    %v9913 = vld [vmem:[%s9906 + $0x18] sm:$0xf]
    %v9914 = vld [vmem:[%s9906 + $0x1c] sm:$0xf]
    %v9915 = vld [vmem:[%s9906 + $0x20] sm:$0xf]
    %v9916 = vld [vmem:[%s9906 + $0x24] sm:$0xf]
    %v9917 = vld [vmem:[%s9906 + $0x28] sm:$0xf]
    %v9918 = vld [vmem:[%s9906 + $0x2c] sm:$0xf]
    %v9919 = vld [vmem:[%s9906 + $0x30] sm:$0xf]
    %v9920 = vld [vmem:[%s9906 + $0x34] sm:$0xf]
    %v9921 = vld [vmem:[%s9906 + $0x38] sm:$0xf]
    %v9922 = vld [vmem:[%s9906 + $0x3c] sm:$0xf]
    %v9923 = vld [vmem:[%s9906 + $0x40] sm:$0xf]
    %v9924 = vld [vmem:[%s9906 + $0x44] sm:$0xf]
    %v9925 = vld [vmem:[%s9906 + $0x48] sm:$0xf]
    %v9926 = vld [vmem:[%s9906 + $0x4c] sm:$0xf]
    %v9927 = vld [vmem:[%s9906 + $0x50] sm:$0xf]
    %v9928 = vld [vmem:[%s9906 + $0x54] sm:$0xf]
    %v9929 = vld [vmem:[%s9906 + $0x58] sm:$0xf]
    %v9930 = vld [vmem:[%s9906 + $0x5c] sm:$0xf]
    %v9931 = vld [vmem:[%s9906 + $0x60] sm:$0xf]
    %v9932 = vld [vmem:[%s9906 + $0x64] sm:$0xf]
    %v9933 = vld [vmem:[%s9906 + $0x68] sm:$0xf]
    %v9934 = vld [vmem:[%s9906 + $0x6c] sm:$0xf]
    %v9935 = vld [vmem:[%s9906 + $0x70] sm:$0xf]
    %v9936 = vld [vmem:[%s9906 + $0x74] sm:$0xf]
    %v9937 = vld [vmem:[%s9906 + $0x78] sm:$0xf]
    %v9938 = vld [vmem:[%s9906 + $0x7c] sm:$0xf]
    %v9971 = vunpack.c.l.b16 %v9907
    %v9972 = vunpack.c.l.b16 %v9908
    %v9973 = vunpack.c.l.b16 %v9909
    %v9974 = vunpack.c.l.b16 %v9910
    %v9975 = vunpack.c.l.b16 %v9911
    %v9976 = vunpack.c.l.b16 %v9912
    %v9977 = vunpack.c.l.b16 %v9913
    %v9978 = vunpack.c.l.b16 %v9914
    %v9979 = vunpack.c.l.b16 %v9915
    %v9980 = vunpack.c.l.b16 %v9916
    %v9981 = vunpack.c.l.b16 %v9917
    %v9982 = vunpack.c.l.b16 %v9918
    %v9983 = vunpack.c.l.b16 %v9919
    %v9984 = vunpack.c.l.b16 %v9920
    %v9985 = vunpack.c.l.b16 %v9921
    %v9986 = vunpack.c.l.b16 %v9922
    %v9987 = vunpack.c.l.b16 %v9923
    %v9988 = vunpack.c.l.b16 %v9924
    %v9989 = vunpack.c.l.b16 %v9925
    %v9990 = vunpack.c.l.b16 %v9926
    %v9991 = vunpack.c.l.b16 %v9927
    %v9992 = vunpack.c.l.b16 %v9928
    %v9993 = vunpack.c.l.b16 %v9929
    %v9994 = vunpack.c.l.b16 %v9930
    %v9995 = vunpack.c.l.b16 %v9931
    %v9996 = vunpack.c.l.b16 %v9932
    %v9997 = vunpack.c.l.b16 %v9933
    %v9998 = vunpack.c.l.b16 %v9934
    %v9999 = vunpack.c.l.b16 %v9935
    %v10000 = vunpack.c.l.b16 %v9936
    %v10001 = vunpack.c.l.b16 %v9937
    %v10002 = vunpack.c.l.b16 %v9938
    %v10003 = vpack.c.b16 %v9972, %v9971
    %v10004 = vpack.c.b16 %v9974, %v9973
    %v10005 = vpack.c.b16 %v9976, %v9975
    %v10006 = vpack.c.b16 %v9978, %v9977
    %v10007 = vpack.c.b16 %v9980, %v9979
    %v10008 = vpack.c.b16 %v9982, %v9981
    %v10009 = vpack.c.b16 %v9984, %v9983
    %v10010 = vpack.c.b16 %v9986, %v9985
    %v10011 = vpack.c.b16 %v9988, %v9987
    %v10012 = vpack.c.b16 %v9990, %v9989
    %v10013 = vpack.c.b16 %v9992, %v9991
    %v10014 = vpack.c.b16 %v9994, %v9993
    %v10015 = vpack.c.b16 %v9996, %v9995
    %v10016 = vpack.c.b16 %v9998, %v9997
    %v10017 = vpack.c.b16 %v10000, %v9999
    %v10018 = vpack.c.b16 %v10002, %v10001
    %10035 = vmatpush.bf16.msra.mxu0 %v10010
    %10036 = vmatpush.bf16.msra.mxu0 %v10009
    %10037 = vmatpush.bf16.msra.mxu0 %v10008
    %10038 = vmatpush.bf16.msra.mxu0 %v10007
    %10039 = vmatpush.bf16.msra.mxu0 %v10006
    %10040 = vmatpush.bf16.msra.mxu0 %v10005
    %10041 = vmatpush.bf16.msra.mxu0 %v10004
    %10042 = vmatpush.bf16.msra.mxu0 %v10003
    %10043 = vmatmul.bf16.gmra.mxu0 %v9904
    %v10044 = vpop.f32.mrf.mxu0
    %v10045 = vadd.f32 0.0, %v10044
    %v10046 = vpop.f32.mrf.mxu0
    %v10047 = vadd.f32 0.0, %v10046
    %10048 = vdwg.mxu0
    %10049 = vmatpush.bf16.msra.mxu0 %v10018
    %10050 = vmatpush.bf16.msra.mxu0 %v10017
    %10051 = vmatpush.bf16.msra.mxu0 %v10016
    %10052 = vmatpush.bf16.msra.mxu0 %v10015
    %10053 = vmatpush.bf16.msra.mxu0 %v10014
    %10054 = vmatpush.bf16.msra.mxu0 %v10013
    %10055 = vmatpush.bf16.msra.mxu0 %v10012
    %10056 = vmatpush.bf16.msra.mxu0 %v10011
    %10057 = vmatmul.bf16.gmra.mxu0 %v9905
    %v10058 = vpop.f32.mrf.mxu0
    %v10059 = vadd.f32 %v10045, %v10058
    %v10060 = vpop.f32.mrf.mxu0
    %v10061 = vadd.f32 %v10047, %v10060
    %10062 = vdwg.mxu0
    %v10063 = vadd.f32 %v9714, %v10059
    %v10064 = vadd.f32 %v9715, %v10061
    %s10065 = scalar_lea.vmem %s49, 1
    %v10066 = vld [vmem:[%s10065] sm:$0x1]
    %v10068 = vperm.slane %v10066, 0
    %v10070 = vadd.f32 %v10063, %v10068
    %v10071 = vadd.f32 %v10064, %v10068
    %v10072 = vld [vmem:[%s51] sm:$0x1]
    %v10073 = vld [vmem:[%s53] sm:$0x1]
    %v10074 = vsel %vm7884, %v10070, 0.0
    %10075 = vadd.xlane.f32.xlu0 %v10074
    %v10076 = vpop.xlane.xlu0 %10075
    %v10077 = vsel %vm7884, %v10071, 0.0
    %10078 = vadd.xlane.f32.xlu0 %v10077
    %v10079 = vpop.xlane.xlu0 %10078
    %v10080 = vmul.f32 %v10076, %v7897
    %v10081 = vmul.f32 %v10079, %v7897
    %v10082 = vmul.f32 %v10070, %v10070
    %v10083 = vmul.f32 %v10071, %v10071
    %v10084 = vsel %vm7884, %v10082, 0.0
    %10085 = vadd.xlane.f32.xlu0 %v10084
    %v10086 = vpop.xlane.xlu0 %10085
    %v10087 = vsel %vm7884, %v10083, 0.0
    %10088 = vadd.xlane.f32.xlu0 %v10087
    %v10089 = vpop.xlane.xlu0 %10088
    %v10090 = vmul.f32 %v10086, %v7897
    %v10091 = vmul.f32 %v10089, %v7897
    %v10092 = vmul.f32 %v10080, %v10080
    %v10093 = vmul.f32 %v10081, %v10081
    %v10094 = vsub.f32 %v10090, %v10092
    %v10095 = vsub.f32 %v10091, %v10093
    %v10096 = vmax.f32 %v10094, 0.0
    %v10097 = vmax.f32 %v10095, 0.0
    %v10098 = vsub.f32 %v10070, %v10080
    %v10099 = vsub.f32 %v10071, %v10081
    %v10100 = vadd.f32 %v10096, 1e-06
    %v10101 = vadd.f32 %v10097, 1e-06
    %v10102 = vrsqrt.pop %v10100
    %v10103 = vmul.f32 %v10102, %v10100
    %v10104 = vmul.f32 %v10103, %v10102
    %v10105 = vmul.f32 0.5, %v10104
    %v10106 = vsub.f32 1.5, %v10105
    %v10107 = vmul.f32 %v10102, %v10106
    %vm10108 = vweird.f32 %v10100
    %vm10109 = vweird.f32 %v10102
    %vm10110 = vmor %vm10108, %vm10109
    %v10111 = vsel %vm10110, %v10102, %v10107
    %v10112 = vrsqrt.pop %v10101
    %v10113 = vmul.f32 %v10112, %v10101
    %v10114 = vmul.f32 %v10113, %v10112
    %v10115 = vmul.f32 0.5, %v10114
    %v10116 = vsub.f32 1.5, %v10115
    %v10117 = vmul.f32 %v10112, %v10116
    %vm10118 = vweird.f32 %v10101
    %vm10119 = vweird.f32 %v10112
    %vm10120 = vmor %vm10118, %vm10119
    %v10121 = vsel %vm10120, %v10112, %v10117
    %v10122 = vmul.f32 %v10098, %v10111
    %v10123 = vmul.f32 %v10099, %v10121
    %v10125 = vperm.slane %v10072, 0
    %v10127 = vmul.f32 %v10122, %v10125
    %v10128 = vmul.f32 %v10123, %v10125
    %v10130 = vperm.slane %v10073, 0
    %v10132 = vadd.f32 %v10127, %v10130
    %v10133 = vadd.f32 %v10128, %v10130
    %v10135 = vrot.slane %v10133, 7
    %v10137 = vsel %vm997, %v10132, %v10135
    %v10138 = vpack.c.bf16 %v10137, %v10137
    %v10139 = vld [vmem:[%s55] sm:$0xf]
    %v10140 = vld [vmem:[%s55 + $0x4] sm:$0xf]
    %v10141 = vld [vmem:[%s55 + $0x8] sm:$0xf]
    %v10142 = vld [vmem:[%s55 + $0xc] sm:$0xf]
    %v10143 = vld [vmem:[%s55 + $0x10] sm:$0xf]
    %v10144 = vld [vmem:[%s55 + $0x14] sm:$0xf]
    %v10145 = vld [vmem:[%s55 + $0x18] sm:$0xf]
    %v10146 = vld [vmem:[%s55 + $0x1c] sm:$0xf]
    %v10147 = vld [vmem:[%s57] sm:$0x1]
    %v10149 = vperm.slane %v10147, 0
    %v10159 = vunpack.c.l.b16 %v10139
    %v10160 = vunpack.c.l.b16 %v10140
    %v10161 = vunpack.c.l.b16 %v10141
    %v10162 = vunpack.c.l.b16 %v10142
    %v10163 = vunpack.c.l.b16 %v10143
    %v10164 = vunpack.c.l.b16 %v10144
    %v10165 = vunpack.c.l.b16 %v10145
    %v10166 = vunpack.c.l.b16 %v10146
    %v10167 = vpack.c.b16 %v10160, %v10159
    %v10168 = vpack.c.b16 %v10162, %v10161
    %v10169 = vpack.c.b16 %v10164, %v10163
    %v10170 = vpack.c.b16 %v10166, %v10165
    %v10176 = vsel %vm7884, %v10138, 0
    %10178 = vmatpush.bf16.msra.mxu0 0
    %10179 = vmatpush.bf16.msra.mxu0 0
    %10180 = vmatpush.bf16.msra.mxu0 0
    %10181 = vmatpush.bf16.msra.mxu0 0
    %10182 = vmatpush.bf16.msra.mxu0 %v10170
    %10183 = vmatpush.bf16.msra.mxu0 %v10169
    %10184 = vmatpush.bf16.msra.mxu0 %v10168
    %10185 = vmatpush.bf16.msra.mxu0 %v10167
    %10186 = vmatmul.bf16.gmra.mxu0 %v10176
    %v10187 = vpop.f32.mrf.mxu0
    %v10188 = vadd.f32 %v10149, %v10187
    %v10189 = vpop.f32.mrf.mxu0
    %10190 = vdwg.mxu0
    %vm10191 = vcmask 9216
    %10192 = vst.msk [vmem:[#allocation5] sm:$0x3] %vm10191, %v10188
    // Predicated region
    $region118: #{cnns_vit_forward.1} parent=1 // pred_check
      _
    $region119: #{cnns_vit_forward.1} parent=1 // pred_check_branch
      %10194 = sbr.rel (0) target = $region121
    $region120: #{cnns_vit_forward.1} parent=1 // pred_region
      %10196 = vsyncadd [#allocation6], 0
      %s10198 = sshll.u32 [#allocation5], 4
      %s10199 = int_to_ptr.vmem [resolvable:$true] %s10198
      %s10200 = sshll.u32 %s59, 4
      %s10201 = int_to_ptr.hbm [resolvable:$true] %s10200
      %10203 = dma.vmem_to_hbm [thread:$0]  %s10199, 32, %s10201, [#allocation6]
    $region121: #{cnns_vit_forward.1} parent=1 // pred_fallthru
      _
    // Predicated region
    $region122: #{cnns_vit_forward.1} parent=1 // pred_check
      _
    $region123: #{cnns_vit_forward.1} parent=1 // pred_check_branch
      %10205 = sbr.rel (0) target = $region125
    $region124: #{cnns_vit_forward.1} parent=1 // pred_region
      %10207 = dma.done [#allocation6], 32
    $region125: #{cnns_vit_forward.1} parent=1 // pred_fallthru
      _
    %10208 = vsyncpa [#allocation6], 1

</llo_original>
